<compile_context>
chip_gen: v6e
topology: v6e:2x2x1
jax: 0.10.0
libtpu: 0.0.40
codegen_flags: <defaults>
</compile_context>

<pallas_src>
import math
import functools

import jax
import jax.numpy as jnp
from jax import lax
from jax.experimental import pallas as pl
from jax.experimental.pallas import tpu as pltpu


# ----------------------------------------------------------------------------- kernel
def _layer_norm(x, gamma, beta, eps=1e-5):
    # torch.nn.LayerNorm: biased variance over last dim, eps=1e-5 (f32 math)
    mean = jnp.mean(x, axis=-1, keepdims=True)
    var = jnp.mean((x - mean) ** 2, axis=-1, keepdims=True)
    return (x - mean) * lax.rsqrt(var + eps) * gamma + beta


def transformer_stack_kernel(
    x_ref,                        # (B*S, E)   patch sequence, batch collapsed into M
    mask_ref,                     # (B*S, B*S) block-diagonal additive mask (0 / -1e30)
    wqkv_ref, bqkv_ref,           # (L, E, P), (L, 1, P)   P = 128, [Wq*s | Wk | Wv | 0-pad]
    wo_ref, bo_ref,               # (L, E, E), (L, 1, E)
    g1_ref, be1_ref,              # (L, 1, E), (L, 1, E)
    w1_ref, bb1_ref,              # (L, E, P), (L, 1, P)   FF hidden zero-padded to P
    w2_ref, bb2_ref,              # (L, P, E), (L, 1, E)   zero rows beyond F
    g2_ref, be2_ref,              # (L, 1, E), (L, 1, E)
    o_ref,                        # (B*S, E)
    heads_ref,                    # VMEM scratch (B*S, E): lane-concat of head outputs
    *, num_heads, num_layers,
):
    x = x_ref[...]                                    # (B*S, E) f32
    BS, E = x.shape
    hd = E // num_heads

    for l in range(num_layers):                       # static unroll; all weights resident
        # ---- fused QKV projection: one lane-dense matmul -----------------------------
        qkv = jnp.dot(x, wqkv_ref[l], preferred_element_type=jnp.float32) + bqkv_ref[l]

        # ---- per-head block-masked attention over all B*S rows -----------------------
        for h in range(num_heads):                    # static, small head count
            q = qkv[:, h * hd:(h + 1) * hd]                       # (BS, hd) scale folded in
            k = qkv[:, E + h * hd:E + (h + 1) * hd]               # (BS, hd)
            v = qkv[:, 2 * E + h * hd:2 * E + (h + 1) * hd]       # (BS, hd)
            s = lax.dot_general(q, k, (((1,), (1,)), ((), ())),
                                preferred_element_type=jnp.float32)   # (BS, BS) dense
            s = s + mask_ref[...]                                  # block-diag mask
            s = s - jnp.max(s, axis=-1, keepdims=True)
            p = jnp.exp(s)
            p = p / jnp.sum(p, axis=-1, keepdims=True)             # exact softmax
            heads_ref[:, h * hd:(h + 1) * hd] = jnp.dot(
                p, v, preferred_element_type=jnp.float32)          # store -> frees vregs

        # ---- single output projection over the lane-concatenated heads ---------------
        attn = jnp.dot(heads_ref[...], wo_ref[l],
                       preferred_element_type=jnp.float32) + bo_ref[l]

        # ---- residual + LayerNorm 1 ----
        x = _layer_norm(x + attn, g1_ref[l], be1_ref[l])

        # ---- feed-forward (hidden dim zero-padded to 128 lanes): Linear->ReLU->Linear -
        h1 = jnp.dot(x, w1_ref[l], preferred_element_type=jnp.float32) + bb1_ref[l]
        h1 = jnp.maximum(h1, 0.0)
        ff = jnp.dot(h1, w2_ref[l], preferred_element_type=jnp.float32) + bb2_ref[l]

        # ---- residual + LayerNorm 2 ----
        x = _layer_norm(x + ff, g2_ref[l], be2_ref[l])

    o_ref[...] = x


def transformer_stack(x_seq, stacked_params, *, num_heads):
    """x_seq: (B, S, E) fp32; stacked_params: tuple of 12 arrays, each with leading L dim."""
    B, S, E = x_seq.shape
    L = stacked_params[0].shape[0]
    BS = B * S
    x_flat = x_seq.reshape(BS, E)

    # Block-diagonal additive attention mask (batch boundaries), computed once on the host
    # and passed in (hoisted out of the head/layer loops).  Large finite negative, not -inf.
    seg = jnp.arange(BS, dtype=jnp.int32) // S
    mask = jnp.where(seg[:, None] == seg[None, :], 0.0, -1e30).astype(jnp.float32)

    kernel = functools.partial(transformer_stack_kernel,
                               num_heads=num_heads, num_layers=L)
    # Single kernel invocation, no grid: everything (activation slab + stacked weights +
    # mask, ~0.2 MB total) is trivially VMEM-resident on v5e/v6e/v7x.
    y_flat = pl.pallas_call(
        kernel,
        out_shape=jax.ShapeDtypeStruct((BS, E), jnp.float32),
        scratch_shapes=[pltpu.VMEM((BS, E), jnp.float32)],
    )(x_flat, mask, *stacked_params)
    return y_flat.reshape(B, S, E)


# ----------------------------------------------------------------------------- params
def init_torch_layer_params(key, embed_dim):
    """Random parameters in PyTorch layout (in_proj (3E,E) rows q|k|v, Linear (out,in))."""
    E = embed_dim
    F = 3 * E
    ks = jax.random.split(key, 6)
    s = 0.05
    return dict(
        in_proj_w=s * jax.random.normal(ks[0], (3 * E, E), jnp.float32),
        in_proj_b=s * jax.random.normal(ks[1], (3 * E,), jnp.float32),
        out_proj_w=s * jax.random.normal(ks[2], (E, E), jnp.float32),
        out_proj_b=jnp.zeros((E,), jnp.float32),
        ln1_g=jnp.ones((E,), jnp.float32), ln1_b=jnp.zeros((E,), jnp.float32),
        ff_w1=s * jax.random.normal(ks[3], (F, E), jnp.float32),
        ff_b1=s * jax.random.normal(ks[4], (F,), jnp.float32),
        ff_w2=s * jax.random.normal(ks[5], (E, F), jnp.float32),
        ff_b2=jnp.zeros((E,), jnp.float32),
        ln2_g=jnp.ones((E,), jnp.float32), ln2_b=jnp.zeros((E,), jnp.float32),
    )


def pack_layer_params(p, num_heads, lane_pad=128):
    """PyTorch layout -> kernel layout.

    x @ W form, fused+padded QKV (scale folded into Q), padded FF hidden dim.
    """
    E = p["ln1_g"].shape[0]
    F = p["ff_b1"].shape[0]
    hd = E // num_heads
    scale = 1.0 / math.sqrt(hd)
    P = max(lane_pad, -(-3 * E // lane_pad) * lane_pad)   # padded lane-minor width
    assert F <= P, "FF hidden dim exceeds padded lane width"

    def pad_cols(a, width):
        return jnp.pad(a, ((0, 0), (0, width - a.shape[1])))

    def pad_rows(a, height):
        return jnp.pad(a, ((0, height - a.shape[0]), (0, 0)))

    Wq, Wk, Wv = (p["in_proj_w"][i * E:(i + 1) * E] for i in range(3))   # (E, E) out x in
    bq, bk, bv = (p["in_proj_b"][i * E:(i + 1) * E] for i in range(3))

    # Fused QKV in x @ W form: columns [ Wq^T * scale | Wk^T | Wv^T | 0-pad ]  -> (E, P)
    wqkv = pad_cols(jnp.concatenate([Wq.T * scale, Wk.T, Wv.T], axis=1), P)
    bqkv = pad_cols(jnp.concatenate([bq * scale, bk, bv]).reshape(1, 3 * E), P)

    return (
        wqkv, bqkv,                                            # (E, P), (1, P)
        p["out_proj_w"].T,                                     # wo (E, E)
        p["out_proj_b"].reshape(1, E),                         # bo (1, E)
        p["ln1_g"].reshape(1, E), p["ln1_b"].reshape(1, E),
        pad_cols(p["ff_w1"].T, P),                             # w1 (E, P) zero-padded cols
        pad_cols(p["ff_b1"].reshape(1, F), P),                 # bb1 (1, P)
        pad_rows(p["ff_w2"].T, P),                             # w2 (P, E) zero-padded rows
        p["ff_b2"].reshape(1, E),                              # bb2 (1, E)
        p["ln2_g"].reshape(1, E), p["ln2_b"].reshape(1, E),
    )


def stack_layers(packed_layers):
    """List of per-layer tuples -> tuple of arrays with a leading L axis."""
    return tuple(jnp.stack([layer[i] for layer in packed_layers], axis=0)
                 for i in range(len(packed_layers[0])))


# ----------------------------------------------------------------------------- glue
def sinusoidal_encoding(num_positions, embedding_dim):
    position = jnp.arange(num_positions, dtype=jnp.float32)[:, None]
    div_term = jnp.exp(
        jnp.arange(0, embedding_dim, 2, dtype=jnp.float32)
        * (-math.log(10000.0) / embedding_dim)
    )
    pe = jnp.zeros((num_positions, embedding_dim), jnp.float32)
    pe = pe.at[:, 0::2].set(jnp.sin(position * div_term))
    pe = pe.at[:, 1::2].set(jnp.cos(position * div_term))
    return pe


def image_sequentialization(x, patch_size):
    """x: (B, C, D, H, W) -> (B, num_patches, C*pD*pH*pW), matching torch unfold order."""
    B, C, D, H, W = x.shape
    pD, pH, pW = patch_size
    nD, nH, nW = D // pD, H // pH, W // pW
    N = nD * nH * nW
    patches = x.reshape(B, C, nD, pD, nH, pH, nW, pW)
    patches = patches.transpose(0, 2, 4, 6, 1, 3, 5, 7)          # (B,nD,nH,nW,C,pD,pH,pW)
    patches = patches.reshape(B, N, C * pD * pH * pW)
    return patches + sinusoidal_encoding(N, C * pD * pH * pW)[None]


def reshape_to_original(x, original_shape, patch_size):
    B, C, D, H, W = original_shape
    pD, pH, pW = patch_size
    nD, nH, nW = D // pD, H // pH, W // pW
    x = x.reshape(B, nD, nH, nW, C, pD, pH, pW)
    x = x.transpose(0, 4, 1, 5, 2, 6, 3, 7)
    return x.reshape(B, C, D, H, W)


def transformer_forward(x, stacked_params, patch_size, num_heads):
    ps = (patch_size, patch_size, patch_size)
    seq = image_sequentialization(x, ps)                               # (B, N, E)
    seq = transformer_stack(seq, stacked_params, num_heads=num_heads)  # fused N-layer stack
    return reshape_to_original(seq, x.shape, ps)                       # (B, C, D, H, W)


# ----------------------------------------------------------------------------- main
if __name__ == "__main__":
    patch_size = 2
    in_channels = 4
    num_heads = 4
    num_layers = 2

    B, C, D, H, W = 2, in_channels, 8, 8, 8
    embed_dim = (patch_size ** 3) * in_channels        # 32
    # num_patches S = (8/2)^3 = 64, so the kernel works on a (B*S, E) = (128, 32) slab
    # with (128, 128) block-masked attention scores and 128-lane-padded QKV/FF slabs.

    key = jax.random.PRNGKey(0)
    kx, kp = jax.random.split(key)
    x = jax.random.normal(kx, (B, C, D, H, W), jnp.float32)

    layer_keys = jax.random.split(kp, num_layers)
    packed = [pack_layer_params(init_torch_layer_params(k, embed_dim), num_heads)
              for k in layer_keys]
    stacked_params = stack_layers(packed)

    out = transformer_forward(x, stacked_params, patch_size, num_heads)
    out = jax.block_until_ready(out)
    assert out.shape == (B, C, D, H, W) and out.dtype == jnp.float32
    print("KERNEL_OK")
</pallas_src>

<mosaic_0001>
module attributes {stable_mosaic.version = 11 : i64} {
  func.func @transformer_stack_kernel(%arg0: memref<128x32xf32, #tpu.memory_space<vmem>>, %arg1: memref<128x128xf32, #tpu.memory_space<vmem>>, %arg2: memref<2x32x128xf32, #tpu.memory_space<vmem>>, %arg3: memref<2x1x128xf32, #tpu.memory_space<vmem>>, %arg4: memref<2x32x32xf32, #tpu.memory_space<vmem>>, %arg5: memref<2x1x32xf32, #tpu.memory_space<vmem>>, %arg6: memref<2x1x32xf32, #tpu.memory_space<vmem>>, %arg7: memref<2x1x32xf32, #tpu.memory_space<vmem>>, %arg8: memref<2x32x128xf32, #tpu.memory_space<vmem>>, %arg9: memref<2x1x128xf32, #tpu.memory_space<vmem>>, %arg10: memref<2x128x32xf32, #tpu.memory_space<vmem>>, %arg11: memref<2x1x32xf32, #tpu.memory_space<vmem>>, %arg12: memref<2x1x32xf32, #tpu.memory_space<vmem>>, %arg13: memref<2x1x32xf32, #tpu.memory_space<vmem>>, %arg14: memref<128x32xf32, #tpu.memory_space<vmem>>, %arg15: memref<128x32xf32, #tpu.memory_space<vmem>>) attributes {dimension_semantics = [], scalar_prefetch = 0 : i64, scratch_operands = 1 : i64, tpu.core_type = #tpu.core_type<tc>} {
    %c0 = arith.constant 0 : index
    %c0_0 = arith.constant 0 : index
    %0 = vector.load %arg0[%c0, %c0_0] : memref<128x32xf32, #tpu.memory_space<vmem>>, vector<128x32xf32>
    %c0_1 = arith.constant 0 : index
    %c0_2 = arith.constant 0 : index
    %c0_3 = arith.constant 0 : index
    %1 = vector.load %arg2[%c0_1, %c0_2, %c0_3] : memref<2x32x128xf32, #tpu.memory_space<vmem>>, vector<1x32x128xf32>
    %2 = vector.shape_cast %1 : vector<1x32x128xf32> to vector<32x128xf32>
    %cst = arith.constant dense<0.000000e+00> : vector<128x128xf32>
    %3 = tpu.matmul %0, %2, %cst {dimension_numbers = #tpu.dot_dimension_numbers<[1], [0], [0], [1], [0, 0, 1, 1], [], []>} : vector<128x32xf32>, vector<32x128xf32>, vector<128x128xf32> -> vector<128x128xf32>
    %c0_4 = arith.constant 0 : index
    %c0_5 = arith.constant 0 : index
    %c0_6 = arith.constant 0 : index
    %4 = vector.load %arg3[%c0_4, %c0_5, %c0_6] : memref<2x1x128xf32, #tpu.memory_space<vmem>>, vector<1x1x128xf32>
    %5 = vector.shape_cast %4 : vector<1x1x128xf32> to vector<1x128xf32>
    %6 = vector.broadcast %5 : vector<1x128xf32> to vector<128x128xf32>
    %7 = arith.addf %3, %6 : vector<128x128xf32>
    %8 = vector.extract_strided_slice %7 {offsets = [0, 0], sizes = [128, 8], strides = [1, 1]} : vector<128x128xf32> to vector<128x8xf32>
    %9 = vector.extract_strided_slice %7 {offsets = [0, 32], sizes = [128, 8], strides = [1, 1]} : vector<128x128xf32> to vector<128x8xf32>
    %10 = vector.extract_strided_slice %7 {offsets = [0, 64], sizes = [128, 8], strides = [1, 1]} : vector<128x128xf32> to vector<128x8xf32>
    %cst_7 = arith.constant dense<0.000000e+00> : vector<128x128xf32>
    %11 = tpu.matmul %8, %9, %cst_7 {dimension_numbers = #tpu.dot_dimension_numbers<[1], [1], [0], [0], [0, 0, 1, 0], [], []>} : vector<128x8xf32>, vector<128x8xf32>, vector<128x128xf32> -> vector<128x128xf32>
    %c0_8 = arith.constant 0 : index
    %c0_9 = arith.constant 0 : index
    %12 = vector.load %arg1[%c0_8, %c0_9] : memref<128x128xf32, #tpu.memory_space<vmem>>, vector<128x128xf32>
    %13 = arith.addf %11, %12 : vector<128x128xf32>
    %cst_10 = arith.constant dense<0xFF800000> : vector<128xf32>
    %14 = vector.multi_reduction <maximumf>, %13, %cst_10 [1] : vector<128x128xf32> to vector<128xf32>
    %15 = vector.shape_cast %14 : vector<128xf32> to vector<128x1xf32>
    %16 = vector.broadcast %15 : vector<128x1xf32> to vector<128x128xf32>
    %17 = arith.subf %13, %16 : vector<128x128xf32>
    %18 = math.exp %17 : vector<128x128xf32>
    %cst_11 = arith.constant dense<0.000000e+00> : vector<128xf32>
    %19 = vector.multi_reduction <add>, %18, %cst_11 [1] : vector<128x128xf32> to vector<128xf32>
    %20 = vector.shape_cast %19 : vector<128xf32> to vector<128x1xf32>
    %21 = vector.broadcast %20 : vector<128x1xf32> to vector<128x128xf32>
    %22 = arith.divf %18, %21 : vector<128x128xf32>
    %cst_12 = arith.constant dense<0.000000e+00> : vector<128x8xf32>
    %23 = tpu.matmul %22, %10, %cst_12 {dimension_numbers = #tpu.dot_dimension_numbers<[1], [0], [0], [1], [0, 0, 1, 1], [], []>} : vector<128x128xf32>, vector<128x8xf32>, vector<128x8xf32> -> vector<128x8xf32>
    %c0_13 = arith.constant 0 : index
    %c0_14 = arith.constant 0 : index
    %24 = vector.load %arg15[%c0_13, %c0_14] : memref<128x32xf32, #tpu.memory_space<vmem>>, vector<128x8xf32>
    tpu.vector_store %arg15[%c0_13, %c0_14], %23 {strides = array<i32>} : memref<128x32xf32, #tpu.memory_space<vmem>>, vector<128x8xf32>,
    %25 = vector.extract_strided_slice %7 {offsets = [0, 8], sizes = [128, 8], strides = [1, 1]} : vector<128x128xf32> to vector<128x8xf32>
    %26 = vector.extract_strided_slice %7 {offsets = [0, 40], sizes = [128, 8], strides = [1, 1]} : vector<128x128xf32> to vector<128x8xf32>
    %27 = vector.extract_strided_slice %7 {offsets = [0, 72], sizes = [128, 8], strides = [1, 1]} : vector<128x128xf32> to vector<128x8xf32>
    %cst_15 = arith.constant dense<0.000000e+00> : vector<128x128xf32>
    %28 = tpu.matmul %25, %26, %cst_15 {dimension_numbers = #tpu.dot_dimension_numbers<[1], [1], [0], [0], [0, 0, 1, 0], [], []>} : vector<128x8xf32>, vector<128x8xf32>, vector<128x128xf32> -> vector<128x128xf32>
    %c0_16 = arith.constant 0 : index
    %c0_17 = arith.constant 0 : index
    %29 = vector.load %arg1[%c0_16, %c0_17] : memref<128x128xf32, #tpu.memory_space<vmem>>, vector<128x128xf32>
    %30 = arith.addf %28, %29 : vector<128x128xf32>
    %cst_18 = arith.constant dense<0xFF800000> : vector<128xf32>
    %31 = vector.multi_reduction <maximumf>, %30, %cst_18 [1] : vector<128x128xf32> to vector<128xf32>
    %32 = vector.shape_cast %31 : vector<128xf32> to vector<128x1xf32>
    %33 = vector.broadcast %32 : vector<128x1xf32> to vector<128x128xf32>
    %34 = arith.subf %30, %33 : vector<128x128xf32>
    %35 = math.exp %34 : vector<128x128xf32>
    %cst_19 = arith.constant dense<0.000000e+00> : vector<128xf32>
    %36 = vector.multi_reduction <add>, %35, %cst_19 [1] : vector<128x128xf32> to vector<128xf32>
    %37 = vector.shape_cast %36 : vector<128xf32> to vector<128x1xf32>
    %38 = vector.broadcast %37 : vector<128x1xf32> to vector<128x128xf32>
    %39 = arith.divf %35, %38 : vector<128x128xf32>
    %cst_20 = arith.constant dense<0.000000e+00> : vector<128x8xf32>
    %40 = tpu.matmul %39, %27, %cst_20 {dimension_numbers = #tpu.dot_dimension_numbers<[1], [0], [0], [1], [0, 0, 1, 1], [], []>} : vector<128x128xf32>, vector<128x8xf32>, vector<128x8xf32> -> vector<128x8xf32>
    %c0_21 = arith.constant 0 : index
    %c8 = arith.constant 8 : index
    %41 = vector.load %arg15[%c0_21, %c8] : memref<128x32xf32, #tpu.memory_space<vmem>>, vector<128x8xf32>
    tpu.vector_store %arg15[%c0_21, %c8], %40 {strides = array<i32>} : memref<128x32xf32, #tpu.memory_space<vmem>>, vector<128x8xf32>,
    %42 = vector.extract_strided_slice %7 {offsets = [0, 16], sizes = [128, 8], strides = [1, 1]} : vector<128x128xf32> to vector<128x8xf32>
    %43 = vector.extract_strided_slice %7 {offsets = [0, 48], sizes = [128, 8], strides = [1, 1]} : vector<128x128xf32> to vector<128x8xf32>
    %44 = vector.extract_strided_slice %7 {offsets = [0, 80], sizes = [128, 8], strides = [1, 1]} : vector<128x128xf32> to vector<128x8xf32>
    %cst_22 = arith.constant dense<0.000000e+00> : vector<128x128xf32>
    %45 = tpu.matmul %42, %43, %cst_22 {dimension_numbers = #tpu.dot_dimension_numbers<[1], [1], [0], [0], [0, 0, 1, 0], [], []>} : vector<128x8xf32>, vector<128x8xf32>, vector<128x128xf32> -> vector<128x128xf32>
    %c0_23 = arith.constant 0 : index
    %c0_24 = arith.constant 0 : index
    %46 = vector.load %arg1[%c0_23, %c0_24] : memref<128x128xf32, #tpu.memory_space<vmem>>, vector<128x128xf32>
    %47 = arith.addf %45, %46 : vector<128x128xf32>
    %cst_25 = arith.constant dense<0xFF800000> : vector<128xf32>
    %48 = vector.multi_reduction <maximumf>, %47, %cst_25 [1] : vector<128x128xf32> to vector<128xf32>
    %49 = vector.shape_cast %48 : vector<128xf32> to vector<128x1xf32>
    %50 = vector.broadcast %49 : vector<128x1xf32> to vector<128x128xf32>
    %51 = arith.subf %47, %50 : vector<128x128xf32>
    %52 = math.exp %51 : vector<128x128xf32>
    %cst_26 = arith.constant dense<0.000000e+00> : vector<128xf32>
    %53 = vector.multi_reduction <add>, %52, %cst_26 [1] : vector<128x128xf32> to vector<128xf32>
    %54 = vector.shape_cast %53 : vector<128xf32> to vector<128x1xf32>
    %55 = vector.broadcast %54 : vector<128x1xf32> to vector<128x128xf32>
    %56 = arith.divf %52, %55 : vector<128x128xf32>
    %cst_27 = arith.constant dense<0.000000e+00> : vector<128x8xf32>
    %57 = tpu.matmul %56, %44, %cst_27 {dimension_numbers = #tpu.dot_dimension_numbers<[1], [0], [0], [1], [0, 0, 1, 1], [], []>} : vector<128x128xf32>, vector<128x8xf32>, vector<128x8xf32> -> vector<128x8xf32>
    %c0_28 = arith.constant 0 : index
    %c16 = arith.constant 16 : index
    %58 = vector.load %arg15[%c0_28, %c16] : memref<128x32xf32, #tpu.memory_space<vmem>>, vector<128x8xf32>
    tpu.vector_store %arg15[%c0_28, %c16], %57 {strides = array<i32>} : memref<128x32xf32, #tpu.memory_space<vmem>>, vector<128x8xf32>,
    %59 = vector.extract_strided_slice %7 {offsets = [0, 24], sizes = [128, 8], strides = [1, 1]} : vector<128x128xf32> to vector<128x8xf32>
    %60 = vector.extract_strided_slice %7 {offsets = [0, 56], sizes = [128, 8], strides = [1, 1]} : vector<128x128xf32> to vector<128x8xf32>
    %61 = vector.extract_strided_slice %7 {offsets = [0, 88], sizes = [128, 8], strides = [1, 1]} : vector<128x128xf32> to vector<128x8xf32>
    %cst_29 = arith.constant dense<0.000000e+00> : vector<128x128xf32>
    %62 = tpu.matmul %59, %60, %cst_29 {dimension_numbers = #tpu.dot_dimension_numbers<[1], [1], [0], [0], [0, 0, 1, 0], [], []>} : vector<128x8xf32>, vector<128x8xf32>, vector<128x128xf32> -> vector<128x128xf32>
    %c0_30 = arith.constant 0 : index
    %c0_31 = arith.constant 0 : index
    %63 = vector.load %arg1[%c0_30, %c0_31] : memref<128x128xf32, #tpu.memory_space<vmem>>, vector<128x128xf32>
    %64 = arith.addf %62, %63 : vector<128x128xf32>
    %cst_32 = arith.constant dense<0xFF800000> : vector<128xf32>
    %65 = vector.multi_reduction <maximumf>, %64, %cst_32 [1] : vector<128x128xf32> to vector<128xf32>
    %66 = vector.shape_cast %65 : vector<128xf32> to vector<128x1xf32>
    %67 = vector.broadcast %66 : vector<128x1xf32> to vector<128x128xf32>
    %68 = arith.subf %64, %67 : vector<128x128xf32>
    %69 = math.exp %68 : vector<128x128xf32>
    %cst_33 = arith.constant dense<0.000000e+00> : vector<128xf32>
    %70 = vector.multi_reduction <add>, %69, %cst_33 [1] : vector<128x128xf32> to vector<128xf32>
    %71 = vector.shape_cast %70 : vector<128xf32> to vector<128x1xf32>
    %72 = vector.broadcast %71 : vector<128x1xf32> to vector<128x128xf32>
    %73 = arith.divf %69, %72 : vector<128x128xf32>
    %cst_34 = arith.constant dense<0.000000e+00> : vector<128x8xf32>
    %74 = tpu.matmul %73, %61, %cst_34 {dimension_numbers = #tpu.dot_dimension_numbers<[1], [0], [0], [1], [0, 0, 1, 1], [], []>} : vector<128x128xf32>, vector<128x8xf32>, vector<128x8xf32> -> vector<128x8xf32>
    %c0_35 = arith.constant 0 : index
    %c24 = arith.constant 24 : index
    %75 = vector.load %arg15[%c0_35, %c24] : memref<128x32xf32, #tpu.memory_space<vmem>>, vector<128x8xf32>
    tpu.vector_store %arg15[%c0_35, %c24], %74 {strides = array<i32>} : memref<128x32xf32, #tpu.memory_space<vmem>>, vector<128x8xf32>,
    %c0_36 = arith.constant 0 : index
    %c0_37 = arith.constant 0 : index
    %76 = vector.load %arg15[%c0_36, %c0_37] : memref<128x32xf32, #tpu.memory_space<vmem>>, vector<128x32xf32>
    %c0_38 = arith.constant 0 : index
    %c0_39 = arith.constant 0 : index
    %c0_40 = arith.constant 0 : index
    %77 = vector.load %arg4[%c0_38, %c0_39, %c0_40] : memref<2x32x32xf32, #tpu.memory_space<vmem>>, vector<1x32x32xf32>
    %78 = vector.shape_cast %77 : vector<1x32x32xf32> to vector<32x32xf32>
    %cst_41 = arith.constant dense<0.000000e+00> : vector<128x32xf32>
    %79 = tpu.matmul %76, %78, %cst_41 {dimension_numbers = #tpu.dot_dimension_numbers<[1], [0], [0], [1], [0, 0, 1, 1], [], []>} : vector<128x32xf32>, vector<32x32xf32>, vector<128x32xf32> -> vector<128x32xf32>
    %c0_42 = arith.constant 0 : index
    %c0_43 = arith.constant 0 : index
    %c0_44 = arith.constant 0 : index
    %80 = vector.load %arg5[%c0_42, %c0_43, %c0_44] : memref<2x1x32xf32, #tpu.memory_space<vmem>>, vector<1x1x32xf32>
    %81 = vector.shape_cast %80 : vector<1x1x32xf32> to vector<1x32xf32>
    %82 = vector.broadcast %81 : vector<1x32xf32> to vector<128x32xf32>
    %83 = arith.addf %79, %82 : vector<128x32xf32>
    %84 = arith.addf %0, %83 : vector<128x32xf32>
    %c0_45 = arith.constant 0 : index
    %c0_46 = arith.constant 0 : index
    %c0_47 = arith.constant 0 : index
    %85 = vector.load %arg6[%c0_45, %c0_46, %c0_47] : memref<2x1x32xf32, #tpu.memory_space<vmem>>, vector<1x1x32xf32>
    %86 = vector.shape_cast %85 : vector<1x1x32xf32> to vector<1x32xf32>
    %c0_48 = arith.constant 0 : index
    %c0_49 = arith.constant 0 : index
    %c0_50 = arith.constant 0 : index
    %87 = vector.load %arg7[%c0_48, %c0_49, %c0_50] : memref<2x1x32xf32, #tpu.memory_space<vmem>>, vector<1x1x32xf32>
    %88 = vector.shape_cast %87 : vector<1x1x32xf32> to vector<1x32xf32>
    %cst_51 = arith.constant dense<0.000000e+00> : vector<128xf32>
    %89 = vector.multi_reduction <add>, %84, %cst_51 [1] : vector<128x32xf32> to vector<128xf32>
    %90 = vector.shape_cast %89 : vector<128xf32> to vector<128x1xf32>
    %cst_52 = arith.constant 3.200000e+01 : f32
    %91 = vector.broadcast %cst_52 : f32 to vector<128x1xf32>
    %92 = arith.divf %90, %91 : vector<128x1xf32>
    %93 = vector.broadcast %92 : vector<128x1xf32> to vector<128x32xf32>
    %94 = arith.subf %84, %93 : vector<128x32xf32>
    %95 = arith.mulf %94, %94 : vector<128x32xf32>
    %cst_53 = arith.constant dense<0.000000e+00> : vector<128xf32>
    %96 = vector.multi_reduction <add>, %95, %cst_53 [1] : vector<128x32xf32> to vector<128xf32>
    %97 = vector.shape_cast %96 : vector<128xf32> to vector<128x1xf32>
    %cst_54 = arith.constant 3.200000e+01 : f32
    %98 = vector.broadcast %cst_54 : f32 to vector<128x1xf32>
    %99 = arith.divf %97, %98 : vector<128x1xf32>
    %100 = vector.broadcast %92 : vector<128x1xf32> to vector<128x32xf32>
    %101 = arith.subf %84, %100 : vector<128x32xf32>
    %cst_55 = arith.constant 9.99999974E-6 : f32
    %102 = vector.broadcast %cst_55 : f32 to vector<128x1xf32>
    %103 = arith.addf %99, %102 : vector<128x1xf32>
    %104 = math.rsqrt %103 : vector<128x1xf32>
    %105 = vector.broadcast %104 : vector<128x1xf32> to vector<128x32xf32>
    %106 = arith.mulf %101, %105 : vector<128x32xf32>
    %107 = vector.broadcast %86 : vector<1x32xf32> to vector<128x32xf32>
    %108 = arith.mulf %106, %107 : vector<128x32xf32>
    %109 = vector.broadcast %88 : vector<1x32xf32> to vector<128x32xf32>
    %110 = arith.addf %108, %109 : vector<128x32xf32>
    %c0_56 = arith.constant 0 : index
    %c0_57 = arith.constant 0 : index
    %c0_58 = arith.constant 0 : index
    %111 = vector.load %arg8[%c0_56, %c0_57, %c0_58] : memref<2x32x128xf32, #tpu.memory_space<vmem>>, vector<1x32x128xf32>
    %112 = vector.shape_cast %111 : vector<1x32x128xf32> to vector<32x128xf32>
    %cst_59 = arith.constant dense<0.000000e+00> : vector<128x128xf32>
    %113 = tpu.matmul %110, %112, %cst_59 {dimension_numbers = #tpu.dot_dimension_numbers<[1], [0], [0], [1], [0, 0, 1, 1], [], []>} : vector<128x32xf32>, vector<32x128xf32>, vector<128x128xf32> -> vector<128x128xf32>
    %c0_60 = arith.constant 0 : index
    %c0_61 = arith.constant 0 : index
    %c0_62 = arith.constant 0 : index
    %114 = vector.load %arg9[%c0_60, %c0_61, %c0_62] : memref<2x1x128xf32, #tpu.memory_space<vmem>>, vector<1x1x128xf32>
    %115 = vector.shape_cast %114 : vector<1x1x128xf32> to vector<1x128xf32>
    %116 = vector.broadcast %115 : vector<1x128xf32> to vector<128x128xf32>
    %117 = arith.addf %113, %116 : vector<128x128xf32>
    %cst_63 = arith.constant 0.000000e+00 : f32
    %118 = vector.broadcast %cst_63 : f32 to vector<128x128xf32>
    %119 = arith.maximumf %117, %118 : vector<128x128xf32>
    %c0_64 = arith.constant 0 : index
    %c0_65 = arith.constant 0 : index
    %c0_66 = arith.constant 0 : index
    %120 = vector.load %arg10[%c0_64, %c0_65, %c0_66] : memref<2x128x32xf32, #tpu.memory_space<vmem>>, vector<1x128x32xf32>
    %121 = vector.shape_cast %120 : vector<1x128x32xf32> to vector<128x32xf32>
    %cst_67 = arith.constant dense<0.000000e+00> : vector<128x32xf32>
    %122 = tpu.matmul %119, %121, %cst_67 {dimension_numbers = #tpu.dot_dimension_numbers<[1], [0], [0], [1], [0, 0, 1, 1], [], []>} : vector<128x128xf32>, vector<128x32xf32>, vector<128x32xf32> -> vector<128x32xf32>
    %c0_68 = arith.constant 0 : index
    %c0_69 = arith.constant 0 : index
    %c0_70 = arith.constant 0 : index
    %123 = vector.load %arg11[%c0_68, %c0_69, %c0_70] : memref<2x1x32xf32, #tpu.memory_space<vmem>>, vector<1x1x32xf32>
    %124 = vector.shape_cast %123 : vector<1x1x32xf32> to vector<1x32xf32>
    %125 = vector.broadcast %124 : vector<1x32xf32> to vector<128x32xf32>
    %126 = arith.addf %122, %125 : vector<128x32xf32>
    %127 = arith.addf %110, %126 : vector<128x32xf32>
    %c0_71 = arith.constant 0 : index
    %c0_72 = arith.constant 0 : index
    %c0_73 = arith.constant 0 : index
    %128 = vector.load %arg12[%c0_71, %c0_72, %c0_73] : memref<2x1x32xf32, #tpu.memory_space<vmem>>, vector<1x1x32xf32>
    %129 = vector.shape_cast %128 : vector<1x1x32xf32> to vector<1x32xf32>
    %c0_74 = arith.constant 0 : index
    %c0_75 = arith.constant 0 : index
    %c0_76 = arith.constant 0 : index
    %130 = vector.load %arg13[%c0_74, %c0_75, %c0_76] : memref<2x1x32xf32, #tpu.memory_space<vmem>>, vector<1x1x32xf32>
    %131 = vector.shape_cast %130 : vector<1x1x32xf32> to vector<1x32xf32>
    %cst_77 = arith.constant dense<0.000000e+00> : vector<128xf32>
    %132 = vector.multi_reduction <add>, %127, %cst_77 [1] : vector<128x32xf32> to vector<128xf32>
    %133 = vector.shape_cast %132 : vector<128xf32> to vector<128x1xf32>
    %cst_78 = arith.constant 3.200000e+01 : f32
    %134 = vector.broadcast %cst_78 : f32 to vector<128x1xf32>
    %135 = arith.divf %133, %134 : vector<128x1xf32>
    %136 = vector.broadcast %135 : vector<128x1xf32> to vector<128x32xf32>
    %137 = arith.subf %127, %136 : vector<128x32xf32>
    %138 = arith.mulf %137, %137 : vector<128x32xf32>
    %cst_79 = arith.constant dense<0.000000e+00> : vector<128xf32>
    %139 = vector.multi_reduction <add>, %138, %cst_79 [1] : vector<128x32xf32> to vector<128xf32>
    %140 = vector.shape_cast %139 : vector<128xf32> to vector<128x1xf32>
    %cst_80 = arith.constant 3.200000e+01 : f32
    %141 = vector.broadcast %cst_80 : f32 to vector<128x1xf32>
    %142 = arith.divf %140, %141 : vector<128x1xf32>
    %143 = vector.broadcast %135 : vector<128x1xf32> to vector<128x32xf32>
    %144 = arith.subf %127, %143 : vector<128x32xf32>
    %cst_81 = arith.constant 9.99999974E-6 : f32
    %145 = vector.broadcast %cst_81 : f32 to vector<128x1xf32>
    %146 = arith.addf %142, %145 : vector<128x1xf32>
    %147 = math.rsqrt %146 : vector<128x1xf32>
    %148 = vector.broadcast %147 : vector<128x1xf32> to vector<128x32xf32>
    %149 = arith.mulf %144, %148 : vector<128x32xf32>
    %150 = vector.broadcast %129 : vector<1x32xf32> to vector<128x32xf32>
    %151 = arith.mulf %149, %150 : vector<128x32xf32>
    %152 = vector.broadcast %131 : vector<1x32xf32> to vector<128x32xf32>
    %153 = arith.addf %151, %152 : vector<128x32xf32>
    %c1 = arith.constant 1 : index
    %c0_82 = arith.constant 0 : index
    %c0_83 = arith.constant 0 : index
    %154 = vector.load %arg2[%c1, %c0_82, %c0_83] : memref<2x32x128xf32, #tpu.memory_space<vmem>>, vector<1x32x128xf32>
    %155 = vector.shape_cast %154 : vector<1x32x128xf32> to vector<32x128xf32>
    %cst_84 = arith.constant dense<0.000000e+00> : vector<128x128xf32>
    %156 = tpu.matmul %153, %155, %cst_84 {dimension_numbers = #tpu.dot_dimension_numbers<[1], [0], [0], [1], [0, 0, 1, 1], [], []>} : vector<128x32xf32>, vector<32x128xf32>, vector<128x128xf32> -> vector<128x128xf32>
    %c1_85 = arith.constant 1 : index
    %c0_86 = arith.constant 0 : index
    %c0_87 = arith.constant 0 : index
    %157 = vector.load %arg3[%c1_85, %c0_86, %c0_87] : memref<2x1x128xf32, #tpu.memory_space<vmem>>, vector<1x1x128xf32>
    %158 = vector.shape_cast %157 : vector<1x1x128xf32> to vector<1x128xf32>
    %159 = vector.broadcast %158 : vector<1x128xf32> to vector<128x128xf32>
    %160 = arith.addf %156, %159 : vector<128x128xf32>
    %161 = vector.extract_strided_slice %160 {offsets = [0, 0], sizes = [128, 8], strides = [1, 1]} : vector<128x128xf32> to vector<128x8xf32>
    %162 = vector.extract_strided_slice %160 {offsets = [0, 32], sizes = [128, 8], strides = [1, 1]} : vector<128x128xf32> to vector<128x8xf32>
    %163 = vector.extract_strided_slice %160 {offsets = [0, 64], sizes = [128, 8], strides = [1, 1]} : vector<128x128xf32> to vector<128x8xf32>
    %cst_88 = arith.constant dense<0.000000e+00> : vector<128x128xf32>
    %164 = tpu.matmul %161, %162, %cst_88 {dimension_numbers = #tpu.dot_dimension_numbers<[1], [1], [0], [0], [0, 0, 1, 0], [], []>} : vector<128x8xf32>, vector<128x8xf32>, vector<128x128xf32> -> vector<128x128xf32>
    %c0_89 = arith.constant 0 : index
    %c0_90 = arith.constant 0 : index
    %165 = vector.load %arg1[%c0_89, %c0_90] : memref<128x128xf32, #tpu.memory_space<vmem>>, vector<128x128xf32>
    %166 = arith.addf %164, %165 : vector<128x128xf32>
    %cst_91 = arith.constant dense<0xFF800000> : vector<128xf32>
    %167 = vector.multi_reduction <maximumf>, %166, %cst_91 [1] : vector<128x128xf32> to vector<128xf32>
    %168 = vector.shape_cast %167 : vector<128xf32> to vector<128x1xf32>
    %169 = vector.broadcast %168 : vector<128x1xf32> to vector<128x128xf32>
    %170 = arith.subf %166, %169 : vector<128x128xf32>
    %171 = math.exp %170 : vector<128x128xf32>
    %cst_92 = arith.constant dense<0.000000e+00> : vector<128xf32>
    %172 = vector.multi_reduction <add>, %171, %cst_92 [1] : vector<128x128xf32> to vector<128xf32>
    %173 = vector.shape_cast %172 : vector<128xf32> to vector<128x1xf32>
    %174 = vector.broadcast %173 : vector<128x1xf32> to vector<128x128xf32>
    %175 = arith.divf %171, %174 : vector<128x128xf32>
    %cst_93 = arith.constant dense<0.000000e+00> : vector<128x8xf32>
    %176 = tpu.matmul %175, %163, %cst_93 {dimension_numbers = #tpu.dot_dimension_numbers<[1], [0], [0], [1], [0, 0, 1, 1], [], []>} : vector<128x128xf32>, vector<128x8xf32>, vector<128x8xf32> -> vector<128x8xf32>
    %c0_94 = arith.constant 0 : index
    %c0_95 = arith.constant 0 : index
    %177 = vector.load %arg15[%c0_94, %c0_95] : memref<128x32xf32, #tpu.memory_space<vmem>>, vector<128x8xf32>
    tpu.vector_store %arg15[%c0_94, %c0_95], %176 {strides = array<i32>} : memref<128x32xf32, #tpu.memory_space<vmem>>, vector<128x8xf32>,
    %178 = vector.extract_strided_slice %160 {offsets = [0, 8], sizes = [128, 8], strides = [1, 1]} : vector<128x128xf32> to vector<128x8xf32>
    %179 = vector.extract_strided_slice %160 {offsets = [0, 40], sizes = [128, 8], strides = [1, 1]} : vector<128x128xf32> to vector<128x8xf32>
    %180 = vector.extract_strided_slice %160 {offsets = [0, 72], sizes = [128, 8], strides = [1, 1]} : vector<128x128xf32> to vector<128x8xf32>
    %cst_96 = arith.constant dense<0.000000e+00> : vector<128x128xf32>
    %181 = tpu.matmul %178, %179, %cst_96 {dimension_numbers = #tpu.dot_dimension_numbers<[1], [1], [0], [0], [0, 0, 1, 0], [], []>} : vector<128x8xf32>, vector<128x8xf32>, vector<128x128xf32> -> vector<128x128xf32>
    %c0_97 = arith.constant 0 : index
    %c0_98 = arith.constant 0 : index
    %182 = vector.load %arg1[%c0_97, %c0_98] : memref<128x128xf32, #tpu.memory_space<vmem>>, vector<128x128xf32>
    %183 = arith.addf %181, %182 : vector<128x128xf32>
    %cst_99 = arith.constant dense<0xFF800000> : vector<128xf32>
    %184 = vector.multi_reduction <maximumf>, %183, %cst_99 [1] : vector<128x128xf32> to vector<128xf32>
    %185 = vector.shape_cast %184 : vector<128xf32> to vector<128x1xf32>
    %186 = vector.broadcast %185 : vector<128x1xf32> to vector<128x128xf32>
    %187 = arith.subf %183, %186 : vector<128x128xf32>
    %188 = math.exp %187 : vector<128x128xf32>
    %cst_100 = arith.constant dense<0.000000e+00> : vector<128xf32>
    %189 = vector.multi_reduction <add>, %188, %cst_100 [1] : vector<128x128xf32> to vector<128xf32>
    %190 = vector.shape_cast %189 : vector<128xf32> to vector<128x1xf32>
    %191 = vector.broadcast %190 : vector<128x1xf32> to vector<128x128xf32>
    %192 = arith.divf %188, %191 : vector<128x128xf32>
    %cst_101 = arith.constant dense<0.000000e+00> : vector<128x8xf32>
    %193 = tpu.matmul %192, %180, %cst_101 {dimension_numbers = #tpu.dot_dimension_numbers<[1], [0], [0], [1], [0, 0, 1, 1], [], []>} : vector<128x128xf32>, vector<128x8xf32>, vector<128x8xf32> -> vector<128x8xf32>
    %c0_102 = arith.constant 0 : index
    %c8_103 = arith.constant 8 : index
    %194 = vector.load %arg15[%c0_102, %c8_103] : memref<128x32xf32, #tpu.memory_space<vmem>>, vector<128x8xf32>
    tpu.vector_store %arg15[%c0_102, %c8_103], %193 {strides = array<i32>} : memref<128x32xf32, #tpu.memory_space<vmem>>, vector<128x8xf32>,
    %195 = vector.extract_strided_slice %160 {offsets = [0, 16], sizes = [128, 8], strides = [1, 1]} : vector<128x128xf32> to vector<128x8xf32>
    %196 = vector.extract_strided_slice %160 {offsets = [0, 48], sizes = [128, 8], strides = [1, 1]} : vector<128x128xf32> to vector<128x8xf32>
    %197 = vector.extract_strided_slice %160 {offsets = [0, 80], sizes = [128, 8], strides = [1, 1]} : vector<128x128xf32> to vector<128x8xf32>
    %cst_104 = arith.constant dense<0.000000e+00> : vector<128x128xf32>
    %198 = tpu.matmul %195, %196, %cst_104 {dimension_numbers = #tpu.dot_dimension_numbers<[1], [1], [0], [0], [0, 0, 1, 0], [], []>} : vector<128x8xf32>, vector<128x8xf32>, vector<128x128xf32> -> vector<128x128xf32>
    %c0_105 = arith.constant 0 : index
    %c0_106 = arith.constant 0 : index
    %199 = vector.load %arg1[%c0_105, %c0_106] : memref<128x128xf32, #tpu.memory_space<vmem>>, vector<128x128xf32>
    %200 = arith.addf %198, %199 : vector<128x128xf32>
    %cst_107 = arith.constant dense<0xFF800000> : vector<128xf32>
    %201 = vector.multi_reduction <maximumf>, %200, %cst_107 [1] : vector<128x128xf32> to vector<128xf32>
    %202 = vector.shape_cast %201 : vector<128xf32> to vector<128x1xf32>
    %203 = vector.broadcast %202 : vector<128x1xf32> to vector<128x128xf32>
    %204 = arith.subf %200, %203 : vector<128x128xf32>
    %205 = math.exp %204 : vector<128x128xf32>
    %cst_108 = arith.constant dense<0.000000e+00> : vector<128xf32>
    %206 = vector.multi_reduction <add>, %205, %cst_108 [1] : vector<128x128xf32> to vector<128xf32>
    %207 = vector.shape_cast %206 : vector<128xf32> to vector<128x1xf32>
    %208 = vector.broadcast %207 : vector<128x1xf32> to vector<128x128xf32>
    %209 = arith.divf %205, %208 : vector<128x128xf32>
    %cst_109 = arith.constant dense<0.000000e+00> : vector<128x8xf32>
    %210 = tpu.matmul %209, %197, %cst_109 {dimension_numbers = #tpu.dot_dimension_numbers<[1], [0], [0], [1], [0, 0, 1, 1], [], []>} : vector<128x128xf32>, vector<128x8xf32>, vector<128x8xf32> -> vector<128x8xf32>
    %c0_110 = arith.constant 0 : index
    %c16_111 = arith.constant 16 : index
    %211 = vector.load %arg15[%c0_110, %c16_111] : memref<128x32xf32, #tpu.memory_space<vmem>>, vector<128x8xf32>
    tpu.vector_store %arg15[%c0_110, %c16_111], %210 {strides = array<i32>} : memref<128x32xf32, #tpu.memory_space<vmem>>, vector<128x8xf32>,
    %212 = vector.extract_strided_slice %160 {offsets = [0, 24], sizes = [128, 8], strides = [1, 1]} : vector<128x128xf32> to vector<128x8xf32>
    %213 = vector.extract_strided_slice %160 {offsets = [0, 56], sizes = [128, 8], strides = [1, 1]} : vector<128x128xf32> to vector<128x8xf32>
    %214 = vector.extract_strided_slice %160 {offsets = [0, 88], sizes = [128, 8], strides = [1, 1]} : vector<128x128xf32> to vector<128x8xf32>
    %cst_112 = arith.constant dense<0.000000e+00> : vector<128x128xf32>
    %215 = tpu.matmul %212, %213, %cst_112 {dimension_numbers = #tpu.dot_dimension_numbers<[1], [1], [0], [0], [0, 0, 1, 0], [], []>} : vector<128x8xf32>, vector<128x8xf32>, vector<128x128xf32> -> vector<128x128xf32>
    %c0_113 = arith.constant 0 : index
    %c0_114 = arith.constant 0 : index
    %216 = vector.load %arg1[%c0_113, %c0_114] : memref<128x128xf32, #tpu.memory_space<vmem>>, vector<128x128xf32>
    %217 = arith.addf %215, %216 : vector<128x128xf32>
    %cst_115 = arith.constant dense<0xFF800000> : vector<128xf32>
    %218 = vector.multi_reduction <maximumf>, %217, %cst_115 [1] : vector<128x128xf32> to vector<128xf32>
    %219 = vector.shape_cast %218 : vector<128xf32> to vector<128x1xf32>
    %220 = vector.broadcast %219 : vector<128x1xf32> to vector<128x128xf32>
    %221 = arith.subf %217, %220 : vector<128x128xf32>
    %222 = math.exp %221 : vector<128x128xf32>
    %cst_116 = arith.constant dense<0.000000e+00> : vector<128xf32>
    %223 = vector.multi_reduction <add>, %222, %cst_116 [1] : vector<128x128xf32> to vector<128xf32>
    %224 = vector.shape_cast %223 : vector<128xf32> to vector<128x1xf32>
    %225 = vector.broadcast %224 : vector<128x1xf32> to vector<128x128xf32>
    %226 = arith.divf %222, %225 : vector<128x128xf32>
    %cst_117 = arith.constant dense<0.000000e+00> : vector<128x8xf32>
    %227 = tpu.matmul %226, %214, %cst_117 {dimension_numbers = #tpu.dot_dimension_numbers<[1], [0], [0], [1], [0, 0, 1, 1], [], []>} : vector<128x128xf32>, vector<128x8xf32>, vector<128x8xf32> -> vector<128x8xf32>
    %c0_118 = arith.constant 0 : index
    %c24_119 = arith.constant 24 : index
    %228 = vector.load %arg15[%c0_118, %c24_119] : memref<128x32xf32, #tpu.memory_space<vmem>>, vector<128x8xf32>
    tpu.vector_store %arg15[%c0_118, %c24_119], %227 {strides = array<i32>} : memref<128x32xf32, #tpu.memory_space<vmem>>, vector<128x8xf32>,
    %c0_120 = arith.constant 0 : index
    %c0_121 = arith.constant 0 : index
    %229 = vector.load %arg15[%c0_120, %c0_121] : memref<128x32xf32, #tpu.memory_space<vmem>>, vector<128x32xf32>
    %c1_122 = arith.constant 1 : index
    %c0_123 = arith.constant 0 : index
    %c0_124 = arith.constant 0 : index
    %230 = vector.load %arg4[%c1_122, %c0_123, %c0_124] : memref<2x32x32xf32, #tpu.memory_space<vmem>>, vector<1x32x32xf32>
    %231 = vector.shape_cast %230 : vector<1x32x32xf32> to vector<32x32xf32>
    %cst_125 = arith.constant dense<0.000000e+00> : vector<128x32xf32>
    %232 = tpu.matmul %229, %231, %cst_125 {dimension_numbers = #tpu.dot_dimension_numbers<[1], [0], [0], [1], [0, 0, 1, 1], [], []>} : vector<128x32xf32>, vector<32x32xf32>, vector<128x32xf32> -> vector<128x32xf32>
    %c1_126 = arith.constant 1 : index
    %c0_127 = arith.constant 0 : index
    %c0_128 = arith.constant 0 : index
    %233 = vector.load %arg5[%c1_126, %c0_127, %c0_128] : memref<2x1x32xf32, #tpu.memory_space<vmem>>, vector<1x1x32xf32>
    %234 = vector.shape_cast %233 : vector<1x1x32xf32> to vector<1x32xf32>
    %235 = vector.broadcast %234 : vector<1x32xf32> to vector<128x32xf32>
    %236 = arith.addf %232, %235 : vector<128x32xf32>
    %237 = arith.addf %153, %236 : vector<128x32xf32>
    %c1_129 = arith.constant 1 : index
    %c0_130 = arith.constant 0 : index
    %c0_131 = arith.constant 0 : index
    %238 = vector.load %arg6[%c1_129, %c0_130, %c0_131] : memref<2x1x32xf32, #tpu.memory_space<vmem>>, vector<1x1x32xf32>
    %239 = vector.shape_cast %238 : vector<1x1x32xf32> to vector<1x32xf32>
    %c1_132 = arith.constant 1 : index
    %c0_133 = arith.constant 0 : index
    %c0_134 = arith.constant 0 : index
    %240 = vector.load %arg7[%c1_132, %c0_133, %c0_134] : memref<2x1x32xf32, #tpu.memory_space<vmem>>, vector<1x1x32xf32>
    %241 = vector.shape_cast %240 : vector<1x1x32xf32> to vector<1x32xf32>
    %cst_135 = arith.constant dense<0.000000e+00> : vector<128xf32>
    %242 = vector.multi_reduction <add>, %237, %cst_135 [1] : vector<128x32xf32> to vector<128xf32>
    %243 = vector.shape_cast %242 : vector<128xf32> to vector<128x1xf32>
    %cst_136 = arith.constant 3.200000e+01 : f32
    %244 = vector.broadcast %cst_136 : f32 to vector<128x1xf32>
    %245 = arith.divf %243, %244 : vector<128x1xf32>
    %246 = vector.broadcast %245 : vector<128x1xf32> to vector<128x32xf32>
    %247 = arith.subf %237, %246 : vector<128x32xf32>
    %248 = arith.mulf %247, %247 : vector<128x32xf32>
    %cst_137 = arith.constant dense<0.000000e+00> : vector<128xf32>
    %249 = vector.multi_reduction <add>, %248, %cst_137 [1] : vector<128x32xf32> to vector<128xf32>
    %250 = vector.shape_cast %249 : vector<128xf32> to vector<128x1xf32>
    %cst_138 = arith.constant 3.200000e+01 : f32
    %251 = vector.broadcast %cst_138 : f32 to vector<128x1xf32>
    %252 = arith.divf %250, %251 : vector<128x1xf32>
    %253 = vector.broadcast %245 : vector<128x1xf32> to vector<128x32xf32>
    %254 = arith.subf %237, %253 : vector<128x32xf32>
    %cst_139 = arith.constant 9.99999974E-6 : f32
    %255 = vector.broadcast %cst_139 : f32 to vector<128x1xf32>
    %256 = arith.addf %252, %255 : vector<128x1xf32>
    %257 = math.rsqrt %256 : vector<128x1xf32>
    %258 = vector.broadcast %257 : vector<128x1xf32> to vector<128x32xf32>
    %259 = arith.mulf %254, %258 : vector<128x32xf32>
    %260 = vector.broadcast %239 : vector<1x32xf32> to vector<128x32xf32>
    %261 = arith.mulf %259, %260 : vector<128x32xf32>
    %262 = vector.broadcast %241 : vector<1x32xf32> to vector<128x32xf32>
    %263 = arith.addf %261, %262 : vector<128x32xf32>
    %c1_140 = arith.constant 1 : index
    %c0_141 = arith.constant 0 : index
    %c0_142 = arith.constant 0 : index
    %264 = vector.load %arg8[%c1_140, %c0_141, %c0_142] : memref<2x32x128xf32, #tpu.memory_space<vmem>>, vector<1x32x128xf32>
    %265 = vector.shape_cast %264 : vector<1x32x128xf32> to vector<32x128xf32>
    %cst_143 = arith.constant dense<0.000000e+00> : vector<128x128xf32>
    %266 = tpu.matmul %263, %265, %cst_143 {dimension_numbers = #tpu.dot_dimension_numbers<[1], [0], [0], [1], [0, 0, 1, 1], [], []>} : vector<128x32xf32>, vector<32x128xf32>, vector<128x128xf32> -> vector<128x128xf32>
    %c1_144 = arith.constant 1 : index
    %c0_145 = arith.constant 0 : index
    %c0_146 = arith.constant 0 : index
    %267 = vector.load %arg9[%c1_144, %c0_145, %c0_146] : memref<2x1x128xf32, #tpu.memory_space<vmem>>, vector<1x1x128xf32>
    %268 = vector.shape_cast %267 : vector<1x1x128xf32> to vector<1x128xf32>
    %269 = vector.broadcast %268 : vector<1x128xf32> to vector<128x128xf32>
    %270 = arith.addf %266, %269 : vector<128x128xf32>
    %cst_147 = arith.constant 0.000000e+00 : f32
    %271 = vector.broadcast %cst_147 : f32 to vector<128x128xf32>
    %272 = arith.maximumf %270, %271 : vector<128x128xf32>
    %c1_148 = arith.constant 1 : index
    %c0_149 = arith.constant 0 : index
    %c0_150 = arith.constant 0 : index
    %273 = vector.load %arg10[%c1_148, %c0_149, %c0_150] : memref<2x128x32xf32, #tpu.memory_space<vmem>>, vector<1x128x32xf32>
    %274 = vector.shape_cast %273 : vector<1x128x32xf32> to vector<128x32xf32>
    %cst_151 = arith.constant dense<0.000000e+00> : vector<128x32xf32>
    %275 = tpu.matmul %272, %274, %cst_151 {dimension_numbers = #tpu.dot_dimension_numbers<[1], [0], [0], [1], [0, 0, 1, 1], [], []>} : vector<128x128xf32>, vector<128x32xf32>, vector<128x32xf32> -> vector<128x32xf32>
    %c1_152 = arith.constant 1 : index
    %c0_153 = arith.constant 0 : index
    %c0_154 = arith.constant 0 : index
    %276 = vector.load %arg11[%c1_152, %c0_153, %c0_154] : memref<2x1x32xf32, #tpu.memory_space<vmem>>, vector<1x1x32xf32>
    %277 = vector.shape_cast %276 : vector<1x1x32xf32> to vector<1x32xf32>
    %278 = vector.broadcast %277 : vector<1x32xf32> to vector<128x32xf32>
    %279 = arith.addf %275, %278 : vector<128x32xf32>
    %280 = arith.addf %263, %279 : vector<128x32xf32>
    %c1_155 = arith.constant 1 : index
    %c0_156 = arith.constant 0 : index
    %c0_157 = arith.constant 0 : index
    %281 = vector.load %arg12[%c1_155, %c0_156, %c0_157] : memref<2x1x32xf32, #tpu.memory_space<vmem>>, vector<1x1x32xf32>
    %282 = vector.shape_cast %281 : vector<1x1x32xf32> to vector<1x32xf32>
    %c1_158 = arith.constant 1 : index
    %c0_159 = arith.constant 0 : index
    %c0_160 = arith.constant 0 : index
    %283 = vector.load %arg13[%c1_158, %c0_159, %c0_160] : memref<2x1x32xf32, #tpu.memory_space<vmem>>, vector<1x1x32xf32>
    %284 = vector.shape_cast %283 : vector<1x1x32xf32> to vector<1x32xf32>
    %cst_161 = arith.constant dense<0.000000e+00> : vector<128xf32>
    %285 = vector.multi_reduction <add>, %280, %cst_161 [1] : vector<128x32xf32> to vector<128xf32>
    %286 = vector.shape_cast %285 : vector<128xf32> to vector<128x1xf32>
    %cst_162 = arith.constant 3.200000e+01 : f32
    %287 = vector.broadcast %cst_162 : f32 to vector<128x1xf32>
    %288 = arith.divf %286, %287 : vector<128x1xf32>
    %289 = vector.broadcast %288 : vector<128x1xf32> to vector<128x32xf32>
    %290 = arith.subf %280, %289 : vector<128x32xf32>
    %291 = arith.mulf %290, %290 : vector<128x32xf32>
    %cst_163 = arith.constant dense<0.000000e+00> : vector<128xf32>
    %292 = vector.multi_reduction <add>, %291, %cst_163 [1] : vector<128x32xf32> to vector<128xf32>
    %293 = vector.shape_cast %292 : vector<128xf32> to vector<128x1xf32>
    %cst_164 = arith.constant 3.200000e+01 : f32
    %294 = vector.broadcast %cst_164 : f32 to vector<128x1xf32>
    %295 = arith.divf %293, %294 : vector<128x1xf32>
    %296 = vector.broadcast %288 : vector<128x1xf32> to vector<128x32xf32>
    %297 = arith.subf %280, %296 : vector<128x32xf32>
    %cst_165 = arith.constant 9.99999974E-6 : f32
    %298 = vector.broadcast %cst_165 : f32 to vector<128x1xf32>
    %299 = arith.addf %295, %298 : vector<128x1xf32>
    %300 = math.rsqrt %299 : vector<128x1xf32>
    %301 = vector.broadcast %300 : vector<128x1xf32> to vector<128x32xf32>
    %302 = arith.mulf %297, %301 : vector<128x32xf32>
    %303 = vector.broadcast %282 : vector<1x32xf32> to vector<128x32xf32>
    %304 = arith.mulf %302, %303 : vector<128x32xf32>
    %305 = vector.broadcast %284 : vector<1x32xf32> to vector<128x32xf32>
    %306 = arith.addf %304, %305 : vector<128x32xf32>
    %c0_166 = arith.constant 0 : index
    %c0_167 = arith.constant 0 : index
    %307 = vector.load %arg14[%c0_166, %c0_167] : memref<128x32xf32, #tpu.memory_space<vmem>>, vector<128x32xf32>
    tpu.vector_store %arg14[%c0_166, %c0_167], %306 {strides = array<i32>} : memref<128x32xf32, #tpu.memory_space<vmem>>, vector<128x32xf32>,
    return
  }
}

</mosaic_0001>

<llo_original>
// kernel: tpu_custom_call.1
$region0: #{tpu_custom_call.1}
  #allocation0 [shape = 'u32[]', space=smem, size = 0x4, offset = 0x4, fixed_abs, tag = 'smem constant byte address 0x4 - core index']
  #allocation1 [shape = 'u32[144,128]{1,0:T(1,128)}', space=vmem, size = 0x12000, scoped, tag = 'internal scratch']
  #allocation2 [shape = 'f32[128,32]{1,0:T(8,128)}', space=vmem, size = 0x10000, scoped, tag = 'scratch operand']
  %s0 = inlined_call_operand.vmem [shape: f32[128,32], index: 0, kind: input, shape index: {}]
  %s1 = inlined_call_operand.vmem [shape: f32[128,128], index: 1, kind: input, shape index: {}]
  %s2 = inlined_call_operand.vmem [shape: f32[2,32,128], index: 2, kind: input, shape index: {}]
  %s3 = inlined_call_operand.vmem [shape: f32[2,1,128], index: 3, kind: input, shape index: {}]
  %s4 = inlined_call_operand.vmem [shape: f32[2,32,32], index: 4, kind: input, shape index: {}]
  %s5 = inlined_call_operand.vmem [shape: f32[2,1,32], index: 5, kind: input, shape index: {}]
  %s6 = inlined_call_operand.vmem [shape: f32[2,1,32], index: 6, kind: input, shape index: {}]
  %s7 = inlined_call_operand.vmem [shape: f32[2,1,32], index: 7, kind: input, shape index: {}]
  %s8 = inlined_call_operand.vmem [shape: f32[2,32,128], index: 8, kind: input, shape index: {}]
  %s9 = inlined_call_operand.vmem [shape: f32[2,1,128], index: 9, kind: input, shape index: {}]
  %s10 = inlined_call_operand.vmem [shape: f32[2,128,32], index: 10, kind: input, shape index: {}]
  %s11 = inlined_call_operand.vmem [shape: f32[2,1,32], index: 11, kind: input, shape index: {}]
  %s12 = inlined_call_operand.vmem [shape: f32[2,1,32], index: 12, kind: input, shape index: {}]
  %s13 = inlined_call_operand.vmem [shape: f32[2,1,32], index: 13, kind: input, shape index: {}]
  %s14 = inlined_call_operand.vmem [shape: f32[128,32], index: 14, kind: output, shape index: {}]
  %s15 = sld [smem:[#allocation0]]
  $region66: #{tpu_custom_call.1} parent=0
    _
  %s17 = ssub.s32 1, %s15
  %s18 = scalar_select 0, %s17, %s15
  // Predicated region
  $region2: #{tpu_custom_call.1} parent=0 // pred_check
    _
  $region3: #{tpu_custom_call.1} parent=0 // pred_check_branch
    %20 = sbr.rel (0) target = $region5
  $region4: #{tpu_custom_call.1} parent=0 // pred_region
    _
  $region5: #{tpu_custom_call.1} parent=0 // pred_fallthru
    _
  // Predicated region
  $region6: #{tpu_custom_call.1} parent=0 // pred_check
    _
  $region7: #{tpu_custom_call.1} parent=0 // pred_check_branch
    %22 = sbr.rel (0) target = $region9
  $region8: #{tpu_custom_call.1} parent=0 // pred_region
    _
  $region9: #{tpu_custom_call.1} parent=0 // pred_fallthru
    _
  // Predicated region
  $region10: #{tpu_custom_call.1} parent=0 // pred_check
    _
  $region11: #{tpu_custom_call.1} parent=0 // pred_check_branch
    %24 = sbr.rel (0) target = $region13
  $region12: #{tpu_custom_call.1} parent=0 // pred_region
    _
  $region13: #{tpu_custom_call.1} parent=0 // pred_fallthru
    _
  // Predicated region
  $region14: #{tpu_custom_call.1} parent=0 // pred_check
    _
  $region15: #{tpu_custom_call.1} parent=0 // pred_check_branch
    %26 = sbr.rel (0) target = $region17
  $region16: #{tpu_custom_call.1} parent=0 // pred_region
    _
  $region17: #{tpu_custom_call.1} parent=0 // pred_fallthru
    _
  // Predicated region
  $region18: #{tpu_custom_call.1} parent=0 // pred_check
    _
  $region19: #{tpu_custom_call.1} parent=0 // pred_check_branch
    %28 = sbr.rel (0) target = $region21
  $region20: #{tpu_custom_call.1} parent=0 // pred_region
    _
  $region21: #{tpu_custom_call.1} parent=0 // pred_fallthru
    _
  // Predicated region
  $region22: #{tpu_custom_call.1} parent=0 // pred_check
    _
  $region23: #{tpu_custom_call.1} parent=0 // pred_check_branch
    %30 = sbr.rel (0) target = $region25
  $region24: #{tpu_custom_call.1} parent=0 // pred_region
    _
  $region25: #{tpu_custom_call.1} parent=0 // pred_fallthru
    _
  // Predicated region
  $region26: #{tpu_custom_call.1} parent=0 // pred_check
    _
  $region27: #{tpu_custom_call.1} parent=0 // pred_check_branch
    %32 = sbr.rel (0) target = $region29
  $region28: #{tpu_custom_call.1} parent=0 // pred_region
    _
  $region29: #{tpu_custom_call.1} parent=0 // pred_fallthru
    _
  // Predicated region
  $region30: #{tpu_custom_call.1} parent=0 // pred_check
    _
  $region31: #{tpu_custom_call.1} parent=0 // pred_check_branch
    %34 = sbr.rel (0) target = $region33
  $region32: #{tpu_custom_call.1} parent=0 // pred_region
    _
  $region33: #{tpu_custom_call.1} parent=0 // pred_fallthru
    _
  // Predicated region
  $region34: #{tpu_custom_call.1} parent=0 // pred_check
    _
  $region35: #{tpu_custom_call.1} parent=0 // pred_check_branch
    %36 = sbr.rel (0) target = $region37
  $region36: #{tpu_custom_call.1} parent=0 // pred_region
    _
  $region37: #{tpu_custom_call.1} parent=0 // pred_fallthru
    _
  // Predicated region
  $region38: #{tpu_custom_call.1} parent=0 // pred_check
    _
  $region39: #{tpu_custom_call.1} parent=0 // pred_check_branch
    %38 = sbr.rel (0) target = $region41
  $region40: #{tpu_custom_call.1} parent=0 // pred_region
    _
  $region41: #{tpu_custom_call.1} parent=0 // pred_fallthru
    _
  // Predicated region
  $region42: #{tpu_custom_call.1} parent=0 // pred_check
    _
  $region43: #{tpu_custom_call.1} parent=0 // pred_check_branch
    %40 = sbr.rel (0) target = $region45
  $region44: #{tpu_custom_call.1} parent=0 // pred_region
    _
  $region45: #{tpu_custom_call.1} parent=0 // pred_fallthru
    _
  // Predicated region
  $region46: #{tpu_custom_call.1} parent=0 // pred_check
    _
  $region47: #{tpu_custom_call.1} parent=0 // pred_check_branch
    %42 = sbr.rel (0) target = $region49
  $region48: #{tpu_custom_call.1} parent=0 // pred_region
    _
  $region49: #{tpu_custom_call.1} parent=0 // pred_fallthru
    _
  // Predicated region
  $region50: #{tpu_custom_call.1} parent=0 // pred_check
    _
  $region51: #{tpu_custom_call.1} parent=0 // pred_check_branch
    %44 = sbr.rel (0) target = $region53
  $region52: #{tpu_custom_call.1} parent=0 // pred_region
    _
  $region53: #{tpu_custom_call.1} parent=0 // pred_fallthru
    _
  // Predicated region
  $region54: #{tpu_custom_call.1} parent=0 // pred_check
    _
  $region55: #{tpu_custom_call.1} parent=0 // pred_check_branch
    %46 = sbr.rel (0) target = $region57
  $region56: #{tpu_custom_call.1} parent=0 // pred_region
    _
  $region57: #{tpu_custom_call.1} parent=0 // pred_fallthru
    _
  %v47 = vld [vmem:[%s0] sm:$0xff]
  %v48 = vld [vmem:[%s0 + $0x8] sm:$0xff]
  %v49 = vld [vmem:[%s0 + $0x10] sm:$0xff]
  %v50 = vld [vmem:[%s0 + $0x18] sm:$0xff]
  %v51 = vld [vmem:[%s0 + $0x20] sm:$0xff]
  %v52 = vld [vmem:[%s0 + $0x28] sm:$0xff]
  %v53 = vld [vmem:[%s0 + $0x30] sm:$0xff]
  %v54 = vld [vmem:[%s0 + $0x38] sm:$0xff]
  %v55 = vld [vmem:[%s0 + $0x40] sm:$0xff]
  %v56 = vld [vmem:[%s0 + $0x48] sm:$0xff]
  %v57 = vld [vmem:[%s0 + $0x50] sm:$0xff]
  %v58 = vld [vmem:[%s0 + $0x58] sm:$0xff]
  %v59 = vld [vmem:[%s0 + $0x60] sm:$0xff]
  %v60 = vld [vmem:[%s0 + $0x68] sm:$0xff]
  %v61 = vld [vmem:[%s0 + $0x70] sm:$0xff]
  %v62 = vld [vmem:[%s0 + $0x78] sm:$0xff]
  %v63 = vld [vmem:[%s2] sm:$0xff]
  %v64 = vld [vmem:[%s2 + $0x8] sm:$0xff]
  %v65 = vld [vmem:[%s2 + $0x10] sm:$0xff]
  %v66 = vld [vmem:[%s2 + $0x18] sm:$0xff]
  %v67 = vld [vmem:[%s3] sm:$0x1]
  %v69 = vlaneseq
  %v70 = vshrl.u32 %v69, 7
  %v71 = vsub.s32 0, %v70
  %v72 = vrot.slane %v67, %v71
  %vm74 = vcmask 261120
  %v76 = vsel %vm74, %v47, 0
  %v79 = vsel %vm74, %v48, 0
  %v82 = vsel %vm74, %v49, 0
  %v85 = vsel %vm74, %v50, 0
  %v88 = vsel %vm74, %v51, 0
  %v91 = vsel %vm74, %v52, 0
  %v94 = vsel %vm74, %v53, 0
  %v97 = vsel %vm74, %v54, 0
  %v100 = vsel %vm74, %v55, 0
  %v103 = vsel %vm74, %v56, 0
  %v106 = vsel %vm74, %v57, 0
  %v109 = vsel %vm74, %v58, 0
  %v112 = vsel %vm74, %v59, 0
  %v115 = vsel %vm74, %v60, 0
  %v118 = vsel %vm74, %v61, 0
  %v121 = vsel %vm74, %v62, 0
  %123 = vmatprep.subr.mxu0 0.0
  %124 = vmatpush1.msra.mxu0 0.0
  %125 = vmatprep.subr.mxu0 0.0
  %126 = vmatpush1.msra.mxu0 0.0
  %127 = vmatprep.subr.mxu0 0.0
  %128 = vmatpush1.msra.mxu0 0.0
  %129 = vmatprep.subr.mxu0 0.0
  %130 = vmatpush1.msra.mxu0 0.0
  %131 = vmatprep.subr.mxu0 0.0
  %132 = vmatpush1.msra.mxu0 0.0
  %133 = vmatprep.subr.mxu0 0.0
  %134 = vmatpush1.msra.mxu0 0.0
  %135 = vmatprep.subr.mxu0 0.0
  %136 = vmatpush1.msra.mxu0 0.0
  %137 = vmatprep.subr.mxu0 0.0
  %138 = vmatpush1.msra.mxu0 0.0
  %139 = vmatprep.subr.mxu0 0.0
  %140 = vmatpush1.msra.mxu0 0.0
  %141 = vmatprep.subr.mxu0 0.0
  %142 = vmatpush1.msra.mxu0 0.0
  %143 = vmatprep.subr.mxu0 0.0
  %144 = vmatpush1.msra.mxu0 0.0
  %145 = vmatprep.subr.mxu0 0.0
  %146 = vmatpush1.msra.mxu0 0.0
  %147 = vmatprep.subr.mxu0 0.0
  %148 = vmatpush1.msra.mxu0 %v66
  %149 = vmatprep.subr.mxu0 0.0
  %150 = vmatpush1.msra.mxu0 %v65
  %151 = vmatprep.subr.mxu0 0.0
  %152 = vmatpush1.msra.mxu0 %v64
  %153 = vmatprep.subr.mxu0 0.0
  %154 = vmatpush1.msra.mxu0 %v63
  %155 = vmatprep.subr.mxu0 0.0
  %156 = vmatpush2.msra.mxu0 0.0
  %157 = vmatprep.subr.mxu0 0.0
  %158 = vmatpush2.msra.mxu0 0.0
  %159 = vmatprep.subr.mxu0 0.0
  %160 = vmatpush2.msra.mxu0 0.0
  %161 = vmatprep.subr.mxu0 0.0
  %162 = vmatpush2.msra.mxu0 0.0
  %163 = vmatprep.subr.mxu0 0.0
  %164 = vmatpush2.msra.mxu0 0.0
  %165 = vmatprep.subr.mxu0 0.0
  %166 = vmatpush2.msra.mxu0 0.0
  %167 = vmatprep.subr.mxu0 0.0
  %168 = vmatpush2.msra.mxu0 0.0
  %169 = vmatprep.subr.mxu0 0.0
  %170 = vmatpush2.msra.mxu0 0.0
  %171 = vmatprep.subr.mxu0 0.0
  %172 = vmatpush2.msra.mxu0 0.0
  %173 = vmatprep.subr.mxu0 0.0
  %174 = vmatpush2.msra.mxu0 0.0
  %175 = vmatprep.subr.mxu0 0.0
  %176 = vmatpush2.msra.mxu0 0.0
  %177 = vmatprep.subr.mxu0 0.0
  %178 = vmatpush2.msra.mxu0 0.0
  %179 = vmatprep.subr.mxu0 0.0
  %180 = vmatpush2.msra.mxu0 0.0
  %181 = vmatprep.subr.mxu0 0.0
  %182 = vmatpush2.msra.mxu0 0.0
  %183 = vmatprep.subr.mxu0 0.0
  %184 = vmatpush2.msra.mxu0 0.0
  %185 = vmatprep.subr.mxu0 0.0
  %186 = vmatpush2.msra.mxu0 0.0
  %187 = vmatprep.mubr.f32.mxu0 0.0
  %188 = vmatmul.mubr.f32.gmra.mxu0 %v76
  %v189 = vpop.f32.mrf.mxu0
  %v190 = vadd.f32 %v72, %v189
  %v191 = vpop.f32.mrf.mxu0
  %192 = vmatprep.mubr.f32.mxu0 0.0
  %193 = vmatmul.mubr.f32.gmra.mxu0 %v79
  %v194 = vpop.f32.mrf.mxu0
  %v195 = vadd.f32 %v72, %v194
  %v196 = vpop.f32.mrf.mxu0
  %197 = vmatprep.mubr.f32.mxu0 0.0
  %198 = vmatmul.mubr.f32.gmra.mxu0 %v82
  %v199 = vpop.f32.mrf.mxu0
  %v200 = vadd.f32 %v72, %v199
  %v201 = vpop.f32.mrf.mxu0
  %202 = vmatprep.mubr.f32.mxu0 0.0
  %203 = vmatmul.mubr.f32.gmra.mxu0 %v85
  %v204 = vpop.f32.mrf.mxu0
  %v205 = vadd.f32 %v72, %v204
  %v206 = vpop.f32.mrf.mxu0
  %207 = vmatprep.mubr.f32.mxu0 0.0
  %208 = vmatmul.mubr.f32.gmra.mxu0 %v88
  %v209 = vpop.f32.mrf.mxu0
  %v210 = vadd.f32 %v72, %v209
  %v211 = vpop.f32.mrf.mxu0
  %212 = vmatprep.mubr.f32.mxu0 0.0
  %213 = vmatmul.mubr.f32.gmra.mxu0 %v91
  %v214 = vpop.f32.mrf.mxu0
  %v215 = vadd.f32 %v72, %v214
  %v216 = vpop.f32.mrf.mxu0
  %217 = vmatprep.mubr.f32.mxu0 0.0
  %218 = vmatmul.mubr.f32.gmra.mxu0 %v94
  %v219 = vpop.f32.mrf.mxu0
  %v220 = vadd.f32 %v72, %v219
  %v221 = vpop.f32.mrf.mxu0
  %222 = vmatprep.mubr.f32.mxu0 0.0
  %223 = vmatmul.mubr.f32.gmra.mxu0 %v97
  %v224 = vpop.f32.mrf.mxu0
  %v225 = vadd.f32 %v72, %v224
  %v226 = vpop.f32.mrf.mxu0
  %227 = vmatprep.mubr.f32.mxu0 0.0
  %228 = vmatmul.mubr.f32.gmra.mxu0 %v100
  %v229 = vpop.f32.mrf.mxu0
  %v230 = vadd.f32 %v72, %v229
  %v231 = vpop.f32.mrf.mxu0
  %232 = vmatprep.mubr.f32.mxu0 0.0
  %233 = vmatmul.mubr.f32.gmra.mxu0 %v103
  %v234 = vpop.f32.mrf.mxu0
  %v235 = vadd.f32 %v72, %v234
  %v236 = vpop.f32.mrf.mxu0
  %237 = vmatprep.mubr.f32.mxu0 0.0
  %238 = vmatmul.mubr.f32.gmra.mxu0 %v106
  %v239 = vpop.f32.mrf.mxu0
  %v240 = vadd.f32 %v72, %v239
  %v241 = vpop.f32.mrf.mxu0
  %242 = vmatprep.mubr.f32.mxu0 0.0
  %243 = vmatmul.mubr.f32.gmra.mxu0 %v109
  %v244 = vpop.f32.mrf.mxu0
  %v245 = vadd.f32 %v72, %v244
  %v246 = vpop.f32.mrf.mxu0
  %247 = vmatprep.mubr.f32.mxu0 0.0
  %248 = vmatmul.mubr.f32.gmra.mxu0 %v112
  %v249 = vpop.f32.mrf.mxu0
  %v250 = vadd.f32 %v72, %v249
  %v251 = vpop.f32.mrf.mxu0
  %252 = vmatprep.mubr.f32.mxu0 0.0
  %253 = vmatmul.mubr.f32.gmra.mxu0 %v115
  %v254 = vpop.f32.mrf.mxu0
  %v255 = vadd.f32 %v72, %v254
  %v256 = vpop.f32.mrf.mxu0
  %257 = vmatprep.mubr.f32.mxu0 0.0
  %258 = vmatmul.mubr.f32.gmra.mxu0 %v118
  %v259 = vpop.f32.mrf.mxu0
  %v260 = vadd.f32 %v72, %v259
  %v261 = vpop.f32.mrf.mxu0
  %262 = vmatprep.mubr.f32.mxu0 0.0
  %263 = vmatmul.mubr.f32.gmra.mxu0 %v121
  %v264 = vpop.f32.mrf.mxu0
  %v265 = vadd.f32 %v72, %v264
  %v266 = vpop.f32.mrf.mxu0
  %267 = vdwg.mxu0
  %v268 = vld [vmem:[%s1] sm:$0xff]
  %v269 = vld [vmem:[%s1 + $0x8] sm:$0xff]
  %v270 = vld [vmem:[%s1 + $0x10] sm:$0xff]
  %v271 = vld [vmem:[%s1 + $0x18] sm:$0xff]
  %v272 = vld [vmem:[%s1 + $0x20] sm:$0xff]
  %v273 = vld [vmem:[%s1 + $0x28] sm:$0xff]
  %v274 = vld [vmem:[%s1 + $0x30] sm:$0xff]
  %v275 = vld [vmem:[%s1 + $0x38] sm:$0xff]
  %v276 = vld [vmem:[%s1 + $0x40] sm:$0xff]
  %v277 = vld [vmem:[%s1 + $0x48] sm:$0xff]
  %v278 = vld [vmem:[%s1 + $0x50] sm:$0xff]
  %v279 = vld [vmem:[%s1 + $0x58] sm:$0xff]
  %v280 = vld [vmem:[%s1 + $0x60] sm:$0xff]
  %v281 = vld [vmem:[%s1 + $0x68] sm:$0xff]
  %v282 = vld [vmem:[%s1 + $0x70] sm:$0xff]
  %v283 = vld [vmem:[%s1 + $0x78] sm:$0xff]
  %300 = vrot.lane.b32.xlu0 %v190, 96
  %v301 = vpop.permute.xlu0 %300
  %302 = vrot.lane.b32.xlu0 %v195, 96
  %v303 = vpop.permute.xlu0 %302
  %304 = vrot.lane.b32.xlu0 %v200, 96
  %v305 = vpop.permute.xlu0 %304
  %306 = vrot.lane.b32.xlu0 %v205, 96
  %v307 = vpop.permute.xlu0 %306
  %308 = vrot.lane.b32.xlu0 %v210, 96
  %v309 = vpop.permute.xlu0 %308
  %310 = vrot.lane.b32.xlu0 %v215, 96
  %v311 = vpop.permute.xlu0 %310
  %312 = vrot.lane.b32.xlu0 %v220, 96
  %v313 = vpop.permute.xlu0 %312
  %314 = vrot.lane.b32.xlu0 %v225, 96
  %v315 = vpop.permute.xlu0 %314
  %316 = vrot.lane.b32.xlu0 %v230, 96
  %v317 = vpop.permute.xlu0 %316
  %318 = vrot.lane.b32.xlu0 %v235, 96
  %v319 = vpop.permute.xlu0 %318
  %320 = vrot.lane.b32.xlu0 %v240, 96
  %v321 = vpop.permute.xlu0 %320
  %322 = vrot.lane.b32.xlu0 %v245, 96
  %v323 = vpop.permute.xlu0 %322
  %324 = vrot.lane.b32.xlu0 %v250, 96
  %v325 = vpop.permute.xlu0 %324
  %326 = vrot.lane.b32.xlu0 %v255, 96
  %v327 = vpop.permute.xlu0 %326
  %328 = vrot.lane.b32.xlu0 %v260, 96
  %v329 = vpop.permute.xlu0 %328
  %330 = vrot.lane.b32.xlu0 %v265, 96
  %v331 = vpop.permute.xlu0 %330
  %vm332 = vcmask 64512
  %v333 = vsel %vm332, %v190, 0
  %v335 = vsel %vm332, %v195, 0
  %v337 = vsel %vm332, %v200, 0
  %v339 = vsel %vm332, %v205, 0
  %v341 = vsel %vm332, %v210, 0
  %v343 = vsel %vm332, %v215, 0
  %v345 = vsel %vm332, %v220, 0
  %v347 = vsel %vm332, %v225, 0
  %v349 = vsel %vm332, %v230, 0
  %v351 = vsel %vm332, %v235, 0
  %v353 = vsel %vm332, %v240, 0
  %v355 = vsel %vm332, %v245, 0
  %v357 = vsel %vm332, %v250, 0
  %v359 = vsel %vm332, %v255, 0
  %v361 = vsel %vm332, %v260, 0
  %v363 = vsel %vm332, %v265, 0
  %v365 = vsel %vm332, %v301, 0
  %v367 = vsel %vm332, %v303, 0
  %v369 = vsel %vm332, %v305, 0
  %v371 = vsel %vm332, %v307, 0
  %v373 = vsel %vm332, %v309, 0
  %v375 = vsel %vm332, %v311, 0
  %v377 = vsel %vm332, %v313, 0
  %v379 = vsel %vm332, %v315, 0
  %v381 = vsel %vm332, %v317, 0
  %v383 = vsel %vm332, %v319, 0
  %v385 = vsel %vm332, %v321, 0
  %v387 = vsel %vm332, %v323, 0
  %v389 = vsel %vm332, %v325, 0
  %v391 = vsel %vm332, %v327, 0
  %v393 = vsel %vm332, %v329, 0
  %v395 = vsel %vm332, %v331, 0
  %397 = vmatprep.subr.mxu0 0.0
  %398 = vmatpush1.xpose.msra.mxu0 %v395
  %399 = vmatprep.subr.mxu0 0.0
  %400 = vmatpush1.xpose.msra.mxu0 %v393
  %401 = vmatprep.subr.mxu0 0.0
  %402 = vmatpush1.xpose.msra.mxu0 %v391
  %403 = vmatprep.subr.mxu0 0.0
  %404 = vmatpush1.xpose.msra.mxu0 %v389
  %405 = vmatprep.subr.mxu0 0.0
  %406 = vmatpush1.xpose.msra.mxu0 %v387
  %407 = vmatprep.subr.mxu0 0.0
  %408 = vmatpush1.xpose.msra.mxu0 %v385
  %409 = vmatprep.subr.mxu0 0.0
  %410 = vmatpush1.xpose.msra.mxu0 %v383
  %411 = vmatprep.subr.mxu0 0.0
  %412 = vmatpush1.xpose.msra.mxu0 %v381
  %413 = vmatprep.subr.mxu0 0.0
  %414 = vmatpush1.xpose.msra.mxu0 %v379
  %415 = vmatprep.subr.mxu0 0.0
  %416 = vmatpush1.xpose.msra.mxu0 %v377
  %417 = vmatprep.subr.mxu0 0.0
  %418 = vmatpush1.xpose.msra.mxu0 %v375
  %419 = vmatprep.subr.mxu0 0.0
  %420 = vmatpush1.xpose.msra.mxu0 %v373
  %421 = vmatprep.subr.mxu0 0.0
  %422 = vmatpush1.xpose.msra.mxu0 %v371
  %423 = vmatprep.subr.mxu0 0.0
  %424 = vmatpush1.xpose.msra.mxu0 %v369
  %425 = vmatprep.subr.mxu0 0.0
  %426 = vmatpush1.xpose.msra.mxu0 %v367
  %427 = vmatprep.subr.mxu0 0.0
  %428 = vmatpush1.xpose.msra.mxu0 %v365
  %429 = vmatprep.subr.mxu0 0.0
  %430 = vmatpush2.xpose.msra.mxu0 0.0
  %431 = vmatprep.subr.mxu0 0.0
  %432 = vmatpush2.xpose.msra.mxu0 0.0
  %433 = vmatprep.subr.mxu0 0.0
  %434 = vmatpush2.xpose.msra.mxu0 0.0
  %435 = vmatprep.subr.mxu0 0.0
  %436 = vmatpush2.xpose.msra.mxu0 0.0
  %437 = vmatprep.subr.mxu0 0.0
  %438 = vmatpush2.xpose.msra.mxu0 0.0
  %439 = vmatprep.subr.mxu0 0.0
  %440 = vmatpush2.xpose.msra.mxu0 0.0
  %441 = vmatprep.subr.mxu0 0.0
  %442 = vmatpush2.xpose.msra.mxu0 0.0
  %443 = vmatprep.subr.mxu0 0.0
  %444 = vmatpush2.xpose.msra.mxu0 0.0
  %445 = vmatprep.subr.mxu0 0.0
  %446 = vmatpush2.xpose.msra.mxu0 0.0
  %447 = vmatprep.subr.mxu0 0.0
  %448 = vmatpush2.xpose.msra.mxu0 0.0
  %449 = vmatprep.subr.mxu0 0.0
  %450 = vmatpush2.xpose.msra.mxu0 0.0
  %451 = vmatprep.subr.mxu0 0.0
  %452 = vmatpush2.xpose.msra.mxu0 0.0
  %453 = vmatprep.subr.mxu0 0.0
  %454 = vmatpush2.xpose.msra.mxu0 0.0
  %455 = vmatprep.subr.mxu0 0.0
  %456 = vmatpush2.xpose.msra.mxu0 0.0
  %457 = vmatprep.subr.mxu0 0.0
  %458 = vmatpush2.xpose.msra.mxu0 0.0
  %459 = vmatprep.subr.mxu0 0.0
  %460 = vmatpush2.xpose.msra.mxu0 0.0
  %461 = vmatprep.mubr.f32.mxu0 0.0
  %462 = vmatmul.mubr.f32.gmra.mxu0 %v333
  %v463 = vpop.f32.mrf.mxu0
  %v464 = vadd.f32 %v268, %v463
  %v465 = vpop.f32.mrf.mxu0
  %466 = vmatprep.mubr.f32.mxu0 0.0
  %467 = vmatmul.mubr.f32.gmra.mxu0 %v335
  %v468 = vpop.f32.mrf.mxu0
  %v469 = vadd.f32 %v269, %v468
  %v470 = vpop.f32.mrf.mxu0
  %471 = vmatprep.mubr.f32.mxu0 0.0
  %472 = vmatmul.mubr.f32.gmra.mxu0 %v337
  %v473 = vpop.f32.mrf.mxu0
  %v474 = vadd.f32 %v270, %v473
  %v475 = vpop.f32.mrf.mxu0
  %476 = vmatprep.mubr.f32.mxu0 0.0
  %477 = vmatmul.mubr.f32.gmra.mxu0 %v339
  %v478 = vpop.f32.mrf.mxu0
  %v479 = vadd.f32 %v271, %v478
  %v480 = vpop.f32.mrf.mxu0
  %481 = vmatprep.mubr.f32.mxu0 0.0
  %482 = vmatmul.mubr.f32.gmra.mxu0 %v341
  %v483 = vpop.f32.mrf.mxu0
  %v484 = vadd.f32 %v272, %v483
  %v485 = vpop.f32.mrf.mxu0
  %486 = vmatprep.mubr.f32.mxu0 0.0
  %487 = vmatmul.mubr.f32.gmra.mxu0 %v343
  %v488 = vpop.f32.mrf.mxu0
  %v489 = vadd.f32 %v273, %v488
  %v490 = vpop.f32.mrf.mxu0
  %491 = vmatprep.mubr.f32.mxu0 0.0
  %492 = vmatmul.mubr.f32.gmra.mxu0 %v345
  %v493 = vpop.f32.mrf.mxu0
  %v494 = vadd.f32 %v274, %v493
  %v495 = vpop.f32.mrf.mxu0
  %496 = vmatprep.mubr.f32.mxu0 0.0
  %497 = vmatmul.mubr.f32.gmra.mxu0 %v347
  %v498 = vpop.f32.mrf.mxu0
  %v499 = vadd.f32 %v275, %v498
  %v500 = vpop.f32.mrf.mxu0
  %501 = vmatprep.mubr.f32.mxu0 0.0
  %502 = vmatmul.mubr.f32.gmra.mxu0 %v349
  %v503 = vpop.f32.mrf.mxu0
  %v504 = vadd.f32 %v276, %v503
  %v505 = vpop.f32.mrf.mxu0
  %506 = vmatprep.mubr.f32.mxu0 0.0
  %507 = vmatmul.mubr.f32.gmra.mxu0 %v351
  %v508 = vpop.f32.mrf.mxu0
  %v509 = vadd.f32 %v277, %v508
  %v510 = vpop.f32.mrf.mxu0
  %511 = vmatprep.mubr.f32.mxu0 0.0
  %512 = vmatmul.mubr.f32.gmra.mxu0 %v353
  %v513 = vpop.f32.mrf.mxu0
  %v514 = vadd.f32 %v278, %v513
  %v515 = vpop.f32.mrf.mxu0
  %516 = vmatprep.mubr.f32.mxu0 0.0
  %517 = vmatmul.mubr.f32.gmra.mxu0 %v355
  %v518 = vpop.f32.mrf.mxu0
  %v519 = vadd.f32 %v279, %v518
  %v520 = vpop.f32.mrf.mxu0
  %521 = vmatprep.mubr.f32.mxu0 0.0
  %522 = vmatmul.mubr.f32.gmra.mxu0 %v357
  %v523 = vpop.f32.mrf.mxu0
  %v524 = vadd.f32 %v280, %v523
  %v525 = vpop.f32.mrf.mxu0
  %526 = vmatprep.mubr.f32.mxu0 0.0
  %527 = vmatmul.mubr.f32.gmra.mxu0 %v359
  %v528 = vpop.f32.mrf.mxu0
  %v529 = vadd.f32 %v281, %v528
  %v530 = vpop.f32.mrf.mxu0
  %531 = vmatprep.mubr.f32.mxu0 0.0
  %532 = vmatmul.mubr.f32.gmra.mxu0 %v361
  %v533 = vpop.f32.mrf.mxu0
  %v534 = vadd.f32 %v282, %v533
  %v535 = vpop.f32.mrf.mxu0
  %536 = vmatprep.mubr.f32.mxu0 0.0
  %537 = vmatmul.mubr.f32.gmra.mxu0 %v363
  %v538 = vpop.f32.mrf.mxu0
  %v539 = vadd.f32 %v283, %v538
  %v540 = vpop.f32.mrf.mxu0
  %541 = vdwg.mxu0
  %542 = vmax.xlane.f32.xlu0 %v464
  %v543 = vpop.xlane.xlu0 %542
  %544 = vmax.xlane.f32.xlu0 %v469
  %v545 = vpop.xlane.xlu0 %544
  %546 = vmax.xlane.f32.xlu0 %v474
  %v547 = vpop.xlane.xlu0 %546
  %548 = vmax.xlane.f32.xlu0 %v479
  %v549 = vpop.xlane.xlu0 %548
  %550 = vmax.xlane.f32.xlu0 %v484
  %v551 = vpop.xlane.xlu0 %550
  %552 = vmax.xlane.f32.xlu0 %v489
  %v553 = vpop.xlane.xlu0 %552
  %554 = vmax.xlane.f32.xlu0 %v494
  %v555 = vpop.xlane.xlu0 %554
  %556 = vmax.xlane.f32.xlu0 %v499
  %v557 = vpop.xlane.xlu0 %556
  %558 = vmax.xlane.f32.xlu0 %v504
  %v559 = vpop.xlane.xlu0 %558
  %560 = vmax.xlane.f32.xlu0 %v509
  %v561 = vpop.xlane.xlu0 %560
  %562 = vmax.xlane.f32.xlu0 %v514
  %v563 = vpop.xlane.xlu0 %562
  %564 = vmax.xlane.f32.xlu0 %v519
  %v565 = vpop.xlane.xlu0 %564
  %566 = vmax.xlane.f32.xlu0 %v524
  %v567 = vpop.xlane.xlu0 %566
  %568 = vmax.xlane.f32.xlu0 %v529
  %v569 = vpop.xlane.xlu0 %568
  %570 = vmax.xlane.f32.xlu0 %v534
  %v571 = vpop.xlane.xlu0 %570
  %572 = vmax.xlane.f32.xlu0 %v539
  %v573 = vpop.xlane.xlu0 %572
  %v574 = vsub.f32 %v464, %v543
  %v575 = vsub.f32 %v469, %v545
  %v576 = vsub.f32 %v474, %v547
  %v577 = vsub.f32 %v479, %v549
  %v578 = vsub.f32 %v484, %v551
  %v579 = vsub.f32 %v489, %v553
  %v580 = vsub.f32 %v494, %v555
  %v581 = vsub.f32 %v499, %v557
  %v582 = vsub.f32 %v504, %v559
  %v583 = vsub.f32 %v509, %v561
  %v584 = vsub.f32 %v514, %v563
  %v585 = vsub.f32 %v519, %v565
  %v586 = vsub.f32 %v524, %v567
  %v587 = vsub.f32 %v529, %v569
  %v588 = vsub.f32 %v534, %v571
  %v589 = vsub.f32 %v539, %v573
  %v590 = vmul.f32 %v574, 1.442695
  %v591 = vpow.pop %v590
  %v592 = vmul.f32 %v575, 1.442695
  %v593 = vpow.pop %v592
  %v594 = vmul.f32 %v576, 1.442695
  %v595 = vpow.pop %v594
  %v596 = vmul.f32 %v577, 1.442695
  %v597 = vpow.pop %v596
  %v598 = vmul.f32 %v578, 1.442695
  %v599 = vpow.pop %v598
  %v600 = vmul.f32 %v579, 1.442695
  %v601 = vpow.pop %v600
  %v602 = vmul.f32 %v580, 1.442695
  %v603 = vpow.pop %v602
  %v604 = vmul.f32 %v581, 1.442695
  %v605 = vpow.pop %v604
  %v606 = vmul.f32 %v582, 1.442695
  %v607 = vpow.pop %v606
  %v608 = vmul.f32 %v583, 1.442695
  %v609 = vpow.pop %v608
  %v610 = vmul.f32 %v584, 1.442695
  %v611 = vpow.pop %v610
  %v612 = vmul.f32 %v585, 1.442695
  %v613 = vpow.pop %v612
  %v614 = vmul.f32 %v586, 1.442695
  %v615 = vpow.pop %v614
  %v616 = vmul.f32 %v587, 1.442695
  %v617 = vpow.pop %v616
  %v618 = vmul.f32 %v588, 1.442695
  %v619 = vpow.pop %v618
  %v620 = vmul.f32 %v589, 1.442695
  %v621 = vpow.pop %v620
  %622 = vadd.xlane.f32.xlu0 %v591
  %v623 = vpop.xlane.xlu0 %622
  %624 = vadd.xlane.f32.xlu0 %v593
  %v625 = vpop.xlane.xlu0 %624
  %626 = vadd.xlane.f32.xlu0 %v595
  %v627 = vpop.xlane.xlu0 %626
  %628 = vadd.xlane.f32.xlu0 %v597
  %v629 = vpop.xlane.xlu0 %628
  %630 = vadd.xlane.f32.xlu0 %v599
  %v631 = vpop.xlane.xlu0 %630
  %632 = vadd.xlane.f32.xlu0 %v601
  %v633 = vpop.xlane.xlu0 %632
  %634 = vadd.xlane.f32.xlu0 %v603
  %v635 = vpop.xlane.xlu0 %634
  %636 = vadd.xlane.f32.xlu0 %v605
  %v637 = vpop.xlane.xlu0 %636
  %638 = vadd.xlane.f32.xlu0 %v607
  %v639 = vpop.xlane.xlu0 %638
  %640 = vadd.xlane.f32.xlu0 %v609
  %v641 = vpop.xlane.xlu0 %640
  %642 = vadd.xlane.f32.xlu0 %v611
  %v643 = vpop.xlane.xlu0 %642
  %644 = vadd.xlane.f32.xlu0 %v613
  %v645 = vpop.xlane.xlu0 %644
  %646 = vadd.xlane.f32.xlu0 %v615
  %v647 = vpop.xlane.xlu0 %646
  %648 = vadd.xlane.f32.xlu0 %v617
  %v649 = vpop.xlane.xlu0 %648
  %650 = vadd.xlane.f32.xlu0 %v619
  %v651 = vpop.xlane.xlu0 %650
  %652 = vadd.xlane.f32.xlu0 %v621
  %v653 = vpop.xlane.xlu0 %652
  %v654 = vrcp.pop %v623
  %v655 = vmul.f32 %v591, %v654
  %v656 = vrcp.pop %v625
  %v657 = vmul.f32 %v593, %v656
  %v658 = vrcp.pop %v627
  %v659 = vmul.f32 %v595, %v658
  %v660 = vrcp.pop %v629
  %v661 = vmul.f32 %v597, %v660
  %v662 = vrcp.pop %v631
  %v663 = vmul.f32 %v599, %v662
  %v664 = vrcp.pop %v633
  %v665 = vmul.f32 %v601, %v664
  %v666 = vrcp.pop %v635
  %v667 = vmul.f32 %v603, %v666
  %v668 = vrcp.pop %v637
  %v669 = vmul.f32 %v605, %v668
  %v670 = vrcp.pop %v639
  %v671 = vmul.f32 %v607, %v670
  %v672 = vrcp.pop %v641
  %v673 = vmul.f32 %v609, %v672
  %v674 = vrcp.pop %v643
  %v675 = vmul.f32 %v611, %v674
  %v676 = vrcp.pop %v645
  %v677 = vmul.f32 %v613, %v676
  %v678 = vrcp.pop %v647
  %v679 = vmul.f32 %v615, %v678
  %v680 = vrcp.pop %v649
  %v681 = vmul.f32 %v617, %v680
  %v682 = vrcp.pop %v651
  %v683 = vmul.f32 %v619, %v682
  %v684 = vrcp.pop %v653
  %v685 = vmul.f32 %v621, %v684
  %686 = vrot.lane.b32.xlu0 %v190, 64
  %v687 = vpop.permute.xlu0 %686
  %688 = vrot.lane.b32.xlu0 %v195, 64
  %v689 = vpop.permute.xlu0 %688
  %690 = vrot.lane.b32.xlu0 %v200, 64
  %v691 = vpop.permute.xlu0 %690
  %692 = vrot.lane.b32.xlu0 %v205, 64
  %v693 = vpop.permute.xlu0 %692
  %694 = vrot.lane.b32.xlu0 %v210, 64
  %v695 = vpop.permute.xlu0 %694
  %696 = vrot.lane.b32.xlu0 %v215, 64
  %v697 = vpop.permute.xlu0 %696
  %698 = vrot.lane.b32.xlu0 %v220, 64
  %v699 = vpop.permute.xlu0 %698
  %700 = vrot.lane.b32.xlu0 %v225, 64
  %v701 = vpop.permute.xlu0 %700
  %702 = vrot.lane.b32.xlu0 %v230, 64
  %v703 = vpop.permute.xlu0 %702
  %704 = vrot.lane.b32.xlu0 %v235, 64
  %v705 = vpop.permute.xlu0 %704
  %706 = vrot.lane.b32.xlu0 %v240, 64
  %v707 = vpop.permute.xlu0 %706
  %708 = vrot.lane.b32.xlu0 %v245, 64
  %v709 = vpop.permute.xlu0 %708
  %710 = vrot.lane.b32.xlu0 %v250, 64
  %v711 = vpop.permute.xlu0 %710
  %712 = vrot.lane.b32.xlu0 %v255, 64
  %v713 = vpop.permute.xlu0 %712
  %714 = vrot.lane.b32.xlu0 %v260, 64
  %v715 = vpop.permute.xlu0 %714
  %716 = vrot.lane.b32.xlu0 %v265, 64
  %v717 = vpop.permute.xlu0 %716
  %734 = vmatprep.subr.mxu0 0.0
  %735 = vmatpush1.msra.mxu0 %v717
  %736 = vmatprep.subr.mxu0 0.0
  %737 = vmatpush1.msra.mxu0 %v715
  %738 = vmatprep.subr.mxu0 0.0
  %739 = vmatpush1.msra.mxu0 %v713
  %740 = vmatprep.subr.mxu0 0.0
  %741 = vmatpush1.msra.mxu0 %v711
  %742 = vmatprep.subr.mxu0 0.0
  %743 = vmatpush1.msra.mxu0 %v709
  %744 = vmatprep.subr.mxu0 0.0
  %745 = vmatpush1.msra.mxu0 %v707
  %746 = vmatprep.subr.mxu0 0.0
  %747 = vmatpush1.msra.mxu0 %v705
  %748 = vmatprep.subr.mxu0 0.0
  %749 = vmatpush1.msra.mxu0 %v703
  %750 = vmatprep.subr.mxu0 0.0
  %751 = vmatpush1.msra.mxu0 %v701
  %752 = vmatprep.subr.mxu0 0.0
  %753 = vmatpush1.msra.mxu0 %v699
  %754 = vmatprep.subr.mxu0 0.0
  %755 = vmatpush1.msra.mxu0 %v697
  %756 = vmatprep.subr.mxu0 0.0
  %757 = vmatpush1.msra.mxu0 %v695
  %758 = vmatprep.subr.mxu0 0.0
  %759 = vmatpush1.msra.mxu0 %v693
  %760 = vmatprep.subr.mxu0 0.0
  %761 = vmatpush1.msra.mxu0 %v691
  %762 = vmatprep.subr.mxu0 0.0
  %763 = vmatpush1.msra.mxu0 %v689
  %764 = vmatprep.subr.mxu0 0.0
  %765 = vmatpush1.msra.mxu0 %v687
  %766 = vmatprep.subr.mxu0 0.0
  %767 = vmatpush2.msra.mxu0 0.0
  %768 = vmatprep.subr.mxu0 0.0
  %769 = vmatpush2.msra.mxu0 0.0
  %770 = vmatprep.subr.mxu0 0.0
  %771 = vmatpush2.msra.mxu0 0.0
  %772 = vmatprep.subr.mxu0 0.0
  %773 = vmatpush2.msra.mxu0 0.0
  %774 = vmatprep.subr.mxu0 0.0
  %775 = vmatpush2.msra.mxu0 0.0
  %776 = vmatprep.subr.mxu0 0.0
  %777 = vmatpush2.msra.mxu0 0.0
  %778 = vmatprep.subr.mxu0 0.0
  %779 = vmatpush2.msra.mxu0 0.0
  %780 = vmatprep.subr.mxu0 0.0
  %781 = vmatpush2.msra.mxu0 0.0
  %782 = vmatprep.subr.mxu0 0.0
  %783 = vmatpush2.msra.mxu0 0.0
  %784 = vmatprep.subr.mxu0 0.0
  %785 = vmatpush2.msra.mxu0 0.0
  %786 = vmatprep.subr.mxu0 0.0
  %787 = vmatpush2.msra.mxu0 0.0
  %788 = vmatprep.subr.mxu0 0.0
  %789 = vmatpush2.msra.mxu0 0.0
  %790 = vmatprep.subr.mxu0 0.0
  %791 = vmatpush2.msra.mxu0 0.0
  %792 = vmatprep.subr.mxu0 0.0
  %793 = vmatpush2.msra.mxu0 0.0
  %794 = vmatprep.subr.mxu0 0.0
  %795 = vmatpush2.msra.mxu0 0.0
  %796 = vmatprep.subr.mxu0 0.0
  %797 = vmatpush2.msra.mxu0 0.0
  %798 = vmatprep.mubr.f32.mxu0 0.0
  %799 = vmatmul.mubr.f32.gmra.mxu0 %v655
  %v800 = vpop.f32.mrf.mxu0
  %v801 = vadd.f32 0.0, %v800
  %v802 = vpop.f32.mrf.mxu0
  %803 = vmatprep.mubr.f32.mxu0 0.0
  %804 = vmatmul.mubr.f32.gmra.mxu0 %v657
  %v805 = vpop.f32.mrf.mxu0
  %v806 = vadd.f32 0.0, %v805
  %v807 = vpop.f32.mrf.mxu0
  %808 = vmatprep.mubr.f32.mxu0 0.0
  %809 = vmatmul.mubr.f32.gmra.mxu0 %v659
  %v810 = vpop.f32.mrf.mxu0
  %v811 = vadd.f32 0.0, %v810
  %v812 = vpop.f32.mrf.mxu0
  %813 = vmatprep.mubr.f32.mxu0 0.0
  %814 = vmatmul.mubr.f32.gmra.mxu0 %v661
  %v815 = vpop.f32.mrf.mxu0
  %v816 = vadd.f32 0.0, %v815
  %v817 = vpop.f32.mrf.mxu0
  %818 = vmatprep.mubr.f32.mxu0 0.0
  %819 = vmatmul.mubr.f32.gmra.mxu0 %v663
  %v820 = vpop.f32.mrf.mxu0
  %v821 = vadd.f32 0.0, %v820
  %v822 = vpop.f32.mrf.mxu0
  %823 = vmatprep.mubr.f32.mxu0 0.0
  %824 = vmatmul.mubr.f32.gmra.mxu0 %v665
  %v825 = vpop.f32.mrf.mxu0
  %v826 = vadd.f32 0.0, %v825
  %v827 = vpop.f32.mrf.mxu0
  %828 = vmatprep.mubr.f32.mxu0 0.0
  %829 = vmatmul.mubr.f32.gmra.mxu0 %v667
  %v830 = vpop.f32.mrf.mxu0
  %v831 = vadd.f32 0.0, %v830
  %v832 = vpop.f32.mrf.mxu0
  %833 = vmatprep.mubr.f32.mxu0 0.0
  %834 = vmatmul.mubr.f32.gmra.mxu0 %v669
  %v835 = vpop.f32.mrf.mxu0
  %v836 = vadd.f32 0.0, %v835
  %v837 = vpop.f32.mrf.mxu0
  %838 = vmatprep.mubr.f32.mxu0 0.0
  %839 = vmatmul.mubr.f32.gmra.mxu0 %v671
  %v840 = vpop.f32.mrf.mxu0
  %v841 = vadd.f32 0.0, %v840
  %v842 = vpop.f32.mrf.mxu0
  %843 = vmatprep.mubr.f32.mxu0 0.0
  %844 = vmatmul.mubr.f32.gmra.mxu0 %v673
  %v845 = vpop.f32.mrf.mxu0
  %v846 = vadd.f32 0.0, %v845
  %v847 = vpop.f32.mrf.mxu0
  %848 = vmatprep.mubr.f32.mxu0 0.0
  %849 = vmatmul.mubr.f32.gmra.mxu0 %v675
  %v850 = vpop.f32.mrf.mxu0
  %v851 = vadd.f32 0.0, %v850
  %v852 = vpop.f32.mrf.mxu0
  %853 = vmatprep.mubr.f32.mxu0 0.0
  %854 = vmatmul.mubr.f32.gmra.mxu0 %v677
  %v855 = vpop.f32.mrf.mxu0
  %v856 = vadd.f32 0.0, %v855
  %v857 = vpop.f32.mrf.mxu0
  %858 = vmatprep.mubr.f32.mxu0 0.0
  %859 = vmatmul.mubr.f32.gmra.mxu0 %v679
  %v860 = vpop.f32.mrf.mxu0
  %v861 = vadd.f32 0.0, %v860
  %v862 = vpop.f32.mrf.mxu0
  %863 = vmatprep.mubr.f32.mxu0 0.0
  %864 = vmatmul.mubr.f32.gmra.mxu0 %v681
  %v865 = vpop.f32.mrf.mxu0
  %v866 = vadd.f32 0.0, %v865
  %v867 = vpop.f32.mrf.mxu0
  %868 = vmatprep.mubr.f32.mxu0 0.0
  %869 = vmatmul.mubr.f32.gmra.mxu0 %v683
  %v870 = vpop.f32.mrf.mxu0
  %v871 = vadd.f32 0.0, %v870
  %v872 = vpop.f32.mrf.mxu0
  %873 = vmatprep.mubr.f32.mxu0 0.0
  %874 = vmatmul.mubr.f32.gmra.mxu0 %v685
  %v875 = vpop.f32.mrf.mxu0
  %v876 = vadd.f32 0.0, %v875
  %v877 = vpop.f32.mrf.mxu0
  %878 = vdwg.mxu0
  %879 = vst.msk [vmem:[#allocation2] sm:$0xff] %vm332, %v801
  %880 = vst.msk [vmem:[#allocation2 + $0x8] sm:$0xff] %vm332, %v806
  %881 = vst.msk [vmem:[#allocation2 + $0x10] sm:$0xff] %vm332, %v811
  %882 = vst.msk [vmem:[#allocation2 + $0x18] sm:$0xff] %vm332, %v816
  %883 = vst.msk [vmem:[#allocation2 + $0x20] sm:$0xff] %vm332, %v821
  %884 = vst.msk [vmem:[#allocation2 + $0x28] sm:$0xff] %vm332, %v826
  %885 = vst.msk [vmem:[#allocation2 + $0x30] sm:$0xff] %vm332, %v831
  %886 = vst.msk [vmem:[#allocation2 + $0x38] sm:$0xff] %vm332, %v836
  %887 = vst.msk [vmem:[#allocation2 + $0x40] sm:$0xff] %vm332, %v841
  %888 = vst.msk [vmem:[#allocation2 + $0x48] sm:$0xff] %vm332, %v846
  %889 = vst.msk [vmem:[#allocation2 + $0x50] sm:$0xff] %vm332, %v851
  %890 = vst.msk [vmem:[#allocation2 + $0x58] sm:$0xff] %vm332, %v856
  %891 = vst.msk [vmem:[#allocation2 + $0x60] sm:$0xff] %vm332, %v861
  %892 = vst.msk [vmem:[#allocation2 + $0x68] sm:$0xff] %vm332, %v866
  %893 = vst.msk [vmem:[#allocation2 + $0x70] sm:$0xff] %vm332, %v871
  %894 = vst.msk [vmem:[#allocation2 + $0x78] sm:$0xff] %vm332, %v876
  %v895 = vld [vmem:[%s1] sm:$0xff]
  %v896 = vld [vmem:[%s1 + $0x8] sm:$0xff]
  %v897 = vld [vmem:[%s1 + $0x10] sm:$0xff]
  %v898 = vld [vmem:[%s1 + $0x18] sm:$0xff]
  %v899 = vld [vmem:[%s1 + $0x20] sm:$0xff]
  %v900 = vld [vmem:[%s1 + $0x28] sm:$0xff]
  %v901 = vld [vmem:[%s1 + $0x30] sm:$0xff]
  %v902 = vld [vmem:[%s1 + $0x38] sm:$0xff]
  %v903 = vld [vmem:[%s1 + $0x40] sm:$0xff]
  %v904 = vld [vmem:[%s1 + $0x48] sm:$0xff]
  %v905 = vld [vmem:[%s1 + $0x50] sm:$0xff]
  %v906 = vld [vmem:[%s1 + $0x58] sm:$0xff]
  %v907 = vld [vmem:[%s1 + $0x60] sm:$0xff]
  %v908 = vld [vmem:[%s1 + $0x68] sm:$0xff]
  %v909 = vld [vmem:[%s1 + $0x70] sm:$0xff]
  %v910 = vld [vmem:[%s1 + $0x78] sm:$0xff]
  %911 = vrot.lane.b32.xlu0 %v190, 120
  %v912 = vpop.permute.xlu0 %911
  %913 = vrot.lane.b32.xlu0 %v195, 120
  %v914 = vpop.permute.xlu0 %913
  %915 = vrot.lane.b32.xlu0 %v200, 120
  %v916 = vpop.permute.xlu0 %915
  %917 = vrot.lane.b32.xlu0 %v205, 120
  %v918 = vpop.permute.xlu0 %917
  %919 = vrot.lane.b32.xlu0 %v210, 120
  %v920 = vpop.permute.xlu0 %919
  %921 = vrot.lane.b32.xlu0 %v215, 120
  %v922 = vpop.permute.xlu0 %921
  %923 = vrot.lane.b32.xlu0 %v220, 120
  %v924 = vpop.permute.xlu0 %923
  %925 = vrot.lane.b32.xlu0 %v225, 120
  %v926 = vpop.permute.xlu0 %925
  %927 = vrot.lane.b32.xlu0 %v230, 120
  %v928 = vpop.permute.xlu0 %927
  %929 = vrot.lane.b32.xlu0 %v235, 120
  %v930 = vpop.permute.xlu0 %929
  %931 = vrot.lane.b32.xlu0 %v240, 120
  %v932 = vpop.permute.xlu0 %931
  %933 = vrot.lane.b32.xlu0 %v245, 120
  %v934 = vpop.permute.xlu0 %933
  %935 = vrot.lane.b32.xlu0 %v250, 120
  %v936 = vpop.permute.xlu0 %935
  %937 = vrot.lane.b32.xlu0 %v255, 120
  %v938 = vpop.permute.xlu0 %937
  %939 = vrot.lane.b32.xlu0 %v260, 120
  %v940 = vpop.permute.xlu0 %939
  %941 = vrot.lane.b32.xlu0 %v265, 120
  %v942 = vpop.permute.xlu0 %941
  %943 = vrot.lane.b32.xlu0 %v190, 88
  %v944 = vpop.permute.xlu0 %943
  %945 = vrot.lane.b32.xlu0 %v195, 88
  %v946 = vpop.permute.xlu0 %945
  %947 = vrot.lane.b32.xlu0 %v200, 88
  %v948 = vpop.permute.xlu0 %947
  %949 = vrot.lane.b32.xlu0 %v205, 88
  %v950 = vpop.permute.xlu0 %949
  %951 = vrot.lane.b32.xlu0 %v210, 88
  %v952 = vpop.permute.xlu0 %951
  %953 = vrot.lane.b32.xlu0 %v215, 88
  %v954 = vpop.permute.xlu0 %953
  %955 = vrot.lane.b32.xlu0 %v220, 88
  %v956 = vpop.permute.xlu0 %955
  %957 = vrot.lane.b32.xlu0 %v225, 88
  %v958 = vpop.permute.xlu0 %957
  %959 = vrot.lane.b32.xlu0 %v230, 88
  %v960 = vpop.permute.xlu0 %959
  %961 = vrot.lane.b32.xlu0 %v235, 88
  %v962 = vpop.permute.xlu0 %961
  %963 = vrot.lane.b32.xlu0 %v240, 88
  %v964 = vpop.permute.xlu0 %963
  %965 = vrot.lane.b32.xlu0 %v245, 88
  %v966 = vpop.permute.xlu0 %965
  %967 = vrot.lane.b32.xlu0 %v250, 88
  %v968 = vpop.permute.xlu0 %967
  %969 = vrot.lane.b32.xlu0 %v255, 88
  %v970 = vpop.permute.xlu0 %969
  %971 = vrot.lane.b32.xlu0 %v260, 88
  %v972 = vpop.permute.xlu0 %971
  %973 = vrot.lane.b32.xlu0 %v265, 88
  %v974 = vpop.permute.xlu0 %973
  %v975 = vsel %vm332, %v912, 0
  %v977 = vsel %vm332, %v914, 0
  %v979 = vsel %vm332, %v916, 0
  %v981 = vsel %vm332, %v918, 0
  %v983 = vsel %vm332, %v920, 0
  %v985 = vsel %vm332, %v922, 0
  %v987 = vsel %vm332, %v924, 0
  %v989 = vsel %vm332, %v926, 0
  %v991 = vsel %vm332, %v928, 0
  %v993 = vsel %vm332, %v930, 0
  %v995 = vsel %vm332, %v932, 0
  %v997 = vsel %vm332, %v934, 0
  %v999 = vsel %vm332, %v936, 0
  %v1001 = vsel %vm332, %v938, 0
  %v1003 = vsel %vm332, %v940, 0
  %v1005 = vsel %vm332, %v942, 0
  %v1007 = vsel %vm332, %v944, 0
  %v1009 = vsel %vm332, %v946, 0
  %v1011 = vsel %vm332, %v948, 0
  %v1013 = vsel %vm332, %v950, 0
  %v1015 = vsel %vm332, %v952, 0
  %v1017 = vsel %vm332, %v954, 0
  %v1019 = vsel %vm332, %v956, 0
  %v1021 = vsel %vm332, %v958, 0
  %v1023 = vsel %vm332, %v960, 0
  %v1025 = vsel %vm332, %v962, 0
  %v1027 = vsel %vm332, %v964, 0
  %v1029 = vsel %vm332, %v966, 0
  %v1031 = vsel %vm332, %v968, 0
  %v1033 = vsel %vm332, %v970, 0
  %v1035 = vsel %vm332, %v972, 0
  %v1037 = vsel %vm332, %v974, 0
  %1039 = vmatprep.subr.mxu0 0.0
  %1040 = vmatpush1.xpose.msra.mxu0 %v1037
  %1041 = vmatprep.subr.mxu0 0.0
  %1042 = vmatpush1.xpose.msra.mxu0 %v1035
  %1043 = vmatprep.subr.mxu0 0.0
  %1044 = vmatpush1.xpose.msra.mxu0 %v1033
  %1045 = vmatprep.subr.mxu0 0.0
  %1046 = vmatpush1.xpose.msra.mxu0 %v1031
  %1047 = vmatprep.subr.mxu0 0.0
  %1048 = vmatpush1.xpose.msra.mxu0 %v1029
  %1049 = vmatprep.subr.mxu0 0.0
  %1050 = vmatpush1.xpose.msra.mxu0 %v1027
  %1051 = vmatprep.subr.mxu0 0.0
  %1052 = vmatpush1.xpose.msra.mxu0 %v1025
  %1053 = vmatprep.subr.mxu0 0.0
  %1054 = vmatpush1.xpose.msra.mxu0 %v1023
  %1055 = vmatprep.subr.mxu0 0.0
  %1056 = vmatpush1.xpose.msra.mxu0 %v1021
  %1057 = vmatprep.subr.mxu0 0.0
  %1058 = vmatpush1.xpose.msra.mxu0 %v1019
  %1059 = vmatprep.subr.mxu0 0.0
  %1060 = vmatpush1.xpose.msra.mxu0 %v1017
  %1061 = vmatprep.subr.mxu0 0.0
  %1062 = vmatpush1.xpose.msra.mxu0 %v1015
  %1063 = vmatprep.subr.mxu0 0.0
  %1064 = vmatpush1.xpose.msra.mxu0 %v1013
  %1065 = vmatprep.subr.mxu0 0.0
  %1066 = vmatpush1.xpose.msra.mxu0 %v1011
  %1067 = vmatprep.subr.mxu0 0.0
  %1068 = vmatpush1.xpose.msra.mxu0 %v1009
  %1069 = vmatprep.subr.mxu0 0.0
  %1070 = vmatpush1.xpose.msra.mxu0 %v1007
  %1071 = vmatprep.subr.mxu0 0.0
  %1072 = vmatpush2.xpose.msra.mxu0 0.0
  %1073 = vmatprep.subr.mxu0 0.0
  %1074 = vmatpush2.xpose.msra.mxu0 0.0
  %1075 = vmatprep.subr.mxu0 0.0
  %1076 = vmatpush2.xpose.msra.mxu0 0.0
  %1077 = vmatprep.subr.mxu0 0.0
  %1078 = vmatpush2.xpose.msra.mxu0 0.0
  %1079 = vmatprep.subr.mxu0 0.0
  %1080 = vmatpush2.xpose.msra.mxu0 0.0
  %1081 = vmatprep.subr.mxu0 0.0
  %1082 = vmatpush2.xpose.msra.mxu0 0.0
  %1083 = vmatprep.subr.mxu0 0.0
  %1084 = vmatpush2.xpose.msra.mxu0 0.0
  %1085 = vmatprep.subr.mxu0 0.0
  %1086 = vmatpush2.xpose.msra.mxu0 0.0
  %1087 = vmatprep.subr.mxu0 0.0
  %1088 = vmatpush2.xpose.msra.mxu0 0.0
  %1089 = vmatprep.subr.mxu0 0.0
  %1090 = vmatpush2.xpose.msra.mxu0 0.0
  %1091 = vmatprep.subr.mxu0 0.0
  %1092 = vmatpush2.xpose.msra.mxu0 0.0
  %1093 = vmatprep.subr.mxu0 0.0
  %1094 = vmatpush2.xpose.msra.mxu0 0.0
  %1095 = vmatprep.subr.mxu0 0.0
  %1096 = vmatpush2.xpose.msra.mxu0 0.0
  %1097 = vmatprep.subr.mxu0 0.0
  %1098 = vmatpush2.xpose.msra.mxu0 0.0
  %1099 = vmatprep.subr.mxu0 0.0
  %1100 = vmatpush2.xpose.msra.mxu0 0.0
  %1101 = vmatprep.subr.mxu0 0.0
  %1102 = vmatpush2.xpose.msra.mxu0 0.0
  %1103 = vmatprep.mubr.f32.mxu0 0.0
  %1104 = vmatmul.mubr.f32.gmra.mxu0 %v975
  %v1105 = vpop.f32.mrf.mxu0
  %v1106 = vadd.f32 %v895, %v1105
  %v1107 = vpop.f32.mrf.mxu0
  %1108 = vmatprep.mubr.f32.mxu0 0.0
  %1109 = vmatmul.mubr.f32.gmra.mxu0 %v977
  %v1110 = vpop.f32.mrf.mxu0
  %v1111 = vadd.f32 %v896, %v1110
  %v1112 = vpop.f32.mrf.mxu0
  %1113 = vmatprep.mubr.f32.mxu0 0.0
  %1114 = vmatmul.mubr.f32.gmra.mxu0 %v979
  %v1115 = vpop.f32.mrf.mxu0
  %v1116 = vadd.f32 %v897, %v1115
  %v1117 = vpop.f32.mrf.mxu0
  %1118 = vmatprep.mubr.f32.mxu0 0.0
  %1119 = vmatmul.mubr.f32.gmra.mxu0 %v981
  %v1120 = vpop.f32.mrf.mxu0
  %v1121 = vadd.f32 %v898, %v1120
  %v1122 = vpop.f32.mrf.mxu0
  %1123 = vmatprep.mubr.f32.mxu0 0.0
  %1124 = vmatmul.mubr.f32.gmra.mxu0 %v983
  %v1125 = vpop.f32.mrf.mxu0
  %v1126 = vadd.f32 %v899, %v1125
  %v1127 = vpop.f32.mrf.mxu0
  %1128 = vmatprep.mubr.f32.mxu0 0.0
  %1129 = vmatmul.mubr.f32.gmra.mxu0 %v985
  %v1130 = vpop.f32.mrf.mxu0
  %v1131 = vadd.f32 %v900, %v1130
  %v1132 = vpop.f32.mrf.mxu0
  %1133 = vmatprep.mubr.f32.mxu0 0.0
  %1134 = vmatmul.mubr.f32.gmra.mxu0 %v987
  %v1135 = vpop.f32.mrf.mxu0
  %v1136 = vadd.f32 %v901, %v1135
  %v1137 = vpop.f32.mrf.mxu0
  %1138 = vmatprep.mubr.f32.mxu0 0.0
  %1139 = vmatmul.mubr.f32.gmra.mxu0 %v989
  %v1140 = vpop.f32.mrf.mxu0
  %v1141 = vadd.f32 %v902, %v1140
  %v1142 = vpop.f32.mrf.mxu0
  %1143 = vmatprep.mubr.f32.mxu0 0.0
  %1144 = vmatmul.mubr.f32.gmra.mxu0 %v991
  %v1145 = vpop.f32.mrf.mxu0
  %v1146 = vadd.f32 %v903, %v1145
  %v1147 = vpop.f32.mrf.mxu0
  %1148 = vmatprep.mubr.f32.mxu0 0.0
  %1149 = vmatmul.mubr.f32.gmra.mxu0 %v993
  %v1150 = vpop.f32.mrf.mxu0
  %v1151 = vadd.f32 %v904, %v1150
  %v1152 = vpop.f32.mrf.mxu0
  %1153 = vmatprep.mubr.f32.mxu0 0.0
  %1154 = vmatmul.mubr.f32.gmra.mxu0 %v995
  %v1155 = vpop.f32.mrf.mxu0
  %v1156 = vadd.f32 %v905, %v1155
  %v1157 = vpop.f32.mrf.mxu0
  %1158 = vmatprep.mubr.f32.mxu0 0.0
  %1159 = vmatmul.mubr.f32.gmra.mxu0 %v997
  %v1160 = vpop.f32.mrf.mxu0
  %v1161 = vadd.f32 %v906, %v1160
  %v1162 = vpop.f32.mrf.mxu0
  %1163 = vmatprep.mubr.f32.mxu0 0.0
  %1164 = vmatmul.mubr.f32.gmra.mxu0 %v999
  %v1165 = vpop.f32.mrf.mxu0
  %v1166 = vadd.f32 %v907, %v1165
  %v1167 = vpop.f32.mrf.mxu0
  %1168 = vmatprep.mubr.f32.mxu0 0.0
  %1169 = vmatmul.mubr.f32.gmra.mxu0 %v1001
  %v1170 = vpop.f32.mrf.mxu0
  %v1171 = vadd.f32 %v908, %v1170
  %v1172 = vpop.f32.mrf.mxu0
  %1173 = vmatprep.mubr.f32.mxu0 0.0
  %1174 = vmatmul.mubr.f32.gmra.mxu0 %v1003
  %v1175 = vpop.f32.mrf.mxu0
  %v1176 = vadd.f32 %v909, %v1175
  %v1177 = vpop.f32.mrf.mxu0
  %1178 = vmatprep.mubr.f32.mxu0 0.0
  %1179 = vmatmul.mubr.f32.gmra.mxu0 %v1005
  %v1180 = vpop.f32.mrf.mxu0
  %v1181 = vadd.f32 %v910, %v1180
  %v1182 = vpop.f32.mrf.mxu0
  %1183 = vdwg.mxu0
  %1184 = vmax.xlane.f32.xlu0 %v1106
  %v1185 = vpop.xlane.xlu0 %1184
  %1186 = vmax.xlane.f32.xlu0 %v1111
  %v1187 = vpop.xlane.xlu0 %1186
  %1188 = vmax.xlane.f32.xlu0 %v1116
  %v1189 = vpop.xlane.xlu0 %1188
  %1190 = vmax.xlane.f32.xlu0 %v1121
  %v1191 = vpop.xlane.xlu0 %1190
  %1192 = vmax.xlane.f32.xlu0 %v1126
  %v1193 = vpop.xlane.xlu0 %1192
  %1194 = vmax.xlane.f32.xlu0 %v1131
  %v1195 = vpop.xlane.xlu0 %1194
  %1196 = vmax.xlane.f32.xlu0 %v1136
  %v1197 = vpop.xlane.xlu0 %1196
  %1198 = vmax.xlane.f32.xlu0 %v1141
  %v1199 = vpop.xlane.xlu0 %1198
  %1200 = vmax.xlane.f32.xlu0 %v1146
  %v1201 = vpop.xlane.xlu0 %1200
  %1202 = vmax.xlane.f32.xlu0 %v1151
  %v1203 = vpop.xlane.xlu0 %1202
  %1204 = vmax.xlane.f32.xlu0 %v1156
  %v1205 = vpop.xlane.xlu0 %1204
  %1206 = vmax.xlane.f32.xlu0 %v1161
  %v1207 = vpop.xlane.xlu0 %1206
  %1208 = vmax.xlane.f32.xlu0 %v1166
  %v1209 = vpop.xlane.xlu0 %1208
  %1210 = vmax.xlane.f32.xlu0 %v1171
  %v1211 = vpop.xlane.xlu0 %1210
  %1212 = vmax.xlane.f32.xlu0 %v1176
  %v1213 = vpop.xlane.xlu0 %1212
  %1214 = vmax.xlane.f32.xlu0 %v1181
  %v1215 = vpop.xlane.xlu0 %1214
  %v1216 = vsub.f32 %v1106, %v1185
  %v1217 = vsub.f32 %v1111, %v1187
  %v1218 = vsub.f32 %v1116, %v1189
  %v1219 = vsub.f32 %v1121, %v1191
  %v1220 = vsub.f32 %v1126, %v1193
  %v1221 = vsub.f32 %v1131, %v1195
  %v1222 = vsub.f32 %v1136, %v1197
  %v1223 = vsub.f32 %v1141, %v1199
  %v1224 = vsub.f32 %v1146, %v1201
  %v1225 = vsub.f32 %v1151, %v1203
  %v1226 = vsub.f32 %v1156, %v1205
  %v1227 = vsub.f32 %v1161, %v1207
  %v1228 = vsub.f32 %v1166, %v1209
  %v1229 = vsub.f32 %v1171, %v1211
  %v1230 = vsub.f32 %v1176, %v1213
  %v1231 = vsub.f32 %v1181, %v1215
  %v1232 = vmul.f32 %v1216, 1.442695
  %v1233 = vpow.pop %v1232
  %v1234 = vmul.f32 %v1217, 1.442695
  %v1235 = vpow.pop %v1234
  %v1236 = vmul.f32 %v1218, 1.442695
  %v1237 = vpow.pop %v1236
  %v1238 = vmul.f32 %v1219, 1.442695
  %v1239 = vpow.pop %v1238
  %v1240 = vmul.f32 %v1220, 1.442695
  %v1241 = vpow.pop %v1240
  %v1242 = vmul.f32 %v1221, 1.442695
  %v1243 = vpow.pop %v1242
  %v1244 = vmul.f32 %v1222, 1.442695
  %v1245 = vpow.pop %v1244
  %v1246 = vmul.f32 %v1223, 1.442695
  %v1247 = vpow.pop %v1246
  %v1248 = vmul.f32 %v1224, 1.442695
  %v1249 = vpow.pop %v1248
  %v1250 = vmul.f32 %v1225, 1.442695
  %v1251 = vpow.pop %v1250
  %v1252 = vmul.f32 %v1226, 1.442695
  %v1253 = vpow.pop %v1252
  %v1254 = vmul.f32 %v1227, 1.442695
  %v1255 = vpow.pop %v1254
  %v1256 = vmul.f32 %v1228, 1.442695
  %v1257 = vpow.pop %v1256
  %v1258 = vmul.f32 %v1229, 1.442695
  %v1259 = vpow.pop %v1258
  %v1260 = vmul.f32 %v1230, 1.442695
  %v1261 = vpow.pop %v1260
  %v1262 = vmul.f32 %v1231, 1.442695
  %v1263 = vpow.pop %v1262
  %1264 = vadd.xlane.f32.xlu0 %v1233
  %v1265 = vpop.xlane.xlu0 %1264
  %1266 = vadd.xlane.f32.xlu0 %v1235
  %v1267 = vpop.xlane.xlu0 %1266
  %1268 = vadd.xlane.f32.xlu0 %v1237
  %v1269 = vpop.xlane.xlu0 %1268
  %1270 = vadd.xlane.f32.xlu0 %v1239
  %v1271 = vpop.xlane.xlu0 %1270
  %1272 = vadd.xlane.f32.xlu0 %v1241
  %v1273 = vpop.xlane.xlu0 %1272
  %1274 = vadd.xlane.f32.xlu0 %v1243
  %v1275 = vpop.xlane.xlu0 %1274
  %1276 = vadd.xlane.f32.xlu0 %v1245
  %v1277 = vpop.xlane.xlu0 %1276
  %1278 = vadd.xlane.f32.xlu0 %v1247
  %v1279 = vpop.xlane.xlu0 %1278
  %1280 = vadd.xlane.f32.xlu0 %v1249
  %v1281 = vpop.xlane.xlu0 %1280
  %1282 = vadd.xlane.f32.xlu0 %v1251
  %v1283 = vpop.xlane.xlu0 %1282
  %1284 = vadd.xlane.f32.xlu0 %v1253
  %v1285 = vpop.xlane.xlu0 %1284
  %1286 = vadd.xlane.f32.xlu0 %v1255
  %v1287 = vpop.xlane.xlu0 %1286
  %1288 = vadd.xlane.f32.xlu0 %v1257
  %v1289 = vpop.xlane.xlu0 %1288
  %1290 = vadd.xlane.f32.xlu0 %v1259
  %v1291 = vpop.xlane.xlu0 %1290
  %1292 = vadd.xlane.f32.xlu0 %v1261
  %v1293 = vpop.xlane.xlu0 %1292
  %1294 = vadd.xlane.f32.xlu0 %v1263
  %v1295 = vpop.xlane.xlu0 %1294
  %v1296 = vrcp.pop %v1265
  %v1297 = vmul.f32 %v1233, %v1296
  %v1298 = vrcp.pop %v1267
  %v1299 = vmul.f32 %v1235, %v1298
  %v1300 = vrcp.pop %v1269
  %v1301 = vmul.f32 %v1237, %v1300
  %v1302 = vrcp.pop %v1271
  %v1303 = vmul.f32 %v1239, %v1302
  %v1304 = vrcp.pop %v1273
  %v1305 = vmul.f32 %v1241, %v1304
  %v1306 = vrcp.pop %v1275
  %v1307 = vmul.f32 %v1243, %v1306
  %v1308 = vrcp.pop %v1277
  %v1309 = vmul.f32 %v1245, %v1308
  %v1310 = vrcp.pop %v1279
  %v1311 = vmul.f32 %v1247, %v1310
  %v1312 = vrcp.pop %v1281
  %v1313 = vmul.f32 %v1249, %v1312
  %v1314 = vrcp.pop %v1283
  %v1315 = vmul.f32 %v1251, %v1314
  %v1316 = vrcp.pop %v1285
  %v1317 = vmul.f32 %v1253, %v1316
  %v1318 = vrcp.pop %v1287
  %v1319 = vmul.f32 %v1255, %v1318
  %v1320 = vrcp.pop %v1289
  %v1321 = vmul.f32 %v1257, %v1320
  %v1322 = vrcp.pop %v1291
  %v1323 = vmul.f32 %v1259, %v1322
  %v1324 = vrcp.pop %v1293
  %v1325 = vmul.f32 %v1261, %v1324
  %v1326 = vrcp.pop %v1295
  %v1327 = vmul.f32 %v1263, %v1326
  %1328 = vrot.lane.b32.xlu0 %v190, 56
  %v1329 = vpop.permute.xlu0 %1328
  %1330 = vrot.lane.b32.xlu0 %v195, 56
  %v1331 = vpop.permute.xlu0 %1330
  %1332 = vrot.lane.b32.xlu0 %v200, 56
  %v1333 = vpop.permute.xlu0 %1332
  %1334 = vrot.lane.b32.xlu0 %v205, 56
  %v1335 = vpop.permute.xlu0 %1334
  %1336 = vrot.lane.b32.xlu0 %v210, 56
  %v1337 = vpop.permute.xlu0 %1336
  %1338 = vrot.lane.b32.xlu0 %v215, 56
  %v1339 = vpop.permute.xlu0 %1338
  %1340 = vrot.lane.b32.xlu0 %v220, 56
  %v1341 = vpop.permute.xlu0 %1340
  %1342 = vrot.lane.b32.xlu0 %v225, 56
  %v1343 = vpop.permute.xlu0 %1342
  %1344 = vrot.lane.b32.xlu0 %v230, 56
  %v1345 = vpop.permute.xlu0 %1344
  %1346 = vrot.lane.b32.xlu0 %v235, 56
  %v1347 = vpop.permute.xlu0 %1346
  %1348 = vrot.lane.b32.xlu0 %v240, 56
  %v1349 = vpop.permute.xlu0 %1348
  %1350 = vrot.lane.b32.xlu0 %v245, 56
  %v1351 = vpop.permute.xlu0 %1350
  %1352 = vrot.lane.b32.xlu0 %v250, 56
  %v1353 = vpop.permute.xlu0 %1352
  %1354 = vrot.lane.b32.xlu0 %v255, 56
  %v1355 = vpop.permute.xlu0 %1354
  %1356 = vrot.lane.b32.xlu0 %v260, 56
  %v1357 = vpop.permute.xlu0 %1356
  %1358 = vrot.lane.b32.xlu0 %v265, 56
  %v1359 = vpop.permute.xlu0 %1358
  %1376 = vmatprep.subr.mxu0 0.0
  %1377 = vmatpush1.msra.mxu0 %v1359
  %1378 = vmatprep.subr.mxu0 0.0
  %1379 = vmatpush1.msra.mxu0 %v1357
  %1380 = vmatprep.subr.mxu0 0.0
  %1381 = vmatpush1.msra.mxu0 %v1355
  %1382 = vmatprep.subr.mxu0 0.0
  %1383 = vmatpush1.msra.mxu0 %v1353
  %1384 = vmatprep.subr.mxu0 0.0
  %1385 = vmatpush1.msra.mxu0 %v1351
  %1386 = vmatprep.subr.mxu0 0.0
  %1387 = vmatpush1.msra.mxu0 %v1349
  %1388 = vmatprep.subr.mxu0 0.0
  %1389 = vmatpush1.msra.mxu0 %v1347
  %1390 = vmatprep.subr.mxu0 0.0
  %1391 = vmatpush1.msra.mxu0 %v1345
  %1392 = vmatprep.subr.mxu0 0.0
  %1393 = vmatpush1.msra.mxu0 %v1343
  %1394 = vmatprep.subr.mxu0 0.0
  %1395 = vmatpush1.msra.mxu0 %v1341
  %1396 = vmatprep.subr.mxu0 0.0
  %1397 = vmatpush1.msra.mxu0 %v1339
  %1398 = vmatprep.subr.mxu0 0.0
  %1399 = vmatpush1.msra.mxu0 %v1337
  %1400 = vmatprep.subr.mxu0 0.0
  %1401 = vmatpush1.msra.mxu0 %v1335
  %1402 = vmatprep.subr.mxu0 0.0
  %1403 = vmatpush1.msra.mxu0 %v1333
  %1404 = vmatprep.subr.mxu0 0.0
  %1405 = vmatpush1.msra.mxu0 %v1331
  %1406 = vmatprep.subr.mxu0 0.0
  %1407 = vmatpush1.msra.mxu0 %v1329
  %1408 = vmatprep.subr.mxu0 0.0
  %1409 = vmatpush2.msra.mxu0 0.0
  %1410 = vmatprep.subr.mxu0 0.0
  %1411 = vmatpush2.msra.mxu0 0.0
  %1412 = vmatprep.subr.mxu0 0.0
  %1413 = vmatpush2.msra.mxu0 0.0
  %1414 = vmatprep.subr.mxu0 0.0
  %1415 = vmatpush2.msra.mxu0 0.0
  %1416 = vmatprep.subr.mxu0 0.0
  %1417 = vmatpush2.msra.mxu0 0.0
  %1418 = vmatprep.subr.mxu0 0.0
  %1419 = vmatpush2.msra.mxu0 0.0
  %1420 = vmatprep.subr.mxu0 0.0
  %1421 = vmatpush2.msra.mxu0 0.0
  %1422 = vmatprep.subr.mxu0 0.0
  %1423 = vmatpush2.msra.mxu0 0.0
  %1424 = vmatprep.subr.mxu0 0.0
  %1425 = vmatpush2.msra.mxu0 0.0
  %1426 = vmatprep.subr.mxu0 0.0
  %1427 = vmatpush2.msra.mxu0 0.0
  %1428 = vmatprep.subr.mxu0 0.0
  %1429 = vmatpush2.msra.mxu0 0.0
  %1430 = vmatprep.subr.mxu0 0.0
  %1431 = vmatpush2.msra.mxu0 0.0
  %1432 = vmatprep.subr.mxu0 0.0
  %1433 = vmatpush2.msra.mxu0 0.0
  %1434 = vmatprep.subr.mxu0 0.0
  %1435 = vmatpush2.msra.mxu0 0.0
  %1436 = vmatprep.subr.mxu0 0.0
  %1437 = vmatpush2.msra.mxu0 0.0
  %1438 = vmatprep.subr.mxu0 0.0
  %1439 = vmatpush2.msra.mxu0 0.0
  %1440 = vmatprep.mubr.f32.mxu0 0.0
  %1441 = vmatmul.mubr.f32.gmra.mxu0 %v1297
  %v1442 = vpop.f32.mrf.mxu0
  %v1443 = vadd.f32 0.0, %v1442
  %v1444 = vpop.f32.mrf.mxu0
  %1445 = vmatprep.mubr.f32.mxu0 0.0
  %1446 = vmatmul.mubr.f32.gmra.mxu0 %v1299
  %v1447 = vpop.f32.mrf.mxu0
  %v1448 = vadd.f32 0.0, %v1447
  %v1449 = vpop.f32.mrf.mxu0
  %1450 = vmatprep.mubr.f32.mxu0 0.0
  %1451 = vmatmul.mubr.f32.gmra.mxu0 %v1301
  %v1452 = vpop.f32.mrf.mxu0
  %v1453 = vadd.f32 0.0, %v1452
  %v1454 = vpop.f32.mrf.mxu0
  %1455 = vmatprep.mubr.f32.mxu0 0.0
  %1456 = vmatmul.mubr.f32.gmra.mxu0 %v1303
  %v1457 = vpop.f32.mrf.mxu0
  %v1458 = vadd.f32 0.0, %v1457
  %v1459 = vpop.f32.mrf.mxu0
  %1460 = vmatprep.mubr.f32.mxu0 0.0
  %1461 = vmatmul.mubr.f32.gmra.mxu0 %v1305
  %v1462 = vpop.f32.mrf.mxu0
  %v1463 = vadd.f32 0.0, %v1462
  %v1464 = vpop.f32.mrf.mxu0
  %1465 = vmatprep.mubr.f32.mxu0 0.0
  %1466 = vmatmul.mubr.f32.gmra.mxu0 %v1307
  %v1467 = vpop.f32.mrf.mxu0
  %v1468 = vadd.f32 0.0, %v1467
  %v1469 = vpop.f32.mrf.mxu0
  %1470 = vmatprep.mubr.f32.mxu0 0.0
  %1471 = vmatmul.mubr.f32.gmra.mxu0 %v1309
  %v1472 = vpop.f32.mrf.mxu0
  %v1473 = vadd.f32 0.0, %v1472
  %v1474 = vpop.f32.mrf.mxu0
  %1475 = vmatprep.mubr.f32.mxu0 0.0
  %1476 = vmatmul.mubr.f32.gmra.mxu0 %v1311
  %v1477 = vpop.f32.mrf.mxu0
  %v1478 = vadd.f32 0.0, %v1477
  %v1479 = vpop.f32.mrf.mxu0
  %1480 = vmatprep.mubr.f32.mxu0 0.0
  %1481 = vmatmul.mubr.f32.gmra.mxu0 %v1313
  %v1482 = vpop.f32.mrf.mxu0
  %v1483 = vadd.f32 0.0, %v1482
  %v1484 = vpop.f32.mrf.mxu0
  %1485 = vmatprep.mubr.f32.mxu0 0.0
  %1486 = vmatmul.mubr.f32.gmra.mxu0 %v1315
  %v1487 = vpop.f32.mrf.mxu0
  %v1488 = vadd.f32 0.0, %v1487
  %v1489 = vpop.f32.mrf.mxu0
  %1490 = vmatprep.mubr.f32.mxu0 0.0
  %1491 = vmatmul.mubr.f32.gmra.mxu0 %v1317
  %v1492 = vpop.f32.mrf.mxu0
  %v1493 = vadd.f32 0.0, %v1492
  %v1494 = vpop.f32.mrf.mxu0
  %1495 = vmatprep.mubr.f32.mxu0 0.0
  %1496 = vmatmul.mubr.f32.gmra.mxu0 %v1319
  %v1497 = vpop.f32.mrf.mxu0
  %v1498 = vadd.f32 0.0, %v1497
  %v1499 = vpop.f32.mrf.mxu0
  %1500 = vmatprep.mubr.f32.mxu0 0.0
  %1501 = vmatmul.mubr.f32.gmra.mxu0 %v1321
  %v1502 = vpop.f32.mrf.mxu0
  %v1503 = vadd.f32 0.0, %v1502
  %v1504 = vpop.f32.mrf.mxu0
  %1505 = vmatprep.mubr.f32.mxu0 0.0
  %1506 = vmatmul.mubr.f32.gmra.mxu0 %v1323
  %v1507 = vpop.f32.mrf.mxu0
  %v1508 = vadd.f32 0.0, %v1507
  %v1509 = vpop.f32.mrf.mxu0
  %1510 = vmatprep.mubr.f32.mxu0 0.0
  %1511 = vmatmul.mubr.f32.gmra.mxu0 %v1325
  %v1512 = vpop.f32.mrf.mxu0
  %v1513 = vadd.f32 0.0, %v1512
  %v1514 = vpop.f32.mrf.mxu0
  %1515 = vmatprep.mubr.f32.mxu0 0.0
  %1516 = vmatmul.mubr.f32.gmra.mxu0 %v1327
  %v1517 = vpop.f32.mrf.mxu0
  %v1518 = vadd.f32 0.0, %v1517
  %v1519 = vpop.f32.mrf.mxu0
  %1520 = vdwg.mxu0
  %1537 = vrot.lane.b32.xlu0 %v1443, 8
  %v1538 = vpop.permute.xlu0 %1537
  %1539 = vrot.lane.b32.xlu0 %v1448, 8
  %v1540 = vpop.permute.xlu0 %1539
  %1541 = vrot.lane.b32.xlu0 %v1453, 8
  %v1542 = vpop.permute.xlu0 %1541
  %1543 = vrot.lane.b32.xlu0 %v1458, 8
  %v1544 = vpop.permute.xlu0 %1543
  %1545 = vrot.lane.b32.xlu0 %v1463, 8
  %v1546 = vpop.permute.xlu0 %1545
  %1547 = vrot.lane.b32.xlu0 %v1468, 8
  %v1548 = vpop.permute.xlu0 %1547
  %1549 = vrot.lane.b32.xlu0 %v1473, 8
  %v1550 = vpop.permute.xlu0 %1549
  %1551 = vrot.lane.b32.xlu0 %v1478, 8
  %v1552 = vpop.permute.xlu0 %1551
  %1553 = vrot.lane.b32.xlu0 %v1483, 8
  %v1554 = vpop.permute.xlu0 %1553
  %1555 = vrot.lane.b32.xlu0 %v1488, 8
  %v1556 = vpop.permute.xlu0 %1555
  %1557 = vrot.lane.b32.xlu0 %v1493, 8
  %v1558 = vpop.permute.xlu0 %1557
  %1559 = vrot.lane.b32.xlu0 %v1498, 8
  %v1560 = vpop.permute.xlu0 %1559
  %1561 = vrot.lane.b32.xlu0 %v1503, 8
  %v1562 = vpop.permute.xlu0 %1561
  %1563 = vrot.lane.b32.xlu0 %v1508, 8
  %v1564 = vpop.permute.xlu0 %1563
  %1565 = vrot.lane.b32.xlu0 %v1513, 8
  %v1566 = vpop.permute.xlu0 %1565
  %1567 = vrot.lane.b32.xlu0 %v1518, 8
  %v1568 = vpop.permute.xlu0 %1567
  %vm1585 = vcmask 130112
  %1586 = vst.msk [vmem:[#allocation2] sm:$0xff] %vm1585, %v1538
  %1587 = vst.msk [vmem:[#allocation2 + $0x8] sm:$0xff] %vm1585, %v1540
  %1588 = vst.msk [vmem:[#allocation2 + $0x10] sm:$0xff] %vm1585, %v1542
  %1589 = vst.msk [vmem:[#allocation2 + $0x18] sm:$0xff] %vm1585, %v1544
  %1590 = vst.msk [vmem:[#allocation2 + $0x20] sm:$0xff] %vm1585, %v1546
  %1591 = vst.msk [vmem:[#allocation2 + $0x28] sm:$0xff] %vm1585, %v1548
  %1592 = vst.msk [vmem:[#allocation2 + $0x30] sm:$0xff] %vm1585, %v1550
  %1593 = vst.msk [vmem:[#allocation2 + $0x38] sm:$0xff] %vm1585, %v1552
  %1594 = vst.msk [vmem:[#allocation2 + $0x40] sm:$0xff] %vm1585, %v1554
  %1595 = vst.msk [vmem:[#allocation2 + $0x48] sm:$0xff] %vm1585, %v1556
  %1596 = vst.msk [vmem:[#allocation2 + $0x50] sm:$0xff] %vm1585, %v1558
  %1597 = vst.msk [vmem:[#allocation2 + $0x58] sm:$0xff] %vm1585, %v1560
  %1598 = vst.msk [vmem:[#allocation2 + $0x60] sm:$0xff] %vm1585, %v1562
  %1599 = vst.msk [vmem:[#allocation2 + $0x68] sm:$0xff] %vm1585, %v1564
  %1600 = vst.msk [vmem:[#allocation2 + $0x70] sm:$0xff] %vm1585, %v1566
  %1601 = vst.msk [vmem:[#allocation2 + $0x78] sm:$0xff] %vm1585, %v1568
  %v1602 = vld [vmem:[%s1] sm:$0xff]
  %v1603 = vld [vmem:[%s1 + $0x8] sm:$0xff]
  %v1604 = vld [vmem:[%s1 + $0x10] sm:$0xff]
  %v1605 = vld [vmem:[%s1 + $0x18] sm:$0xff]
  %v1606 = vld [vmem:[%s1 + $0x20] sm:$0xff]
  %v1607 = vld [vmem:[%s1 + $0x28] sm:$0xff]
  %v1608 = vld [vmem:[%s1 + $0x30] sm:$0xff]
  %v1609 = vld [vmem:[%s1 + $0x38] sm:$0xff]
  %v1610 = vld [vmem:[%s1 + $0x40] sm:$0xff]
  %v1611 = vld [vmem:[%s1 + $0x48] sm:$0xff]
  %v1612 = vld [vmem:[%s1 + $0x50] sm:$0xff]
  %v1613 = vld [vmem:[%s1 + $0x58] sm:$0xff]
  %v1614 = vld [vmem:[%s1 + $0x60] sm:$0xff]
  %v1615 = vld [vmem:[%s1 + $0x68] sm:$0xff]
  %v1616 = vld [vmem:[%s1 + $0x70] sm:$0xff]
  %v1617 = vld [vmem:[%s1 + $0x78] sm:$0xff]
  %1618 = vrot.lane.b32.xlu0 %v190, 112
  %v1619 = vpop.permute.xlu0 %1618
  %1620 = vrot.lane.b32.xlu0 %v195, 112
  %v1621 = vpop.permute.xlu0 %1620
  %1622 = vrot.lane.b32.xlu0 %v200, 112
  %v1623 = vpop.permute.xlu0 %1622
  %1624 = vrot.lane.b32.xlu0 %v205, 112
  %v1625 = vpop.permute.xlu0 %1624
  %1626 = vrot.lane.b32.xlu0 %v210, 112
  %v1627 = vpop.permute.xlu0 %1626
  %1628 = vrot.lane.b32.xlu0 %v215, 112
  %v1629 = vpop.permute.xlu0 %1628
  %1630 = vrot.lane.b32.xlu0 %v220, 112
  %v1631 = vpop.permute.xlu0 %1630
  %1632 = vrot.lane.b32.xlu0 %v225, 112
  %v1633 = vpop.permute.xlu0 %1632
  %1634 = vrot.lane.b32.xlu0 %v230, 112
  %v1635 = vpop.permute.xlu0 %1634
  %1636 = vrot.lane.b32.xlu0 %v235, 112
  %v1637 = vpop.permute.xlu0 %1636
  %1638 = vrot.lane.b32.xlu0 %v240, 112
  %v1639 = vpop.permute.xlu0 %1638
  %1640 = vrot.lane.b32.xlu0 %v245, 112
  %v1641 = vpop.permute.xlu0 %1640
  %1642 = vrot.lane.b32.xlu0 %v250, 112
  %v1643 = vpop.permute.xlu0 %1642
  %1644 = vrot.lane.b32.xlu0 %v255, 112
  %v1645 = vpop.permute.xlu0 %1644
  %1646 = vrot.lane.b32.xlu0 %v260, 112
  %v1647 = vpop.permute.xlu0 %1646
  %1648 = vrot.lane.b32.xlu0 %v265, 112
  %v1649 = vpop.permute.xlu0 %1648
  %1650 = vrot.lane.b32.xlu0 %v190, 80
  %v1651 = vpop.permute.xlu0 %1650
  %1652 = vrot.lane.b32.xlu0 %v195, 80
  %v1653 = vpop.permute.xlu0 %1652
  %1654 = vrot.lane.b32.xlu0 %v200, 80
  %v1655 = vpop.permute.xlu0 %1654
  %1656 = vrot.lane.b32.xlu0 %v205, 80
  %v1657 = vpop.permute.xlu0 %1656
  %1658 = vrot.lane.b32.xlu0 %v210, 80
  %v1659 = vpop.permute.xlu0 %1658
  %1660 = vrot.lane.b32.xlu0 %v215, 80
  %v1661 = vpop.permute.xlu0 %1660
  %1662 = vrot.lane.b32.xlu0 %v220, 80
  %v1663 = vpop.permute.xlu0 %1662
  %1664 = vrot.lane.b32.xlu0 %v225, 80
  %v1665 = vpop.permute.xlu0 %1664
  %1666 = vrot.lane.b32.xlu0 %v230, 80
  %v1667 = vpop.permute.xlu0 %1666
  %1668 = vrot.lane.b32.xlu0 %v235, 80
  %v1669 = vpop.permute.xlu0 %1668
  %1670 = vrot.lane.b32.xlu0 %v240, 80
  %v1671 = vpop.permute.xlu0 %1670
  %1672 = vrot.lane.b32.xlu0 %v245, 80
  %v1673 = vpop.permute.xlu0 %1672
  %1674 = vrot.lane.b32.xlu0 %v250, 80
  %v1675 = vpop.permute.xlu0 %1674
  %1676 = vrot.lane.b32.xlu0 %v255, 80
  %v1677 = vpop.permute.xlu0 %1676
  %1678 = vrot.lane.b32.xlu0 %v260, 80
  %v1679 = vpop.permute.xlu0 %1678
  %1680 = vrot.lane.b32.xlu0 %v265, 80
  %v1681 = vpop.permute.xlu0 %1680
  %v1682 = vsel %vm332, %v1619, 0
  %v1684 = vsel %vm332, %v1621, 0
  %v1686 = vsel %vm332, %v1623, 0
  %v1688 = vsel %vm332, %v1625, 0
  %v1690 = vsel %vm332, %v1627, 0
  %v1692 = vsel %vm332, %v1629, 0
  %v1694 = vsel %vm332, %v1631, 0
  %v1696 = vsel %vm332, %v1633, 0
  %v1698 = vsel %vm332, %v1635, 0
  %v1700 = vsel %vm332, %v1637, 0
  %v1702 = vsel %vm332, %v1639, 0
  %v1704 = vsel %vm332, %v1641, 0
  %v1706 = vsel %vm332, %v1643, 0
  %v1708 = vsel %vm332, %v1645, 0
  %v1710 = vsel %vm332, %v1647, 0
  %v1712 = vsel %vm332, %v1649, 0
  %v1714 = vsel %vm332, %v1651, 0
  %v1716 = vsel %vm332, %v1653, 0
  %v1718 = vsel %vm332, %v1655, 0
  %v1720 = vsel %vm332, %v1657, 0
  %v1722 = vsel %vm332, %v1659, 0
  %v1724 = vsel %vm332, %v1661, 0
  %v1726 = vsel %vm332, %v1663, 0
  %v1728 = vsel %vm332, %v1665, 0
  %v1730 = vsel %vm332, %v1667, 0
  %v1732 = vsel %vm332, %v1669, 0
  %v1734 = vsel %vm332, %v1671, 0
  %v1736 = vsel %vm332, %v1673, 0
  %v1738 = vsel %vm332, %v1675, 0
  %v1740 = vsel %vm332, %v1677, 0
  %v1742 = vsel %vm332, %v1679, 0
  %v1744 = vsel %vm332, %v1681, 0
  %1746 = vmatprep.subr.mxu0 0.0
  %1747 = vmatpush1.xpose.msra.mxu0 %v1744
  %1748 = vmatprep.subr.mxu0 0.0
  %1749 = vmatpush1.xpose.msra.mxu0 %v1742
  %1750 = vmatprep.subr.mxu0 0.0
  %1751 = vmatpush1.xpose.msra.mxu0 %v1740
  %1752 = vmatprep.subr.mxu0 0.0
  %1753 = vmatpush1.xpose.msra.mxu0 %v1738
  %1754 = vmatprep.subr.mxu0 0.0
  %1755 = vmatpush1.xpose.msra.mxu0 %v1736
  %1756 = vmatprep.subr.mxu0 0.0
  %1757 = vmatpush1.xpose.msra.mxu0 %v1734
  %1758 = vmatprep.subr.mxu0 0.0
  %1759 = vmatpush1.xpose.msra.mxu0 %v1732
  %1760 = vmatprep.subr.mxu0 0.0
  %1761 = vmatpush1.xpose.msra.mxu0 %v1730
  %1762 = vmatprep.subr.mxu0 0.0
  %1763 = vmatpush1.xpose.msra.mxu0 %v1728
  %1764 = vmatprep.subr.mxu0 0.0
  %1765 = vmatpush1.xpose.msra.mxu0 %v1726
  %1766 = vmatprep.subr.mxu0 0.0
  %1767 = vmatpush1.xpose.msra.mxu0 %v1724
  %1768 = vmatprep.subr.mxu0 0.0
  %1769 = vmatpush1.xpose.msra.mxu0 %v1722
  %1770 = vmatprep.subr.mxu0 0.0
  %1771 = vmatpush1.xpose.msra.mxu0 %v1720
  %1772 = vmatprep.subr.mxu0 0.0
  %1773 = vmatpush1.xpose.msra.mxu0 %v1718
  %1774 = vmatprep.subr.mxu0 0.0
  %1775 = vmatpush1.xpose.msra.mxu0 %v1716
  %1776 = vmatprep.subr.mxu0 0.0
  %1777 = vmatpush1.xpose.msra.mxu0 %v1714
  %1778 = vmatprep.subr.mxu0 0.0
  %1779 = vmatpush2.xpose.msra.mxu0 0.0
  %1780 = vmatprep.subr.mxu0 0.0
  %1781 = vmatpush2.xpose.msra.mxu0 0.0
  %1782 = vmatprep.subr.mxu0 0.0
  %1783 = vmatpush2.xpose.msra.mxu0 0.0
  %1784 = vmatprep.subr.mxu0 0.0
  %1785 = vmatpush2.xpose.msra.mxu0 0.0
  %1786 = vmatprep.subr.mxu0 0.0
  %1787 = vmatpush2.xpose.msra.mxu0 0.0
  %1788 = vmatprep.subr.mxu0 0.0
  %1789 = vmatpush2.xpose.msra.mxu0 0.0
  %1790 = vmatprep.subr.mxu0 0.0
  %1791 = vmatpush2.xpose.msra.mxu0 0.0
  %1792 = vmatprep.subr.mxu0 0.0
  %1793 = vmatpush2.xpose.msra.mxu0 0.0
  %1794 = vmatprep.subr.mxu0 0.0
  %1795 = vmatpush2.xpose.msra.mxu0 0.0
  %1796 = vmatprep.subr.mxu0 0.0
  %1797 = vmatpush2.xpose.msra.mxu0 0.0
  %1798 = vmatprep.subr.mxu0 0.0
  %1799 = vmatpush2.xpose.msra.mxu0 0.0
  %1800 = vmatprep.subr.mxu0 0.0
  %1801 = vmatpush2.xpose.msra.mxu0 0.0
  %1802 = vmatprep.subr.mxu0 0.0
  %1803 = vmatpush2.xpose.msra.mxu0 0.0
  %1804 = vmatprep.subr.mxu0 0.0
  %1805 = vmatpush2.xpose.msra.mxu0 0.0
  %1806 = vmatprep.subr.mxu0 0.0
  %1807 = vmatpush2.xpose.msra.mxu0 0.0
  %1808 = vmatprep.subr.mxu0 0.0
  %1809 = vmatpush2.xpose.msra.mxu0 0.0
  %1810 = vmatprep.mubr.f32.mxu0 0.0
  %1811 = vmatmul.mubr.f32.gmra.mxu0 %v1682
  %v1812 = vpop.f32.mrf.mxu0
  %v1813 = vadd.f32 %v1602, %v1812
  %v1814 = vpop.f32.mrf.mxu0
  %1815 = vmatprep.mubr.f32.mxu0 0.0
  %1816 = vmatmul.mubr.f32.gmra.mxu0 %v1684
  %v1817 = vpop.f32.mrf.mxu0
  %v1818 = vadd.f32 %v1603, %v1817
  %v1819 = vpop.f32.mrf.mxu0
  %1820 = vmatprep.mubr.f32.mxu0 0.0
  %1821 = vmatmul.mubr.f32.gmra.mxu0 %v1686
  %v1822 = vpop.f32.mrf.mxu0
  %v1823 = vadd.f32 %v1604, %v1822
  %v1824 = vpop.f32.mrf.mxu0
  %1825 = vmatprep.mubr.f32.mxu0 0.0
  %1826 = vmatmul.mubr.f32.gmra.mxu0 %v1688
  %v1827 = vpop.f32.mrf.mxu0
  %v1828 = vadd.f32 %v1605, %v1827
  %v1829 = vpop.f32.mrf.mxu0
  %1830 = vmatprep.mubr.f32.mxu0 0.0
  %1831 = vmatmul.mubr.f32.gmra.mxu0 %v1690
  %v1832 = vpop.f32.mrf.mxu0
  %v1833 = vadd.f32 %v1606, %v1832
  %v1834 = vpop.f32.mrf.mxu0
  %1835 = vmatprep.mubr.f32.mxu0 0.0
  %1836 = vmatmul.mubr.f32.gmra.mxu0 %v1692
  %v1837 = vpop.f32.mrf.mxu0
  %v1838 = vadd.f32 %v1607, %v1837
  %v1839 = vpop.f32.mrf.mxu0
  %1840 = vmatprep.mubr.f32.mxu0 0.0
  %1841 = vmatmul.mubr.f32.gmra.mxu0 %v1694
  %v1842 = vpop.f32.mrf.mxu0
  %v1843 = vadd.f32 %v1608, %v1842
  %v1844 = vpop.f32.mrf.mxu0
  %1845 = vmatprep.mubr.f32.mxu0 0.0
  %1846 = vmatmul.mubr.f32.gmra.mxu0 %v1696
  %v1847 = vpop.f32.mrf.mxu0
  %v1848 = vadd.f32 %v1609, %v1847
  %v1849 = vpop.f32.mrf.mxu0
  %1850 = vmatprep.mubr.f32.mxu0 0.0
  %1851 = vmatmul.mubr.f32.gmra.mxu0 %v1698
  %v1852 = vpop.f32.mrf.mxu0
  %v1853 = vadd.f32 %v1610, %v1852
  %v1854 = vpop.f32.mrf.mxu0
  %1855 = vmatprep.mubr.f32.mxu0 0.0
  %1856 = vmatmul.mubr.f32.gmra.mxu0 %v1700
  %v1857 = vpop.f32.mrf.mxu0
  %v1858 = vadd.f32 %v1611, %v1857
  %v1859 = vpop.f32.mrf.mxu0
  %1860 = vmatprep.mubr.f32.mxu0 0.0
  %1861 = vmatmul.mubr.f32.gmra.mxu0 %v1702
  %v1862 = vpop.f32.mrf.mxu0
  %v1863 = vadd.f32 %v1612, %v1862
  %v1864 = vpop.f32.mrf.mxu0
  %1865 = vmatprep.mubr.f32.mxu0 0.0
  %1866 = vmatmul.mubr.f32.gmra.mxu0 %v1704
  %v1867 = vpop.f32.mrf.mxu0
  %v1868 = vadd.f32 %v1613, %v1867
  %v1869 = vpop.f32.mrf.mxu0
  %1870 = vmatprep.mubr.f32.mxu0 0.0
  %1871 = vmatmul.mubr.f32.gmra.mxu0 %v1706
  %v1872 = vpop.f32.mrf.mxu0
  %v1873 = vadd.f32 %v1614, %v1872
  %v1874 = vpop.f32.mrf.mxu0
  %1875 = vmatprep.mubr.f32.mxu0 0.0
  %1876 = vmatmul.mubr.f32.gmra.mxu0 %v1708
  %v1877 = vpop.f32.mrf.mxu0
  %v1878 = vadd.f32 %v1615, %v1877
  %v1879 = vpop.f32.mrf.mxu0
  %1880 = vmatprep.mubr.f32.mxu0 0.0
  %1881 = vmatmul.mubr.f32.gmra.mxu0 %v1710
  %v1882 = vpop.f32.mrf.mxu0
  %v1883 = vadd.f32 %v1616, %v1882
  %v1884 = vpop.f32.mrf.mxu0
  %1885 = vmatprep.mubr.f32.mxu0 0.0
  %1886 = vmatmul.mubr.f32.gmra.mxu0 %v1712
  %v1887 = vpop.f32.mrf.mxu0
  %v1888 = vadd.f32 %v1617, %v1887
  %v1889 = vpop.f32.mrf.mxu0
  %1890 = vdwg.mxu0
  %1891 = vmax.xlane.f32.xlu0 %v1813
  %v1892 = vpop.xlane.xlu0 %1891
  %1893 = vmax.xlane.f32.xlu0 %v1818
  %v1894 = vpop.xlane.xlu0 %1893
  %1895 = vmax.xlane.f32.xlu0 %v1823
  %v1896 = vpop.xlane.xlu0 %1895
  %1897 = vmax.xlane.f32.xlu0 %v1828
  %v1898 = vpop.xlane.xlu0 %1897
  %1899 = vmax.xlane.f32.xlu0 %v1833
  %v1900 = vpop.xlane.xlu0 %1899
  %1901 = vmax.xlane.f32.xlu0 %v1838
  %v1902 = vpop.xlane.xlu0 %1901
  %1903 = vmax.xlane.f32.xlu0 %v1843
  %v1904 = vpop.xlane.xlu0 %1903
  %1905 = vmax.xlane.f32.xlu0 %v1848
  %v1906 = vpop.xlane.xlu0 %1905
  %1907 = vmax.xlane.f32.xlu0 %v1853
  %v1908 = vpop.xlane.xlu0 %1907
  %1909 = vmax.xlane.f32.xlu0 %v1858
  %v1910 = vpop.xlane.xlu0 %1909
  %1911 = vmax.xlane.f32.xlu0 %v1863
  %v1912 = vpop.xlane.xlu0 %1911
  %1913 = vmax.xlane.f32.xlu0 %v1868
  %v1914 = vpop.xlane.xlu0 %1913
  %1915 = vmax.xlane.f32.xlu0 %v1873
  %v1916 = vpop.xlane.xlu0 %1915
  %1917 = vmax.xlane.f32.xlu0 %v1878
  %v1918 = vpop.xlane.xlu0 %1917
  %1919 = vmax.xlane.f32.xlu0 %v1883
  %v1920 = vpop.xlane.xlu0 %1919
  %1921 = vmax.xlane.f32.xlu0 %v1888
  %v1922 = vpop.xlane.xlu0 %1921
  %v1923 = vsub.f32 %v1813, %v1892
  %v1924 = vsub.f32 %v1818, %v1894
  %v1925 = vsub.f32 %v1823, %v1896
  %v1926 = vsub.f32 %v1828, %v1898
  %v1927 = vsub.f32 %v1833, %v1900
  %v1928 = vsub.f32 %v1838, %v1902
  %v1929 = vsub.f32 %v1843, %v1904
  %v1930 = vsub.f32 %v1848, %v1906
  %v1931 = vsub.f32 %v1853, %v1908
  %v1932 = vsub.f32 %v1858, %v1910
  %v1933 = vsub.f32 %v1863, %v1912
  %v1934 = vsub.f32 %v1868, %v1914
  %v1935 = vsub.f32 %v1873, %v1916
  %v1936 = vsub.f32 %v1878, %v1918
  %v1937 = vsub.f32 %v1883, %v1920
  %v1938 = vsub.f32 %v1888, %v1922
  %v1939 = vmul.f32 %v1923, 1.442695
  %v1940 = vpow.pop %v1939
  %v1941 = vmul.f32 %v1924, 1.442695
  %v1942 = vpow.pop %v1941
  %v1943 = vmul.f32 %v1925, 1.442695
  %v1944 = vpow.pop %v1943
  %v1945 = vmul.f32 %v1926, 1.442695
  %v1946 = vpow.pop %v1945
  %v1947 = vmul.f32 %v1927, 1.442695
  %v1948 = vpow.pop %v1947
  %v1949 = vmul.f32 %v1928, 1.442695
  %v1950 = vpow.pop %v1949
  %v1951 = vmul.f32 %v1929, 1.442695
  %v1952 = vpow.pop %v1951
  %v1953 = vmul.f32 %v1930, 1.442695
  %v1954 = vpow.pop %v1953
  %v1955 = vmul.f32 %v1931, 1.442695
  %v1956 = vpow.pop %v1955
  %v1957 = vmul.f32 %v1932, 1.442695
  %v1958 = vpow.pop %v1957
  %v1959 = vmul.f32 %v1933, 1.442695
  %v1960 = vpow.pop %v1959
  %v1961 = vmul.f32 %v1934, 1.442695
  %v1962 = vpow.pop %v1961
  %v1963 = vmul.f32 %v1935, 1.442695
  %v1964 = vpow.pop %v1963
  %v1965 = vmul.f32 %v1936, 1.442695
  %v1966 = vpow.pop %v1965
  %v1967 = vmul.f32 %v1937, 1.442695
  %v1968 = vpow.pop %v1967
  %v1969 = vmul.f32 %v1938, 1.442695
  %v1970 = vpow.pop %v1969
  %1971 = vadd.xlane.f32.xlu0 %v1940
  %v1972 = vpop.xlane.xlu0 %1971
  %1973 = vadd.xlane.f32.xlu0 %v1942
  %v1974 = vpop.xlane.xlu0 %1973
  %1975 = vadd.xlane.f32.xlu0 %v1944
  %v1976 = vpop.xlane.xlu0 %1975
  %1977 = vadd.xlane.f32.xlu0 %v1946
  %v1978 = vpop.xlane.xlu0 %1977
  %1979 = vadd.xlane.f32.xlu0 %v1948
  %v1980 = vpop.xlane.xlu0 %1979
  %1981 = vadd.xlane.f32.xlu0 %v1950
  %v1982 = vpop.xlane.xlu0 %1981
  %1983 = vadd.xlane.f32.xlu0 %v1952
  %v1984 = vpop.xlane.xlu0 %1983
  %1985 = vadd.xlane.f32.xlu0 %v1954
  %v1986 = vpop.xlane.xlu0 %1985
  %1987 = vadd.xlane.f32.xlu0 %v1956
  %v1988 = vpop.xlane.xlu0 %1987
  %1989 = vadd.xlane.f32.xlu0 %v1958
  %v1990 = vpop.xlane.xlu0 %1989
  %1991 = vadd.xlane.f32.xlu0 %v1960
  %v1992 = vpop.xlane.xlu0 %1991
  %1993 = vadd.xlane.f32.xlu0 %v1962
  %v1994 = vpop.xlane.xlu0 %1993
  %1995 = vadd.xlane.f32.xlu0 %v1964
  %v1996 = vpop.xlane.xlu0 %1995
  %1997 = vadd.xlane.f32.xlu0 %v1966
  %v1998 = vpop.xlane.xlu0 %1997
  %1999 = vadd.xlane.f32.xlu0 %v1968
  %v2000 = vpop.xlane.xlu0 %1999
  %2001 = vadd.xlane.f32.xlu0 %v1970
  %v2002 = vpop.xlane.xlu0 %2001
  %v2003 = vrcp.pop %v1972
  %v2004 = vmul.f32 %v1940, %v2003
  %v2005 = vrcp.pop %v1974
  %v2006 = vmul.f32 %v1942, %v2005
  %v2007 = vrcp.pop %v1976
  %v2008 = vmul.f32 %v1944, %v2007
  %v2009 = vrcp.pop %v1978
  %v2010 = vmul.f32 %v1946, %v2009
  %v2011 = vrcp.pop %v1980
  %v2012 = vmul.f32 %v1948, %v2011
  %v2013 = vrcp.pop %v1982
  %v2014 = vmul.f32 %v1950, %v2013
  %v2015 = vrcp.pop %v1984
  %v2016 = vmul.f32 %v1952, %v2015
  %v2017 = vrcp.pop %v1986
  %v2018 = vmul.f32 %v1954, %v2017
  %v2019 = vrcp.pop %v1988
  %v2020 = vmul.f32 %v1956, %v2019
  %v2021 = vrcp.pop %v1990
  %v2022 = vmul.f32 %v1958, %v2021
  %v2023 = vrcp.pop %v1992
  %v2024 = vmul.f32 %v1960, %v2023
  %v2025 = vrcp.pop %v1994
  %v2026 = vmul.f32 %v1962, %v2025
  %v2027 = vrcp.pop %v1996
  %v2028 = vmul.f32 %v1964, %v2027
  %v2029 = vrcp.pop %v1998
  %v2030 = vmul.f32 %v1966, %v2029
  %v2031 = vrcp.pop %v2000
  %v2032 = vmul.f32 %v1968, %v2031
  %v2033 = vrcp.pop %v2002
  %v2034 = vmul.f32 %v1970, %v2033
  %2035 = vrot.lane.b32.xlu0 %v190, 48
  %v2036 = vpop.permute.xlu0 %2035
  %2037 = vrot.lane.b32.xlu0 %v195, 48
  %v2038 = vpop.permute.xlu0 %2037
  %2039 = vrot.lane.b32.xlu0 %v200, 48
  %v2040 = vpop.permute.xlu0 %2039
  %2041 = vrot.lane.b32.xlu0 %v205, 48
  %v2042 = vpop.permute.xlu0 %2041
  %2043 = vrot.lane.b32.xlu0 %v210, 48
  %v2044 = vpop.permute.xlu0 %2043
  %2045 = vrot.lane.b32.xlu0 %v215, 48
  %v2046 = vpop.permute.xlu0 %2045
  %2047 = vrot.lane.b32.xlu0 %v220, 48
  %v2048 = vpop.permute.xlu0 %2047
  %2049 = vrot.lane.b32.xlu0 %v225, 48
  %v2050 = vpop.permute.xlu0 %2049
  %2051 = vrot.lane.b32.xlu0 %v230, 48
  %v2052 = vpop.permute.xlu0 %2051
  %2053 = vrot.lane.b32.xlu0 %v235, 48
  %v2054 = vpop.permute.xlu0 %2053
  %2055 = vrot.lane.b32.xlu0 %v240, 48
  %v2056 = vpop.permute.xlu0 %2055
  %2057 = vrot.lane.b32.xlu0 %v245, 48
  %v2058 = vpop.permute.xlu0 %2057
  %2059 = vrot.lane.b32.xlu0 %v250, 48
  %v2060 = vpop.permute.xlu0 %2059
  %2061 = vrot.lane.b32.xlu0 %v255, 48
  %v2062 = vpop.permute.xlu0 %2061
  %2063 = vrot.lane.b32.xlu0 %v260, 48
  %v2064 = vpop.permute.xlu0 %2063
  %2065 = vrot.lane.b32.xlu0 %v265, 48
  %v2066 = vpop.permute.xlu0 %2065
  %2083 = vmatprep.subr.mxu0 0.0
  %2084 = vmatpush1.msra.mxu0 %v2066
  %2085 = vmatprep.subr.mxu0 0.0
  %2086 = vmatpush1.msra.mxu0 %v2064
  %2087 = vmatprep.subr.mxu0 0.0
  %2088 = vmatpush1.msra.mxu0 %v2062
  %2089 = vmatprep.subr.mxu0 0.0
  %2090 = vmatpush1.msra.mxu0 %v2060
  %2091 = vmatprep.subr.mxu0 0.0
  %2092 = vmatpush1.msra.mxu0 %v2058
  %2093 = vmatprep.subr.mxu0 0.0
  %2094 = vmatpush1.msra.mxu0 %v2056
  %2095 = vmatprep.subr.mxu0 0.0
  %2096 = vmatpush1.msra.mxu0 %v2054
  %2097 = vmatprep.subr.mxu0 0.0
  %2098 = vmatpush1.msra.mxu0 %v2052
  %2099 = vmatprep.subr.mxu0 0.0
  %2100 = vmatpush1.msra.mxu0 %v2050
  %2101 = vmatprep.subr.mxu0 0.0
  %2102 = vmatpush1.msra.mxu0 %v2048
  %2103 = vmatprep.subr.mxu0 0.0
  %2104 = vmatpush1.msra.mxu0 %v2046
  %2105 = vmatprep.subr.mxu0 0.0
  %2106 = vmatpush1.msra.mxu0 %v2044
  %2107 = vmatprep.subr.mxu0 0.0
  %2108 = vmatpush1.msra.mxu0 %v2042
  %2109 = vmatprep.subr.mxu0 0.0
  %2110 = vmatpush1.msra.mxu0 %v2040
  %2111 = vmatprep.subr.mxu0 0.0
  %2112 = vmatpush1.msra.mxu0 %v2038
  %2113 = vmatprep.subr.mxu0 0.0
  %2114 = vmatpush1.msra.mxu0 %v2036
  %2115 = vmatprep.subr.mxu0 0.0
  %2116 = vmatpush2.msra.mxu0 0.0
  %2117 = vmatprep.subr.mxu0 0.0
  %2118 = vmatpush2.msra.mxu0 0.0
  %2119 = vmatprep.subr.mxu0 0.0
  %2120 = vmatpush2.msra.mxu0 0.0
  %2121 = vmatprep.subr.mxu0 0.0
  %2122 = vmatpush2.msra.mxu0 0.0
  %2123 = vmatprep.subr.mxu0 0.0
  %2124 = vmatpush2.msra.mxu0 0.0
  %2125 = vmatprep.subr.mxu0 0.0
  %2126 = vmatpush2.msra.mxu0 0.0
  %2127 = vmatprep.subr.mxu0 0.0
  %2128 = vmatpush2.msra.mxu0 0.0
  %2129 = vmatprep.subr.mxu0 0.0
  %2130 = vmatpush2.msra.mxu0 0.0
  %2131 = vmatprep.subr.mxu0 0.0
  %2132 = vmatpush2.msra.mxu0 0.0
  %2133 = vmatprep.subr.mxu0 0.0
  %2134 = vmatpush2.msra.mxu0 0.0
  %2135 = vmatprep.subr.mxu0 0.0
  %2136 = vmatpush2.msra.mxu0 0.0
  %2137 = vmatprep.subr.mxu0 0.0
  %2138 = vmatpush2.msra.mxu0 0.0
  %2139 = vmatprep.subr.mxu0 0.0
  %2140 = vmatpush2.msra.mxu0 0.0
  %2141 = vmatprep.subr.mxu0 0.0
  %2142 = vmatpush2.msra.mxu0 0.0
  %2143 = vmatprep.subr.mxu0 0.0
  %2144 = vmatpush2.msra.mxu0 0.0
  %2145 = vmatprep.subr.mxu0 0.0
  %2146 = vmatpush2.msra.mxu0 0.0
  %2147 = vmatprep.mubr.f32.mxu0 0.0
  %2148 = vmatmul.mubr.f32.gmra.mxu0 %v2004
  %v2149 = vpop.f32.mrf.mxu0
  %v2150 = vadd.f32 0.0, %v2149
  %v2151 = vpop.f32.mrf.mxu0
  %2152 = vmatprep.mubr.f32.mxu0 0.0
  %2153 = vmatmul.mubr.f32.gmra.mxu0 %v2006
  %v2154 = vpop.f32.mrf.mxu0
  %v2155 = vadd.f32 0.0, %v2154
  %v2156 = vpop.f32.mrf.mxu0
  %2157 = vmatprep.mubr.f32.mxu0 0.0
  %2158 = vmatmul.mubr.f32.gmra.mxu0 %v2008
  %v2159 = vpop.f32.mrf.mxu0
  %v2160 = vadd.f32 0.0, %v2159
  %v2161 = vpop.f32.mrf.mxu0
  %2162 = vmatprep.mubr.f32.mxu0 0.0
  %2163 = vmatmul.mubr.f32.gmra.mxu0 %v2010
  %v2164 = vpop.f32.mrf.mxu0
  %v2165 = vadd.f32 0.0, %v2164
  %v2166 = vpop.f32.mrf.mxu0
  %2167 = vmatprep.mubr.f32.mxu0 0.0
  %2168 = vmatmul.mubr.f32.gmra.mxu0 %v2012
  %v2169 = vpop.f32.mrf.mxu0
  %v2170 = vadd.f32 0.0, %v2169
  %v2171 = vpop.f32.mrf.mxu0
  %2172 = vmatprep.mubr.f32.mxu0 0.0
  %2173 = vmatmul.mubr.f32.gmra.mxu0 %v2014
  %v2174 = vpop.f32.mrf.mxu0
  %v2175 = vadd.f32 0.0, %v2174
  %v2176 = vpop.f32.mrf.mxu0
  %2177 = vmatprep.mubr.f32.mxu0 0.0
  %2178 = vmatmul.mubr.f32.gmra.mxu0 %v2016
  %v2179 = vpop.f32.mrf.mxu0
  %v2180 = vadd.f32 0.0, %v2179
  %v2181 = vpop.f32.mrf.mxu0
  %2182 = vmatprep.mubr.f32.mxu0 0.0
  %2183 = vmatmul.mubr.f32.gmra.mxu0 %v2018
  %v2184 = vpop.f32.mrf.mxu0
  %v2185 = vadd.f32 0.0, %v2184
  %v2186 = vpop.f32.mrf.mxu0
  %2187 = vmatprep.mubr.f32.mxu0 0.0
  %2188 = vmatmul.mubr.f32.gmra.mxu0 %v2020
  %v2189 = vpop.f32.mrf.mxu0
  %v2190 = vadd.f32 0.0, %v2189
  %v2191 = vpop.f32.mrf.mxu0
  %2192 = vmatprep.mubr.f32.mxu0 0.0
  %2193 = vmatmul.mubr.f32.gmra.mxu0 %v2022
  %v2194 = vpop.f32.mrf.mxu0
  %v2195 = vadd.f32 0.0, %v2194
  %v2196 = vpop.f32.mrf.mxu0
  %2197 = vmatprep.mubr.f32.mxu0 0.0
  %2198 = vmatmul.mubr.f32.gmra.mxu0 %v2024
  %v2199 = vpop.f32.mrf.mxu0
  %v2200 = vadd.f32 0.0, %v2199
  %v2201 = vpop.f32.mrf.mxu0
  %2202 = vmatprep.mubr.f32.mxu0 0.0
  %2203 = vmatmul.mubr.f32.gmra.mxu0 %v2026
  %v2204 = vpop.f32.mrf.mxu0
  %v2205 = vadd.f32 0.0, %v2204
  %v2206 = vpop.f32.mrf.mxu0
  %2207 = vmatprep.mubr.f32.mxu0 0.0
  %2208 = vmatmul.mubr.f32.gmra.mxu0 %v2028
  %v2209 = vpop.f32.mrf.mxu0
  %v2210 = vadd.f32 0.0, %v2209
  %v2211 = vpop.f32.mrf.mxu0
  %2212 = vmatprep.mubr.f32.mxu0 0.0
  %2213 = vmatmul.mubr.f32.gmra.mxu0 %v2030
  %v2214 = vpop.f32.mrf.mxu0
  %v2215 = vadd.f32 0.0, %v2214
  %v2216 = vpop.f32.mrf.mxu0
  %2217 = vmatprep.mubr.f32.mxu0 0.0
  %2218 = vmatmul.mubr.f32.gmra.mxu0 %v2032
  %v2219 = vpop.f32.mrf.mxu0
  %v2220 = vadd.f32 0.0, %v2219
  %v2221 = vpop.f32.mrf.mxu0
  %2222 = vmatprep.mubr.f32.mxu0 0.0
  %2223 = vmatmul.mubr.f32.gmra.mxu0 %v2034
  %v2224 = vpop.f32.mrf.mxu0
  %v2225 = vadd.f32 0.0, %v2224
  %v2226 = vpop.f32.mrf.mxu0
  %2227 = vdwg.mxu0
  %2244 = vrot.lane.b32.xlu0 %v2150, 16
  %v2245 = vpop.permute.xlu0 %2244
  %2246 = vrot.lane.b32.xlu0 %v2155, 16
  %v2247 = vpop.permute.xlu0 %2246
  %2248 = vrot.lane.b32.xlu0 %v2160, 16
  %v2249 = vpop.permute.xlu0 %2248
  %2250 = vrot.lane.b32.xlu0 %v2165, 16
  %v2251 = vpop.permute.xlu0 %2250
  %2252 = vrot.lane.b32.xlu0 %v2170, 16
  %v2253 = vpop.permute.xlu0 %2252
  %2254 = vrot.lane.b32.xlu0 %v2175, 16
  %v2255 = vpop.permute.xlu0 %2254
  %2256 = vrot.lane.b32.xlu0 %v2180, 16
  %v2257 = vpop.permute.xlu0 %2256
  %2258 = vrot.lane.b32.xlu0 %v2185, 16
  %v2259 = vpop.permute.xlu0 %2258
  %2260 = vrot.lane.b32.xlu0 %v2190, 16
  %v2261 = vpop.permute.xlu0 %2260
  %2262 = vrot.lane.b32.xlu0 %v2195, 16
  %v2263 = vpop.permute.xlu0 %2262
  %2264 = vrot.lane.b32.xlu0 %v2200, 16
  %v2265 = vpop.permute.xlu0 %2264
  %2266 = vrot.lane.b32.xlu0 %v2205, 16
  %v2267 = vpop.permute.xlu0 %2266
  %2268 = vrot.lane.b32.xlu0 %v2210, 16
  %v2269 = vpop.permute.xlu0 %2268
  %2270 = vrot.lane.b32.xlu0 %v2215, 16
  %v2271 = vpop.permute.xlu0 %2270
  %2272 = vrot.lane.b32.xlu0 %v2220, 16
  %v2273 = vpop.permute.xlu0 %2272
  %2274 = vrot.lane.b32.xlu0 %v2225, 16
  %v2275 = vpop.permute.xlu0 %2274
  %vm2292 = vcmask 195712
  %2293 = vst.msk [vmem:[#allocation2] sm:$0xff] %vm2292, %v2245
  %2294 = vst.msk [vmem:[#allocation2 + $0x8] sm:$0xff] %vm2292, %v2247
  %2295 = vst.msk [vmem:[#allocation2 + $0x10] sm:$0xff] %vm2292, %v2249
  %2296 = vst.msk [vmem:[#allocation2 + $0x18] sm:$0xff] %vm2292, %v2251
  %2297 = vst.msk [vmem:[#allocation2 + $0x20] sm:$0xff] %vm2292, %v2253
  %2298 = vst.msk [vmem:[#allocation2 + $0x28] sm:$0xff] %vm2292, %v2255
  %2299 = vst.msk [vmem:[#allocation2 + $0x30] sm:$0xff] %vm2292, %v2257
  %2300 = vst.msk [vmem:[#allocation2 + $0x38] sm:$0xff] %vm2292, %v2259
  %2301 = vst.msk [vmem:[#allocation2 + $0x40] sm:$0xff] %vm2292, %v2261
  %2302 = vst.msk [vmem:[#allocation2 + $0x48] sm:$0xff] %vm2292, %v2263
  %2303 = vst.msk [vmem:[#allocation2 + $0x50] sm:$0xff] %vm2292, %v2265
  %2304 = vst.msk [vmem:[#allocation2 + $0x58] sm:$0xff] %vm2292, %v2267
  %2305 = vst.msk [vmem:[#allocation2 + $0x60] sm:$0xff] %vm2292, %v2269
  %2306 = vst.msk [vmem:[#allocation2 + $0x68] sm:$0xff] %vm2292, %v2271
  %2307 = vst.msk [vmem:[#allocation2 + $0x70] sm:$0xff] %vm2292, %v2273
  %2308 = vst.msk [vmem:[#allocation2 + $0x78] sm:$0xff] %vm2292, %v2275
  %v2309 = vld [vmem:[%s1] sm:$0xff]
  %v2310 = vld [vmem:[%s1 + $0x8] sm:$0xff]
  %v2311 = vld [vmem:[%s1 + $0x10] sm:$0xff]
  %v2312 = vld [vmem:[%s1 + $0x18] sm:$0xff]
  %v2313 = vld [vmem:[%s1 + $0x20] sm:$0xff]
  %v2314 = vld [vmem:[%s1 + $0x28] sm:$0xff]
  %v2315 = vld [vmem:[%s1 + $0x30] sm:$0xff]
  %v2316 = vld [vmem:[%s1 + $0x38] sm:$0xff]
  %v2317 = vld [vmem:[%s1 + $0x40] sm:$0xff]
  %v2318 = vld [vmem:[%s1 + $0x48] sm:$0xff]
  %v2319 = vld [vmem:[%s1 + $0x50] sm:$0xff]
  %v2320 = vld [vmem:[%s1 + $0x58] sm:$0xff]
  %v2321 = vld [vmem:[%s1 + $0x60] sm:$0xff]
  %v2322 = vld [vmem:[%s1 + $0x68] sm:$0xff]
  %v2323 = vld [vmem:[%s1 + $0x70] sm:$0xff]
  %v2324 = vld [vmem:[%s1 + $0x78] sm:$0xff]
  %2325 = vrot.lane.b32.xlu0 %v190, 104
  %v2326 = vpop.permute.xlu0 %2325
  %2327 = vrot.lane.b32.xlu0 %v195, 104
  %v2328 = vpop.permute.xlu0 %2327
  %2329 = vrot.lane.b32.xlu0 %v200, 104
  %v2330 = vpop.permute.xlu0 %2329
  %2331 = vrot.lane.b32.xlu0 %v205, 104
  %v2332 = vpop.permute.xlu0 %2331
  %2333 = vrot.lane.b32.xlu0 %v210, 104
  %v2334 = vpop.permute.xlu0 %2333
  %2335 = vrot.lane.b32.xlu0 %v215, 104
  %v2336 = vpop.permute.xlu0 %2335
  %2337 = vrot.lane.b32.xlu0 %v220, 104
  %v2338 = vpop.permute.xlu0 %2337
  %2339 = vrot.lane.b32.xlu0 %v225, 104
  %v2340 = vpop.permute.xlu0 %2339
  %2341 = vrot.lane.b32.xlu0 %v230, 104
  %v2342 = vpop.permute.xlu0 %2341
  %2343 = vrot.lane.b32.xlu0 %v235, 104
  %v2344 = vpop.permute.xlu0 %2343
  %2345 = vrot.lane.b32.xlu0 %v240, 104
  %v2346 = vpop.permute.xlu0 %2345
  %2347 = vrot.lane.b32.xlu0 %v245, 104
  %v2348 = vpop.permute.xlu0 %2347
  %2349 = vrot.lane.b32.xlu0 %v250, 104
  %v2350 = vpop.permute.xlu0 %2349
  %2351 = vrot.lane.b32.xlu0 %v255, 104
  %v2352 = vpop.permute.xlu0 %2351
  %2353 = vrot.lane.b32.xlu0 %v260, 104
  %v2354 = vpop.permute.xlu0 %2353
  %2355 = vrot.lane.b32.xlu0 %v265, 104
  %v2356 = vpop.permute.xlu0 %2355
  %2357 = vrot.lane.b32.xlu0 %v190, 72
  %v2358 = vpop.permute.xlu0 %2357
  %2359 = vrot.lane.b32.xlu0 %v195, 72
  %v2360 = vpop.permute.xlu0 %2359
  %2361 = vrot.lane.b32.xlu0 %v200, 72
  %v2362 = vpop.permute.xlu0 %2361
  %2363 = vrot.lane.b32.xlu0 %v205, 72
  %v2364 = vpop.permute.xlu0 %2363
  %2365 = vrot.lane.b32.xlu0 %v210, 72
  %v2366 = vpop.permute.xlu0 %2365
  %2367 = vrot.lane.b32.xlu0 %v215, 72
  %v2368 = vpop.permute.xlu0 %2367
  %2369 = vrot.lane.b32.xlu0 %v220, 72
  %v2370 = vpop.permute.xlu0 %2369
  %2371 = vrot.lane.b32.xlu0 %v225, 72
  %v2372 = vpop.permute.xlu0 %2371
  %2373 = vrot.lane.b32.xlu0 %v230, 72
  %v2374 = vpop.permute.xlu0 %2373
  %2375 = vrot.lane.b32.xlu0 %v235, 72
  %v2376 = vpop.permute.xlu0 %2375
  %2377 = vrot.lane.b32.xlu0 %v240, 72
  %v2378 = vpop.permute.xlu0 %2377
  %2379 = vrot.lane.b32.xlu0 %v245, 72
  %v2380 = vpop.permute.xlu0 %2379
  %2381 = vrot.lane.b32.xlu0 %v250, 72
  %v2382 = vpop.permute.xlu0 %2381
  %2383 = vrot.lane.b32.xlu0 %v255, 72
  %v2384 = vpop.permute.xlu0 %2383
  %2385 = vrot.lane.b32.xlu0 %v260, 72
  %v2386 = vpop.permute.xlu0 %2385
  %2387 = vrot.lane.b32.xlu0 %v265, 72
  %v2388 = vpop.permute.xlu0 %2387
  %v2389 = vsel %vm332, %v2326, 0
  %v2391 = vsel %vm332, %v2328, 0
  %v2393 = vsel %vm332, %v2330, 0
  %v2395 = vsel %vm332, %v2332, 0
  %v2397 = vsel %vm332, %v2334, 0
  %v2399 = vsel %vm332, %v2336, 0
  %v2401 = vsel %vm332, %v2338, 0
  %v2403 = vsel %vm332, %v2340, 0
  %v2405 = vsel %vm332, %v2342, 0
  %v2407 = vsel %vm332, %v2344, 0
  %v2409 = vsel %vm332, %v2346, 0
  %v2411 = vsel %vm332, %v2348, 0
  %v2413 = vsel %vm332, %v2350, 0
  %v2415 = vsel %vm332, %v2352, 0
  %v2417 = vsel %vm332, %v2354, 0
  %v2419 = vsel %vm332, %v2356, 0
  %v2421 = vsel %vm332, %v2358, 0
  %v2423 = vsel %vm332, %v2360, 0
  %v2425 = vsel %vm332, %v2362, 0
  %v2427 = vsel %vm332, %v2364, 0
  %v2429 = vsel %vm332, %v2366, 0
  %v2431 = vsel %vm332, %v2368, 0
  %v2433 = vsel %vm332, %v2370, 0
  %v2435 = vsel %vm332, %v2372, 0
  %v2437 = vsel %vm332, %v2374, 0
  %v2439 = vsel %vm332, %v2376, 0
  %v2441 = vsel %vm332, %v2378, 0
  %v2443 = vsel %vm332, %v2380, 0
  %v2445 = vsel %vm332, %v2382, 0
  %v2447 = vsel %vm332, %v2384, 0
  %v2449 = vsel %vm332, %v2386, 0
  %v2451 = vsel %vm332, %v2388, 0
  %2453 = vmatprep.subr.mxu0 0.0
  %2454 = vmatpush1.xpose.msra.mxu0 %v2451
  %2455 = vmatprep.subr.mxu0 0.0
  %2456 = vmatpush1.xpose.msra.mxu0 %v2449
  %2457 = vmatprep.subr.mxu0 0.0
  %2458 = vmatpush1.xpose.msra.mxu0 %v2447
  %2459 = vmatprep.subr.mxu0 0.0
  %2460 = vmatpush1.xpose.msra.mxu0 %v2445
  %2461 = vmatprep.subr.mxu0 0.0
  %2462 = vmatpush1.xpose.msra.mxu0 %v2443
  %2463 = vmatprep.subr.mxu0 0.0
  %2464 = vmatpush1.xpose.msra.mxu0 %v2441
  %2465 = vmatprep.subr.mxu0 0.0
  %2466 = vmatpush1.xpose.msra.mxu0 %v2439
  %2467 = vmatprep.subr.mxu0 0.0
  %2468 = vmatpush1.xpose.msra.mxu0 %v2437
  %2469 = vmatprep.subr.mxu0 0.0
  %2470 = vmatpush1.xpose.msra.mxu0 %v2435
  %2471 = vmatprep.subr.mxu0 0.0
  %2472 = vmatpush1.xpose.msra.mxu0 %v2433
  %2473 = vmatprep.subr.mxu0 0.0
  %2474 = vmatpush1.xpose.msra.mxu0 %v2431
  %2475 = vmatprep.subr.mxu0 0.0
  %2476 = vmatpush1.xpose.msra.mxu0 %v2429
  %2477 = vmatprep.subr.mxu0 0.0
  %2478 = vmatpush1.xpose.msra.mxu0 %v2427
  %2479 = vmatprep.subr.mxu0 0.0
  %2480 = vmatpush1.xpose.msra.mxu0 %v2425
  %2481 = vmatprep.subr.mxu0 0.0
  %2482 = vmatpush1.xpose.msra.mxu0 %v2423
  %2483 = vmatprep.subr.mxu0 0.0
  %2484 = vmatpush1.xpose.msra.mxu0 %v2421
  %2485 = vmatprep.subr.mxu0 0.0
  %2486 = vmatpush2.xpose.msra.mxu0 0.0
  %2487 = vmatprep.subr.mxu0 0.0
  %2488 = vmatpush2.xpose.msra.mxu0 0.0
  %2489 = vmatprep.subr.mxu0 0.0
  %2490 = vmatpush2.xpose.msra.mxu0 0.0
  %2491 = vmatprep.subr.mxu0 0.0
  %2492 = vmatpush2.xpose.msra.mxu0 0.0
  %2493 = vmatprep.subr.mxu0 0.0
  %2494 = vmatpush2.xpose.msra.mxu0 0.0
  %2495 = vmatprep.subr.mxu0 0.0
  %2496 = vmatpush2.xpose.msra.mxu0 0.0
  %2497 = vmatprep.subr.mxu0 0.0
  %2498 = vmatpush2.xpose.msra.mxu0 0.0
  %2499 = vmatprep.subr.mxu0 0.0
  %2500 = vmatpush2.xpose.msra.mxu0 0.0
  %2501 = vmatprep.subr.mxu0 0.0
  %2502 = vmatpush2.xpose.msra.mxu0 0.0
  %2503 = vmatprep.subr.mxu0 0.0
  %2504 = vmatpush2.xpose.msra.mxu0 0.0
  %2505 = vmatprep.subr.mxu0 0.0
  %2506 = vmatpush2.xpose.msra.mxu0 0.0
  %2507 = vmatprep.subr.mxu0 0.0
  %2508 = vmatpush2.xpose.msra.mxu0 0.0
  %2509 = vmatprep.subr.mxu0 0.0
  %2510 = vmatpush2.xpose.msra.mxu0 0.0
  %2511 = vmatprep.subr.mxu0 0.0
  %2512 = vmatpush2.xpose.msra.mxu0 0.0
  %2513 = vmatprep.subr.mxu0 0.0
  %2514 = vmatpush2.xpose.msra.mxu0 0.0
  %2515 = vmatprep.subr.mxu0 0.0
  %2516 = vmatpush2.xpose.msra.mxu0 0.0
  %2517 = vmatprep.mubr.f32.mxu0 0.0
  %2518 = vmatmul.mubr.f32.gmra.mxu0 %v2389
  %v2519 = vpop.f32.mrf.mxu0
  %v2520 = vadd.f32 %v2309, %v2519
  %v2521 = vpop.f32.mrf.mxu0
  %2522 = vmatprep.mubr.f32.mxu0 0.0
  %2523 = vmatmul.mubr.f32.gmra.mxu0 %v2391
  %v2524 = vpop.f32.mrf.mxu0
  %v2525 = vadd.f32 %v2310, %v2524
  %v2526 = vpop.f32.mrf.mxu0
  %2527 = vmatprep.mubr.f32.mxu0 0.0
  %2528 = vmatmul.mubr.f32.gmra.mxu0 %v2393
  %v2529 = vpop.f32.mrf.mxu0
  %v2530 = vadd.f32 %v2311, %v2529
  %v2531 = vpop.f32.mrf.mxu0
  %2532 = vmatprep.mubr.f32.mxu0 0.0
  %2533 = vmatmul.mubr.f32.gmra.mxu0 %v2395
  %v2534 = vpop.f32.mrf.mxu0
  %v2535 = vadd.f32 %v2312, %v2534
  %v2536 = vpop.f32.mrf.mxu0
  %2537 = vmatprep.mubr.f32.mxu0 0.0
  %2538 = vmatmul.mubr.f32.gmra.mxu0 %v2397
  %v2539 = vpop.f32.mrf.mxu0
  %v2540 = vadd.f32 %v2313, %v2539
  %v2541 = vpop.f32.mrf.mxu0
  %2542 = vmatprep.mubr.f32.mxu0 0.0
  %2543 = vmatmul.mubr.f32.gmra.mxu0 %v2399
  %v2544 = vpop.f32.mrf.mxu0
  %v2545 = vadd.f32 %v2314, %v2544
  %v2546 = vpop.f32.mrf.mxu0
  %2547 = vmatprep.mubr.f32.mxu0 0.0
  %2548 = vmatmul.mubr.f32.gmra.mxu0 %v2401
  %v2549 = vpop.f32.mrf.mxu0
  %v2550 = vadd.f32 %v2315, %v2549
  %v2551 = vpop.f32.mrf.mxu0
  %2552 = vmatprep.mubr.f32.mxu0 0.0
  %2553 = vmatmul.mubr.f32.gmra.mxu0 %v2403
  %v2554 = vpop.f32.mrf.mxu0
  %v2555 = vadd.f32 %v2316, %v2554
  %v2556 = vpop.f32.mrf.mxu0
  %2557 = vmatprep.mubr.f32.mxu0 0.0
  %2558 = vmatmul.mubr.f32.gmra.mxu0 %v2405
  %v2559 = vpop.f32.mrf.mxu0
  %v2560 = vadd.f32 %v2317, %v2559
  %v2561 = vpop.f32.mrf.mxu0
  %2562 = vmatprep.mubr.f32.mxu0 0.0
  %2563 = vmatmul.mubr.f32.gmra.mxu0 %v2407
  %v2564 = vpop.f32.mrf.mxu0
  %v2565 = vadd.f32 %v2318, %v2564
  %v2566 = vpop.f32.mrf.mxu0
  %2567 = vmatprep.mubr.f32.mxu0 0.0
  %2568 = vmatmul.mubr.f32.gmra.mxu0 %v2409
  %v2569 = vpop.f32.mrf.mxu0
  %v2570 = vadd.f32 %v2319, %v2569
  %v2571 = vpop.f32.mrf.mxu0
  %2572 = vmatprep.mubr.f32.mxu0 0.0
  %2573 = vmatmul.mubr.f32.gmra.mxu0 %v2411
  %v2574 = vpop.f32.mrf.mxu0
  %v2575 = vadd.f32 %v2320, %v2574
  %v2576 = vpop.f32.mrf.mxu0
  %2577 = vmatprep.mubr.f32.mxu0 0.0
  %2578 = vmatmul.mubr.f32.gmra.mxu0 %v2413
  %v2579 = vpop.f32.mrf.mxu0
  %v2580 = vadd.f32 %v2321, %v2579
  %v2581 = vpop.f32.mrf.mxu0
  %2582 = vmatprep.mubr.f32.mxu0 0.0
  %2583 = vmatmul.mubr.f32.gmra.mxu0 %v2415
  %v2584 = vpop.f32.mrf.mxu0
  %v2585 = vadd.f32 %v2322, %v2584
  %v2586 = vpop.f32.mrf.mxu0
  %2587 = vmatprep.mubr.f32.mxu0 0.0
  %2588 = vmatmul.mubr.f32.gmra.mxu0 %v2417
  %v2589 = vpop.f32.mrf.mxu0
  %v2590 = vadd.f32 %v2323, %v2589
  %v2591 = vpop.f32.mrf.mxu0
  %2592 = vmatprep.mubr.f32.mxu0 0.0
  %2593 = vmatmul.mubr.f32.gmra.mxu0 %v2419
  %v2594 = vpop.f32.mrf.mxu0
  %v2595 = vadd.f32 %v2324, %v2594
  %v2596 = vpop.f32.mrf.mxu0
  %2597 = vdwg.mxu0
  %2598 = vmax.xlane.f32.xlu0 %v2520
  %v2599 = vpop.xlane.xlu0 %2598
  %2600 = vmax.xlane.f32.xlu0 %v2525
  %v2601 = vpop.xlane.xlu0 %2600
  %2602 = vmax.xlane.f32.xlu0 %v2530
  %v2603 = vpop.xlane.xlu0 %2602
  %2604 = vmax.xlane.f32.xlu0 %v2535
  %v2605 = vpop.xlane.xlu0 %2604
  %2606 = vmax.xlane.f32.xlu0 %v2540
  %v2607 = vpop.xlane.xlu0 %2606
  %2608 = vmax.xlane.f32.xlu0 %v2545
  %v2609 = vpop.xlane.xlu0 %2608
  %2610 = vmax.xlane.f32.xlu0 %v2550
  %v2611 = vpop.xlane.xlu0 %2610
  %2612 = vmax.xlane.f32.xlu0 %v2555
  %v2613 = vpop.xlane.xlu0 %2612
  %2614 = vmax.xlane.f32.xlu0 %v2560
  %v2615 = vpop.xlane.xlu0 %2614
  %2616 = vmax.xlane.f32.xlu0 %v2565
  %v2617 = vpop.xlane.xlu0 %2616
  %2618 = vmax.xlane.f32.xlu0 %v2570
  %v2619 = vpop.xlane.xlu0 %2618
  %2620 = vmax.xlane.f32.xlu0 %v2575
  %v2621 = vpop.xlane.xlu0 %2620
  %2622 = vmax.xlane.f32.xlu0 %v2580
  %v2623 = vpop.xlane.xlu0 %2622
  %2624 = vmax.xlane.f32.xlu0 %v2585
  %v2625 = vpop.xlane.xlu0 %2624
  %2626 = vmax.xlane.f32.xlu0 %v2590
  %v2627 = vpop.xlane.xlu0 %2626
  %2628 = vmax.xlane.f32.xlu0 %v2595
  %v2629 = vpop.xlane.xlu0 %2628
  %v2630 = vsub.f32 %v2520, %v2599
  %v2631 = vsub.f32 %v2525, %v2601
  %v2632 = vsub.f32 %v2530, %v2603
  %v2633 = vsub.f32 %v2535, %v2605
  %v2634 = vsub.f32 %v2540, %v2607
  %v2635 = vsub.f32 %v2545, %v2609
  %v2636 = vsub.f32 %v2550, %v2611
  %v2637 = vsub.f32 %v2555, %v2613
  %v2638 = vsub.f32 %v2560, %v2615
  %v2639 = vsub.f32 %v2565, %v2617
  %v2640 = vsub.f32 %v2570, %v2619
  %v2641 = vsub.f32 %v2575, %v2621
  %v2642 = vsub.f32 %v2580, %v2623
  %v2643 = vsub.f32 %v2585, %v2625
  %v2644 = vsub.f32 %v2590, %v2627
  %v2645 = vsub.f32 %v2595, %v2629
  %v2646 = vmul.f32 %v2630, 1.442695
  %v2647 = vpow.pop %v2646
  %v2648 = vmul.f32 %v2631, 1.442695
  %v2649 = vpow.pop %v2648
  %v2650 = vmul.f32 %v2632, 1.442695
  %v2651 = vpow.pop %v2650
  %v2652 = vmul.f32 %v2633, 1.442695
  %v2653 = vpow.pop %v2652
  %v2654 = vmul.f32 %v2634, 1.442695
  %v2655 = vpow.pop %v2654
  %v2656 = vmul.f32 %v2635, 1.442695
  %v2657 = vpow.pop %v2656
  %v2658 = vmul.f32 %v2636, 1.442695
  %v2659 = vpow.pop %v2658
  %v2660 = vmul.f32 %v2637, 1.442695
  %v2661 = vpow.pop %v2660
  %v2662 = vmul.f32 %v2638, 1.442695
  %v2663 = vpow.pop %v2662
  %v2664 = vmul.f32 %v2639, 1.442695
  %v2665 = vpow.pop %v2664
  %v2666 = vmul.f32 %v2640, 1.442695
  %v2667 = vpow.pop %v2666
  %v2668 = vmul.f32 %v2641, 1.442695
  %v2669 = vpow.pop %v2668
  %v2670 = vmul.f32 %v2642, 1.442695
  %v2671 = vpow.pop %v2670
  %v2672 = vmul.f32 %v2643, 1.442695
  %v2673 = vpow.pop %v2672
  %v2674 = vmul.f32 %v2644, 1.442695
  %v2675 = vpow.pop %v2674
  %v2676 = vmul.f32 %v2645, 1.442695
  %v2677 = vpow.pop %v2676
  %2678 = vadd.xlane.f32.xlu0 %v2647
  %v2679 = vpop.xlane.xlu0 %2678
  %2680 = vadd.xlane.f32.xlu0 %v2649
  %v2681 = vpop.xlane.xlu0 %2680
  %2682 = vadd.xlane.f32.xlu0 %v2651
  %v2683 = vpop.xlane.xlu0 %2682
  %2684 = vadd.xlane.f32.xlu0 %v2653
  %v2685 = vpop.xlane.xlu0 %2684
  %2686 = vadd.xlane.f32.xlu0 %v2655
  %v2687 = vpop.xlane.xlu0 %2686
  %2688 = vadd.xlane.f32.xlu0 %v2657
  %v2689 = vpop.xlane.xlu0 %2688
  %2690 = vadd.xlane.f32.xlu0 %v2659
  %v2691 = vpop.xlane.xlu0 %2690
  %2692 = vadd.xlane.f32.xlu0 %v2661
  %v2693 = vpop.xlane.xlu0 %2692
  %2694 = vadd.xlane.f32.xlu0 %v2663
  %v2695 = vpop.xlane.xlu0 %2694
  %2696 = vadd.xlane.f32.xlu0 %v2665
  %v2697 = vpop.xlane.xlu0 %2696
  %2698 = vadd.xlane.f32.xlu0 %v2667
  %v2699 = vpop.xlane.xlu0 %2698
  %2700 = vadd.xlane.f32.xlu0 %v2669
  %v2701 = vpop.xlane.xlu0 %2700
  %2702 = vadd.xlane.f32.xlu0 %v2671
  %v2703 = vpop.xlane.xlu0 %2702
  %2704 = vadd.xlane.f32.xlu0 %v2673
  %v2705 = vpop.xlane.xlu0 %2704
  %2706 = vadd.xlane.f32.xlu0 %v2675
  %v2707 = vpop.xlane.xlu0 %2706
  %2708 = vadd.xlane.f32.xlu0 %v2677
  %v2709 = vpop.xlane.xlu0 %2708
  %v2710 = vrcp.pop %v2679
  %v2711 = vmul.f32 %v2647, %v2710
  %v2712 = vrcp.pop %v2681
  %v2713 = vmul.f32 %v2649, %v2712
  %v2714 = vrcp.pop %v2683
  %v2715 = vmul.f32 %v2651, %v2714
  %v2716 = vrcp.pop %v2685
  %v2717 = vmul.f32 %v2653, %v2716
  %v2718 = vrcp.pop %v2687
  %v2719 = vmul.f32 %v2655, %v2718
  %v2720 = vrcp.pop %v2689
  %v2721 = vmul.f32 %v2657, %v2720
  %v2722 = vrcp.pop %v2691
  %v2723 = vmul.f32 %v2659, %v2722
  %v2724 = vrcp.pop %v2693
  %v2725 = vmul.f32 %v2661, %v2724
  %v2726 = vrcp.pop %v2695
  %v2727 = vmul.f32 %v2663, %v2726
  %v2728 = vrcp.pop %v2697
  %v2729 = vmul.f32 %v2665, %v2728
  %v2730 = vrcp.pop %v2699
  %v2731 = vmul.f32 %v2667, %v2730
  %v2732 = vrcp.pop %v2701
  %v2733 = vmul.f32 %v2669, %v2732
  %v2734 = vrcp.pop %v2703
  %v2735 = vmul.f32 %v2671, %v2734
  %v2736 = vrcp.pop %v2705
  %v2737 = vmul.f32 %v2673, %v2736
  %v2738 = vrcp.pop %v2707
  %v2739 = vmul.f32 %v2675, %v2738
  %v2740 = vrcp.pop %v2709
  %v2741 = vmul.f32 %v2677, %v2740
  %2742 = vrot.lane.b32.xlu0 %v190, 40
  %v2743 = vpop.permute.xlu0 %2742
  %2744 = vrot.lane.b32.xlu0 %v195, 40
  %v2745 = vpop.permute.xlu0 %2744
  %2746 = vrot.lane.b32.xlu0 %v200, 40
  %v2747 = vpop.permute.xlu0 %2746
  %2748 = vrot.lane.b32.xlu0 %v205, 40
  %v2749 = vpop.permute.xlu0 %2748
  %2750 = vrot.lane.b32.xlu0 %v210, 40
  %v2751 = vpop.permute.xlu0 %2750
  %2752 = vrot.lane.b32.xlu0 %v215, 40
  %v2753 = vpop.permute.xlu0 %2752
  %2754 = vrot.lane.b32.xlu0 %v220, 40
  %v2755 = vpop.permute.xlu0 %2754
  %2756 = vrot.lane.b32.xlu0 %v225, 40
  %v2757 = vpop.permute.xlu0 %2756
  %2758 = vrot.lane.b32.xlu0 %v230, 40
  %v2759 = vpop.permute.xlu0 %2758
  %2760 = vrot.lane.b32.xlu0 %v235, 40
  %v2761 = vpop.permute.xlu0 %2760
  %2762 = vrot.lane.b32.xlu0 %v240, 40
  %v2763 = vpop.permute.xlu0 %2762
  %2764 = vrot.lane.b32.xlu0 %v245, 40
  %v2765 = vpop.permute.xlu0 %2764
  %2766 = vrot.lane.b32.xlu0 %v250, 40
  %v2767 = vpop.permute.xlu0 %2766
  %2768 = vrot.lane.b32.xlu0 %v255, 40
  %v2769 = vpop.permute.xlu0 %2768
  %2770 = vrot.lane.b32.xlu0 %v260, 40
  %v2771 = vpop.permute.xlu0 %2770
  %2772 = vrot.lane.b32.xlu0 %v265, 40
  %v2773 = vpop.permute.xlu0 %2772
  %2790 = vmatprep.subr.mxu0 0.0
  %2791 = vmatpush1.msra.mxu0 %v2773
  %2792 = vmatprep.subr.mxu0 0.0
  %2793 = vmatpush1.msra.mxu0 %v2771
  %2794 = vmatprep.subr.mxu0 0.0
  %2795 = vmatpush1.msra.mxu0 %v2769
  %2796 = vmatprep.subr.mxu0 0.0
  %2797 = vmatpush1.msra.mxu0 %v2767
  %2798 = vmatprep.subr.mxu0 0.0
  %2799 = vmatpush1.msra.mxu0 %v2765
  %2800 = vmatprep.subr.mxu0 0.0
  %2801 = vmatpush1.msra.mxu0 %v2763
  %2802 = vmatprep.subr.mxu0 0.0
  %2803 = vmatpush1.msra.mxu0 %v2761
  %2804 = vmatprep.subr.mxu0 0.0
  %2805 = vmatpush1.msra.mxu0 %v2759
  %2806 = vmatprep.subr.mxu0 0.0
  %2807 = vmatpush1.msra.mxu0 %v2757
  %2808 = vmatprep.subr.mxu0 0.0
  %2809 = vmatpush1.msra.mxu0 %v2755
  %2810 = vmatprep.subr.mxu0 0.0
  %2811 = vmatpush1.msra.mxu0 %v2753
  %2812 = vmatprep.subr.mxu0 0.0
  %2813 = vmatpush1.msra.mxu0 %v2751
  %2814 = vmatprep.subr.mxu0 0.0
  %2815 = vmatpush1.msra.mxu0 %v2749
  %2816 = vmatprep.subr.mxu0 0.0
  %2817 = vmatpush1.msra.mxu0 %v2747
  %2818 = vmatprep.subr.mxu0 0.0
  %2819 = vmatpush1.msra.mxu0 %v2745
  %2820 = vmatprep.subr.mxu0 0.0
  %2821 = vmatpush1.msra.mxu0 %v2743
  %2822 = vmatprep.subr.mxu0 0.0
  %2823 = vmatpush2.msra.mxu0 0.0
  %2824 = vmatprep.subr.mxu0 0.0
  %2825 = vmatpush2.msra.mxu0 0.0
  %2826 = vmatprep.subr.mxu0 0.0
  %2827 = vmatpush2.msra.mxu0 0.0
  %2828 = vmatprep.subr.mxu0 0.0
  %2829 = vmatpush2.msra.mxu0 0.0
  %2830 = vmatprep.subr.mxu0 0.0
  %2831 = vmatpush2.msra.mxu0 0.0
  %2832 = vmatprep.subr.mxu0 0.0
  %2833 = vmatpush2.msra.mxu0 0.0
  %2834 = vmatprep.subr.mxu0 0.0
  %2835 = vmatpush2.msra.mxu0 0.0
  %2836 = vmatprep.subr.mxu0 0.0
  %2837 = vmatpush2.msra.mxu0 0.0
  %2838 = vmatprep.subr.mxu0 0.0
  %2839 = vmatpush2.msra.mxu0 0.0
  %2840 = vmatprep.subr.mxu0 0.0
  %2841 = vmatpush2.msra.mxu0 0.0
  %2842 = vmatprep.subr.mxu0 0.0
  %2843 = vmatpush2.msra.mxu0 0.0
  %2844 = vmatprep.subr.mxu0 0.0
  %2845 = vmatpush2.msra.mxu0 0.0
  %2846 = vmatprep.subr.mxu0 0.0
  %2847 = vmatpush2.msra.mxu0 0.0
  %2848 = vmatprep.subr.mxu0 0.0
  %2849 = vmatpush2.msra.mxu0 0.0
  %2850 = vmatprep.subr.mxu0 0.0
  %2851 = vmatpush2.msra.mxu0 0.0
  %2852 = vmatprep.subr.mxu0 0.0
  %2853 = vmatpush2.msra.mxu0 0.0
  %2854 = vmatprep.mubr.f32.mxu0 0.0
  %2855 = vmatmul.mubr.f32.gmra.mxu0 %v2711
  %v2856 = vpop.f32.mrf.mxu0
  %v2857 = vadd.f32 0.0, %v2856
  %v2858 = vpop.f32.mrf.mxu0
  %2859 = vmatprep.mubr.f32.mxu0 0.0
  %2860 = vmatmul.mubr.f32.gmra.mxu0 %v2713
  %v2861 = vpop.f32.mrf.mxu0
  %v2862 = vadd.f32 0.0, %v2861
  %v2863 = vpop.f32.mrf.mxu0
  %2864 = vmatprep.mubr.f32.mxu0 0.0
  %2865 = vmatmul.mubr.f32.gmra.mxu0 %v2715
  %v2866 = vpop.f32.mrf.mxu0
  %v2867 = vadd.f32 0.0, %v2866
  %v2868 = vpop.f32.mrf.mxu0
  %2869 = vmatprep.mubr.f32.mxu0 0.0
  %2870 = vmatmul.mubr.f32.gmra.mxu0 %v2717
  %v2871 = vpop.f32.mrf.mxu0
  %v2872 = vadd.f32 0.0, %v2871
  %v2873 = vpop.f32.mrf.mxu0
  %2874 = vmatprep.mubr.f32.mxu0 0.0
  %2875 = vmatmul.mubr.f32.gmra.mxu0 %v2719
  %v2876 = vpop.f32.mrf.mxu0
  %v2877 = vadd.f32 0.0, %v2876
  %v2878 = vpop.f32.mrf.mxu0
  %2879 = vmatprep.mubr.f32.mxu0 0.0
  %2880 = vmatmul.mubr.f32.gmra.mxu0 %v2721
  %v2881 = vpop.f32.mrf.mxu0
  %v2882 = vadd.f32 0.0, %v2881
  %v2883 = vpop.f32.mrf.mxu0
  %2884 = vmatprep.mubr.f32.mxu0 0.0
  %2885 = vmatmul.mubr.f32.gmra.mxu0 %v2723
  %v2886 = vpop.f32.mrf.mxu0
  %v2887 = vadd.f32 0.0, %v2886
  %v2888 = vpop.f32.mrf.mxu0
  %2889 = vmatprep.mubr.f32.mxu0 0.0
  %2890 = vmatmul.mubr.f32.gmra.mxu0 %v2725
  %v2891 = vpop.f32.mrf.mxu0
  %v2892 = vadd.f32 0.0, %v2891
  %v2893 = vpop.f32.mrf.mxu0
  %2894 = vmatprep.mubr.f32.mxu0 0.0
  %2895 = vmatmul.mubr.f32.gmra.mxu0 %v2727
  %v2896 = vpop.f32.mrf.mxu0
  %v2897 = vadd.f32 0.0, %v2896
  %v2898 = vpop.f32.mrf.mxu0
  %2899 = vmatprep.mubr.f32.mxu0 0.0
  %2900 = vmatmul.mubr.f32.gmra.mxu0 %v2729
  %v2901 = vpop.f32.mrf.mxu0
  %v2902 = vadd.f32 0.0, %v2901
  %v2903 = vpop.f32.mrf.mxu0
  %2904 = vmatprep.mubr.f32.mxu0 0.0
  %2905 = vmatmul.mubr.f32.gmra.mxu0 %v2731
  %v2906 = vpop.f32.mrf.mxu0
  %v2907 = vadd.f32 0.0, %v2906
  %v2908 = vpop.f32.mrf.mxu0
  %2909 = vmatprep.mubr.f32.mxu0 0.0
  %2910 = vmatmul.mubr.f32.gmra.mxu0 %v2733
  %v2911 = vpop.f32.mrf.mxu0
  %v2912 = vadd.f32 0.0, %v2911
  %v2913 = vpop.f32.mrf.mxu0
  %2914 = vmatprep.mubr.f32.mxu0 0.0
  %2915 = vmatmul.mubr.f32.gmra.mxu0 %v2735
  %v2916 = vpop.f32.mrf.mxu0
  %v2917 = vadd.f32 0.0, %v2916
  %v2918 = vpop.f32.mrf.mxu0
  %2919 = vmatprep.mubr.f32.mxu0 0.0
  %2920 = vmatmul.mubr.f32.gmra.mxu0 %v2737
  %v2921 = vpop.f32.mrf.mxu0
  %v2922 = vadd.f32 0.0, %v2921
  %v2923 = vpop.f32.mrf.mxu0
  %2924 = vmatprep.mubr.f32.mxu0 0.0
  %2925 = vmatmul.mubr.f32.gmra.mxu0 %v2739
  %v2926 = vpop.f32.mrf.mxu0
  %v2927 = vadd.f32 0.0, %v2926
  %v2928 = vpop.f32.mrf.mxu0
  %2929 = vmatprep.mubr.f32.mxu0 0.0
  %2930 = vmatmul.mubr.f32.gmra.mxu0 %v2741
  %v2931 = vpop.f32.mrf.mxu0
  %v2932 = vadd.f32 0.0, %v2931
  %v2933 = vpop.f32.mrf.mxu0
  %2934 = vdwg.mxu0
  %2951 = vrot.lane.b32.xlu0 %v2857, 24
  %v2952 = vpop.permute.xlu0 %2951
  %2953 = vrot.lane.b32.xlu0 %v2862, 24
  %v2954 = vpop.permute.xlu0 %2953
  %2955 = vrot.lane.b32.xlu0 %v2867, 24
  %v2956 = vpop.permute.xlu0 %2955
  %2957 = vrot.lane.b32.xlu0 %v2872, 24
  %v2958 = vpop.permute.xlu0 %2957
  %2959 = vrot.lane.b32.xlu0 %v2877, 24
  %v2960 = vpop.permute.xlu0 %2959
  %2961 = vrot.lane.b32.xlu0 %v2882, 24
  %v2962 = vpop.permute.xlu0 %2961
  %2963 = vrot.lane.b32.xlu0 %v2887, 24
  %v2964 = vpop.permute.xlu0 %2963
  %2965 = vrot.lane.b32.xlu0 %v2892, 24
  %v2966 = vpop.permute.xlu0 %2965
  %2967 = vrot.lane.b32.xlu0 %v2897, 24
  %v2968 = vpop.permute.xlu0 %2967
  %2969 = vrot.lane.b32.xlu0 %v2902, 24
  %v2970 = vpop.permute.xlu0 %2969
  %2971 = vrot.lane.b32.xlu0 %v2907, 24
  %v2972 = vpop.permute.xlu0 %2971
  %2973 = vrot.lane.b32.xlu0 %v2912, 24
  %v2974 = vpop.permute.xlu0 %2973
  %2975 = vrot.lane.b32.xlu0 %v2917, 24
  %v2976 = vpop.permute.xlu0 %2975
  %2977 = vrot.lane.b32.xlu0 %v2922, 24
  %v2978 = vpop.permute.xlu0 %2977
  %2979 = vrot.lane.b32.xlu0 %v2927, 24
  %v2980 = vpop.permute.xlu0 %2979
  %2981 = vrot.lane.b32.xlu0 %v2932, 24
  %v2982 = vpop.permute.xlu0 %2981
  %vm2999 = vcmask 261312
  %3000 = vst.msk [vmem:[#allocation2] sm:$0xff] %vm2999, %v2952
  %3001 = vst.msk [vmem:[#allocation2 + $0x8] sm:$0xff] %vm2999, %v2954
  %3002 = vst.msk [vmem:[#allocation2 + $0x10] sm:$0xff] %vm2999, %v2956
  %3003 = vst.msk [vmem:[#allocation2 + $0x18] sm:$0xff] %vm2999, %v2958
  %3004 = vst.msk [vmem:[#allocation2 + $0x20] sm:$0xff] %vm2999, %v2960
  %3005 = vst.msk [vmem:[#allocation2 + $0x28] sm:$0xff] %vm2999, %v2962
  %3006 = vst.msk [vmem:[#allocation2 + $0x30] sm:$0xff] %vm2999, %v2964
  %3007 = vst.msk [vmem:[#allocation2 + $0x38] sm:$0xff] %vm2999, %v2966
  %3008 = vst.msk [vmem:[#allocation2 + $0x40] sm:$0xff] %vm2999, %v2968
  %3009 = vst.msk [vmem:[#allocation2 + $0x48] sm:$0xff] %vm2999, %v2970
  %3010 = vst.msk [vmem:[#allocation2 + $0x50] sm:$0xff] %vm2999, %v2972
  %3011 = vst.msk [vmem:[#allocation2 + $0x58] sm:$0xff] %vm2999, %v2974
  %3012 = vst.msk [vmem:[#allocation2 + $0x60] sm:$0xff] %vm2999, %v2976
  %3013 = vst.msk [vmem:[#allocation2 + $0x68] sm:$0xff] %vm2999, %v2978
  %3014 = vst.msk [vmem:[#allocation2 + $0x70] sm:$0xff] %vm2999, %v2980
  %3015 = vst.msk [vmem:[#allocation2 + $0x78] sm:$0xff] %vm2999, %v2982
  %v3016 = vld [vmem:[#allocation2] sm:$0xff]
  %v3017 = vld [vmem:[#allocation2 + $0x8] sm:$0xff]
  %v3018 = vld [vmem:[#allocation2 + $0x10] sm:$0xff]
  %v3019 = vld [vmem:[#allocation2 + $0x18] sm:$0xff]
  %v3020 = vld [vmem:[#allocation2 + $0x20] sm:$0xff]
  %v3021 = vld [vmem:[#allocation2 + $0x28] sm:$0xff]
  %v3022 = vld [vmem:[#allocation2 + $0x30] sm:$0xff]
  %v3023 = vld [vmem:[#allocation2 + $0x38] sm:$0xff]
  %v3024 = vld [vmem:[#allocation2 + $0x40] sm:$0xff]
  %v3025 = vld [vmem:[#allocation2 + $0x48] sm:$0xff]
  %v3026 = vld [vmem:[#allocation2 + $0x50] sm:$0xff]
  %v3027 = vld [vmem:[#allocation2 + $0x58] sm:$0xff]
  %v3028 = vld [vmem:[#allocation2 + $0x60] sm:$0xff]
  %v3029 = vld [vmem:[#allocation2 + $0x68] sm:$0xff]
  %v3030 = vld [vmem:[#allocation2 + $0x70] sm:$0xff]
  %v3031 = vld [vmem:[#allocation2 + $0x78] sm:$0xff]
  %v3032 = vld [vmem:[%s4] sm:$0xff]
  %v3033 = vld [vmem:[%s4 + $0x8] sm:$0xff]
  %v3034 = vld [vmem:[%s4 + $0x10] sm:$0xff]
  %v3035 = vld [vmem:[%s4 + $0x18] sm:$0xff]
  %v3036 = vld [vmem:[%s5] sm:$0x1]
  %v3038 = vlaneseq
  %v3039 = vshrl.u32 %v3038, 7
  %v3040 = vsub.s32 0, %v3039
  %v3041 = vrot.slane %v3036, %v3040
  %v3044 = vsel %vm74, %v3016, 0
  %v3047 = vsel %vm74, %v3017, 0
  %v3050 = vsel %vm74, %v3018, 0
  %v3053 = vsel %vm74, %v3019, 0
  %v3056 = vsel %vm74, %v3020, 0
  %v3059 = vsel %vm74, %v3021, 0
  %v3062 = vsel %vm74, %v3022, 0
  %v3065 = vsel %vm74, %v3023, 0
  %v3068 = vsel %vm74, %v3024, 0
  %v3071 = vsel %vm74, %v3025, 0
  %v3074 = vsel %vm74, %v3026, 0
  %v3077 = vsel %vm74, %v3027, 0
  %v3080 = vsel %vm74, %v3028, 0
  %v3083 = vsel %vm74, %v3029, 0
  %v3086 = vsel %vm74, %v3030, 0
  %v3089 = vsel %vm74, %v3031, 0
  %3091 = vmatprep.subr.mxu0 0.0
  %3092 = vmatpush1.msra.mxu0 0.0
  %3093 = vmatprep.subr.mxu0 0.0
  %3094 = vmatpush1.msra.mxu0 0.0
  %3095 = vmatprep.subr.mxu0 0.0
  %3096 = vmatpush1.msra.mxu0 0.0
  %3097 = vmatprep.subr.mxu0 0.0
  %3098 = vmatpush1.msra.mxu0 0.0
  %3099 = vmatprep.subr.mxu0 0.0
  %3100 = vmatpush1.msra.mxu0 0.0
  %3101 = vmatprep.subr.mxu0 0.0
  %3102 = vmatpush1.msra.mxu0 0.0
  %3103 = vmatprep.subr.mxu0 0.0
  %3104 = vmatpush1.msra.mxu0 0.0
  %3105 = vmatprep.subr.mxu0 0.0
  %3106 = vmatpush1.msra.mxu0 0.0
  %3107 = vmatprep.subr.mxu0 0.0
  %3108 = vmatpush1.msra.mxu0 0.0
  %3109 = vmatprep.subr.mxu0 0.0
  %3110 = vmatpush1.msra.mxu0 0.0
  %3111 = vmatprep.subr.mxu0 0.0
  %3112 = vmatpush1.msra.mxu0 0.0
  %3113 = vmatprep.subr.mxu0 0.0
  %3114 = vmatpush1.msra.mxu0 0.0
  %3115 = vmatprep.subr.mxu0 0.0
  %3116 = vmatpush1.msra.mxu0 %v3035
  %3117 = vmatprep.subr.mxu0 0.0
  %3118 = vmatpush1.msra.mxu0 %v3034
  %3119 = vmatprep.subr.mxu0 0.0
  %3120 = vmatpush1.msra.mxu0 %v3033
  %3121 = vmatprep.subr.mxu0 0.0
  %3122 = vmatpush1.msra.mxu0 %v3032
  %3123 = vmatprep.subr.mxu0 0.0
  %3124 = vmatpush2.msra.mxu0 0.0
  %3125 = vmatprep.subr.mxu0 0.0
  %3126 = vmatpush2.msra.mxu0 0.0
  %3127 = vmatprep.subr.mxu0 0.0
  %3128 = vmatpush2.msra.mxu0 0.0
  %3129 = vmatprep.subr.mxu0 0.0
  %3130 = vmatpush2.msra.mxu0 0.0
  %3131 = vmatprep.subr.mxu0 0.0
  %3132 = vmatpush2.msra.mxu0 0.0
  %3133 = vmatprep.subr.mxu0 0.0
  %3134 = vmatpush2.msra.mxu0 0.0
  %3135 = vmatprep.subr.mxu0 0.0
  %3136 = vmatpush2.msra.mxu0 0.0
  %3137 = vmatprep.subr.mxu0 0.0
  %3138 = vmatpush2.msra.mxu0 0.0
  %3139 = vmatprep.subr.mxu0 0.0
  %3140 = vmatpush2.msra.mxu0 0.0
  %3141 = vmatprep.subr.mxu0 0.0
  %3142 = vmatpush2.msra.mxu0 0.0
  %3143 = vmatprep.subr.mxu0 0.0
  %3144 = vmatpush2.msra.mxu0 0.0
  %3145 = vmatprep.subr.mxu0 0.0
  %3146 = vmatpush2.msra.mxu0 0.0
  %3147 = vmatprep.subr.mxu0 0.0
  %3148 = vmatpush2.msra.mxu0 0.0
  %3149 = vmatprep.subr.mxu0 0.0
  %3150 = vmatpush2.msra.mxu0 0.0
  %3151 = vmatprep.subr.mxu0 0.0
  %3152 = vmatpush2.msra.mxu0 0.0
  %3153 = vmatprep.subr.mxu0 0.0
  %3154 = vmatpush2.msra.mxu0 0.0
  %3155 = vmatprep.mubr.f32.mxu0 0.0
  %3156 = vmatmul.mubr.f32.gmra.mxu0 %v3044
  %v3157 = vpop.f32.mrf.mxu0
  %v3158 = vadd.f32 %v3041, %v3157
  %v3159 = vpop.f32.mrf.mxu0
  %3160 = vmatprep.mubr.f32.mxu0 0.0
  %3161 = vmatmul.mubr.f32.gmra.mxu0 %v3047
  %v3162 = vpop.f32.mrf.mxu0
  %v3163 = vadd.f32 %v3041, %v3162
  %v3164 = vpop.f32.mrf.mxu0
  %3165 = vmatprep.mubr.f32.mxu0 0.0
  %3166 = vmatmul.mubr.f32.gmra.mxu0 %v3050
  %v3167 = vpop.f32.mrf.mxu0
  %v3168 = vadd.f32 %v3041, %v3167
  %v3169 = vpop.f32.mrf.mxu0
  %3170 = vmatprep.mubr.f32.mxu0 0.0
  %3171 = vmatmul.mubr.f32.gmra.mxu0 %v3053
  %v3172 = vpop.f32.mrf.mxu0
  %v3173 = vadd.f32 %v3041, %v3172
  %v3174 = vpop.f32.mrf.mxu0
  %3175 = vmatprep.mubr.f32.mxu0 0.0
  %3176 = vmatmul.mubr.f32.gmra.mxu0 %v3056
  %v3177 = vpop.f32.mrf.mxu0
  %v3178 = vadd.f32 %v3041, %v3177
  %v3179 = vpop.f32.mrf.mxu0
  %3180 = vmatprep.mubr.f32.mxu0 0.0
  %3181 = vmatmul.mubr.f32.gmra.mxu0 %v3059
  %v3182 = vpop.f32.mrf.mxu0
  %v3183 = vadd.f32 %v3041, %v3182
  %v3184 = vpop.f32.mrf.mxu0
  %3185 = vmatprep.mubr.f32.mxu0 0.0
  %3186 = vmatmul.mubr.f32.gmra.mxu0 %v3062
  %v3187 = vpop.f32.mrf.mxu0
  %v3188 = vadd.f32 %v3041, %v3187
  %v3189 = vpop.f32.mrf.mxu0
  %3190 = vmatprep.mubr.f32.mxu0 0.0
  %3191 = vmatmul.mubr.f32.gmra.mxu0 %v3065
  %v3192 = vpop.f32.mrf.mxu0
  %v3193 = vadd.f32 %v3041, %v3192
  %v3194 = vpop.f32.mrf.mxu0
  %3195 = vmatprep.mubr.f32.mxu0 0.0
  %3196 = vmatmul.mubr.f32.gmra.mxu0 %v3068
  %v3197 = vpop.f32.mrf.mxu0
  %v3198 = vadd.f32 %v3041, %v3197
  %v3199 = vpop.f32.mrf.mxu0
  %3200 = vmatprep.mubr.f32.mxu0 0.0
  %3201 = vmatmul.mubr.f32.gmra.mxu0 %v3071
  %v3202 = vpop.f32.mrf.mxu0
  %v3203 = vadd.f32 %v3041, %v3202
  %v3204 = vpop.f32.mrf.mxu0
  %3205 = vmatprep.mubr.f32.mxu0 0.0
  %3206 = vmatmul.mubr.f32.gmra.mxu0 %v3074
  %v3207 = vpop.f32.mrf.mxu0
  %v3208 = vadd.f32 %v3041, %v3207
  %v3209 = vpop.f32.mrf.mxu0
  %3210 = vmatprep.mubr.f32.mxu0 0.0
  %3211 = vmatmul.mubr.f32.gmra.mxu0 %v3077
  %v3212 = vpop.f32.mrf.mxu0
  %v3213 = vadd.f32 %v3041, %v3212
  %v3214 = vpop.f32.mrf.mxu0
  %3215 = vmatprep.mubr.f32.mxu0 0.0
  %3216 = vmatmul.mubr.f32.gmra.mxu0 %v3080
  %v3217 = vpop.f32.mrf.mxu0
  %v3218 = vadd.f32 %v3041, %v3217
  %v3219 = vpop.f32.mrf.mxu0
  %3220 = vmatprep.mubr.f32.mxu0 0.0
  %3221 = vmatmul.mubr.f32.gmra.mxu0 %v3083
  %v3222 = vpop.f32.mrf.mxu0
  %v3223 = vadd.f32 %v3041, %v3222
  %v3224 = vpop.f32.mrf.mxu0
  %3225 = vmatprep.mubr.f32.mxu0 0.0
  %3226 = vmatmul.mubr.f32.gmra.mxu0 %v3086
  %v3227 = vpop.f32.mrf.mxu0
  %v3228 = vadd.f32 %v3041, %v3227
  %v3229 = vpop.f32.mrf.mxu0
  %3230 = vmatprep.mubr.f32.mxu0 0.0
  %3231 = vmatmul.mubr.f32.gmra.mxu0 %v3089
  %v3232 = vpop.f32.mrf.mxu0
  %v3233 = vadd.f32 %v3041, %v3232
  %v3234 = vpop.f32.mrf.mxu0
  %3235 = vdwg.mxu0
  %v3236 = vadd.f32 %v47, %v3158
  %v3237 = vadd.f32 %v48, %v3163
  %v3238 = vadd.f32 %v49, %v3168
  %v3239 = vadd.f32 %v50, %v3173
  %v3240 = vadd.f32 %v51, %v3178
  %v3241 = vadd.f32 %v52, %v3183
  %v3242 = vadd.f32 %v53, %v3188
  %v3243 = vadd.f32 %v54, %v3193
  %v3244 = vadd.f32 %v55, %v3198
  %v3245 = vadd.f32 %v56, %v3203
  %v3246 = vadd.f32 %v57, %v3208
  %v3247 = vadd.f32 %v58, %v3213
  %v3248 = vadd.f32 %v59, %v3218
  %v3249 = vadd.f32 %v60, %v3223
  %v3250 = vadd.f32 %v61, %v3228
  %v3251 = vadd.f32 %v62, %v3233
  %v3252 = vld [vmem:[%s6] sm:$0x1]
  %v3253 = vld [vmem:[%s7] sm:$0x1]
  %v3254 = vsel %vm74, %v3236, 0.0
  %3255 = vadd.xlane.f32.xlu0 %v3254
  %v3256 = vpop.xlane.xlu0 %3255
  %v3257 = vsel %vm74, %v3237, 0.0
  %3258 = vadd.xlane.f32.xlu0 %v3257
  %v3259 = vpop.xlane.xlu0 %3258
  %v3260 = vsel %vm74, %v3238, 0.0
  %3261 = vadd.xlane.f32.xlu0 %v3260
  %v3262 = vpop.xlane.xlu0 %3261
  %v3263 = vsel %vm74, %v3239, 0.0
  %3264 = vadd.xlane.f32.xlu0 %v3263
  %v3265 = vpop.xlane.xlu0 %3264
  %v3266 = vsel %vm74, %v3240, 0.0
  %3267 = vadd.xlane.f32.xlu0 %v3266
  %v3268 = vpop.xlane.xlu0 %3267
  %v3269 = vsel %vm74, %v3241, 0.0
  %3270 = vadd.xlane.f32.xlu0 %v3269
  %v3271 = vpop.xlane.xlu0 %3270
  %v3272 = vsel %vm74, %v3242, 0.0
  %3273 = vadd.xlane.f32.xlu0 %v3272
  %v3274 = vpop.xlane.xlu0 %3273
  %v3275 = vsel %vm74, %v3243, 0.0
  %3276 = vadd.xlane.f32.xlu0 %v3275
  %v3277 = vpop.xlane.xlu0 %3276
  %v3278 = vsel %vm74, %v3244, 0.0
  %3279 = vadd.xlane.f32.xlu0 %v3278
  %v3280 = vpop.xlane.xlu0 %3279
  %v3281 = vsel %vm74, %v3245, 0.0
  %3282 = vadd.xlane.f32.xlu0 %v3281
  %v3283 = vpop.xlane.xlu0 %3282
  %v3284 = vsel %vm74, %v3246, 0.0
  %3285 = vadd.xlane.f32.xlu0 %v3284
  %v3286 = vpop.xlane.xlu0 %3285
  %v3287 = vsel %vm74, %v3247, 0.0
  %3288 = vadd.xlane.f32.xlu0 %v3287
  %v3289 = vpop.xlane.xlu0 %3288
  %v3290 = vsel %vm74, %v3248, 0.0
  %3291 = vadd.xlane.f32.xlu0 %v3290
  %v3292 = vpop.xlane.xlu0 %3291
  %v3293 = vsel %vm74, %v3249, 0.0
  %3294 = vadd.xlane.f32.xlu0 %v3293
  %v3295 = vpop.xlane.xlu0 %3294
  %v3296 = vsel %vm74, %v3250, 0.0
  %3297 = vadd.xlane.f32.xlu0 %v3296
  %v3298 = vpop.xlane.xlu0 %3297
  %v3299 = vsel %vm74, %v3251, 0.0
  %3300 = vadd.xlane.f32.xlu0 %v3299
  %v3301 = vpop.xlane.xlu0 %3300
  %v3302 = vrcp.pop 32.0
  %v3303 = vmul.f32 %v3256, %v3302
  %v3304 = vmul.f32 %v3259, %v3302
  %v3305 = vmul.f32 %v3262, %v3302
  %v3306 = vmul.f32 %v3265, %v3302
  %v3307 = vmul.f32 %v3268, %v3302
  %v3308 = vmul.f32 %v3271, %v3302
  %v3309 = vmul.f32 %v3274, %v3302
  %v3310 = vmul.f32 %v3277, %v3302
  %v3311 = vmul.f32 %v3280, %v3302
  %v3312 = vmul.f32 %v3283, %v3302
  %v3313 = vmul.f32 %v3286, %v3302
  %v3314 = vmul.f32 %v3289, %v3302
  %v3315 = vmul.f32 %v3292, %v3302
  %v3316 = vmul.f32 %v3295, %v3302
  %v3317 = vmul.f32 %v3298, %v3302
  %v3318 = vmul.f32 %v3301, %v3302
  %v3319 = vsub.f32 %v3236, %v3303
  %v3320 = vsub.f32 %v3237, %v3304
  %v3321 = vsub.f32 %v3238, %v3305
  %v3322 = vsub.f32 %v3239, %v3306
  %v3323 = vsub.f32 %v3240, %v3307
  %v3324 = vsub.f32 %v3241, %v3308
  %v3325 = vsub.f32 %v3242, %v3309
  %v3326 = vsub.f32 %v3243, %v3310
  %v3327 = vsub.f32 %v3244, %v3311
  %v3328 = vsub.f32 %v3245, %v3312
  %v3329 = vsub.f32 %v3246, %v3313
  %v3330 = vsub.f32 %v3247, %v3314
  %v3331 = vsub.f32 %v3248, %v3315
  %v3332 = vsub.f32 %v3249, %v3316
  %v3333 = vsub.f32 %v3250, %v3317
  %v3334 = vsub.f32 %v3251, %v3318
  %v3335 = vmul.f32 %v3319, %v3319
  %v3336 = vmul.f32 %v3320, %v3320
  %v3337 = vmul.f32 %v3321, %v3321
  %v3338 = vmul.f32 %v3322, %v3322
  %v3339 = vmul.f32 %v3323, %v3323
  %v3340 = vmul.f32 %v3324, %v3324
  %v3341 = vmul.f32 %v3325, %v3325
  %v3342 = vmul.f32 %v3326, %v3326
  %v3343 = vmul.f32 %v3327, %v3327
  %v3344 = vmul.f32 %v3328, %v3328
  %v3345 = vmul.f32 %v3329, %v3329
  %v3346 = vmul.f32 %v3330, %v3330
  %v3347 = vmul.f32 %v3331, %v3331
  %v3348 = vmul.f32 %v3332, %v3332
  %v3349 = vmul.f32 %v3333, %v3333
  %v3350 = vmul.f32 %v3334, %v3334
  %v3351 = vsel %vm74, %v3335, 0.0
  %3352 = vadd.xlane.f32.xlu0 %v3351
  %v3353 = vpop.xlane.xlu0 %3352
  %v3354 = vsel %vm74, %v3336, 0.0
  %3355 = vadd.xlane.f32.xlu0 %v3354
  %v3356 = vpop.xlane.xlu0 %3355
  %v3357 = vsel %vm74, %v3337, 0.0
  %3358 = vadd.xlane.f32.xlu0 %v3357
  %v3359 = vpop.xlane.xlu0 %3358
  %v3360 = vsel %vm74, %v3338, 0.0
  %3361 = vadd.xlane.f32.xlu0 %v3360
  %v3362 = vpop.xlane.xlu0 %3361
  %v3363 = vsel %vm74, %v3339, 0.0
  %3364 = vadd.xlane.f32.xlu0 %v3363
  %v3365 = vpop.xlane.xlu0 %3364
  %v3366 = vsel %vm74, %v3340, 0.0
  %3367 = vadd.xlane.f32.xlu0 %v3366
  %v3368 = vpop.xlane.xlu0 %3367
  %v3369 = vsel %vm74, %v3341, 0.0
  %3370 = vadd.xlane.f32.xlu0 %v3369
  %v3371 = vpop.xlane.xlu0 %3370
  %v3372 = vsel %vm74, %v3342, 0.0
  %3373 = vadd.xlane.f32.xlu0 %v3372
  %v3374 = vpop.xlane.xlu0 %3373
  %v3375 = vsel %vm74, %v3343, 0.0
  %3376 = vadd.xlane.f32.xlu0 %v3375
  %v3377 = vpop.xlane.xlu0 %3376
  %v3378 = vsel %vm74, %v3344, 0.0
  %3379 = vadd.xlane.f32.xlu0 %v3378
  %v3380 = vpop.xlane.xlu0 %3379
  %v3381 = vsel %vm74, %v3345, 0.0
  %3382 = vadd.xlane.f32.xlu0 %v3381
  %v3383 = vpop.xlane.xlu0 %3382
  %v3384 = vsel %vm74, %v3346, 0.0
  %3385 = vadd.xlane.f32.xlu0 %v3384
  %v3386 = vpop.xlane.xlu0 %3385
  %v3387 = vsel %vm74, %v3347, 0.0
  %3388 = vadd.xlane.f32.xlu0 %v3387
  %v3389 = vpop.xlane.xlu0 %3388
  %v3390 = vsel %vm74, %v3348, 0.0
  %3391 = vadd.xlane.f32.xlu0 %v3390
  %v3392 = vpop.xlane.xlu0 %3391
  %v3393 = vsel %vm74, %v3349, 0.0
  %3394 = vadd.xlane.f32.xlu0 %v3393
  %v3395 = vpop.xlane.xlu0 %3394
  %v3396 = vsel %vm74, %v3350, 0.0
  %3397 = vadd.xlane.f32.xlu0 %v3396
  %v3398 = vpop.xlane.xlu0 %3397
  %v3399 = vmul.f32 %v3353, %v3302
  %v3400 = vmul.f32 %v3356, %v3302
  %v3401 = vmul.f32 %v3359, %v3302
  %v3402 = vmul.f32 %v3362, %v3302
  %v3403 = vmul.f32 %v3365, %v3302
  %v3404 = vmul.f32 %v3368, %v3302
  %v3405 = vmul.f32 %v3371, %v3302
  %v3406 = vmul.f32 %v3374, %v3302
  %v3407 = vmul.f32 %v3377, %v3302
  %v3408 = vmul.f32 %v3380, %v3302
  %v3409 = vmul.f32 %v3383, %v3302
  %v3410 = vmul.f32 %v3386, %v3302
  %v3411 = vmul.f32 %v3389, %v3302
  %v3412 = vmul.f32 %v3392, %v3302
  %v3413 = vmul.f32 %v3395, %v3302
  %v3414 = vmul.f32 %v3398, %v3302
  %v3415 = vadd.f32 %v3399, 1e-05
  %v3416 = vadd.f32 %v3400, 1e-05
  %v3417 = vadd.f32 %v3401, 1e-05
  %v3418 = vadd.f32 %v3402, 1e-05
  %v3419 = vadd.f32 %v3403, 1e-05
  %v3420 = vadd.f32 %v3404, 1e-05
  %v3421 = vadd.f32 %v3405, 1e-05
  %v3422 = vadd.f32 %v3406, 1e-05
  %v3423 = vadd.f32 %v3407, 1e-05
  %v3424 = vadd.f32 %v3408, 1e-05
  %v3425 = vadd.f32 %v3409, 1e-05
  %v3426 = vadd.f32 %v3410, 1e-05
  %v3427 = vadd.f32 %v3411, 1e-05
  %v3428 = vadd.f32 %v3412, 1e-05
  %v3429 = vadd.f32 %v3413, 1e-05
  %v3430 = vadd.f32 %v3414, 1e-05
  %v3431 = vrsqrt.pop %v3415
  %v3432 = vrsqrt.pop %v3416
  %v3433 = vrsqrt.pop %v3417
  %v3434 = vrsqrt.pop %v3418
  %v3435 = vrsqrt.pop %v3419
  %v3436 = vrsqrt.pop %v3420
  %v3437 = vrsqrt.pop %v3421
  %v3438 = vrsqrt.pop %v3422
  %v3439 = vrsqrt.pop %v3423
  %v3440 = vrsqrt.pop %v3424
  %v3441 = vrsqrt.pop %v3425
  %v3442 = vrsqrt.pop %v3426
  %v3443 = vrsqrt.pop %v3427
  %v3444 = vrsqrt.pop %v3428
  %v3445 = vrsqrt.pop %v3429
  %v3446 = vrsqrt.pop %v3430
  %v3447 = vmul.f32 %v3319, %v3431
  %v3448 = vmul.f32 %v3320, %v3432
  %v3449 = vmul.f32 %v3321, %v3433
  %v3450 = vmul.f32 %v3322, %v3434
  %v3451 = vmul.f32 %v3323, %v3435
  %v3452 = vmul.f32 %v3324, %v3436
  %v3453 = vmul.f32 %v3325, %v3437
  %v3454 = vmul.f32 %v3326, %v3438
  %v3455 = vmul.f32 %v3327, %v3439
  %v3456 = vmul.f32 %v3328, %v3440
  %v3457 = vmul.f32 %v3329, %v3441
  %v3458 = vmul.f32 %v3330, %v3442
  %v3459 = vmul.f32 %v3331, %v3443
  %v3460 = vmul.f32 %v3332, %v3444
  %v3461 = vmul.f32 %v3333, %v3445
  %v3462 = vmul.f32 %v3334, %v3446
  %v3464 = vlaneseq
  %v3465 = vshrl.u32 %v3464, 7
  %v3466 = vsub.s32 0, %v3465
  %v3467 = vrot.slane %v3252, %v3466
  %v3469 = vmul.f32 %v3447, %v3467
  %v3470 = vmul.f32 %v3448, %v3467
  %v3471 = vmul.f32 %v3449, %v3467
  %v3472 = vmul.f32 %v3450, %v3467
  %v3473 = vmul.f32 %v3451, %v3467
  %v3474 = vmul.f32 %v3452, %v3467
  %v3475 = vmul.f32 %v3453, %v3467
  %v3476 = vmul.f32 %v3454, %v3467
  %v3477 = vmul.f32 %v3455, %v3467
  %v3478 = vmul.f32 %v3456, %v3467
  %v3479 = vmul.f32 %v3457, %v3467
  %v3480 = vmul.f32 %v3458, %v3467
  %v3481 = vmul.f32 %v3459, %v3467
  %v3482 = vmul.f32 %v3460, %v3467
  %v3483 = vmul.f32 %v3461, %v3467
  %v3484 = vmul.f32 %v3462, %v3467
  %v3486 = vlaneseq
  %v3487 = vshrl.u32 %v3486, 7
  %v3488 = vsub.s32 0, %v3487
  %v3489 = vrot.slane %v3253, %v3488
  %v3491 = vadd.f32 %v3469, %v3489
  %v3492 = vadd.f32 %v3470, %v3489
  %v3493 = vadd.f32 %v3471, %v3489
  %v3494 = vadd.f32 %v3472, %v3489
  %v3495 = vadd.f32 %v3473, %v3489
  %v3496 = vadd.f32 %v3474, %v3489
  %v3497 = vadd.f32 %v3475, %v3489
  %v3498 = vadd.f32 %v3476, %v3489
  %v3499 = vadd.f32 %v3477, %v3489
  %v3500 = vadd.f32 %v3478, %v3489
  %v3501 = vadd.f32 %v3479, %v3489
  %v3502 = vadd.f32 %v3480, %v3489
  %v3503 = vadd.f32 %v3481, %v3489
  %v3504 = vadd.f32 %v3482, %v3489
  %v3505 = vadd.f32 %v3483, %v3489
  %v3506 = vadd.f32 %v3484, %v3489
  %v3507 = vld [vmem:[%s8] sm:$0xff]
  %v3508 = vld [vmem:[%s8 + $0x8] sm:$0xff]
  %v3509 = vld [vmem:[%s8 + $0x10] sm:$0xff]
  %v3510 = vld [vmem:[%s8 + $0x18] sm:$0xff]
  %v3511 = vld [vmem:[%s9] sm:$0x1]
  %v3513 = vlaneseq
  %v3514 = vshrl.u32 %v3513, 7
  %v3515 = vsub.s32 0, %v3514
  %v3516 = vrot.slane %v3511, %v3515
  %v3519 = vsel %vm74, %v3491, 0
  %v3522 = vsel %vm74, %v3492, 0
  %v3525 = vsel %vm74, %v3493, 0
  %v3528 = vsel %vm74, %v3494, 0
  %v3531 = vsel %vm74, %v3495, 0
  %v3534 = vsel %vm74, %v3496, 0
  %v3537 = vsel %vm74, %v3497, 0
  %v3540 = vsel %vm74, %v3498, 0
  %v3543 = vsel %vm74, %v3499, 0
  %v3546 = vsel %vm74, %v3500, 0
  %v3549 = vsel %vm74, %v3501, 0
  %v3552 = vsel %vm74, %v3502, 0
  %v3555 = vsel %vm74, %v3503, 0
  %v3558 = vsel %vm74, %v3504, 0
  %v3561 = vsel %vm74, %v3505, 0
  %v3564 = vsel %vm74, %v3506, 0
  %3566 = vmatprep.subr.mxu0 0.0
  %3567 = vmatpush1.msra.mxu0 0.0
  %3568 = vmatprep.subr.mxu0 0.0
  %3569 = vmatpush1.msra.mxu0 0.0
  %3570 = vmatprep.subr.mxu0 0.0
  %3571 = vmatpush1.msra.mxu0 0.0
  %3572 = vmatprep.subr.mxu0 0.0
  %3573 = vmatpush1.msra.mxu0 0.0
  %3574 = vmatprep.subr.mxu0 0.0
  %3575 = vmatpush1.msra.mxu0 0.0
  %3576 = vmatprep.subr.mxu0 0.0
  %3577 = vmatpush1.msra.mxu0 0.0
  %3578 = vmatprep.subr.mxu0 0.0
  %3579 = vmatpush1.msra.mxu0 0.0
  %3580 = vmatprep.subr.mxu0 0.0
  %3581 = vmatpush1.msra.mxu0 0.0
  %3582 = vmatprep.subr.mxu0 0.0
  %3583 = vmatpush1.msra.mxu0 0.0
  %3584 = vmatprep.subr.mxu0 0.0
  %3585 = vmatpush1.msra.mxu0 0.0
  %3586 = vmatprep.subr.mxu0 0.0
  %3587 = vmatpush1.msra.mxu0 0.0
  %3588 = vmatprep.subr.mxu0 0.0
  %3589 = vmatpush1.msra.mxu0 0.0
  %3590 = vmatprep.subr.mxu0 0.0
  %3591 = vmatpush1.msra.mxu0 %v3510
  %3592 = vmatprep.subr.mxu0 0.0
  %3593 = vmatpush1.msra.mxu0 %v3509
  %3594 = vmatprep.subr.mxu0 0.0
  %3595 = vmatpush1.msra.mxu0 %v3508
  %3596 = vmatprep.subr.mxu0 0.0
  %3597 = vmatpush1.msra.mxu0 %v3507
  %3598 = vmatprep.subr.mxu0 0.0
  %3599 = vmatpush2.msra.mxu0 0.0
  %3600 = vmatprep.subr.mxu0 0.0
  %3601 = vmatpush2.msra.mxu0 0.0
  %3602 = vmatprep.subr.mxu0 0.0
  %3603 = vmatpush2.msra.mxu0 0.0
  %3604 = vmatprep.subr.mxu0 0.0
  %3605 = vmatpush2.msra.mxu0 0.0
  %3606 = vmatprep.subr.mxu0 0.0
  %3607 = vmatpush2.msra.mxu0 0.0
  %3608 = vmatprep.subr.mxu0 0.0
  %3609 = vmatpush2.msra.mxu0 0.0
  %3610 = vmatprep.subr.mxu0 0.0
  %3611 = vmatpush2.msra.mxu0 0.0
  %3612 = vmatprep.subr.mxu0 0.0
  %3613 = vmatpush2.msra.mxu0 0.0
  %3614 = vmatprep.subr.mxu0 0.0
  %3615 = vmatpush2.msra.mxu0 0.0
  %3616 = vmatprep.subr.mxu0 0.0
  %3617 = vmatpush2.msra.mxu0 0.0
  %3618 = vmatprep.subr.mxu0 0.0
  %3619 = vmatpush2.msra.mxu0 0.0
  %3620 = vmatprep.subr.mxu0 0.0
  %3621 = vmatpush2.msra.mxu0 0.0
  %3622 = vmatprep.subr.mxu0 0.0
  %3623 = vmatpush2.msra.mxu0 0.0
  %3624 = vmatprep.subr.mxu0 0.0
  %3625 = vmatpush2.msra.mxu0 0.0
  %3626 = vmatprep.subr.mxu0 0.0
  %3627 = vmatpush2.msra.mxu0 0.0
  %3628 = vmatprep.subr.mxu0 0.0
  %3629 = vmatpush2.msra.mxu0 0.0
  %3630 = vmatprep.mubr.f32.mxu0 0.0
  %3631 = vmatmul.mubr.f32.gmra.mxu0 %v3519
  %v3632 = vpop.f32.mrf.mxu0
  %v3633 = vadd.f32 %v3516, %v3632
  %v3634 = vpop.f32.mrf.mxu0
  %3635 = vmatprep.mubr.f32.mxu0 0.0
  %3636 = vmatmul.mubr.f32.gmra.mxu0 %v3522
  %v3637 = vpop.f32.mrf.mxu0
  %v3638 = vadd.f32 %v3516, %v3637
  %v3639 = vpop.f32.mrf.mxu0
  %3640 = vmatprep.mubr.f32.mxu0 0.0
  %3641 = vmatmul.mubr.f32.gmra.mxu0 %v3525
  %v3642 = vpop.f32.mrf.mxu0
  %v3643 = vadd.f32 %v3516, %v3642
  %v3644 = vpop.f32.mrf.mxu0
  %3645 = vmatprep.mubr.f32.mxu0 0.0
  %3646 = vmatmul.mubr.f32.gmra.mxu0 %v3528
  %v3647 = vpop.f32.mrf.mxu0
  %v3648 = vadd.f32 %v3516, %v3647
  %v3649 = vpop.f32.mrf.mxu0
  %3650 = vmatprep.mubr.f32.mxu0 0.0
  %3651 = vmatmul.mubr.f32.gmra.mxu0 %v3531
  %v3652 = vpop.f32.mrf.mxu0
  %v3653 = vadd.f32 %v3516, %v3652
  %v3654 = vpop.f32.mrf.mxu0
  %3655 = vmatprep.mubr.f32.mxu0 0.0
  %3656 = vmatmul.mubr.f32.gmra.mxu0 %v3534
  %v3657 = vpop.f32.mrf.mxu0
  %v3658 = vadd.f32 %v3516, %v3657
  %v3659 = vpop.f32.mrf.mxu0
  %3660 = vmatprep.mubr.f32.mxu0 0.0
  %3661 = vmatmul.mubr.f32.gmra.mxu0 %v3537
  %v3662 = vpop.f32.mrf.mxu0
  %v3663 = vadd.f32 %v3516, %v3662
  %v3664 = vpop.f32.mrf.mxu0
  %3665 = vmatprep.mubr.f32.mxu0 0.0
  %3666 = vmatmul.mubr.f32.gmra.mxu0 %v3540
  %v3667 = vpop.f32.mrf.mxu0
  %v3668 = vadd.f32 %v3516, %v3667
  %v3669 = vpop.f32.mrf.mxu0
  %3670 = vmatprep.mubr.f32.mxu0 0.0
  %3671 = vmatmul.mubr.f32.gmra.mxu0 %v3543
  %v3672 = vpop.f32.mrf.mxu0
  %v3673 = vadd.f32 %v3516, %v3672
  %v3674 = vpop.f32.mrf.mxu0
  %3675 = vmatprep.mubr.f32.mxu0 0.0
  %3676 = vmatmul.mubr.f32.gmra.mxu0 %v3546
  %v3677 = vpop.f32.mrf.mxu0
  %v3678 = vadd.f32 %v3516, %v3677
  %v3679 = vpop.f32.mrf.mxu0
  %3680 = vmatprep.mubr.f32.mxu0 0.0
  %3681 = vmatmul.mubr.f32.gmra.mxu0 %v3549
  %v3682 = vpop.f32.mrf.mxu0
  %v3683 = vadd.f32 %v3516, %v3682
  %v3684 = vpop.f32.mrf.mxu0
  %3685 = vmatprep.mubr.f32.mxu0 0.0
  %3686 = vmatmul.mubr.f32.gmra.mxu0 %v3552
  %v3687 = vpop.f32.mrf.mxu0
  %v3688 = vadd.f32 %v3516, %v3687
  %v3689 = vpop.f32.mrf.mxu0
  %3690 = vmatprep.mubr.f32.mxu0 0.0
  %3691 = vmatmul.mubr.f32.gmra.mxu0 %v3555
  %v3692 = vpop.f32.mrf.mxu0
  %v3693 = vadd.f32 %v3516, %v3692
  %v3694 = vpop.f32.mrf.mxu0
  %3695 = vmatprep.mubr.f32.mxu0 0.0
  %3696 = vmatmul.mubr.f32.gmra.mxu0 %v3558
  %v3697 = vpop.f32.mrf.mxu0
  %v3698 = vadd.f32 %v3516, %v3697
  %v3699 = vpop.f32.mrf.mxu0
  %3700 = vmatprep.mubr.f32.mxu0 0.0
  %3701 = vmatmul.mubr.f32.gmra.mxu0 %v3561
  %v3702 = vpop.f32.mrf.mxu0
  %v3703 = vadd.f32 %v3516, %v3702
  %v3704 = vpop.f32.mrf.mxu0
  %3705 = vmatprep.mubr.f32.mxu0 0.0
  %3706 = vmatmul.mubr.f32.gmra.mxu0 %v3564
  %v3707 = vpop.f32.mrf.mxu0
  %v3708 = vadd.f32 %v3516, %v3707
  %v3709 = vpop.f32.mrf.mxu0
  %3710 = vdwg.mxu0
  %v3711 = vmax.f32 %v3633, 0.0
  %v3712 = vmax.f32 %v3638, 0.0
  %v3713 = vmax.f32 %v3643, 0.0
  %v3714 = vmax.f32 %v3648, 0.0
  %v3715 = vmax.f32 %v3653, 0.0
  %v3716 = vmax.f32 %v3658, 0.0
  %v3717 = vmax.f32 %v3663, 0.0
  %v3718 = vmax.f32 %v3668, 0.0
  %v3719 = vmax.f32 %v3673, 0.0
  %v3720 = vmax.f32 %v3678, 0.0
  %v3721 = vmax.f32 %v3683, 0.0
  %v3722 = vmax.f32 %v3688, 0.0
  %v3723 = vmax.f32 %v3693, 0.0
  %v3724 = vmax.f32 %v3698, 0.0
  %v3725 = vmax.f32 %v3703, 0.0
  %v3726 = vmax.f32 %v3708, 0.0
  %v3727 = vld [vmem:[%s10] sm:$0xff]
  %v3728 = vld [vmem:[%s10 + $0x8] sm:$0xff]
  %v3729 = vld [vmem:[%s10 + $0x10] sm:$0xff]
  %v3730 = vld [vmem:[%s10 + $0x18] sm:$0xff]
  %v3731 = vld [vmem:[%s10 + $0x20] sm:$0xff]
  %v3732 = vld [vmem:[%s10 + $0x28] sm:$0xff]
  %v3733 = vld [vmem:[%s10 + $0x30] sm:$0xff]
  %v3734 = vld [vmem:[%s10 + $0x38] sm:$0xff]
  %v3735 = vld [vmem:[%s10 + $0x40] sm:$0xff]
  %v3736 = vld [vmem:[%s10 + $0x48] sm:$0xff]
  %v3737 = vld [vmem:[%s10 + $0x50] sm:$0xff]
  %v3738 = vld [vmem:[%s10 + $0x58] sm:$0xff]
  %v3739 = vld [vmem:[%s10 + $0x60] sm:$0xff]
  %v3740 = vld [vmem:[%s10 + $0x68] sm:$0xff]
  %v3741 = vld [vmem:[%s10 + $0x70] sm:$0xff]
  %v3742 = vld [vmem:[%s10 + $0x78] sm:$0xff]
  %v3743 = vld [vmem:[%s11] sm:$0x1]
  %v3745 = vlaneseq
  %v3746 = vshrl.u32 %v3745, 7
  %v3747 = vsub.s32 0, %v3746
  %v3748 = vrot.slane %v3743, %v3747
  %3750 = vmatprep.subr.mxu0 0.0
  %3751 = vmatpush1.msra.mxu0 %v3742
  %3752 = vmatprep.subr.mxu0 0.0
  %3753 = vmatpush1.msra.mxu0 %v3741
  %3754 = vmatprep.subr.mxu0 0.0
  %3755 = vmatpush1.msra.mxu0 %v3740
  %3756 = vmatprep.subr.mxu0 0.0
  %3757 = vmatpush1.msra.mxu0 %v3739
  %3758 = vmatprep.subr.mxu0 0.0
  %3759 = vmatpush1.msra.mxu0 %v3738
  %3760 = vmatprep.subr.mxu0 0.0
  %3761 = vmatpush1.msra.mxu0 %v3737
  %3762 = vmatprep.subr.mxu0 0.0
  %3763 = vmatpush1.msra.mxu0 %v3736
  %3764 = vmatprep.subr.mxu0 0.0
  %3765 = vmatpush1.msra.mxu0 %v3735
  %3766 = vmatprep.subr.mxu0 0.0
  %3767 = vmatpush1.msra.mxu0 %v3734
  %3768 = vmatprep.subr.mxu0 0.0
  %3769 = vmatpush1.msra.mxu0 %v3733
  %3770 = vmatprep.subr.mxu0 0.0
  %3771 = vmatpush1.msra.mxu0 %v3732
  %3772 = vmatprep.subr.mxu0 0.0
  %3773 = vmatpush1.msra.mxu0 %v3731
  %3774 = vmatprep.subr.mxu0 0.0
  %3775 = vmatpush1.msra.mxu0 %v3730
  %3776 = vmatprep.subr.mxu0 0.0
  %3777 = vmatpush1.msra.mxu0 %v3729
  %3778 = vmatprep.subr.mxu0 0.0
  %3779 = vmatpush1.msra.mxu0 %v3728
  %3780 = vmatprep.subr.mxu0 0.0
  %3781 = vmatpush1.msra.mxu0 %v3727
  %3782 = vmatprep.subr.mxu0 0.0
  %3783 = vmatpush2.msra.mxu0 0.0
  %3784 = vmatprep.subr.mxu0 0.0
  %3785 = vmatpush2.msra.mxu0 0.0
  %3786 = vmatprep.subr.mxu0 0.0
  %3787 = vmatpush2.msra.mxu0 0.0
  %3788 = vmatprep.subr.mxu0 0.0
  %3789 = vmatpush2.msra.mxu0 0.0
  %3790 = vmatprep.subr.mxu0 0.0
  %3791 = vmatpush2.msra.mxu0 0.0
  %3792 = vmatprep.subr.mxu0 0.0
  %3793 = vmatpush2.msra.mxu0 0.0
  %3794 = vmatprep.subr.mxu0 0.0
  %3795 = vmatpush2.msra.mxu0 0.0
  %3796 = vmatprep.subr.mxu0 0.0
  %3797 = vmatpush2.msra.mxu0 0.0
  %3798 = vmatprep.subr.mxu0 0.0
  %3799 = vmatpush2.msra.mxu0 0.0
  %3800 = vmatprep.subr.mxu0 0.0
  %3801 = vmatpush2.msra.mxu0 0.0
  %3802 = vmatprep.subr.mxu0 0.0
  %3803 = vmatpush2.msra.mxu0 0.0
  %3804 = vmatprep.subr.mxu0 0.0
  %3805 = vmatpush2.msra.mxu0 0.0
  %3806 = vmatprep.subr.mxu0 0.0
  %3807 = vmatpush2.msra.mxu0 0.0
  %3808 = vmatprep.subr.mxu0 0.0
  %3809 = vmatpush2.msra.mxu0 0.0
  %3810 = vmatprep.subr.mxu0 0.0
  %3811 = vmatpush2.msra.mxu0 0.0
  %3812 = vmatprep.subr.mxu0 0.0
  %3813 = vmatpush2.msra.mxu0 0.0
  %3814 = vmatprep.mubr.f32.mxu0 0.0
  %3815 = vmatmul.mubr.f32.gmra.mxu0 %v3711
  %v3816 = vpop.f32.mrf.mxu0
  %v3817 = vadd.f32 %v3748, %v3816
  %v3818 = vpop.f32.mrf.mxu0
  %3819 = vmatprep.mubr.f32.mxu0 0.0
  %3820 = vmatmul.mubr.f32.gmra.mxu0 %v3712
  %v3821 = vpop.f32.mrf.mxu0
  %v3822 = vadd.f32 %v3748, %v3821
  %v3823 = vpop.f32.mrf.mxu0
  %3824 = vmatprep.mubr.f32.mxu0 0.0
  %3825 = vmatmul.mubr.f32.gmra.mxu0 %v3713
  %v3826 = vpop.f32.mrf.mxu0
  %v3827 = vadd.f32 %v3748, %v3826
  %v3828 = vpop.f32.mrf.mxu0
  %3829 = vmatprep.mubr.f32.mxu0 0.0
  %3830 = vmatmul.mubr.f32.gmra.mxu0 %v3714
  %v3831 = vpop.f32.mrf.mxu0
  %v3832 = vadd.f32 %v3748, %v3831
  %v3833 = vpop.f32.mrf.mxu0
  %3834 = vmatprep.mubr.f32.mxu0 0.0
  %3835 = vmatmul.mubr.f32.gmra.mxu0 %v3715
  %v3836 = vpop.f32.mrf.mxu0
  %v3837 = vadd.f32 %v3748, %v3836
  %v3838 = vpop.f32.mrf.mxu0
  %3839 = vmatprep.mubr.f32.mxu0 0.0
  %3840 = vmatmul.mubr.f32.gmra.mxu0 %v3716
  %v3841 = vpop.f32.mrf.mxu0
  %v3842 = vadd.f32 %v3748, %v3841
  %v3843 = vpop.f32.mrf.mxu0
  %3844 = vmatprep.mubr.f32.mxu0 0.0
  %3845 = vmatmul.mubr.f32.gmra.mxu0 %v3717
  %v3846 = vpop.f32.mrf.mxu0
  %v3847 = vadd.f32 %v3748, %v3846
  %v3848 = vpop.f32.mrf.mxu0
  %3849 = vmatprep.mubr.f32.mxu0 0.0
  %3850 = vmatmul.mubr.f32.gmra.mxu0 %v3718
  %v3851 = vpop.f32.mrf.mxu0
  %v3852 = vadd.f32 %v3748, %v3851
  %v3853 = vpop.f32.mrf.mxu0
  %3854 = vmatprep.mubr.f32.mxu0 0.0
  %3855 = vmatmul.mubr.f32.gmra.mxu0 %v3719
  %v3856 = vpop.f32.mrf.mxu0
  %v3857 = vadd.f32 %v3748, %v3856
  %v3858 = vpop.f32.mrf.mxu0
  %3859 = vmatprep.mubr.f32.mxu0 0.0
  %3860 = vmatmul.mubr.f32.gmra.mxu0 %v3720
  %v3861 = vpop.f32.mrf.mxu0
  %v3862 = vadd.f32 %v3748, %v3861
  %v3863 = vpop.f32.mrf.mxu0
  %3864 = vmatprep.mubr.f32.mxu0 0.0
  %3865 = vmatmul.mubr.f32.gmra.mxu0 %v3721
  %v3866 = vpop.f32.mrf.mxu0
  %v3867 = vadd.f32 %v3748, %v3866
  %v3868 = vpop.f32.mrf.mxu0
  %3869 = vmatprep.mubr.f32.mxu0 0.0
  %3870 = vmatmul.mubr.f32.gmra.mxu0 %v3722
  %v3871 = vpop.f32.mrf.mxu0
  %v3872 = vadd.f32 %v3748, %v3871
  %v3873 = vpop.f32.mrf.mxu0
  %3874 = vmatprep.mubr.f32.mxu0 0.0
  %3875 = vmatmul.mubr.f32.gmra.mxu0 %v3723
  %v3876 = vpop.f32.mrf.mxu0
  %v3877 = vadd.f32 %v3748, %v3876
  %v3878 = vpop.f32.mrf.mxu0
  %3879 = vmatprep.mubr.f32.mxu0 0.0
  %3880 = vmatmul.mubr.f32.gmra.mxu0 %v3724
  %v3881 = vpop.f32.mrf.mxu0
  %v3882 = vadd.f32 %v3748, %v3881
  %v3883 = vpop.f32.mrf.mxu0
  %3884 = vmatprep.mubr.f32.mxu0 0.0
  %3885 = vmatmul.mubr.f32.gmra.mxu0 %v3725
  %v3886 = vpop.f32.mrf.mxu0
  %v3887 = vadd.f32 %v3748, %v3886
  %v3888 = vpop.f32.mrf.mxu0
  %3889 = vmatprep.mubr.f32.mxu0 0.0
  %3890 = vmatmul.mubr.f32.gmra.mxu0 %v3726
  %v3891 = vpop.f32.mrf.mxu0
  %v3892 = vadd.f32 %v3748, %v3891
  %v3893 = vpop.f32.mrf.mxu0
  %3894 = vdwg.mxu0
  %v3895 = vadd.f32 %v3491, %v3817
  %v3896 = vadd.f32 %v3492, %v3822
  %v3897 = vadd.f32 %v3493, %v3827
  %v3898 = vadd.f32 %v3494, %v3832
  %v3899 = vadd.f32 %v3495, %v3837
  %v3900 = vadd.f32 %v3496, %v3842
  %v3901 = vadd.f32 %v3497, %v3847
  %v3902 = vadd.f32 %v3498, %v3852
  %v3903 = vadd.f32 %v3499, %v3857
  %v3904 = vadd.f32 %v3500, %v3862
  %v3905 = vadd.f32 %v3501, %v3867
  %v3906 = vadd.f32 %v3502, %v3872
  %v3907 = vadd.f32 %v3503, %v3877
  %v3908 = vadd.f32 %v3504, %v3882
  %v3909 = vadd.f32 %v3505, %v3887
  %v3910 = vadd.f32 %v3506, %v3892
  %v3911 = vld [vmem:[%s12] sm:$0x1]
  %v3912 = vld [vmem:[%s13] sm:$0x1]
  %v3913 = vsel %vm74, %v3895, 0.0
  %3914 = vadd.xlane.f32.xlu0 %v3913
  %v3915 = vpop.xlane.xlu0 %3914
  %v3916 = vsel %vm74, %v3896, 0.0
  %3917 = vadd.xlane.f32.xlu0 %v3916
  %v3918 = vpop.xlane.xlu0 %3917
  %v3919 = vsel %vm74, %v3897, 0.0
  %3920 = vadd.xlane.f32.xlu0 %v3919
  %v3921 = vpop.xlane.xlu0 %3920
  %v3922 = vsel %vm74, %v3898, 0.0
  %3923 = vadd.xlane.f32.xlu0 %v3922
  %v3924 = vpop.xlane.xlu0 %3923
  %v3925 = vsel %vm74, %v3899, 0.0
  %3926 = vadd.xlane.f32.xlu0 %v3925
  %v3927 = vpop.xlane.xlu0 %3926
  %v3928 = vsel %vm74, %v3900, 0.0
  %3929 = vadd.xlane.f32.xlu0 %v3928
  %v3930 = vpop.xlane.xlu0 %3929
  %v3931 = vsel %vm74, %v3901, 0.0
  %3932 = vadd.xlane.f32.xlu0 %v3931
  %v3933 = vpop.xlane.xlu0 %3932
  %v3934 = vsel %vm74, %v3902, 0.0
  %3935 = vadd.xlane.f32.xlu0 %v3934
  %v3936 = vpop.xlane.xlu0 %3935
  %v3937 = vsel %vm74, %v3903, 0.0
  %3938 = vadd.xlane.f32.xlu0 %v3937
  %v3939 = vpop.xlane.xlu0 %3938
  %v3940 = vsel %vm74, %v3904, 0.0
  %3941 = vadd.xlane.f32.xlu0 %v3940
  %v3942 = vpop.xlane.xlu0 %3941
  %v3943 = vsel %vm74, %v3905, 0.0
  %3944 = vadd.xlane.f32.xlu0 %v3943
  %v3945 = vpop.xlane.xlu0 %3944
  %v3946 = vsel %vm74, %v3906, 0.0
  %3947 = vadd.xlane.f32.xlu0 %v3946
  %v3948 = vpop.xlane.xlu0 %3947
  %v3949 = vsel %vm74, %v3907, 0.0
  %3950 = vadd.xlane.f32.xlu0 %v3949
  %v3951 = vpop.xlane.xlu0 %3950
  %v3952 = vsel %vm74, %v3908, 0.0
  %3953 = vadd.xlane.f32.xlu0 %v3952
  %v3954 = vpop.xlane.xlu0 %3953
  %v3955 = vsel %vm74, %v3909, 0.0
  %3956 = vadd.xlane.f32.xlu0 %v3955
  %v3957 = vpop.xlane.xlu0 %3956
  %v3958 = vsel %vm74, %v3910, 0.0
  %3959 = vadd.xlane.f32.xlu0 %v3958
  %v3960 = vpop.xlane.xlu0 %3959
  %v3961 = vmul.f32 %v3915, %v3302
  %v3962 = vmul.f32 %v3918, %v3302
  %v3963 = vmul.f32 %v3921, %v3302
  %v3964 = vmul.f32 %v3924, %v3302
  %v3965 = vmul.f32 %v3927, %v3302
  %v3966 = vmul.f32 %v3930, %v3302
  %v3967 = vmul.f32 %v3933, %v3302
  %v3968 = vmul.f32 %v3936, %v3302
  %v3969 = vmul.f32 %v3939, %v3302
  %v3970 = vmul.f32 %v3942, %v3302
  %v3971 = vmul.f32 %v3945, %v3302
  %v3972 = vmul.f32 %v3948, %v3302
  %v3973 = vmul.f32 %v3951, %v3302
  %v3974 = vmul.f32 %v3954, %v3302
  %v3975 = vmul.f32 %v3957, %v3302
  %v3976 = vmul.f32 %v3960, %v3302
  %v3977 = vsub.f32 %v3895, %v3961
  %v3978 = vsub.f32 %v3896, %v3962
  %v3979 = vsub.f32 %v3897, %v3963
  %v3980 = vsub.f32 %v3898, %v3964
  %v3981 = vsub.f32 %v3899, %v3965
  %v3982 = vsub.f32 %v3900, %v3966
  %v3983 = vsub.f32 %v3901, %v3967
  %v3984 = vsub.f32 %v3902, %v3968
  %v3985 = vsub.f32 %v3903, %v3969
  %v3986 = vsub.f32 %v3904, %v3970
  %v3987 = vsub.f32 %v3905, %v3971
  %v3988 = vsub.f32 %v3906, %v3972
  %v3989 = vsub.f32 %v3907, %v3973
  %v3990 = vsub.f32 %v3908, %v3974
  %v3991 = vsub.f32 %v3909, %v3975
  %v3992 = vsub.f32 %v3910, %v3976
  %v3993 = vmul.f32 %v3977, %v3977
  %v3994 = vmul.f32 %v3978, %v3978
  %v3995 = vmul.f32 %v3979, %v3979
  %v3996 = vmul.f32 %v3980, %v3980
  %v3997 = vmul.f32 %v3981, %v3981
  %v3998 = vmul.f32 %v3982, %v3982
  %v3999 = vmul.f32 %v3983, %v3983
  %v4000 = vmul.f32 %v3984, %v3984
  %v4001 = vmul.f32 %v3985, %v3985
  %v4002 = vmul.f32 %v3986, %v3986
  %v4003 = vmul.f32 %v3987, %v3987
  %v4004 = vmul.f32 %v3988, %v3988
  %v4005 = vmul.f32 %v3989, %v3989
  %v4006 = vmul.f32 %v3990, %v3990
  %v4007 = vmul.f32 %v3991, %v3991
  %v4008 = vmul.f32 %v3992, %v3992
  %v4009 = vsel %vm74, %v3993, 0.0
  %4010 = vadd.xlane.f32.xlu0 %v4009
  %v4011 = vpop.xlane.xlu0 %4010
  %v4012 = vsel %vm74, %v3994, 0.0
  %4013 = vadd.xlane.f32.xlu0 %v4012
  %v4014 = vpop.xlane.xlu0 %4013
  %v4015 = vsel %vm74, %v3995, 0.0
  %4016 = vadd.xlane.f32.xlu0 %v4015
  %v4017 = vpop.xlane.xlu0 %4016
  %v4018 = vsel %vm74, %v3996, 0.0
  %4019 = vadd.xlane.f32.xlu0 %v4018
  %v4020 = vpop.xlane.xlu0 %4019
  %v4021 = vsel %vm74, %v3997, 0.0
  %4022 = vadd.xlane.f32.xlu0 %v4021
  %v4023 = vpop.xlane.xlu0 %4022
  %v4024 = vsel %vm74, %v3998, 0.0
  %4025 = vadd.xlane.f32.xlu0 %v4024
  %v4026 = vpop.xlane.xlu0 %4025
  %v4027 = vsel %vm74, %v3999, 0.0
  %4028 = vadd.xlane.f32.xlu0 %v4027
  %v4029 = vpop.xlane.xlu0 %4028
  %v4030 = vsel %vm74, %v4000, 0.0
  %4031 = vadd.xlane.f32.xlu0 %v4030
  %v4032 = vpop.xlane.xlu0 %4031
  %v4033 = vsel %vm74, %v4001, 0.0
  %4034 = vadd.xlane.f32.xlu0 %v4033
  %v4035 = vpop.xlane.xlu0 %4034
  %v4036 = vsel %vm74, %v4002, 0.0
  %4037 = vadd.xlane.f32.xlu0 %v4036
  %v4038 = vpop.xlane.xlu0 %4037
  %v4039 = vsel %vm74, %v4003, 0.0
  %4040 = vadd.xlane.f32.xlu0 %v4039
  %v4041 = vpop.xlane.xlu0 %4040
  %v4042 = vsel %vm74, %v4004, 0.0
  %4043 = vadd.xlane.f32.xlu0 %v4042
  %v4044 = vpop.xlane.xlu0 %4043
  %v4045 = vsel %vm74, %v4005, 0.0
  %4046 = vadd.xlane.f32.xlu0 %v4045
  %v4047 = vpop.xlane.xlu0 %4046
  %v4048 = vsel %vm74, %v4006, 0.0
  %4049 = vadd.xlane.f32.xlu0 %v4048
  %v4050 = vpop.xlane.xlu0 %4049
  %v4051 = vsel %vm74, %v4007, 0.0
  %4052 = vadd.xlane.f32.xlu0 %v4051
  %v4053 = vpop.xlane.xlu0 %4052
  %v4054 = vsel %vm74, %v4008, 0.0
  %4055 = vadd.xlane.f32.xlu0 %v4054
  %v4056 = vpop.xlane.xlu0 %4055
  %v4057 = vmul.f32 %v4011, %v3302
  %v4058 = vmul.f32 %v4014, %v3302
  %v4059 = vmul.f32 %v4017, %v3302
  %v4060 = vmul.f32 %v4020, %v3302
  %v4061 = vmul.f32 %v4023, %v3302
  %v4062 = vmul.f32 %v4026, %v3302
  %v4063 = vmul.f32 %v4029, %v3302
  %v4064 = vmul.f32 %v4032, %v3302
  %v4065 = vmul.f32 %v4035, %v3302
  %v4066 = vmul.f32 %v4038, %v3302
  %v4067 = vmul.f32 %v4041, %v3302
  %v4068 = vmul.f32 %v4044, %v3302
  %v4069 = vmul.f32 %v4047, %v3302
  %v4070 = vmul.f32 %v4050, %v3302
  %v4071 = vmul.f32 %v4053, %v3302
  %v4072 = vmul.f32 %v4056, %v3302
  %v4073 = vadd.f32 %v4057, 1e-05
  %v4074 = vadd.f32 %v4058, 1e-05
  %v4075 = vadd.f32 %v4059, 1e-05
  %v4076 = vadd.f32 %v4060, 1e-05
  %v4077 = vadd.f32 %v4061, 1e-05
  %v4078 = vadd.f32 %v4062, 1e-05
  %v4079 = vadd.f32 %v4063, 1e-05
  %v4080 = vadd.f32 %v4064, 1e-05
  %v4081 = vadd.f32 %v4065, 1e-05
  %v4082 = vadd.f32 %v4066, 1e-05
  %v4083 = vadd.f32 %v4067, 1e-05
  %v4084 = vadd.f32 %v4068, 1e-05
  %v4085 = vadd.f32 %v4069, 1e-05
  %v4086 = vadd.f32 %v4070, 1e-05
  %v4087 = vadd.f32 %v4071, 1e-05
  %v4088 = vadd.f32 %v4072, 1e-05
  %v4089 = vrsqrt.pop %v4073
  %v4090 = vrsqrt.pop %v4074
  %v4091 = vrsqrt.pop %v4075
  %v4092 = vrsqrt.pop %v4076
  %v4093 = vrsqrt.pop %v4077
  %v4094 = vrsqrt.pop %v4078
  %v4095 = vrsqrt.pop %v4079
  %v4096 = vrsqrt.pop %v4080
  %v4097 = vrsqrt.pop %v4081
  %v4098 = vrsqrt.pop %v4082
  %v4099 = vrsqrt.pop %v4083
  %v4100 = vrsqrt.pop %v4084
  %v4101 = vrsqrt.pop %v4085
  %v4102 = vrsqrt.pop %v4086
  %v4103 = vrsqrt.pop %v4087
  %v4104 = vrsqrt.pop %v4088
  %v4105 = vmul.f32 %v3977, %v4089
  %v4106 = vmul.f32 %v3978, %v4090
  %v4107 = vmul.f32 %v3979, %v4091
  %v4108 = vmul.f32 %v3980, %v4092
  %v4109 = vmul.f32 %v3981, %v4093
  %v4110 = vmul.f32 %v3982, %v4094
  %v4111 = vmul.f32 %v3983, %v4095
  %v4112 = vmul.f32 %v3984, %v4096
  %v4113 = vmul.f32 %v3985, %v4097
  %v4114 = vmul.f32 %v3986, %v4098
  %v4115 = vmul.f32 %v3987, %v4099
  %v4116 = vmul.f32 %v3988, %v4100
  %v4117 = vmul.f32 %v3989, %v4101
  %v4118 = vmul.f32 %v3990, %v4102
  %v4119 = vmul.f32 %v3991, %v4103
  %v4120 = vmul.f32 %v3992, %v4104
  %v4122 = vlaneseq
  %v4123 = vshrl.u32 %v4122, 7
  %v4124 = vsub.s32 0, %v4123
  %v4125 = vrot.slane %v3911, %v4124
  %v4127 = vmul.f32 %v4105, %v4125
  %v4128 = vmul.f32 %v4106, %v4125
  %v4129 = vmul.f32 %v4107, %v4125
  %v4130 = vmul.f32 %v4108, %v4125
  %v4131 = vmul.f32 %v4109, %v4125
  %v4132 = vmul.f32 %v4110, %v4125
  %v4133 = vmul.f32 %v4111, %v4125
  %v4134 = vmul.f32 %v4112, %v4125
  %v4135 = vmul.f32 %v4113, %v4125
  %v4136 = vmul.f32 %v4114, %v4125
  %v4137 = vmul.f32 %v4115, %v4125
  %v4138 = vmul.f32 %v4116, %v4125
  %v4139 = vmul.f32 %v4117, %v4125
  %v4140 = vmul.f32 %v4118, %v4125
  %v4141 = vmul.f32 %v4119, %v4125
  %v4142 = vmul.f32 %v4120, %v4125
  %v4144 = vlaneseq
  %v4145 = vshrl.u32 %v4144, 7
  %v4146 = vsub.s32 0, %v4145
  %v4147 = vrot.slane %v3912, %v4146
  %v4149 = vadd.f32 %v4127, %v4147
  %v4150 = vadd.f32 %v4128, %v4147
  %v4151 = vadd.f32 %v4129, %v4147
  %v4152 = vadd.f32 %v4130, %v4147
  %v4153 = vadd.f32 %v4131, %v4147
  %v4154 = vadd.f32 %v4132, %v4147
  %v4155 = vadd.f32 %v4133, %v4147
  %v4156 = vadd.f32 %v4134, %v4147
  %v4157 = vadd.f32 %v4135, %v4147
  %v4158 = vadd.f32 %v4136, %v4147
  %v4159 = vadd.f32 %v4137, %v4147
  %v4160 = vadd.f32 %v4138, %v4147
  %v4161 = vadd.f32 %v4139, %v4147
  %v4162 = vadd.f32 %v4140, %v4147
  %v4163 = vadd.f32 %v4141, %v4147
  %v4164 = vadd.f32 %v4142, %v4147
  %s4165 = scalar_lea.vmem %s2, 32
  %v4166 = vld [vmem:[%s4165] sm:$0xff]
  %v4167 = vld [vmem:[%s4165 + $0x8] sm:$0xff]
  %v4168 = vld [vmem:[%s4165 + $0x10] sm:$0xff]
  %v4169 = vld [vmem:[%s4165 + $0x18] sm:$0xff]
  %s4170 = scalar_lea.vmem %s3, 1
  %v4171 = vld [vmem:[%s4170] sm:$0x1]
  %v4173 = vlaneseq
  %v4174 = vshrl.u32 %v4173, 7
  %v4175 = vsub.s32 0, %v4174
  %v4176 = vrot.slane %v4171, %v4175
  %v4179 = vsel %vm74, %v4149, 0
  %v4182 = vsel %vm74, %v4150, 0
  %v4185 = vsel %vm74, %v4151, 0
  %v4188 = vsel %vm74, %v4152, 0
  %v4191 = vsel %vm74, %v4153, 0
  %v4194 = vsel %vm74, %v4154, 0
  %v4197 = vsel %vm74, %v4155, 0
  %v4200 = vsel %vm74, %v4156, 0
  %v4203 = vsel %vm74, %v4157, 0
  %v4206 = vsel %vm74, %v4158, 0
  %v4209 = vsel %vm74, %v4159, 0
  %v4212 = vsel %vm74, %v4160, 0
  %v4215 = vsel %vm74, %v4161, 0
  %v4218 = vsel %vm74, %v4162, 0
  %v4221 = vsel %vm74, %v4163, 0
  %v4224 = vsel %vm74, %v4164, 0
  %4226 = vmatprep.subr.mxu0 0.0
  %4227 = vmatpush1.msra.mxu0 0.0
  %4228 = vmatprep.subr.mxu0 0.0
  %4229 = vmatpush1.msra.mxu0 0.0
  %4230 = vmatprep.subr.mxu0 0.0
  %4231 = vmatpush1.msra.mxu0 0.0
  %4232 = vmatprep.subr.mxu0 0.0
  %4233 = vmatpush1.msra.mxu0 0.0
  %4234 = vmatprep.subr.mxu0 0.0
  %4235 = vmatpush1.msra.mxu0 0.0
  %4236 = vmatprep.subr.mxu0 0.0
  %4237 = vmatpush1.msra.mxu0 0.0
  %4238 = vmatprep.subr.mxu0 0.0
  %4239 = vmatpush1.msra.mxu0 0.0
  %4240 = vmatprep.subr.mxu0 0.0
  %4241 = vmatpush1.msra.mxu0 0.0
  %4242 = vmatprep.subr.mxu0 0.0
  %4243 = vmatpush1.msra.mxu0 0.0
  %4244 = vmatprep.subr.mxu0 0.0
  %4245 = vmatpush1.msra.mxu0 0.0
  %4246 = vmatprep.subr.mxu0 0.0
  %4247 = vmatpush1.msra.mxu0 0.0
  %4248 = vmatprep.subr.mxu0 0.0
  %4249 = vmatpush1.msra.mxu0 0.0
  %4250 = vmatprep.subr.mxu0 0.0
  %4251 = vmatpush1.msra.mxu0 %v4169
  %4252 = vmatprep.subr.mxu0 0.0
  %4253 = vmatpush1.msra.mxu0 %v4168
  %4254 = vmatprep.subr.mxu0 0.0
  %4255 = vmatpush1.msra.mxu0 %v4167
  %4256 = vmatprep.subr.mxu0 0.0
  %4257 = vmatpush1.msra.mxu0 %v4166
  %4258 = vmatprep.subr.mxu0 0.0
  %4259 = vmatpush2.msra.mxu0 0.0
  %4260 = vmatprep.subr.mxu0 0.0
  %4261 = vmatpush2.msra.mxu0 0.0
  %4262 = vmatprep.subr.mxu0 0.0
  %4263 = vmatpush2.msra.mxu0 0.0
  %4264 = vmatprep.subr.mxu0 0.0
  %4265 = vmatpush2.msra.mxu0 0.0
  %4266 = vmatprep.subr.mxu0 0.0
  %4267 = vmatpush2.msra.mxu0 0.0
  %4268 = vmatprep.subr.mxu0 0.0
  %4269 = vmatpush2.msra.mxu0 0.0
  %4270 = vmatprep.subr.mxu0 0.0
  %4271 = vmatpush2.msra.mxu0 0.0
  %4272 = vmatprep.subr.mxu0 0.0
  %4273 = vmatpush2.msra.mxu0 0.0
  %4274 = vmatprep.subr.mxu0 0.0
  %4275 = vmatpush2.msra.mxu0 0.0
  %4276 = vmatprep.subr.mxu0 0.0
  %4277 = vmatpush2.msra.mxu0 0.0
  %4278 = vmatprep.subr.mxu0 0.0
  %4279 = vmatpush2.msra.mxu0 0.0
  %4280 = vmatprep.subr.mxu0 0.0
  %4281 = vmatpush2.msra.mxu0 0.0
  %4282 = vmatprep.subr.mxu0 0.0
  %4283 = vmatpush2.msra.mxu0 0.0
  %4284 = vmatprep.subr.mxu0 0.0
  %4285 = vmatpush2.msra.mxu0 0.0
  %4286 = vmatprep.subr.mxu0 0.0
  %4287 = vmatpush2.msra.mxu0 0.0
  %4288 = vmatprep.subr.mxu0 0.0
  %4289 = vmatpush2.msra.mxu0 0.0
  %4290 = vmatprep.mubr.f32.mxu0 0.0
  %4291 = vmatmul.mubr.f32.gmra.mxu0 %v4179
  %v4292 = vpop.f32.mrf.mxu0
  %v4293 = vadd.f32 %v4176, %v4292
  %v4294 = vpop.f32.mrf.mxu0
  %4295 = vmatprep.mubr.f32.mxu0 0.0
  %4296 = vmatmul.mubr.f32.gmra.mxu0 %v4182
  %v4297 = vpop.f32.mrf.mxu0
  %v4298 = vadd.f32 %v4176, %v4297
  %v4299 = vpop.f32.mrf.mxu0
  %4300 = vmatprep.mubr.f32.mxu0 0.0
  %4301 = vmatmul.mubr.f32.gmra.mxu0 %v4185
  %v4302 = vpop.f32.mrf.mxu0
  %v4303 = vadd.f32 %v4176, %v4302
  %v4304 = vpop.f32.mrf.mxu0
  %4305 = vmatprep.mubr.f32.mxu0 0.0
  %4306 = vmatmul.mubr.f32.gmra.mxu0 %v4188
  %v4307 = vpop.f32.mrf.mxu0
  %v4308 = vadd.f32 %v4176, %v4307
  %v4309 = vpop.f32.mrf.mxu0
  %4310 = vmatprep.mubr.f32.mxu0 0.0
  %4311 = vmatmul.mubr.f32.gmra.mxu0 %v4191
  %v4312 = vpop.f32.mrf.mxu0
  %v4313 = vadd.f32 %v4176, %v4312
  %v4314 = vpop.f32.mrf.mxu0
  %4315 = vmatprep.mubr.f32.mxu0 0.0
  %4316 = vmatmul.mubr.f32.gmra.mxu0 %v4194
  %v4317 = vpop.f32.mrf.mxu0
  %v4318 = vadd.f32 %v4176, %v4317
  %v4319 = vpop.f32.mrf.mxu0
  %4320 = vmatprep.mubr.f32.mxu0 0.0
  %4321 = vmatmul.mubr.f32.gmra.mxu0 %v4197
  %v4322 = vpop.f32.mrf.mxu0
  %v4323 = vadd.f32 %v4176, %v4322
  %v4324 = vpop.f32.mrf.mxu0
  %4325 = vmatprep.mubr.f32.mxu0 0.0
  %4326 = vmatmul.mubr.f32.gmra.mxu0 %v4200
  %v4327 = vpop.f32.mrf.mxu0
  %v4328 = vadd.f32 %v4176, %v4327
  %v4329 = vpop.f32.mrf.mxu0
  %4330 = vmatprep.mubr.f32.mxu0 0.0
  %4331 = vmatmul.mubr.f32.gmra.mxu0 %v4203
  %v4332 = vpop.f32.mrf.mxu0
  %v4333 = vadd.f32 %v4176, %v4332
  %v4334 = vpop.f32.mrf.mxu0
  %4335 = vmatprep.mubr.f32.mxu0 0.0
  %4336 = vmatmul.mubr.f32.gmra.mxu0 %v4206
  %v4337 = vpop.f32.mrf.mxu0
  %v4338 = vadd.f32 %v4176, %v4337
  %v4339 = vpop.f32.mrf.mxu0
  %4340 = vmatprep.mubr.f32.mxu0 0.0
  %4341 = vmatmul.mubr.f32.gmra.mxu0 %v4209
  %v4342 = vpop.f32.mrf.mxu0
  %v4343 = vadd.f32 %v4176, %v4342
  %v4344 = vpop.f32.mrf.mxu0
  %4345 = vmatprep.mubr.f32.mxu0 0.0
  %4346 = vmatmul.mubr.f32.gmra.mxu0 %v4212
  %v4347 = vpop.f32.mrf.mxu0
  %v4348 = vadd.f32 %v4176, %v4347
  %v4349 = vpop.f32.mrf.mxu0
  %4350 = vmatprep.mubr.f32.mxu0 0.0
  %4351 = vmatmul.mubr.f32.gmra.mxu0 %v4215
  %v4352 = vpop.f32.mrf.mxu0
  %v4353 = vadd.f32 %v4176, %v4352
  %v4354 = vpop.f32.mrf.mxu0
  %4355 = vmatprep.mubr.f32.mxu0 0.0
  %4356 = vmatmul.mubr.f32.gmra.mxu0 %v4218
  %v4357 = vpop.f32.mrf.mxu0
  %v4358 = vadd.f32 %v4176, %v4357
  %v4359 = vpop.f32.mrf.mxu0
  %4360 = vmatprep.mubr.f32.mxu0 0.0
  %4361 = vmatmul.mubr.f32.gmra.mxu0 %v4221
  %v4362 = vpop.f32.mrf.mxu0
  %v4363 = vadd.f32 %v4176, %v4362
  %v4364 = vpop.f32.mrf.mxu0
  %4365 = vmatprep.mubr.f32.mxu0 0.0
  %4366 = vmatmul.mubr.f32.gmra.mxu0 %v4224
  %v4367 = vpop.f32.mrf.mxu0
  %v4368 = vadd.f32 %v4176, %v4367
  %v4369 = vpop.f32.mrf.mxu0
  %4370 = vdwg.mxu0
  %v4371 = vld [vmem:[%s1] sm:$0xff]
  %v4372 = vld [vmem:[%s1 + $0x8] sm:$0xff]
  %v4373 = vld [vmem:[%s1 + $0x10] sm:$0xff]
  %v4374 = vld [vmem:[%s1 + $0x18] sm:$0xff]
  %v4375 = vld [vmem:[%s1 + $0x20] sm:$0xff]
  %v4376 = vld [vmem:[%s1 + $0x28] sm:$0xff]
  %v4377 = vld [vmem:[%s1 + $0x30] sm:$0xff]
  %v4378 = vld [vmem:[%s1 + $0x38] sm:$0xff]
  %v4379 = vld [vmem:[%s1 + $0x40] sm:$0xff]
  %v4380 = vld [vmem:[%s1 + $0x48] sm:$0xff]
  %v4381 = vld [vmem:[%s1 + $0x50] sm:$0xff]
  %v4382 = vld [vmem:[%s1 + $0x58] sm:$0xff]
  %v4383 = vld [vmem:[%s1 + $0x60] sm:$0xff]
  %v4384 = vld [vmem:[%s1 + $0x68] sm:$0xff]
  %v4385 = vld [vmem:[%s1 + $0x70] sm:$0xff]
  %v4386 = vld [vmem:[%s1 + $0x78] sm:$0xff]
  %4403 = vrot.lane.b32.xlu0 %v4293, 96
  %v4404 = vpop.permute.xlu0 %4403
  %4405 = vrot.lane.b32.xlu0 %v4298, 96
  %v4406 = vpop.permute.xlu0 %4405
  %4407 = vrot.lane.b32.xlu0 %v4303, 96
  %v4408 = vpop.permute.xlu0 %4407
  %4409 = vrot.lane.b32.xlu0 %v4308, 96
  %v4410 = vpop.permute.xlu0 %4409
  %4411 = vrot.lane.b32.xlu0 %v4313, 96
  %v4412 = vpop.permute.xlu0 %4411
  %4413 = vrot.lane.b32.xlu0 %v4318, 96
  %v4414 = vpop.permute.xlu0 %4413
  %4415 = vrot.lane.b32.xlu0 %v4323, 96
  %v4416 = vpop.permute.xlu0 %4415
  %4417 = vrot.lane.b32.xlu0 %v4328, 96
  %v4418 = vpop.permute.xlu0 %4417
  %4419 = vrot.lane.b32.xlu0 %v4333, 96
  %v4420 = vpop.permute.xlu0 %4419
  %4421 = vrot.lane.b32.xlu0 %v4338, 96
  %v4422 = vpop.permute.xlu0 %4421
  %4423 = vrot.lane.b32.xlu0 %v4343, 96
  %v4424 = vpop.permute.xlu0 %4423
  %4425 = vrot.lane.b32.xlu0 %v4348, 96
  %v4426 = vpop.permute.xlu0 %4425
  %4427 = vrot.lane.b32.xlu0 %v4353, 96
  %v4428 = vpop.permute.xlu0 %4427
  %4429 = vrot.lane.b32.xlu0 %v4358, 96
  %v4430 = vpop.permute.xlu0 %4429
  %4431 = vrot.lane.b32.xlu0 %v4363, 96
  %v4432 = vpop.permute.xlu0 %4431
  %4433 = vrot.lane.b32.xlu0 %v4368, 96
  %v4434 = vpop.permute.xlu0 %4433
  %v4435 = vsel %vm332, %v4293, 0
  %v4437 = vsel %vm332, %v4298, 0
  %v4439 = vsel %vm332, %v4303, 0
  %v4441 = vsel %vm332, %v4308, 0
  %v4443 = vsel %vm332, %v4313, 0
  %v4445 = vsel %vm332, %v4318, 0
  %v4447 = vsel %vm332, %v4323, 0
  %v4449 = vsel %vm332, %v4328, 0
  %v4451 = vsel %vm332, %v4333, 0
  %v4453 = vsel %vm332, %v4338, 0
  %v4455 = vsel %vm332, %v4343, 0
  %v4457 = vsel %vm332, %v4348, 0
  %v4459 = vsel %vm332, %v4353, 0
  %v4461 = vsel %vm332, %v4358, 0
  %v4463 = vsel %vm332, %v4363, 0
  %v4465 = vsel %vm332, %v4368, 0
  %v4467 = vsel %vm332, %v4404, 0
  %v4469 = vsel %vm332, %v4406, 0
  %v4471 = vsel %vm332, %v4408, 0
  %v4473 = vsel %vm332, %v4410, 0
  %v4475 = vsel %vm332, %v4412, 0
  %v4477 = vsel %vm332, %v4414, 0
  %v4479 = vsel %vm332, %v4416, 0
  %v4481 = vsel %vm332, %v4418, 0
  %v4483 = vsel %vm332, %v4420, 0
  %v4485 = vsel %vm332, %v4422, 0
  %v4487 = vsel %vm332, %v4424, 0
  %v4489 = vsel %vm332, %v4426, 0
  %v4491 = vsel %vm332, %v4428, 0
  %v4493 = vsel %vm332, %v4430, 0
  %v4495 = vsel %vm332, %v4432, 0
  %v4497 = vsel %vm332, %v4434, 0
  %4499 = vmatprep.subr.mxu0 0.0
  %4500 = vmatpush1.xpose.msra.mxu0 %v4497
  %4501 = vmatprep.subr.mxu0 0.0
  %4502 = vmatpush1.xpose.msra.mxu0 %v4495
  %4503 = vmatprep.subr.mxu0 0.0
  %4504 = vmatpush1.xpose.msra.mxu0 %v4493
  %4505 = vmatprep.subr.mxu0 0.0
  %4506 = vmatpush1.xpose.msra.mxu0 %v4491
  %4507 = vmatprep.subr.mxu0 0.0
  %4508 = vmatpush1.xpose.msra.mxu0 %v4489
  %4509 = vmatprep.subr.mxu0 0.0
  %4510 = vmatpush1.xpose.msra.mxu0 %v4487
  %4511 = vmatprep.subr.mxu0 0.0
  %4512 = vmatpush1.xpose.msra.mxu0 %v4485
  %4513 = vmatprep.subr.mxu0 0.0
  %4514 = vmatpush1.xpose.msra.mxu0 %v4483
  %4515 = vmatprep.subr.mxu0 0.0
  %4516 = vmatpush1.xpose.msra.mxu0 %v4481
  %4517 = vmatprep.subr.mxu0 0.0
  %4518 = vmatpush1.xpose.msra.mxu0 %v4479
  %4519 = vmatprep.subr.mxu0 0.0
  %4520 = vmatpush1.xpose.msra.mxu0 %v4477
  %4521 = vmatprep.subr.mxu0 0.0
  %4522 = vmatpush1.xpose.msra.mxu0 %v4475
  %4523 = vmatprep.subr.mxu0 0.0
  %4524 = vmatpush1.xpose.msra.mxu0 %v4473
  %4525 = vmatprep.subr.mxu0 0.0
  %4526 = vmatpush1.xpose.msra.mxu0 %v4471
  %4527 = vmatprep.subr.mxu0 0.0
  %4528 = vmatpush1.xpose.msra.mxu0 %v4469
  %4529 = vmatprep.subr.mxu0 0.0
  %4530 = vmatpush1.xpose.msra.mxu0 %v4467
  %4531 = vmatprep.subr.mxu0 0.0
  %4532 = vmatpush2.xpose.msra.mxu0 0.0
  %4533 = vmatprep.subr.mxu0 0.0
  %4534 = vmatpush2.xpose.msra.mxu0 0.0
  %4535 = vmatprep.subr.mxu0 0.0
  %4536 = vmatpush2.xpose.msra.mxu0 0.0
  %4537 = vmatprep.subr.mxu0 0.0
  %4538 = vmatpush2.xpose.msra.mxu0 0.0
  %4539 = vmatprep.subr.mxu0 0.0
  %4540 = vmatpush2.xpose.msra.mxu0 0.0
  %4541 = vmatprep.subr.mxu0 0.0
  %4542 = vmatpush2.xpose.msra.mxu0 0.0
  %4543 = vmatprep.subr.mxu0 0.0
  %4544 = vmatpush2.xpose.msra.mxu0 0.0
  %4545 = vmatprep.subr.mxu0 0.0
  %4546 = vmatpush2.xpose.msra.mxu0 0.0
  %4547 = vmatprep.subr.mxu0 0.0
  %4548 = vmatpush2.xpose.msra.mxu0 0.0
  %4549 = vmatprep.subr.mxu0 0.0
  %4550 = vmatpush2.xpose.msra.mxu0 0.0
  %4551 = vmatprep.subr.mxu0 0.0
  %4552 = vmatpush2.xpose.msra.mxu0 0.0
  %4553 = vmatprep.subr.mxu0 0.0
  %4554 = vmatpush2.xpose.msra.mxu0 0.0
  %4555 = vmatprep.subr.mxu0 0.0
  %4556 = vmatpush2.xpose.msra.mxu0 0.0
  %4557 = vmatprep.subr.mxu0 0.0
  %4558 = vmatpush2.xpose.msra.mxu0 0.0
  %4559 = vmatprep.subr.mxu0 0.0
  %4560 = vmatpush2.xpose.msra.mxu0 0.0
  %4561 = vmatprep.subr.mxu0 0.0
  %4562 = vmatpush2.xpose.msra.mxu0 0.0
  %4563 = vmatprep.mubr.f32.mxu0 0.0
  %4564 = vmatmul.mubr.f32.gmra.mxu0 %v4435
  %v4565 = vpop.f32.mrf.mxu0
  %v4566 = vadd.f32 %v4371, %v4565
  %v4567 = vpop.f32.mrf.mxu0
  %4568 = vmatprep.mubr.f32.mxu0 0.0
  %4569 = vmatmul.mubr.f32.gmra.mxu0 %v4437
  %v4570 = vpop.f32.mrf.mxu0
  %v4571 = vadd.f32 %v4372, %v4570
  %v4572 = vpop.f32.mrf.mxu0
  %4573 = vmatprep.mubr.f32.mxu0 0.0
  %4574 = vmatmul.mubr.f32.gmra.mxu0 %v4439
  %v4575 = vpop.f32.mrf.mxu0
  %v4576 = vadd.f32 %v4373, %v4575
  %v4577 = vpop.f32.mrf.mxu0
  %4578 = vmatprep.mubr.f32.mxu0 0.0
  %4579 = vmatmul.mubr.f32.gmra.mxu0 %v4441
  %v4580 = vpop.f32.mrf.mxu0
  %v4581 = vadd.f32 %v4374, %v4580
  %v4582 = vpop.f32.mrf.mxu0
  %4583 = vmatprep.mubr.f32.mxu0 0.0
  %4584 = vmatmul.mubr.f32.gmra.mxu0 %v4443
  %v4585 = vpop.f32.mrf.mxu0
  %v4586 = vadd.f32 %v4375, %v4585
  %v4587 = vpop.f32.mrf.mxu0
  %4588 = vmatprep.mubr.f32.mxu0 0.0
  %4589 = vmatmul.mubr.f32.gmra.mxu0 %v4445
  %v4590 = vpop.f32.mrf.mxu0
  %v4591 = vadd.f32 %v4376, %v4590
  %v4592 = vpop.f32.mrf.mxu0
  %4593 = vmatprep.mubr.f32.mxu0 0.0
  %4594 = vmatmul.mubr.f32.gmra.mxu0 %v4447
  %v4595 = vpop.f32.mrf.mxu0
  %v4596 = vadd.f32 %v4377, %v4595
  %v4597 = vpop.f32.mrf.mxu0
  %4598 = vmatprep.mubr.f32.mxu0 0.0
  %4599 = vmatmul.mubr.f32.gmra.mxu0 %v4449
  %v4600 = vpop.f32.mrf.mxu0
  %v4601 = vadd.f32 %v4378, %v4600
  %v4602 = vpop.f32.mrf.mxu0
  %4603 = vmatprep.mubr.f32.mxu0 0.0
  %4604 = vmatmul.mubr.f32.gmra.mxu0 %v4451
  %v4605 = vpop.f32.mrf.mxu0
  %v4606 = vadd.f32 %v4379, %v4605
  %v4607 = vpop.f32.mrf.mxu0
  %4608 = vmatprep.mubr.f32.mxu0 0.0
  %4609 = vmatmul.mubr.f32.gmra.mxu0 %v4453
  %v4610 = vpop.f32.mrf.mxu0
  %v4611 = vadd.f32 %v4380, %v4610
  %v4612 = vpop.f32.mrf.mxu0
  %4613 = vmatprep.mubr.f32.mxu0 0.0
  %4614 = vmatmul.mubr.f32.gmra.mxu0 %v4455
  %v4615 = vpop.f32.mrf.mxu0
  %v4616 = vadd.f32 %v4381, %v4615
  %v4617 = vpop.f32.mrf.mxu0
  %4618 = vmatprep.mubr.f32.mxu0 0.0
  %4619 = vmatmul.mubr.f32.gmra.mxu0 %v4457
  %v4620 = vpop.f32.mrf.mxu0
  %v4621 = vadd.f32 %v4382, %v4620
  %v4622 = vpop.f32.mrf.mxu0
  %4623 = vmatprep.mubr.f32.mxu0 0.0
  %4624 = vmatmul.mubr.f32.gmra.mxu0 %v4459
  %v4625 = vpop.f32.mrf.mxu0
  %v4626 = vadd.f32 %v4383, %v4625
  %v4627 = vpop.f32.mrf.mxu0
  %4628 = vmatprep.mubr.f32.mxu0 0.0
  %4629 = vmatmul.mubr.f32.gmra.mxu0 %v4461
  %v4630 = vpop.f32.mrf.mxu0
  %v4631 = vadd.f32 %v4384, %v4630
  %v4632 = vpop.f32.mrf.mxu0
  %4633 = vmatprep.mubr.f32.mxu0 0.0
  %4634 = vmatmul.mubr.f32.gmra.mxu0 %v4463
  %v4635 = vpop.f32.mrf.mxu0
  %v4636 = vadd.f32 %v4385, %v4635
  %v4637 = vpop.f32.mrf.mxu0
  %4638 = vmatprep.mubr.f32.mxu0 0.0
  %4639 = vmatmul.mubr.f32.gmra.mxu0 %v4465
  %v4640 = vpop.f32.mrf.mxu0
  %v4641 = vadd.f32 %v4386, %v4640
  %v4642 = vpop.f32.mrf.mxu0
  %4643 = vdwg.mxu0
  %4644 = vmax.xlane.f32.xlu0 %v4566
  %v4645 = vpop.xlane.xlu0 %4644
  %4646 = vmax.xlane.f32.xlu0 %v4571
  %v4647 = vpop.xlane.xlu0 %4646
  %4648 = vmax.xlane.f32.xlu0 %v4576
  %v4649 = vpop.xlane.xlu0 %4648
  %4650 = vmax.xlane.f32.xlu0 %v4581
  %v4651 = vpop.xlane.xlu0 %4650
  %4652 = vmax.xlane.f32.xlu0 %v4586
  %v4653 = vpop.xlane.xlu0 %4652
  %4654 = vmax.xlane.f32.xlu0 %v4591
  %v4655 = vpop.xlane.xlu0 %4654
  %4656 = vmax.xlane.f32.xlu0 %v4596
  %v4657 = vpop.xlane.xlu0 %4656
  %4658 = vmax.xlane.f32.xlu0 %v4601
  %v4659 = vpop.xlane.xlu0 %4658
  %4660 = vmax.xlane.f32.xlu0 %v4606
  %v4661 = vpop.xlane.xlu0 %4660
  %4662 = vmax.xlane.f32.xlu0 %v4611
  %v4663 = vpop.xlane.xlu0 %4662
  %4664 = vmax.xlane.f32.xlu0 %v4616
  %v4665 = vpop.xlane.xlu0 %4664
  %4666 = vmax.xlane.f32.xlu0 %v4621
  %v4667 = vpop.xlane.xlu0 %4666
  %4668 = vmax.xlane.f32.xlu0 %v4626
  %v4669 = vpop.xlane.xlu0 %4668
  %4670 = vmax.xlane.f32.xlu0 %v4631
  %v4671 = vpop.xlane.xlu0 %4670
  %4672 = vmax.xlane.f32.xlu0 %v4636
  %v4673 = vpop.xlane.xlu0 %4672
  %4674 = vmax.xlane.f32.xlu0 %v4641
  %v4675 = vpop.xlane.xlu0 %4674
  %v4676 = vsub.f32 %v4566, %v4645
  %v4677 = vsub.f32 %v4571, %v4647
  %v4678 = vsub.f32 %v4576, %v4649
  %v4679 = vsub.f32 %v4581, %v4651
  %v4680 = vsub.f32 %v4586, %v4653
  %v4681 = vsub.f32 %v4591, %v4655
  %v4682 = vsub.f32 %v4596, %v4657
  %v4683 = vsub.f32 %v4601, %v4659
  %v4684 = vsub.f32 %v4606, %v4661
  %v4685 = vsub.f32 %v4611, %v4663
  %v4686 = vsub.f32 %v4616, %v4665
  %v4687 = vsub.f32 %v4621, %v4667
  %v4688 = vsub.f32 %v4626, %v4669
  %v4689 = vsub.f32 %v4631, %v4671
  %v4690 = vsub.f32 %v4636, %v4673
  %v4691 = vsub.f32 %v4641, %v4675
  %v4692 = vmul.f32 %v4676, 1.442695
  %v4693 = vpow.pop %v4692
  %v4694 = vmul.f32 %v4677, 1.442695
  %v4695 = vpow.pop %v4694
  %v4696 = vmul.f32 %v4678, 1.442695
  %v4697 = vpow.pop %v4696
  %v4698 = vmul.f32 %v4679, 1.442695
  %v4699 = vpow.pop %v4698
  %v4700 = vmul.f32 %v4680, 1.442695
  %v4701 = vpow.pop %v4700
  %v4702 = vmul.f32 %v4681, 1.442695
  %v4703 = vpow.pop %v4702
  %v4704 = vmul.f32 %v4682, 1.442695
  %v4705 = vpow.pop %v4704
  %v4706 = vmul.f32 %v4683, 1.442695
  %v4707 = vpow.pop %v4706
  %v4708 = vmul.f32 %v4684, 1.442695
  %v4709 = vpow.pop %v4708
  %v4710 = vmul.f32 %v4685, 1.442695
  %v4711 = vpow.pop %v4710
  %v4712 = vmul.f32 %v4686, 1.442695
  %v4713 = vpow.pop %v4712
  %v4714 = vmul.f32 %v4687, 1.442695
  %v4715 = vpow.pop %v4714
  %v4716 = vmul.f32 %v4688, 1.442695
  %v4717 = vpow.pop %v4716
  %v4718 = vmul.f32 %v4689, 1.442695
  %v4719 = vpow.pop %v4718
  %v4720 = vmul.f32 %v4690, 1.442695
  %v4721 = vpow.pop %v4720
  %v4722 = vmul.f32 %v4691, 1.442695
  %v4723 = vpow.pop %v4722
  %4724 = vadd.xlane.f32.xlu0 %v4693
  %v4725 = vpop.xlane.xlu0 %4724
  %4726 = vadd.xlane.f32.xlu0 %v4695
  %v4727 = vpop.xlane.xlu0 %4726
  %4728 = vadd.xlane.f32.xlu0 %v4697
  %v4729 = vpop.xlane.xlu0 %4728
  %4730 = vadd.xlane.f32.xlu0 %v4699
  %v4731 = vpop.xlane.xlu0 %4730
  %4732 = vadd.xlane.f32.xlu0 %v4701
  %v4733 = vpop.xlane.xlu0 %4732
  %4734 = vadd.xlane.f32.xlu0 %v4703
  %v4735 = vpop.xlane.xlu0 %4734
  %4736 = vadd.xlane.f32.xlu0 %v4705
  %v4737 = vpop.xlane.xlu0 %4736
  %4738 = vadd.xlane.f32.xlu0 %v4707
  %v4739 = vpop.xlane.xlu0 %4738
  %4740 = vadd.xlane.f32.xlu0 %v4709
  %v4741 = vpop.xlane.xlu0 %4740
  %4742 = vadd.xlane.f32.xlu0 %v4711
  %v4743 = vpop.xlane.xlu0 %4742
  %4744 = vadd.xlane.f32.xlu0 %v4713
  %v4745 = vpop.xlane.xlu0 %4744
  %4746 = vadd.xlane.f32.xlu0 %v4715
  %v4747 = vpop.xlane.xlu0 %4746
  %4748 = vadd.xlane.f32.xlu0 %v4717
  %v4749 = vpop.xlane.xlu0 %4748
  %4750 = vadd.xlane.f32.xlu0 %v4719
  %v4751 = vpop.xlane.xlu0 %4750
  %4752 = vadd.xlane.f32.xlu0 %v4721
  %v4753 = vpop.xlane.xlu0 %4752
  %4754 = vadd.xlane.f32.xlu0 %v4723
  %v4755 = vpop.xlane.xlu0 %4754
  %v4756 = vrcp.pop %v4725
  %v4757 = vmul.f32 %v4693, %v4756
  %v4758 = vrcp.pop %v4727
  %v4759 = vmul.f32 %v4695, %v4758
  %v4760 = vrcp.pop %v4729
  %v4761 = vmul.f32 %v4697, %v4760
  %v4762 = vrcp.pop %v4731
  %v4763 = vmul.f32 %v4699, %v4762
  %v4764 = vrcp.pop %v4733
  %v4765 = vmul.f32 %v4701, %v4764
  %v4766 = vrcp.pop %v4735
  %v4767 = vmul.f32 %v4703, %v4766
  %v4768 = vrcp.pop %v4737
  %v4769 = vmul.f32 %v4705, %v4768
  %v4770 = vrcp.pop %v4739
  %v4771 = vmul.f32 %v4707, %v4770
  %v4772 = vrcp.pop %v4741
  %v4773 = vmul.f32 %v4709, %v4772
  %v4774 = vrcp.pop %v4743
  %v4775 = vmul.f32 %v4711, %v4774
  %v4776 = vrcp.pop %v4745
  %v4777 = vmul.f32 %v4713, %v4776
  %v4778 = vrcp.pop %v4747
  %v4779 = vmul.f32 %v4715, %v4778
  %v4780 = vrcp.pop %v4749
  %v4781 = vmul.f32 %v4717, %v4780
  %v4782 = vrcp.pop %v4751
  %v4783 = vmul.f32 %v4719, %v4782
  %v4784 = vrcp.pop %v4753
  %v4785 = vmul.f32 %v4721, %v4784
  %v4786 = vrcp.pop %v4755
  %v4787 = vmul.f32 %v4723, %v4786
  %4788 = vrot.lane.b32.xlu0 %v4293, 64
  %v4789 = vpop.permute.xlu0 %4788
  %4790 = vrot.lane.b32.xlu0 %v4298, 64
  %v4791 = vpop.permute.xlu0 %4790
  %4792 = vrot.lane.b32.xlu0 %v4303, 64
  %v4793 = vpop.permute.xlu0 %4792
  %4794 = vrot.lane.b32.xlu0 %v4308, 64
  %v4795 = vpop.permute.xlu0 %4794
  %4796 = vrot.lane.b32.xlu0 %v4313, 64
  %v4797 = vpop.permute.xlu0 %4796
  %4798 = vrot.lane.b32.xlu0 %v4318, 64
  %v4799 = vpop.permute.xlu0 %4798
  %4800 = vrot.lane.b32.xlu0 %v4323, 64
  %v4801 = vpop.permute.xlu0 %4800
  %4802 = vrot.lane.b32.xlu0 %v4328, 64
  %v4803 = vpop.permute.xlu0 %4802
  %4804 = vrot.lane.b32.xlu0 %v4333, 64
  %v4805 = vpop.permute.xlu0 %4804
  %4806 = vrot.lane.b32.xlu0 %v4338, 64
  %v4807 = vpop.permute.xlu0 %4806
  %4808 = vrot.lane.b32.xlu0 %v4343, 64
  %v4809 = vpop.permute.xlu0 %4808
  %4810 = vrot.lane.b32.xlu0 %v4348, 64
  %v4811 = vpop.permute.xlu0 %4810
  %4812 = vrot.lane.b32.xlu0 %v4353, 64
  %v4813 = vpop.permute.xlu0 %4812
  %4814 = vrot.lane.b32.xlu0 %v4358, 64
  %v4815 = vpop.permute.xlu0 %4814
  %4816 = vrot.lane.b32.xlu0 %v4363, 64
  %v4817 = vpop.permute.xlu0 %4816
  %4818 = vrot.lane.b32.xlu0 %v4368, 64
  %v4819 = vpop.permute.xlu0 %4818
  %4836 = vmatprep.subr.mxu0 0.0
  %4837 = vmatpush1.msra.mxu0 %v4819
  %4838 = vmatprep.subr.mxu0 0.0
  %4839 = vmatpush1.msra.mxu0 %v4817
  %4840 = vmatprep.subr.mxu0 0.0
  %4841 = vmatpush1.msra.mxu0 %v4815
  %4842 = vmatprep.subr.mxu0 0.0
  %4843 = vmatpush1.msra.mxu0 %v4813
  %4844 = vmatprep.subr.mxu0 0.0
  %4845 = vmatpush1.msra.mxu0 %v4811
  %4846 = vmatprep.subr.mxu0 0.0
  %4847 = vmatpush1.msra.mxu0 %v4809
  %4848 = vmatprep.subr.mxu0 0.0
  %4849 = vmatpush1.msra.mxu0 %v4807
  %4850 = vmatprep.subr.mxu0 0.0
  %4851 = vmatpush1.msra.mxu0 %v4805
  %4852 = vmatprep.subr.mxu0 0.0
  %4853 = vmatpush1.msra.mxu0 %v4803
  %4854 = vmatprep.subr.mxu0 0.0
  %4855 = vmatpush1.msra.mxu0 %v4801
  %4856 = vmatprep.subr.mxu0 0.0
  %4857 = vmatpush1.msra.mxu0 %v4799
  %4858 = vmatprep.subr.mxu0 0.0
  %4859 = vmatpush1.msra.mxu0 %v4797
  %4860 = vmatprep.subr.mxu0 0.0
  %4861 = vmatpush1.msra.mxu0 %v4795
  %4862 = vmatprep.subr.mxu0 0.0
  %4863 = vmatpush1.msra.mxu0 %v4793
  %4864 = vmatprep.subr.mxu0 0.0
  %4865 = vmatpush1.msra.mxu0 %v4791
  %4866 = vmatprep.subr.mxu0 0.0
  %4867 = vmatpush1.msra.mxu0 %v4789
  %4868 = vmatprep.subr.mxu0 0.0
  %4869 = vmatpush2.msra.mxu0 0.0
  %4870 = vmatprep.subr.mxu0 0.0
  %4871 = vmatpush2.msra.mxu0 0.0
  %4872 = vmatprep.subr.mxu0 0.0
  %4873 = vmatpush2.msra.mxu0 0.0
  %4874 = vmatprep.subr.mxu0 0.0
  %4875 = vmatpush2.msra.mxu0 0.0
  %4876 = vmatprep.subr.mxu0 0.0
  %4877 = vmatpush2.msra.mxu0 0.0
  %4878 = vmatprep.subr.mxu0 0.0
  %4879 = vmatpush2.msra.mxu0 0.0
  %4880 = vmatprep.subr.mxu0 0.0
  %4881 = vmatpush2.msra.mxu0 0.0
  %4882 = vmatprep.subr.mxu0 0.0
  %4883 = vmatpush2.msra.mxu0 0.0
  %4884 = vmatprep.subr.mxu0 0.0
  %4885 = vmatpush2.msra.mxu0 0.0
  %4886 = vmatprep.subr.mxu0 0.0
  %4887 = vmatpush2.msra.mxu0 0.0
  %4888 = vmatprep.subr.mxu0 0.0
  %4889 = vmatpush2.msra.mxu0 0.0
  %4890 = vmatprep.subr.mxu0 0.0
  %4891 = vmatpush2.msra.mxu0 0.0
  %4892 = vmatprep.subr.mxu0 0.0
  %4893 = vmatpush2.msra.mxu0 0.0
  %4894 = vmatprep.subr.mxu0 0.0
  %4895 = vmatpush2.msra.mxu0 0.0
  %4896 = vmatprep.subr.mxu0 0.0
  %4897 = vmatpush2.msra.mxu0 0.0
  %4898 = vmatprep.subr.mxu0 0.0
  %4899 = vmatpush2.msra.mxu0 0.0
  %4900 = vmatprep.mubr.f32.mxu0 0.0
  %4901 = vmatmul.mubr.f32.gmra.mxu0 %v4757
  %v4902 = vpop.f32.mrf.mxu0
  %v4903 = vadd.f32 0.0, %v4902
  %v4904 = vpop.f32.mrf.mxu0
  %4905 = vmatprep.mubr.f32.mxu0 0.0
  %4906 = vmatmul.mubr.f32.gmra.mxu0 %v4759
  %v4907 = vpop.f32.mrf.mxu0
  %v4908 = vadd.f32 0.0, %v4907
  %v4909 = vpop.f32.mrf.mxu0
  %4910 = vmatprep.mubr.f32.mxu0 0.0
  %4911 = vmatmul.mubr.f32.gmra.mxu0 %v4761
  %v4912 = vpop.f32.mrf.mxu0
  %v4913 = vadd.f32 0.0, %v4912
  %v4914 = vpop.f32.mrf.mxu0
  %4915 = vmatprep.mubr.f32.mxu0 0.0
  %4916 = vmatmul.mubr.f32.gmra.mxu0 %v4763
  %v4917 = vpop.f32.mrf.mxu0
  %v4918 = vadd.f32 0.0, %v4917
  %v4919 = vpop.f32.mrf.mxu0
  %4920 = vmatprep.mubr.f32.mxu0 0.0
  %4921 = vmatmul.mubr.f32.gmra.mxu0 %v4765
  %v4922 = vpop.f32.mrf.mxu0
  %v4923 = vadd.f32 0.0, %v4922
  %v4924 = vpop.f32.mrf.mxu0
  %4925 = vmatprep.mubr.f32.mxu0 0.0
  %4926 = vmatmul.mubr.f32.gmra.mxu0 %v4767
  %v4927 = vpop.f32.mrf.mxu0
  %v4928 = vadd.f32 0.0, %v4927
  %v4929 = vpop.f32.mrf.mxu0
  %4930 = vmatprep.mubr.f32.mxu0 0.0
  %4931 = vmatmul.mubr.f32.gmra.mxu0 %v4769
  %v4932 = vpop.f32.mrf.mxu0
  %v4933 = vadd.f32 0.0, %v4932
  %v4934 = vpop.f32.mrf.mxu0
  %4935 = vmatprep.mubr.f32.mxu0 0.0
  %4936 = vmatmul.mubr.f32.gmra.mxu0 %v4771
  %v4937 = vpop.f32.mrf.mxu0
  %v4938 = vadd.f32 0.0, %v4937
  %v4939 = vpop.f32.mrf.mxu0
  %4940 = vmatprep.mubr.f32.mxu0 0.0
  %4941 = vmatmul.mubr.f32.gmra.mxu0 %v4773
  %v4942 = vpop.f32.mrf.mxu0
  %v4943 = vadd.f32 0.0, %v4942
  %v4944 = vpop.f32.mrf.mxu0
  %4945 = vmatprep.mubr.f32.mxu0 0.0
  %4946 = vmatmul.mubr.f32.gmra.mxu0 %v4775
  %v4947 = vpop.f32.mrf.mxu0
  %v4948 = vadd.f32 0.0, %v4947
  %v4949 = vpop.f32.mrf.mxu0
  %4950 = vmatprep.mubr.f32.mxu0 0.0
  %4951 = vmatmul.mubr.f32.gmra.mxu0 %v4777
  %v4952 = vpop.f32.mrf.mxu0
  %v4953 = vadd.f32 0.0, %v4952
  %v4954 = vpop.f32.mrf.mxu0
  %4955 = vmatprep.mubr.f32.mxu0 0.0
  %4956 = vmatmul.mubr.f32.gmra.mxu0 %v4779
  %v4957 = vpop.f32.mrf.mxu0
  %v4958 = vadd.f32 0.0, %v4957
  %v4959 = vpop.f32.mrf.mxu0
  %4960 = vmatprep.mubr.f32.mxu0 0.0
  %4961 = vmatmul.mubr.f32.gmra.mxu0 %v4781
  %v4962 = vpop.f32.mrf.mxu0
  %v4963 = vadd.f32 0.0, %v4962
  %v4964 = vpop.f32.mrf.mxu0
  %4965 = vmatprep.mubr.f32.mxu0 0.0
  %4966 = vmatmul.mubr.f32.gmra.mxu0 %v4783
  %v4967 = vpop.f32.mrf.mxu0
  %v4968 = vadd.f32 0.0, %v4967
  %v4969 = vpop.f32.mrf.mxu0
  %4970 = vmatprep.mubr.f32.mxu0 0.0
  %4971 = vmatmul.mubr.f32.gmra.mxu0 %v4785
  %v4972 = vpop.f32.mrf.mxu0
  %v4973 = vadd.f32 0.0, %v4972
  %v4974 = vpop.f32.mrf.mxu0
  %4975 = vmatprep.mubr.f32.mxu0 0.0
  %4976 = vmatmul.mubr.f32.gmra.mxu0 %v4787
  %v4977 = vpop.f32.mrf.mxu0
  %v4978 = vadd.f32 0.0, %v4977
  %v4979 = vpop.f32.mrf.mxu0
  %4980 = vdwg.mxu0
  %4981 = vst.msk [vmem:[#allocation2] sm:$0xff] %vm332, %v4903
  %4982 = vst.msk [vmem:[#allocation2 + $0x8] sm:$0xff] %vm332, %v4908
  %4983 = vst.msk [vmem:[#allocation2 + $0x10] sm:$0xff] %vm332, %v4913
  %4984 = vst.msk [vmem:[#allocation2 + $0x18] sm:$0xff] %vm332, %v4918
  %4985 = vst.msk [vmem:[#allocation2 + $0x20] sm:$0xff] %vm332, %v4923
  %4986 = vst.msk [vmem:[#allocation2 + $0x28] sm:$0xff] %vm332, %v4928
  %4987 = vst.msk [vmem:[#allocation2 + $0x30] sm:$0xff] %vm332, %v4933
  %4988 = vst.msk [vmem:[#allocation2 + $0x38] sm:$0xff] %vm332, %v4938
  %4989 = vst.msk [vmem:[#allocation2 + $0x40] sm:$0xff] %vm332, %v4943
  %4990 = vst.msk [vmem:[#allocation2 + $0x48] sm:$0xff] %vm332, %v4948
  %4991 = vst.msk [vmem:[#allocation2 + $0x50] sm:$0xff] %vm332, %v4953
  %4992 = vst.msk [vmem:[#allocation2 + $0x58] sm:$0xff] %vm332, %v4958
  %4993 = vst.msk [vmem:[#allocation2 + $0x60] sm:$0xff] %vm332, %v4963
  %4994 = vst.msk [vmem:[#allocation2 + $0x68] sm:$0xff] %vm332, %v4968
  %4995 = vst.msk [vmem:[#allocation2 + $0x70] sm:$0xff] %vm332, %v4973
  %4996 = vst.msk [vmem:[#allocation2 + $0x78] sm:$0xff] %vm332, %v4978
  %v4997 = vld [vmem:[%s1] sm:$0xff]
  %v4998 = vld [vmem:[%s1 + $0x8] sm:$0xff]
  %v4999 = vld [vmem:[%s1 + $0x10] sm:$0xff]
  %v5000 = vld [vmem:[%s1 + $0x18] sm:$0xff]
  %v5001 = vld [vmem:[%s1 + $0x20] sm:$0xff]
  %v5002 = vld [vmem:[%s1 + $0x28] sm:$0xff]
  %v5003 = vld [vmem:[%s1 + $0x30] sm:$0xff]
  %v5004 = vld [vmem:[%s1 + $0x38] sm:$0xff]
  %v5005 = vld [vmem:[%s1 + $0x40] sm:$0xff]
  %v5006 = vld [vmem:[%s1 + $0x48] sm:$0xff]
  %v5007 = vld [vmem:[%s1 + $0x50] sm:$0xff]
  %v5008 = vld [vmem:[%s1 + $0x58] sm:$0xff]
  %v5009 = vld [vmem:[%s1 + $0x60] sm:$0xff]
  %v5010 = vld [vmem:[%s1 + $0x68] sm:$0xff]
  %v5011 = vld [vmem:[%s1 + $0x70] sm:$0xff]
  %v5012 = vld [vmem:[%s1 + $0x78] sm:$0xff]
  %5013 = vrot.lane.b32.xlu0 %v4293, 120
  %v5014 = vpop.permute.xlu0 %5013
  %5015 = vrot.lane.b32.xlu0 %v4298, 120
  %v5016 = vpop.permute.xlu0 %5015
  %5017 = vrot.lane.b32.xlu0 %v4303, 120
  %v5018 = vpop.permute.xlu0 %5017
  %5019 = vrot.lane.b32.xlu0 %v4308, 120
  %v5020 = vpop.permute.xlu0 %5019
  %5021 = vrot.lane.b32.xlu0 %v4313, 120
  %v5022 = vpop.permute.xlu0 %5021
  %5023 = vrot.lane.b32.xlu0 %v4318, 120
  %v5024 = vpop.permute.xlu0 %5023
  %5025 = vrot.lane.b32.xlu0 %v4323, 120
  %v5026 = vpop.permute.xlu0 %5025
  %5027 = vrot.lane.b32.xlu0 %v4328, 120
  %v5028 = vpop.permute.xlu0 %5027
  %5029 = vrot.lane.b32.xlu0 %v4333, 120
  %v5030 = vpop.permute.xlu0 %5029
  %5031 = vrot.lane.b32.xlu0 %v4338, 120
  %v5032 = vpop.permute.xlu0 %5031
  %5033 = vrot.lane.b32.xlu0 %v4343, 120
  %v5034 = vpop.permute.xlu0 %5033
  %5035 = vrot.lane.b32.xlu0 %v4348, 120
  %v5036 = vpop.permute.xlu0 %5035
  %5037 = vrot.lane.b32.xlu0 %v4353, 120
  %v5038 = vpop.permute.xlu0 %5037
  %5039 = vrot.lane.b32.xlu0 %v4358, 120
  %v5040 = vpop.permute.xlu0 %5039
  %5041 = vrot.lane.b32.xlu0 %v4363, 120
  %v5042 = vpop.permute.xlu0 %5041
  %5043 = vrot.lane.b32.xlu0 %v4368, 120
  %v5044 = vpop.permute.xlu0 %5043
  %5045 = vrot.lane.b32.xlu0 %v4293, 88
  %v5046 = vpop.permute.xlu0 %5045
  %5047 = vrot.lane.b32.xlu0 %v4298, 88
  %v5048 = vpop.permute.xlu0 %5047
  %5049 = vrot.lane.b32.xlu0 %v4303, 88
  %v5050 = vpop.permute.xlu0 %5049
  %5051 = vrot.lane.b32.xlu0 %v4308, 88
  %v5052 = vpop.permute.xlu0 %5051
  %5053 = vrot.lane.b32.xlu0 %v4313, 88
  %v5054 = vpop.permute.xlu0 %5053
  %5055 = vrot.lane.b32.xlu0 %v4318, 88
  %v5056 = vpop.permute.xlu0 %5055
  %5057 = vrot.lane.b32.xlu0 %v4323, 88
  %v5058 = vpop.permute.xlu0 %5057
  %5059 = vrot.lane.b32.xlu0 %v4328, 88
  %v5060 = vpop.permute.xlu0 %5059
  %5061 = vrot.lane.b32.xlu0 %v4333, 88
  %v5062 = vpop.permute.xlu0 %5061
  %5063 = vrot.lane.b32.xlu0 %v4338, 88
  %v5064 = vpop.permute.xlu0 %5063
  %5065 = vrot.lane.b32.xlu0 %v4343, 88
  %v5066 = vpop.permute.xlu0 %5065
  %5067 = vrot.lane.b32.xlu0 %v4348, 88
  %v5068 = vpop.permute.xlu0 %5067
  %5069 = vrot.lane.b32.xlu0 %v4353, 88
  %v5070 = vpop.permute.xlu0 %5069
  %5071 = vrot.lane.b32.xlu0 %v4358, 88
  %v5072 = vpop.permute.xlu0 %5071
  %5073 = vrot.lane.b32.xlu0 %v4363, 88
  %v5074 = vpop.permute.xlu0 %5073
  %5075 = vrot.lane.b32.xlu0 %v4368, 88
  %v5076 = vpop.permute.xlu0 %5075
  %v5077 = vsel %vm332, %v5014, 0
  %v5079 = vsel %vm332, %v5016, 0
  %v5081 = vsel %vm332, %v5018, 0
  %v5083 = vsel %vm332, %v5020, 0
  %v5085 = vsel %vm332, %v5022, 0
  %v5087 = vsel %vm332, %v5024, 0
  %v5089 = vsel %vm332, %v5026, 0
  %v5091 = vsel %vm332, %v5028, 0
  %v5093 = vsel %vm332, %v5030, 0
  %v5095 = vsel %vm332, %v5032, 0
  %v5097 = vsel %vm332, %v5034, 0
  %v5099 = vsel %vm332, %v5036, 0
  %v5101 = vsel %vm332, %v5038, 0
  %v5103 = vsel %vm332, %v5040, 0
  %v5105 = vsel %vm332, %v5042, 0
  %v5107 = vsel %vm332, %v5044, 0
  %v5109 = vsel %vm332, %v5046, 0
  %v5111 = vsel %vm332, %v5048, 0
  %v5113 = vsel %vm332, %v5050, 0
  %v5115 = vsel %vm332, %v5052, 0
  %v5117 = vsel %vm332, %v5054, 0
  %v5119 = vsel %vm332, %v5056, 0
  %v5121 = vsel %vm332, %v5058, 0
  %v5123 = vsel %vm332, %v5060, 0
  %v5125 = vsel %vm332, %v5062, 0
  %v5127 = vsel %vm332, %v5064, 0
  %v5129 = vsel %vm332, %v5066, 0
  %v5131 = vsel %vm332, %v5068, 0
  %v5133 = vsel %vm332, %v5070, 0
  %v5135 = vsel %vm332, %v5072, 0
  %v5137 = vsel %vm332, %v5074, 0
  %v5139 = vsel %vm332, %v5076, 0
  %5141 = vmatprep.subr.mxu0 0.0
  %5142 = vmatpush1.xpose.msra.mxu0 %v5139
  %5143 = vmatprep.subr.mxu0 0.0
  %5144 = vmatpush1.xpose.msra.mxu0 %v5137
  %5145 = vmatprep.subr.mxu0 0.0
  %5146 = vmatpush1.xpose.msra.mxu0 %v5135
  %5147 = vmatprep.subr.mxu0 0.0
  %5148 = vmatpush1.xpose.msra.mxu0 %v5133
  %5149 = vmatprep.subr.mxu0 0.0
  %5150 = vmatpush1.xpose.msra.mxu0 %v5131
  %5151 = vmatprep.subr.mxu0 0.0
  %5152 = vmatpush1.xpose.msra.mxu0 %v5129
  %5153 = vmatprep.subr.mxu0 0.0
  %5154 = vmatpush1.xpose.msra.mxu0 %v5127
  %5155 = vmatprep.subr.mxu0 0.0
  %5156 = vmatpush1.xpose.msra.mxu0 %v5125
  %5157 = vmatprep.subr.mxu0 0.0
  %5158 = vmatpush1.xpose.msra.mxu0 %v5123
  %5159 = vmatprep.subr.mxu0 0.0
  %5160 = vmatpush1.xpose.msra.mxu0 %v5121
  %5161 = vmatprep.subr.mxu0 0.0
  %5162 = vmatpush1.xpose.msra.mxu0 %v5119
  %5163 = vmatprep.subr.mxu0 0.0
  %5164 = vmatpush1.xpose.msra.mxu0 %v5117
  %5165 = vmatprep.subr.mxu0 0.0
  %5166 = vmatpush1.xpose.msra.mxu0 %v5115
  %5167 = vmatprep.subr.mxu0 0.0
  %5168 = vmatpush1.xpose.msra.mxu0 %v5113
  %5169 = vmatprep.subr.mxu0 0.0
  %5170 = vmatpush1.xpose.msra.mxu0 %v5111
  %5171 = vmatprep.subr.mxu0 0.0
  %5172 = vmatpush1.xpose.msra.mxu0 %v5109
  %5173 = vmatprep.subr.mxu0 0.0
  %5174 = vmatpush2.xpose.msra.mxu0 0.0
  %5175 = vmatprep.subr.mxu0 0.0
  %5176 = vmatpush2.xpose.msra.mxu0 0.0
  %5177 = vmatprep.subr.mxu0 0.0
  %5178 = vmatpush2.xpose.msra.mxu0 0.0
  %5179 = vmatprep.subr.mxu0 0.0
  %5180 = vmatpush2.xpose.msra.mxu0 0.0
  %5181 = vmatprep.subr.mxu0 0.0
  %5182 = vmatpush2.xpose.msra.mxu0 0.0
  %5183 = vmatprep.subr.mxu0 0.0
  %5184 = vmatpush2.xpose.msra.mxu0 0.0
  %5185 = vmatprep.subr.mxu0 0.0
  %5186 = vmatpush2.xpose.msra.mxu0 0.0
  %5187 = vmatprep.subr.mxu0 0.0
  %5188 = vmatpush2.xpose.msra.mxu0 0.0
  %5189 = vmatprep.subr.mxu0 0.0
  %5190 = vmatpush2.xpose.msra.mxu0 0.0
  %5191 = vmatprep.subr.mxu0 0.0
  %5192 = vmatpush2.xpose.msra.mxu0 0.0
  %5193 = vmatprep.subr.mxu0 0.0
  %5194 = vmatpush2.xpose.msra.mxu0 0.0
  %5195 = vmatprep.subr.mxu0 0.0
  %5196 = vmatpush2.xpose.msra.mxu0 0.0
  %5197 = vmatprep.subr.mxu0 0.0
  %5198 = vmatpush2.xpose.msra.mxu0 0.0
  %5199 = vmatprep.subr.mxu0 0.0
  %5200 = vmatpush2.xpose.msra.mxu0 0.0
  %5201 = vmatprep.subr.mxu0 0.0
  %5202 = vmatpush2.xpose.msra.mxu0 0.0
  %5203 = vmatprep.subr.mxu0 0.0
  %5204 = vmatpush2.xpose.msra.mxu0 0.0
  %5205 = vmatprep.mubr.f32.mxu0 0.0
  %5206 = vmatmul.mubr.f32.gmra.mxu0 %v5077
  %v5207 = vpop.f32.mrf.mxu0
  %v5208 = vadd.f32 %v4997, %v5207
  %v5209 = vpop.f32.mrf.mxu0
  %5210 = vmatprep.mubr.f32.mxu0 0.0
  %5211 = vmatmul.mubr.f32.gmra.mxu0 %v5079
  %v5212 = vpop.f32.mrf.mxu0
  %v5213 = vadd.f32 %v4998, %v5212
  %v5214 = vpop.f32.mrf.mxu0
  %5215 = vmatprep.mubr.f32.mxu0 0.0
  %5216 = vmatmul.mubr.f32.gmra.mxu0 %v5081
  %v5217 = vpop.f32.mrf.mxu0
  %v5218 = vadd.f32 %v4999, %v5217
  %v5219 = vpop.f32.mrf.mxu0
  %5220 = vmatprep.mubr.f32.mxu0 0.0
  %5221 = vmatmul.mubr.f32.gmra.mxu0 %v5083
  %v5222 = vpop.f32.mrf.mxu0
  %v5223 = vadd.f32 %v5000, %v5222
  %v5224 = vpop.f32.mrf.mxu0
  %5225 = vmatprep.mubr.f32.mxu0 0.0
  %5226 = vmatmul.mubr.f32.gmra.mxu0 %v5085
  %v5227 = vpop.f32.mrf.mxu0
  %v5228 = vadd.f32 %v5001, %v5227
  %v5229 = vpop.f32.mrf.mxu0
  %5230 = vmatprep.mubr.f32.mxu0 0.0
  %5231 = vmatmul.mubr.f32.gmra.mxu0 %v5087
  %v5232 = vpop.f32.mrf.mxu0
  %v5233 = vadd.f32 %v5002, %v5232
  %v5234 = vpop.f32.mrf.mxu0
  %5235 = vmatprep.mubr.f32.mxu0 0.0
  %5236 = vmatmul.mubr.f32.gmra.mxu0 %v5089
  %v5237 = vpop.f32.mrf.mxu0
  %v5238 = vadd.f32 %v5003, %v5237
  %v5239 = vpop.f32.mrf.mxu0
  %5240 = vmatprep.mubr.f32.mxu0 0.0
  %5241 = vmatmul.mubr.f32.gmra.mxu0 %v5091
  %v5242 = vpop.f32.mrf.mxu0
  %v5243 = vadd.f32 %v5004, %v5242
  %v5244 = vpop.f32.mrf.mxu0
  %5245 = vmatprep.mubr.f32.mxu0 0.0
  %5246 = vmatmul.mubr.f32.gmra.mxu0 %v5093
  %v5247 = vpop.f32.mrf.mxu0
  %v5248 = vadd.f32 %v5005, %v5247
  %v5249 = vpop.f32.mrf.mxu0
  %5250 = vmatprep.mubr.f32.mxu0 0.0
  %5251 = vmatmul.mubr.f32.gmra.mxu0 %v5095
  %v5252 = vpop.f32.mrf.mxu0
  %v5253 = vadd.f32 %v5006, %v5252
  %v5254 = vpop.f32.mrf.mxu0
  %5255 = vmatprep.mubr.f32.mxu0 0.0
  %5256 = vmatmul.mubr.f32.gmra.mxu0 %v5097
  %v5257 = vpop.f32.mrf.mxu0
  %v5258 = vadd.f32 %v5007, %v5257
  %v5259 = vpop.f32.mrf.mxu0
  %5260 = vmatprep.mubr.f32.mxu0 0.0
  %5261 = vmatmul.mubr.f32.gmra.mxu0 %v5099
  %v5262 = vpop.f32.mrf.mxu0
  %v5263 = vadd.f32 %v5008, %v5262
  %v5264 = vpop.f32.mrf.mxu0
  %5265 = vmatprep.mubr.f32.mxu0 0.0
  %5266 = vmatmul.mubr.f32.gmra.mxu0 %v5101
  %v5267 = vpop.f32.mrf.mxu0
  %v5268 = vadd.f32 %v5009, %v5267
  %v5269 = vpop.f32.mrf.mxu0
  %5270 = vmatprep.mubr.f32.mxu0 0.0
  %5271 = vmatmul.mubr.f32.gmra.mxu0 %v5103
  %v5272 = vpop.f32.mrf.mxu0
  %v5273 = vadd.f32 %v5010, %v5272
  %v5274 = vpop.f32.mrf.mxu0
  %5275 = vmatprep.mubr.f32.mxu0 0.0
  %5276 = vmatmul.mubr.f32.gmra.mxu0 %v5105
  %v5277 = vpop.f32.mrf.mxu0
  %v5278 = vadd.f32 %v5011, %v5277
  %v5279 = vpop.f32.mrf.mxu0
  %5280 = vmatprep.mubr.f32.mxu0 0.0
  %5281 = vmatmul.mubr.f32.gmra.mxu0 %v5107
  %v5282 = vpop.f32.mrf.mxu0
  %v5283 = vadd.f32 %v5012, %v5282
  %v5284 = vpop.f32.mrf.mxu0
  %5285 = vdwg.mxu0
  %5286 = vmax.xlane.f32.xlu0 %v5208
  %v5287 = vpop.xlane.xlu0 %5286
  %5288 = vmax.xlane.f32.xlu0 %v5213
  %v5289 = vpop.xlane.xlu0 %5288
  %5290 = vmax.xlane.f32.xlu0 %v5218
  %v5291 = vpop.xlane.xlu0 %5290
  %5292 = vmax.xlane.f32.xlu0 %v5223
  %v5293 = vpop.xlane.xlu0 %5292
  %5294 = vmax.xlane.f32.xlu0 %v5228
  %v5295 = vpop.xlane.xlu0 %5294
  %5296 = vmax.xlane.f32.xlu0 %v5233
  %v5297 = vpop.xlane.xlu0 %5296
  %5298 = vmax.xlane.f32.xlu0 %v5238
  %v5299 = vpop.xlane.xlu0 %5298
  %5300 = vmax.xlane.f32.xlu0 %v5243
  %v5301 = vpop.xlane.xlu0 %5300
  %5302 = vmax.xlane.f32.xlu0 %v5248
  %v5303 = vpop.xlane.xlu0 %5302
  %5304 = vmax.xlane.f32.xlu0 %v5253
  %v5305 = vpop.xlane.xlu0 %5304
  %5306 = vmax.xlane.f32.xlu0 %v5258
  %v5307 = vpop.xlane.xlu0 %5306
  %5308 = vmax.xlane.f32.xlu0 %v5263
  %v5309 = vpop.xlane.xlu0 %5308
  %5310 = vmax.xlane.f32.xlu0 %v5268
  %v5311 = vpop.xlane.xlu0 %5310
  %5312 = vmax.xlane.f32.xlu0 %v5273
  %v5313 = vpop.xlane.xlu0 %5312
  %5314 = vmax.xlane.f32.xlu0 %v5278
  %v5315 = vpop.xlane.xlu0 %5314
  %5316 = vmax.xlane.f32.xlu0 %v5283
  %v5317 = vpop.xlane.xlu0 %5316
  %v5318 = vsub.f32 %v5208, %v5287
  %v5319 = vsub.f32 %v5213, %v5289
  %v5320 = vsub.f32 %v5218, %v5291
  %v5321 = vsub.f32 %v5223, %v5293
  %v5322 = vsub.f32 %v5228, %v5295
  %v5323 = vsub.f32 %v5233, %v5297
  %v5324 = vsub.f32 %v5238, %v5299
  %v5325 = vsub.f32 %v5243, %v5301
  %v5326 = vsub.f32 %v5248, %v5303
  %v5327 = vsub.f32 %v5253, %v5305
  %v5328 = vsub.f32 %v5258, %v5307
  %v5329 = vsub.f32 %v5263, %v5309
  %v5330 = vsub.f32 %v5268, %v5311
  %v5331 = vsub.f32 %v5273, %v5313
  %v5332 = vsub.f32 %v5278, %v5315
  %v5333 = vsub.f32 %v5283, %v5317
  %v5334 = vmul.f32 %v5318, 1.442695
  %v5335 = vpow.pop %v5334
  %v5336 = vmul.f32 %v5319, 1.442695
  %v5337 = vpow.pop %v5336
  %v5338 = vmul.f32 %v5320, 1.442695
  %v5339 = vpow.pop %v5338
  %v5340 = vmul.f32 %v5321, 1.442695
  %v5341 = vpow.pop %v5340
  %v5342 = vmul.f32 %v5322, 1.442695
  %v5343 = vpow.pop %v5342
  %v5344 = vmul.f32 %v5323, 1.442695
  %v5345 = vpow.pop %v5344
  %v5346 = vmul.f32 %v5324, 1.442695
  %v5347 = vpow.pop %v5346
  %v5348 = vmul.f32 %v5325, 1.442695
  %v5349 = vpow.pop %v5348
  %v5350 = vmul.f32 %v5326, 1.442695
  %v5351 = vpow.pop %v5350
  %v5352 = vmul.f32 %v5327, 1.442695
  %v5353 = vpow.pop %v5352
  %v5354 = vmul.f32 %v5328, 1.442695
  %v5355 = vpow.pop %v5354
  %v5356 = vmul.f32 %v5329, 1.442695
  %v5357 = vpow.pop %v5356
  %v5358 = vmul.f32 %v5330, 1.442695
  %v5359 = vpow.pop %v5358
  %v5360 = vmul.f32 %v5331, 1.442695
  %v5361 = vpow.pop %v5360
  %v5362 = vmul.f32 %v5332, 1.442695
  %v5363 = vpow.pop %v5362
  %v5364 = vmul.f32 %v5333, 1.442695
  %v5365 = vpow.pop %v5364
  %5366 = vadd.xlane.f32.xlu0 %v5335
  %v5367 = vpop.xlane.xlu0 %5366
  %5368 = vadd.xlane.f32.xlu0 %v5337
  %v5369 = vpop.xlane.xlu0 %5368
  %5370 = vadd.xlane.f32.xlu0 %v5339
  %v5371 = vpop.xlane.xlu0 %5370
  %5372 = vadd.xlane.f32.xlu0 %v5341
  %v5373 = vpop.xlane.xlu0 %5372
  %5374 = vadd.xlane.f32.xlu0 %v5343
  %v5375 = vpop.xlane.xlu0 %5374
  %5376 = vadd.xlane.f32.xlu0 %v5345
  %v5377 = vpop.xlane.xlu0 %5376
  %5378 = vadd.xlane.f32.xlu0 %v5347
  %v5379 = vpop.xlane.xlu0 %5378
  %5380 = vadd.xlane.f32.xlu0 %v5349
  %v5381 = vpop.xlane.xlu0 %5380
  %5382 = vadd.xlane.f32.xlu0 %v5351
  %v5383 = vpop.xlane.xlu0 %5382
  %5384 = vadd.xlane.f32.xlu0 %v5353
  %v5385 = vpop.xlane.xlu0 %5384
  %5386 = vadd.xlane.f32.xlu0 %v5355
  %v5387 = vpop.xlane.xlu0 %5386
  %5388 = vadd.xlane.f32.xlu0 %v5357
  %v5389 = vpop.xlane.xlu0 %5388
  %5390 = vadd.xlane.f32.xlu0 %v5359
  %v5391 = vpop.xlane.xlu0 %5390
  %5392 = vadd.xlane.f32.xlu0 %v5361
  %v5393 = vpop.xlane.xlu0 %5392
  %5394 = vadd.xlane.f32.xlu0 %v5363
  %v5395 = vpop.xlane.xlu0 %5394
  %5396 = vadd.xlane.f32.xlu0 %v5365
  %v5397 = vpop.xlane.xlu0 %5396
  %v5398 = vrcp.pop %v5367
  %v5399 = vmul.f32 %v5335, %v5398
  %v5400 = vrcp.pop %v5369
  %v5401 = vmul.f32 %v5337, %v5400
  %v5402 = vrcp.pop %v5371
  %v5403 = vmul.f32 %v5339, %v5402
  %v5404 = vrcp.pop %v5373
  %v5405 = vmul.f32 %v5341, %v5404
  %v5406 = vrcp.pop %v5375
  %v5407 = vmul.f32 %v5343, %v5406
  %v5408 = vrcp.pop %v5377
  %v5409 = vmul.f32 %v5345, %v5408
  %v5410 = vrcp.pop %v5379
  %v5411 = vmul.f32 %v5347, %v5410
  %v5412 = vrcp.pop %v5381
  %v5413 = vmul.f32 %v5349, %v5412
  %v5414 = vrcp.pop %v5383
  %v5415 = vmul.f32 %v5351, %v5414
  %v5416 = vrcp.pop %v5385
  %v5417 = vmul.f32 %v5353, %v5416
  %v5418 = vrcp.pop %v5387
  %v5419 = vmul.f32 %v5355, %v5418
  %v5420 = vrcp.pop %v5389
  %v5421 = vmul.f32 %v5357, %v5420
  %v5422 = vrcp.pop %v5391
  %v5423 = vmul.f32 %v5359, %v5422
  %v5424 = vrcp.pop %v5393
  %v5425 = vmul.f32 %v5361, %v5424
  %v5426 = vrcp.pop %v5395
  %v5427 = vmul.f32 %v5363, %v5426
  %v5428 = vrcp.pop %v5397
  %v5429 = vmul.f32 %v5365, %v5428
  %5430 = vrot.lane.b32.xlu0 %v4293, 56
  %v5431 = vpop.permute.xlu0 %5430
  %5432 = vrot.lane.b32.xlu0 %v4298, 56
  %v5433 = vpop.permute.xlu0 %5432
  %5434 = vrot.lane.b32.xlu0 %v4303, 56
  %v5435 = vpop.permute.xlu0 %5434
  %5436 = vrot.lane.b32.xlu0 %v4308, 56
  %v5437 = vpop.permute.xlu0 %5436
  %5438 = vrot.lane.b32.xlu0 %v4313, 56
  %v5439 = vpop.permute.xlu0 %5438
  %5440 = vrot.lane.b32.xlu0 %v4318, 56
  %v5441 = vpop.permute.xlu0 %5440
  %5442 = vrot.lane.b32.xlu0 %v4323, 56
  %v5443 = vpop.permute.xlu0 %5442
  %5444 = vrot.lane.b32.xlu0 %v4328, 56
  %v5445 = vpop.permute.xlu0 %5444
  %5446 = vrot.lane.b32.xlu0 %v4333, 56
  %v5447 = vpop.permute.xlu0 %5446
  %5448 = vrot.lane.b32.xlu0 %v4338, 56
  %v5449 = vpop.permute.xlu0 %5448
  %5450 = vrot.lane.b32.xlu0 %v4343, 56
  %v5451 = vpop.permute.xlu0 %5450
  %5452 = vrot.lane.b32.xlu0 %v4348, 56
  %v5453 = vpop.permute.xlu0 %5452
  %5454 = vrot.lane.b32.xlu0 %v4353, 56
  %v5455 = vpop.permute.xlu0 %5454
  %5456 = vrot.lane.b32.xlu0 %v4358, 56
  %v5457 = vpop.permute.xlu0 %5456
  %5458 = vrot.lane.b32.xlu0 %v4363, 56
  %v5459 = vpop.permute.xlu0 %5458
  %5460 = vrot.lane.b32.xlu0 %v4368, 56
  %v5461 = vpop.permute.xlu0 %5460
  %5478 = vmatprep.subr.mxu0 0.0
  %5479 = vmatpush1.msra.mxu0 %v5461
  %5480 = vmatprep.subr.mxu0 0.0
  %5481 = vmatpush1.msra.mxu0 %v5459
  %5482 = vmatprep.subr.mxu0 0.0
  %5483 = vmatpush1.msra.mxu0 %v5457
  %5484 = vmatprep.subr.mxu0 0.0
  %5485 = vmatpush1.msra.mxu0 %v5455
  %5486 = vmatprep.subr.mxu0 0.0
  %5487 = vmatpush1.msra.mxu0 %v5453
  %5488 = vmatprep.subr.mxu0 0.0
  %5489 = vmatpush1.msra.mxu0 %v5451
  %5490 = vmatprep.subr.mxu0 0.0
  %5491 = vmatpush1.msra.mxu0 %v5449
  %5492 = vmatprep.subr.mxu0 0.0
  %5493 = vmatpush1.msra.mxu0 %v5447
  %5494 = vmatprep.subr.mxu0 0.0
  %5495 = vmatpush1.msra.mxu0 %v5445
  %5496 = vmatprep.subr.mxu0 0.0
  %5497 = vmatpush1.msra.mxu0 %v5443
  %5498 = vmatprep.subr.mxu0 0.0
  %5499 = vmatpush1.msra.mxu0 %v5441
  %5500 = vmatprep.subr.mxu0 0.0
  %5501 = vmatpush1.msra.mxu0 %v5439
  %5502 = vmatprep.subr.mxu0 0.0
  %5503 = vmatpush1.msra.mxu0 %v5437
  %5504 = vmatprep.subr.mxu0 0.0
  %5505 = vmatpush1.msra.mxu0 %v5435
  %5506 = vmatprep.subr.mxu0 0.0
  %5507 = vmatpush1.msra.mxu0 %v5433
  %5508 = vmatprep.subr.mxu0 0.0
  %5509 = vmatpush1.msra.mxu0 %v5431
  %5510 = vmatprep.subr.mxu0 0.0
  %5511 = vmatpush2.msra.mxu0 0.0
  %5512 = vmatprep.subr.mxu0 0.0
  %5513 = vmatpush2.msra.mxu0 0.0
  %5514 = vmatprep.subr.mxu0 0.0
  %5515 = vmatpush2.msra.mxu0 0.0
  %5516 = vmatprep.subr.mxu0 0.0
  %5517 = vmatpush2.msra.mxu0 0.0
  %5518 = vmatprep.subr.mxu0 0.0
  %5519 = vmatpush2.msra.mxu0 0.0
  %5520 = vmatprep.subr.mxu0 0.0
  %5521 = vmatpush2.msra.mxu0 0.0
  %5522 = vmatprep.subr.mxu0 0.0
  %5523 = vmatpush2.msra.mxu0 0.0
  %5524 = vmatprep.subr.mxu0 0.0
  %5525 = vmatpush2.msra.mxu0 0.0
  %5526 = vmatprep.subr.mxu0 0.0
  %5527 = vmatpush2.msra.mxu0 0.0
  %5528 = vmatprep.subr.mxu0 0.0
  %5529 = vmatpush2.msra.mxu0 0.0
  %5530 = vmatprep.subr.mxu0 0.0
  %5531 = vmatpush2.msra.mxu0 0.0
  %5532 = vmatprep.subr.mxu0 0.0
  %5533 = vmatpush2.msra.mxu0 0.0
  %5534 = vmatprep.subr.mxu0 0.0
  %5535 = vmatpush2.msra.mxu0 0.0
  %5536 = vmatprep.subr.mxu0 0.0
  %5537 = vmatpush2.msra.mxu0 0.0
  %5538 = vmatprep.subr.mxu0 0.0
  %5539 = vmatpush2.msra.mxu0 0.0
  %5540 = vmatprep.subr.mxu0 0.0
  %5541 = vmatpush2.msra.mxu0 0.0
  %5542 = vmatprep.mubr.f32.mxu0 0.0
  %5543 = vmatmul.mubr.f32.gmra.mxu0 %v5399
  %v5544 = vpop.f32.mrf.mxu0
  %v5545 = vadd.f32 0.0, %v5544
  %v5546 = vpop.f32.mrf.mxu0
  %5547 = vmatprep.mubr.f32.mxu0 0.0
  %5548 = vmatmul.mubr.f32.gmra.mxu0 %v5401
  %v5549 = vpop.f32.mrf.mxu0
  %v5550 = vadd.f32 0.0, %v5549
  %v5551 = vpop.f32.mrf.mxu0
  %5552 = vmatprep.mubr.f32.mxu0 0.0
  %5553 = vmatmul.mubr.f32.gmra.mxu0 %v5403
  %v5554 = vpop.f32.mrf.mxu0
  %v5555 = vadd.f32 0.0, %v5554
  %v5556 = vpop.f32.mrf.mxu0
  %5557 = vmatprep.mubr.f32.mxu0 0.0
  %5558 = vmatmul.mubr.f32.gmra.mxu0 %v5405
  %v5559 = vpop.f32.mrf.mxu0
  %v5560 = vadd.f32 0.0, %v5559
  %v5561 = vpop.f32.mrf.mxu0
  %5562 = vmatprep.mubr.f32.mxu0 0.0
  %5563 = vmatmul.mubr.f32.gmra.mxu0 %v5407
  %v5564 = vpop.f32.mrf.mxu0
  %v5565 = vadd.f32 0.0, %v5564
  %v5566 = vpop.f32.mrf.mxu0
  %5567 = vmatprep.mubr.f32.mxu0 0.0
  %5568 = vmatmul.mubr.f32.gmra.mxu0 %v5409
  %v5569 = vpop.f32.mrf.mxu0
  %v5570 = vadd.f32 0.0, %v5569
  %v5571 = vpop.f32.mrf.mxu0
  %5572 = vmatprep.mubr.f32.mxu0 0.0
  %5573 = vmatmul.mubr.f32.gmra.mxu0 %v5411
  %v5574 = vpop.f32.mrf.mxu0
  %v5575 = vadd.f32 0.0, %v5574
  %v5576 = vpop.f32.mrf.mxu0
  %5577 = vmatprep.mubr.f32.mxu0 0.0
  %5578 = vmatmul.mubr.f32.gmra.mxu0 %v5413
  %v5579 = vpop.f32.mrf.mxu0
  %v5580 = vadd.f32 0.0, %v5579
  %v5581 = vpop.f32.mrf.mxu0
  %5582 = vmatprep.mubr.f32.mxu0 0.0
  %5583 = vmatmul.mubr.f32.gmra.mxu0 %v5415
  %v5584 = vpop.f32.mrf.mxu0
  %v5585 = vadd.f32 0.0, %v5584
  %v5586 = vpop.f32.mrf.mxu0
  %5587 = vmatprep.mubr.f32.mxu0 0.0
  %5588 = vmatmul.mubr.f32.gmra.mxu0 %v5417
  %v5589 = vpop.f32.mrf.mxu0
  %v5590 = vadd.f32 0.0, %v5589
  %v5591 = vpop.f32.mrf.mxu0
  %5592 = vmatprep.mubr.f32.mxu0 0.0
  %5593 = vmatmul.mubr.f32.gmra.mxu0 %v5419
  %v5594 = vpop.f32.mrf.mxu0
  %v5595 = vadd.f32 0.0, %v5594
  %v5596 = vpop.f32.mrf.mxu0
  %5597 = vmatprep.mubr.f32.mxu0 0.0
  %5598 = vmatmul.mubr.f32.gmra.mxu0 %v5421
  %v5599 = vpop.f32.mrf.mxu0
  %v5600 = vadd.f32 0.0, %v5599
  %v5601 = vpop.f32.mrf.mxu0
  %5602 = vmatprep.mubr.f32.mxu0 0.0
  %5603 = vmatmul.mubr.f32.gmra.mxu0 %v5423
  %v5604 = vpop.f32.mrf.mxu0
  %v5605 = vadd.f32 0.0, %v5604
  %v5606 = vpop.f32.mrf.mxu0
  %5607 = vmatprep.mubr.f32.mxu0 0.0
  %5608 = vmatmul.mubr.f32.gmra.mxu0 %v5425
  %v5609 = vpop.f32.mrf.mxu0
  %v5610 = vadd.f32 0.0, %v5609
  %v5611 = vpop.f32.mrf.mxu0
  %5612 = vmatprep.mubr.f32.mxu0 0.0
  %5613 = vmatmul.mubr.f32.gmra.mxu0 %v5427
  %v5614 = vpop.f32.mrf.mxu0
  %v5615 = vadd.f32 0.0, %v5614
  %v5616 = vpop.f32.mrf.mxu0
  %5617 = vmatprep.mubr.f32.mxu0 0.0
  %5618 = vmatmul.mubr.f32.gmra.mxu0 %v5429
  %v5619 = vpop.f32.mrf.mxu0
  %v5620 = vadd.f32 0.0, %v5619
  %v5621 = vpop.f32.mrf.mxu0
  %5622 = vdwg.mxu0
  %5639 = vrot.lane.b32.xlu0 %v5545, 8
  %v5640 = vpop.permute.xlu0 %5639
  %5641 = vrot.lane.b32.xlu0 %v5550, 8
  %v5642 = vpop.permute.xlu0 %5641
  %5643 = vrot.lane.b32.xlu0 %v5555, 8
  %v5644 = vpop.permute.xlu0 %5643
  %5645 = vrot.lane.b32.xlu0 %v5560, 8
  %v5646 = vpop.permute.xlu0 %5645
  %5647 = vrot.lane.b32.xlu0 %v5565, 8
  %v5648 = vpop.permute.xlu0 %5647
  %5649 = vrot.lane.b32.xlu0 %v5570, 8
  %v5650 = vpop.permute.xlu0 %5649
  %5651 = vrot.lane.b32.xlu0 %v5575, 8
  %v5652 = vpop.permute.xlu0 %5651
  %5653 = vrot.lane.b32.xlu0 %v5580, 8
  %v5654 = vpop.permute.xlu0 %5653
  %5655 = vrot.lane.b32.xlu0 %v5585, 8
  %v5656 = vpop.permute.xlu0 %5655
  %5657 = vrot.lane.b32.xlu0 %v5590, 8
  %v5658 = vpop.permute.xlu0 %5657
  %5659 = vrot.lane.b32.xlu0 %v5595, 8
  %v5660 = vpop.permute.xlu0 %5659
  %5661 = vrot.lane.b32.xlu0 %v5600, 8
  %v5662 = vpop.permute.xlu0 %5661
  %5663 = vrot.lane.b32.xlu0 %v5605, 8
  %v5664 = vpop.permute.xlu0 %5663
  %5665 = vrot.lane.b32.xlu0 %v5610, 8
  %v5666 = vpop.permute.xlu0 %5665
  %5667 = vrot.lane.b32.xlu0 %v5615, 8
  %v5668 = vpop.permute.xlu0 %5667
  %5669 = vrot.lane.b32.xlu0 %v5620, 8
  %v5670 = vpop.permute.xlu0 %5669
  %5687 = vst.msk [vmem:[#allocation2] sm:$0xff] %vm1585, %v5640
  %5688 = vst.msk [vmem:[#allocation2 + $0x8] sm:$0xff] %vm1585, %v5642
  %5689 = vst.msk [vmem:[#allocation2 + $0x10] sm:$0xff] %vm1585, %v5644
  %5690 = vst.msk [vmem:[#allocation2 + $0x18] sm:$0xff] %vm1585, %v5646
  %5691 = vst.msk [vmem:[#allocation2 + $0x20] sm:$0xff] %vm1585, %v5648
  %5692 = vst.msk [vmem:[#allocation2 + $0x28] sm:$0xff] %vm1585, %v5650
  %5693 = vst.msk [vmem:[#allocation2 + $0x30] sm:$0xff] %vm1585, %v5652
  %5694 = vst.msk [vmem:[#allocation2 + $0x38] sm:$0xff] %vm1585, %v5654
  %5695 = vst.msk [vmem:[#allocation2 + $0x40] sm:$0xff] %vm1585, %v5656
  %5696 = vst.msk [vmem:[#allocation2 + $0x48] sm:$0xff] %vm1585, %v5658
  %5697 = vst.msk [vmem:[#allocation2 + $0x50] sm:$0xff] %vm1585, %v5660
  %5698 = vst.msk [vmem:[#allocation2 + $0x58] sm:$0xff] %vm1585, %v5662
  %5699 = vst.msk [vmem:[#allocation2 + $0x60] sm:$0xff] %vm1585, %v5664
  %5700 = vst.msk [vmem:[#allocation2 + $0x68] sm:$0xff] %vm1585, %v5666
  %5701 = vst.msk [vmem:[#allocation2 + $0x70] sm:$0xff] %vm1585, %v5668
  %5702 = vst.msk [vmem:[#allocation2 + $0x78] sm:$0xff] %vm1585, %v5670
  %v5703 = vld [vmem:[%s1] sm:$0xff]
  %v5704 = vld [vmem:[%s1 + $0x8] sm:$0xff]
  %v5705 = vld [vmem:[%s1 + $0x10] sm:$0xff]
  %v5706 = vld [vmem:[%s1 + $0x18] sm:$0xff]
  %v5707 = vld [vmem:[%s1 + $0x20] sm:$0xff]
  %v5708 = vld [vmem:[%s1 + $0x28] sm:$0xff]
  %v5709 = vld [vmem:[%s1 + $0x30] sm:$0xff]
  %v5710 = vld [vmem:[%s1 + $0x38] sm:$0xff]
  %v5711 = vld [vmem:[%s1 + $0x40] sm:$0xff]
  %v5712 = vld [vmem:[%s1 + $0x48] sm:$0xff]
  %v5713 = vld [vmem:[%s1 + $0x50] sm:$0xff]
  %v5714 = vld [vmem:[%s1 + $0x58] sm:$0xff]
  %v5715 = vld [vmem:[%s1 + $0x60] sm:$0xff]
  %v5716 = vld [vmem:[%s1 + $0x68] sm:$0xff]
  %v5717 = vld [vmem:[%s1 + $0x70] sm:$0xff]
  %v5718 = vld [vmem:[%s1 + $0x78] sm:$0xff]
  %5719 = vrot.lane.b32.xlu0 %v4293, 112
  %v5720 = vpop.permute.xlu0 %5719
  %5721 = vrot.lane.b32.xlu0 %v4298, 112
  %v5722 = vpop.permute.xlu0 %5721
  %5723 = vrot.lane.b32.xlu0 %v4303, 112
  %v5724 = vpop.permute.xlu0 %5723
  %5725 = vrot.lane.b32.xlu0 %v4308, 112
  %v5726 = vpop.permute.xlu0 %5725
  %5727 = vrot.lane.b32.xlu0 %v4313, 112
  %v5728 = vpop.permute.xlu0 %5727
  %5729 = vrot.lane.b32.xlu0 %v4318, 112
  %v5730 = vpop.permute.xlu0 %5729
  %5731 = vrot.lane.b32.xlu0 %v4323, 112
  %v5732 = vpop.permute.xlu0 %5731
  %5733 = vrot.lane.b32.xlu0 %v4328, 112
  %v5734 = vpop.permute.xlu0 %5733
  %5735 = vrot.lane.b32.xlu0 %v4333, 112
  %v5736 = vpop.permute.xlu0 %5735
  %5737 = vrot.lane.b32.xlu0 %v4338, 112
  %v5738 = vpop.permute.xlu0 %5737
  %5739 = vrot.lane.b32.xlu0 %v4343, 112
  %v5740 = vpop.permute.xlu0 %5739
  %5741 = vrot.lane.b32.xlu0 %v4348, 112
  %v5742 = vpop.permute.xlu0 %5741
  %5743 = vrot.lane.b32.xlu0 %v4353, 112
  %v5744 = vpop.permute.xlu0 %5743
  %5745 = vrot.lane.b32.xlu0 %v4358, 112
  %v5746 = vpop.permute.xlu0 %5745
  %5747 = vrot.lane.b32.xlu0 %v4363, 112
  %v5748 = vpop.permute.xlu0 %5747
  %5749 = vrot.lane.b32.xlu0 %v4368, 112
  %v5750 = vpop.permute.xlu0 %5749
  %5751 = vrot.lane.b32.xlu0 %v4293, 80
  %v5752 = vpop.permute.xlu0 %5751
  %5753 = vrot.lane.b32.xlu0 %v4298, 80
  %v5754 = vpop.permute.xlu0 %5753
  %5755 = vrot.lane.b32.xlu0 %v4303, 80
  %v5756 = vpop.permute.xlu0 %5755
  %5757 = vrot.lane.b32.xlu0 %v4308, 80
  %v5758 = vpop.permute.xlu0 %5757
  %5759 = vrot.lane.b32.xlu0 %v4313, 80
  %v5760 = vpop.permute.xlu0 %5759
  %5761 = vrot.lane.b32.xlu0 %v4318, 80
  %v5762 = vpop.permute.xlu0 %5761
  %5763 = vrot.lane.b32.xlu0 %v4323, 80
  %v5764 = vpop.permute.xlu0 %5763
  %5765 = vrot.lane.b32.xlu0 %v4328, 80
  %v5766 = vpop.permute.xlu0 %5765
  %5767 = vrot.lane.b32.xlu0 %v4333, 80
  %v5768 = vpop.permute.xlu0 %5767
  %5769 = vrot.lane.b32.xlu0 %v4338, 80
  %v5770 = vpop.permute.xlu0 %5769
  %5771 = vrot.lane.b32.xlu0 %v4343, 80
  %v5772 = vpop.permute.xlu0 %5771
  %5773 = vrot.lane.b32.xlu0 %v4348, 80
  %v5774 = vpop.permute.xlu0 %5773
  %5775 = vrot.lane.b32.xlu0 %v4353, 80
  %v5776 = vpop.permute.xlu0 %5775
  %5777 = vrot.lane.b32.xlu0 %v4358, 80
  %v5778 = vpop.permute.xlu0 %5777
  %5779 = vrot.lane.b32.xlu0 %v4363, 80
  %v5780 = vpop.permute.xlu0 %5779
  %5781 = vrot.lane.b32.xlu0 %v4368, 80
  %v5782 = vpop.permute.xlu0 %5781
  %v5783 = vsel %vm332, %v5720, 0
  %v5785 = vsel %vm332, %v5722, 0
  %v5787 = vsel %vm332, %v5724, 0
  %v5789 = vsel %vm332, %v5726, 0
  %v5791 = vsel %vm332, %v5728, 0
  %v5793 = vsel %vm332, %v5730, 0
  %v5795 = vsel %vm332, %v5732, 0
  %v5797 = vsel %vm332, %v5734, 0
  %v5799 = vsel %vm332, %v5736, 0
  %v5801 = vsel %vm332, %v5738, 0
  %v5803 = vsel %vm332, %v5740, 0
  %v5805 = vsel %vm332, %v5742, 0
  %v5807 = vsel %vm332, %v5744, 0
  %v5809 = vsel %vm332, %v5746, 0
  %v5811 = vsel %vm332, %v5748, 0
  %v5813 = vsel %vm332, %v5750, 0
  %v5815 = vsel %vm332, %v5752, 0
  %v5817 = vsel %vm332, %v5754, 0
  %v5819 = vsel %vm332, %v5756, 0
  %v5821 = vsel %vm332, %v5758, 0
  %v5823 = vsel %vm332, %v5760, 0
  %v5825 = vsel %vm332, %v5762, 0
  %v5827 = vsel %vm332, %v5764, 0
  %v5829 = vsel %vm332, %v5766, 0
  %v5831 = vsel %vm332, %v5768, 0
  %v5833 = vsel %vm332, %v5770, 0
  %v5835 = vsel %vm332, %v5772, 0
  %v5837 = vsel %vm332, %v5774, 0
  %v5839 = vsel %vm332, %v5776, 0
  %v5841 = vsel %vm332, %v5778, 0
  %v5843 = vsel %vm332, %v5780, 0
  %v5845 = vsel %vm332, %v5782, 0
  %5847 = vmatprep.subr.mxu0 0.0
  %5848 = vmatpush1.xpose.msra.mxu0 %v5845
  %5849 = vmatprep.subr.mxu0 0.0
  %5850 = vmatpush1.xpose.msra.mxu0 %v5843
  %5851 = vmatprep.subr.mxu0 0.0
  %5852 = vmatpush1.xpose.msra.mxu0 %v5841
  %5853 = vmatprep.subr.mxu0 0.0
  %5854 = vmatpush1.xpose.msra.mxu0 %v5839
  %5855 = vmatprep.subr.mxu0 0.0
  %5856 = vmatpush1.xpose.msra.mxu0 %v5837
  %5857 = vmatprep.subr.mxu0 0.0
  %5858 = vmatpush1.xpose.msra.mxu0 %v5835
  %5859 = vmatprep.subr.mxu0 0.0
  %5860 = vmatpush1.xpose.msra.mxu0 %v5833
  %5861 = vmatprep.subr.mxu0 0.0
  %5862 = vmatpush1.xpose.msra.mxu0 %v5831
  %5863 = vmatprep.subr.mxu0 0.0
  %5864 = vmatpush1.xpose.msra.mxu0 %v5829
  %5865 = vmatprep.subr.mxu0 0.0
  %5866 = vmatpush1.xpose.msra.mxu0 %v5827
  %5867 = vmatprep.subr.mxu0 0.0
  %5868 = vmatpush1.xpose.msra.mxu0 %v5825
  %5869 = vmatprep.subr.mxu0 0.0
  %5870 = vmatpush1.xpose.msra.mxu0 %v5823
  %5871 = vmatprep.subr.mxu0 0.0
  %5872 = vmatpush1.xpose.msra.mxu0 %v5821
  %5873 = vmatprep.subr.mxu0 0.0
  %5874 = vmatpush1.xpose.msra.mxu0 %v5819
  %5875 = vmatprep.subr.mxu0 0.0
  %5876 = vmatpush1.xpose.msra.mxu0 %v5817
  %5877 = vmatprep.subr.mxu0 0.0
  %5878 = vmatpush1.xpose.msra.mxu0 %v5815
  %5879 = vmatprep.subr.mxu0 0.0
  %5880 = vmatpush2.xpose.msra.mxu0 0.0
  %5881 = vmatprep.subr.mxu0 0.0
  %5882 = vmatpush2.xpose.msra.mxu0 0.0
  %5883 = vmatprep.subr.mxu0 0.0
  %5884 = vmatpush2.xpose.msra.mxu0 0.0
  %5885 = vmatprep.subr.mxu0 0.0
  %5886 = vmatpush2.xpose.msra.mxu0 0.0
  %5887 = vmatprep.subr.mxu0 0.0
  %5888 = vmatpush2.xpose.msra.mxu0 0.0
  %5889 = vmatprep.subr.mxu0 0.0
  %5890 = vmatpush2.xpose.msra.mxu0 0.0
  %5891 = vmatprep.subr.mxu0 0.0
  %5892 = vmatpush2.xpose.msra.mxu0 0.0
  %5893 = vmatprep.subr.mxu0 0.0
  %5894 = vmatpush2.xpose.msra.mxu0 0.0
  %5895 = vmatprep.subr.mxu0 0.0
  %5896 = vmatpush2.xpose.msra.mxu0 0.0
  %5897 = vmatprep.subr.mxu0 0.0
  %5898 = vmatpush2.xpose.msra.mxu0 0.0
  %5899 = vmatprep.subr.mxu0 0.0
  %5900 = vmatpush2.xpose.msra.mxu0 0.0
  %5901 = vmatprep.subr.mxu0 0.0
  %5902 = vmatpush2.xpose.msra.mxu0 0.0
  %5903 = vmatprep.subr.mxu0 0.0
  %5904 = vmatpush2.xpose.msra.mxu0 0.0
  %5905 = vmatprep.subr.mxu0 0.0
  %5906 = vmatpush2.xpose.msra.mxu0 0.0
  %5907 = vmatprep.subr.mxu0 0.0
  %5908 = vmatpush2.xpose.msra.mxu0 0.0
  %5909 = vmatprep.subr.mxu0 0.0
  %5910 = vmatpush2.xpose.msra.mxu0 0.0
  %5911 = vmatprep.mubr.f32.mxu0 0.0
  %5912 = vmatmul.mubr.f32.gmra.mxu0 %v5783
  %v5913 = vpop.f32.mrf.mxu0
  %v5914 = vadd.f32 %v5703, %v5913
  %v5915 = vpop.f32.mrf.mxu0
  %5916 = vmatprep.mubr.f32.mxu0 0.0
  %5917 = vmatmul.mubr.f32.gmra.mxu0 %v5785
  %v5918 = vpop.f32.mrf.mxu0
  %v5919 = vadd.f32 %v5704, %v5918
  %v5920 = vpop.f32.mrf.mxu0
  %5921 = vmatprep.mubr.f32.mxu0 0.0
  %5922 = vmatmul.mubr.f32.gmra.mxu0 %v5787
  %v5923 = vpop.f32.mrf.mxu0
  %v5924 = vadd.f32 %v5705, %v5923
  %v5925 = vpop.f32.mrf.mxu0
  %5926 = vmatprep.mubr.f32.mxu0 0.0
  %5927 = vmatmul.mubr.f32.gmra.mxu0 %v5789
  %v5928 = vpop.f32.mrf.mxu0
  %v5929 = vadd.f32 %v5706, %v5928
  %v5930 = vpop.f32.mrf.mxu0
  %5931 = vmatprep.mubr.f32.mxu0 0.0
  %5932 = vmatmul.mubr.f32.gmra.mxu0 %v5791
  %v5933 = vpop.f32.mrf.mxu0
  %v5934 = vadd.f32 %v5707, %v5933
  %v5935 = vpop.f32.mrf.mxu0
  %5936 = vmatprep.mubr.f32.mxu0 0.0
  %5937 = vmatmul.mubr.f32.gmra.mxu0 %v5793
  %v5938 = vpop.f32.mrf.mxu0
  %v5939 = vadd.f32 %v5708, %v5938
  %v5940 = vpop.f32.mrf.mxu0
  %5941 = vmatprep.mubr.f32.mxu0 0.0
  %5942 = vmatmul.mubr.f32.gmra.mxu0 %v5795
  %v5943 = vpop.f32.mrf.mxu0
  %v5944 = vadd.f32 %v5709, %v5943
  %v5945 = vpop.f32.mrf.mxu0
  %5946 = vmatprep.mubr.f32.mxu0 0.0
  %5947 = vmatmul.mubr.f32.gmra.mxu0 %v5797
  %v5948 = vpop.f32.mrf.mxu0
  %v5949 = vadd.f32 %v5710, %v5948
  %v5950 = vpop.f32.mrf.mxu0
  %5951 = vmatprep.mubr.f32.mxu0 0.0
  %5952 = vmatmul.mubr.f32.gmra.mxu0 %v5799
  %v5953 = vpop.f32.mrf.mxu0
  %v5954 = vadd.f32 %v5711, %v5953
  %v5955 = vpop.f32.mrf.mxu0
  %5956 = vmatprep.mubr.f32.mxu0 0.0
  %5957 = vmatmul.mubr.f32.gmra.mxu0 %v5801
  %v5958 = vpop.f32.mrf.mxu0
  %v5959 = vadd.f32 %v5712, %v5958
  %v5960 = vpop.f32.mrf.mxu0
  %5961 = vmatprep.mubr.f32.mxu0 0.0
  %5962 = vmatmul.mubr.f32.gmra.mxu0 %v5803
  %v5963 = vpop.f32.mrf.mxu0
  %v5964 = vadd.f32 %v5713, %v5963
  %v5965 = vpop.f32.mrf.mxu0
  %5966 = vmatprep.mubr.f32.mxu0 0.0
  %5967 = vmatmul.mubr.f32.gmra.mxu0 %v5805
  %v5968 = vpop.f32.mrf.mxu0
  %v5969 = vadd.f32 %v5714, %v5968
  %v5970 = vpop.f32.mrf.mxu0
  %5971 = vmatprep.mubr.f32.mxu0 0.0
  %5972 = vmatmul.mubr.f32.gmra.mxu0 %v5807
  %v5973 = vpop.f32.mrf.mxu0
  %v5974 = vadd.f32 %v5715, %v5973
  %v5975 = vpop.f32.mrf.mxu0
  %5976 = vmatprep.mubr.f32.mxu0 0.0
  %5977 = vmatmul.mubr.f32.gmra.mxu0 %v5809
  %v5978 = vpop.f32.mrf.mxu0
  %v5979 = vadd.f32 %v5716, %v5978
  %v5980 = vpop.f32.mrf.mxu0
  %5981 = vmatprep.mubr.f32.mxu0 0.0
  %5982 = vmatmul.mubr.f32.gmra.mxu0 %v5811
  %v5983 = vpop.f32.mrf.mxu0
  %v5984 = vadd.f32 %v5717, %v5983
  %v5985 = vpop.f32.mrf.mxu0
  %5986 = vmatprep.mubr.f32.mxu0 0.0
  %5987 = vmatmul.mubr.f32.gmra.mxu0 %v5813
  %v5988 = vpop.f32.mrf.mxu0
  %v5989 = vadd.f32 %v5718, %v5988
  %v5990 = vpop.f32.mrf.mxu0
  %5991 = vdwg.mxu0
  %5992 = vmax.xlane.f32.xlu0 %v5914
  %v5993 = vpop.xlane.xlu0 %5992
  %5994 = vmax.xlane.f32.xlu0 %v5919
  %v5995 = vpop.xlane.xlu0 %5994
  %5996 = vmax.xlane.f32.xlu0 %v5924
  %v5997 = vpop.xlane.xlu0 %5996
  %5998 = vmax.xlane.f32.xlu0 %v5929
  %v5999 = vpop.xlane.xlu0 %5998
  %6000 = vmax.xlane.f32.xlu0 %v5934
  %v6001 = vpop.xlane.xlu0 %6000
  %6002 = vmax.xlane.f32.xlu0 %v5939
  %v6003 = vpop.xlane.xlu0 %6002
  %6004 = vmax.xlane.f32.xlu0 %v5944
  %v6005 = vpop.xlane.xlu0 %6004
  %6006 = vmax.xlane.f32.xlu0 %v5949
  %v6007 = vpop.xlane.xlu0 %6006
  %6008 = vmax.xlane.f32.xlu0 %v5954
  %v6009 = vpop.xlane.xlu0 %6008
  %6010 = vmax.xlane.f32.xlu0 %v5959
  %v6011 = vpop.xlane.xlu0 %6010
  %6012 = vmax.xlane.f32.xlu0 %v5964
  %v6013 = vpop.xlane.xlu0 %6012
  %6014 = vmax.xlane.f32.xlu0 %v5969
  %v6015 = vpop.xlane.xlu0 %6014
  %6016 = vmax.xlane.f32.xlu0 %v5974
  %v6017 = vpop.xlane.xlu0 %6016
  %6018 = vmax.xlane.f32.xlu0 %v5979
  %v6019 = vpop.xlane.xlu0 %6018
  %6020 = vmax.xlane.f32.xlu0 %v5984
  %v6021 = vpop.xlane.xlu0 %6020
  %6022 = vmax.xlane.f32.xlu0 %v5989
  %v6023 = vpop.xlane.xlu0 %6022
  %v6024 = vsub.f32 %v5914, %v5993
  %v6025 = vsub.f32 %v5919, %v5995
  %v6026 = vsub.f32 %v5924, %v5997
  %v6027 = vsub.f32 %v5929, %v5999
  %v6028 = vsub.f32 %v5934, %v6001
  %v6029 = vsub.f32 %v5939, %v6003
  %v6030 = vsub.f32 %v5944, %v6005
  %v6031 = vsub.f32 %v5949, %v6007
  %v6032 = vsub.f32 %v5954, %v6009
  %v6033 = vsub.f32 %v5959, %v6011
  %v6034 = vsub.f32 %v5964, %v6013
  %v6035 = vsub.f32 %v5969, %v6015
  %v6036 = vsub.f32 %v5974, %v6017
  %v6037 = vsub.f32 %v5979, %v6019
  %v6038 = vsub.f32 %v5984, %v6021
  %v6039 = vsub.f32 %v5989, %v6023
  %v6040 = vmul.f32 %v6024, 1.442695
  %v6041 = vpow.pop %v6040
  %v6042 = vmul.f32 %v6025, 1.442695
  %v6043 = vpow.pop %v6042
  %v6044 = vmul.f32 %v6026, 1.442695
  %v6045 = vpow.pop %v6044
  %v6046 = vmul.f32 %v6027, 1.442695
  %v6047 = vpow.pop %v6046
  %v6048 = vmul.f32 %v6028, 1.442695
  %v6049 = vpow.pop %v6048
  %v6050 = vmul.f32 %v6029, 1.442695
  %v6051 = vpow.pop %v6050
  %v6052 = vmul.f32 %v6030, 1.442695
  %v6053 = vpow.pop %v6052
  %v6054 = vmul.f32 %v6031, 1.442695
  %v6055 = vpow.pop %v6054
  %v6056 = vmul.f32 %v6032, 1.442695
  %v6057 = vpow.pop %v6056
  %v6058 = vmul.f32 %v6033, 1.442695
  %v6059 = vpow.pop %v6058
  %v6060 = vmul.f32 %v6034, 1.442695
  %v6061 = vpow.pop %v6060
  %v6062 = vmul.f32 %v6035, 1.442695
  %v6063 = vpow.pop %v6062
  %v6064 = vmul.f32 %v6036, 1.442695
  %v6065 = vpow.pop %v6064
  %v6066 = vmul.f32 %v6037, 1.442695
  %v6067 = vpow.pop %v6066
  %v6068 = vmul.f32 %v6038, 1.442695
  %v6069 = vpow.pop %v6068
  %v6070 = vmul.f32 %v6039, 1.442695
  %v6071 = vpow.pop %v6070
  %6072 = vadd.xlane.f32.xlu0 %v6041
  %v6073 = vpop.xlane.xlu0 %6072
  %6074 = vadd.xlane.f32.xlu0 %v6043
  %v6075 = vpop.xlane.xlu0 %6074
  %6076 = vadd.xlane.f32.xlu0 %v6045
  %v6077 = vpop.xlane.xlu0 %6076
  %6078 = vadd.xlane.f32.xlu0 %v6047
  %v6079 = vpop.xlane.xlu0 %6078
  %6080 = vadd.xlane.f32.xlu0 %v6049
  %v6081 = vpop.xlane.xlu0 %6080
  %6082 = vadd.xlane.f32.xlu0 %v6051
  %v6083 = vpop.xlane.xlu0 %6082
  %6084 = vadd.xlane.f32.xlu0 %v6053
  %v6085 = vpop.xlane.xlu0 %6084
  %6086 = vadd.xlane.f32.xlu0 %v6055
  %v6087 = vpop.xlane.xlu0 %6086
  %6088 = vadd.xlane.f32.xlu0 %v6057
  %v6089 = vpop.xlane.xlu0 %6088
  %6090 = vadd.xlane.f32.xlu0 %v6059
  %v6091 = vpop.xlane.xlu0 %6090
  %6092 = vadd.xlane.f32.xlu0 %v6061
  %v6093 = vpop.xlane.xlu0 %6092
  %6094 = vadd.xlane.f32.xlu0 %v6063
  %v6095 = vpop.xlane.xlu0 %6094
  %6096 = vadd.xlane.f32.xlu0 %v6065
  %v6097 = vpop.xlane.xlu0 %6096
  %6098 = vadd.xlane.f32.xlu0 %v6067
  %v6099 = vpop.xlane.xlu0 %6098
  %6100 = vadd.xlane.f32.xlu0 %v6069
  %v6101 = vpop.xlane.xlu0 %6100
  %6102 = vadd.xlane.f32.xlu0 %v6071
  %v6103 = vpop.xlane.xlu0 %6102
  %v6104 = vrcp.pop %v6073
  %v6105 = vmul.f32 %v6041, %v6104
  %v6106 = vrcp.pop %v6075
  %v6107 = vmul.f32 %v6043, %v6106
  %v6108 = vrcp.pop %v6077
  %v6109 = vmul.f32 %v6045, %v6108
  %v6110 = vrcp.pop %v6079
  %v6111 = vmul.f32 %v6047, %v6110
  %v6112 = vrcp.pop %v6081
  %v6113 = vmul.f32 %v6049, %v6112
  %v6114 = vrcp.pop %v6083
  %v6115 = vmul.f32 %v6051, %v6114
  %v6116 = vrcp.pop %v6085
  %v6117 = vmul.f32 %v6053, %v6116
  %v6118 = vrcp.pop %v6087
  %v6119 = vmul.f32 %v6055, %v6118
  %v6120 = vrcp.pop %v6089
  %v6121 = vmul.f32 %v6057, %v6120
  %v6122 = vrcp.pop %v6091
  %v6123 = vmul.f32 %v6059, %v6122
  %v6124 = vrcp.pop %v6093
  %v6125 = vmul.f32 %v6061, %v6124
  %v6126 = vrcp.pop %v6095
  %v6127 = vmul.f32 %v6063, %v6126
  %v6128 = vrcp.pop %v6097
  %v6129 = vmul.f32 %v6065, %v6128
  %v6130 = vrcp.pop %v6099
  %v6131 = vmul.f32 %v6067, %v6130
  %v6132 = vrcp.pop %v6101
  %v6133 = vmul.f32 %v6069, %v6132
  %v6134 = vrcp.pop %v6103
  %v6135 = vmul.f32 %v6071, %v6134
  %6136 = vrot.lane.b32.xlu0 %v4293, 48
  %v6137 = vpop.permute.xlu0 %6136
  %6138 = vrot.lane.b32.xlu0 %v4298, 48
  %v6139 = vpop.permute.xlu0 %6138
  %6140 = vrot.lane.b32.xlu0 %v4303, 48
  %v6141 = vpop.permute.xlu0 %6140
  %6142 = vrot.lane.b32.xlu0 %v4308, 48
  %v6143 = vpop.permute.xlu0 %6142
  %6144 = vrot.lane.b32.xlu0 %v4313, 48
  %v6145 = vpop.permute.xlu0 %6144
  %6146 = vrot.lane.b32.xlu0 %v4318, 48
  %v6147 = vpop.permute.xlu0 %6146
  %6148 = vrot.lane.b32.xlu0 %v4323, 48
  %v6149 = vpop.permute.xlu0 %6148
  %6150 = vrot.lane.b32.xlu0 %v4328, 48
  %v6151 = vpop.permute.xlu0 %6150
  %6152 = vrot.lane.b32.xlu0 %v4333, 48
  %v6153 = vpop.permute.xlu0 %6152
  %6154 = vrot.lane.b32.xlu0 %v4338, 48
  %v6155 = vpop.permute.xlu0 %6154
  %6156 = vrot.lane.b32.xlu0 %v4343, 48
  %v6157 = vpop.permute.xlu0 %6156
  %6158 = vrot.lane.b32.xlu0 %v4348, 48
  %v6159 = vpop.permute.xlu0 %6158
  %6160 = vrot.lane.b32.xlu0 %v4353, 48
  %v6161 = vpop.permute.xlu0 %6160
  %6162 = vrot.lane.b32.xlu0 %v4358, 48
  %v6163 = vpop.permute.xlu0 %6162
  %6164 = vrot.lane.b32.xlu0 %v4363, 48
  %v6165 = vpop.permute.xlu0 %6164
  %6166 = vrot.lane.b32.xlu0 %v4368, 48
  %v6167 = vpop.permute.xlu0 %6166
  %6184 = vmatprep.subr.mxu0 0.0
  %6185 = vmatpush1.msra.mxu0 %v6167
  %6186 = vmatprep.subr.mxu0 0.0
  %6187 = vmatpush1.msra.mxu0 %v6165
  %6188 = vmatprep.subr.mxu0 0.0
  %6189 = vmatpush1.msra.mxu0 %v6163
  %6190 = vmatprep.subr.mxu0 0.0
  %6191 = vmatpush1.msra.mxu0 %v6161
  %6192 = vmatprep.subr.mxu0 0.0
  %6193 = vmatpush1.msra.mxu0 %v6159
  %6194 = vmatprep.subr.mxu0 0.0
  %6195 = vmatpush1.msra.mxu0 %v6157
  %6196 = vmatprep.subr.mxu0 0.0
  %6197 = vmatpush1.msra.mxu0 %v6155
  %6198 = vmatprep.subr.mxu0 0.0
  %6199 = vmatpush1.msra.mxu0 %v6153
  %6200 = vmatprep.subr.mxu0 0.0
  %6201 = vmatpush1.msra.mxu0 %v6151
  %6202 = vmatprep.subr.mxu0 0.0
  %6203 = vmatpush1.msra.mxu0 %v6149
  %6204 = vmatprep.subr.mxu0 0.0
  %6205 = vmatpush1.msra.mxu0 %v6147
  %6206 = vmatprep.subr.mxu0 0.0
  %6207 = vmatpush1.msra.mxu0 %v6145
  %6208 = vmatprep.subr.mxu0 0.0
  %6209 = vmatpush1.msra.mxu0 %v6143
  %6210 = vmatprep.subr.mxu0 0.0
  %6211 = vmatpush1.msra.mxu0 %v6141
  %6212 = vmatprep.subr.mxu0 0.0
  %6213 = vmatpush1.msra.mxu0 %v6139
  %6214 = vmatprep.subr.mxu0 0.0
  %6215 = vmatpush1.msra.mxu0 %v6137
  %6216 = vmatprep.subr.mxu0 0.0
  %6217 = vmatpush2.msra.mxu0 0.0
  %6218 = vmatprep.subr.mxu0 0.0
  %6219 = vmatpush2.msra.mxu0 0.0
  %6220 = vmatprep.subr.mxu0 0.0
  %6221 = vmatpush2.msra.mxu0 0.0
  %6222 = vmatprep.subr.mxu0 0.0
  %6223 = vmatpush2.msra.mxu0 0.0
  %6224 = vmatprep.subr.mxu0 0.0
  %6225 = vmatpush2.msra.mxu0 0.0
  %6226 = vmatprep.subr.mxu0 0.0
  %6227 = vmatpush2.msra.mxu0 0.0
  %6228 = vmatprep.subr.mxu0 0.0
  %6229 = vmatpush2.msra.mxu0 0.0
  %6230 = vmatprep.subr.mxu0 0.0
  %6231 = vmatpush2.msra.mxu0 0.0
  %6232 = vmatprep.subr.mxu0 0.0
  %6233 = vmatpush2.msra.mxu0 0.0
  %6234 = vmatprep.subr.mxu0 0.0
  %6235 = vmatpush2.msra.mxu0 0.0
  %6236 = vmatprep.subr.mxu0 0.0
  %6237 = vmatpush2.msra.mxu0 0.0
  %6238 = vmatprep.subr.mxu0 0.0
  %6239 = vmatpush2.msra.mxu0 0.0
  %6240 = vmatprep.subr.mxu0 0.0
  %6241 = vmatpush2.msra.mxu0 0.0
  %6242 = vmatprep.subr.mxu0 0.0
  %6243 = vmatpush2.msra.mxu0 0.0
  %6244 = vmatprep.subr.mxu0 0.0
  %6245 = vmatpush2.msra.mxu0 0.0
  %6246 = vmatprep.subr.mxu0 0.0
  %6247 = vmatpush2.msra.mxu0 0.0
  %6248 = vmatprep.mubr.f32.mxu0 0.0
  %6249 = vmatmul.mubr.f32.gmra.mxu0 %v6105
  %v6250 = vpop.f32.mrf.mxu0
  %v6251 = vadd.f32 0.0, %v6250
  %v6252 = vpop.f32.mrf.mxu0
  %6253 = vmatprep.mubr.f32.mxu0 0.0
  %6254 = vmatmul.mubr.f32.gmra.mxu0 %v6107
  %v6255 = vpop.f32.mrf.mxu0
  %v6256 = vadd.f32 0.0, %v6255
  %v6257 = vpop.f32.mrf.mxu0
  %6258 = vmatprep.mubr.f32.mxu0 0.0
  %6259 = vmatmul.mubr.f32.gmra.mxu0 %v6109
  %v6260 = vpop.f32.mrf.mxu0
  %v6261 = vadd.f32 0.0, %v6260
  %v6262 = vpop.f32.mrf.mxu0
  %6263 = vmatprep.mubr.f32.mxu0 0.0
  %6264 = vmatmul.mubr.f32.gmra.mxu0 %v6111
  %v6265 = vpop.f32.mrf.mxu0
  %v6266 = vadd.f32 0.0, %v6265
  %v6267 = vpop.f32.mrf.mxu0
  %6268 = vmatprep.mubr.f32.mxu0 0.0
  %6269 = vmatmul.mubr.f32.gmra.mxu0 %v6113
  %v6270 = vpop.f32.mrf.mxu0
  %v6271 = vadd.f32 0.0, %v6270
  %v6272 = vpop.f32.mrf.mxu0
  %6273 = vmatprep.mubr.f32.mxu0 0.0
  %6274 = vmatmul.mubr.f32.gmra.mxu0 %v6115
  %v6275 = vpop.f32.mrf.mxu0
  %v6276 = vadd.f32 0.0, %v6275
  %v6277 = vpop.f32.mrf.mxu0
  %6278 = vmatprep.mubr.f32.mxu0 0.0
  %6279 = vmatmul.mubr.f32.gmra.mxu0 %v6117
  %v6280 = vpop.f32.mrf.mxu0
  %v6281 = vadd.f32 0.0, %v6280
  %v6282 = vpop.f32.mrf.mxu0
  %6283 = vmatprep.mubr.f32.mxu0 0.0
  %6284 = vmatmul.mubr.f32.gmra.mxu0 %v6119
  %v6285 = vpop.f32.mrf.mxu0
  %v6286 = vadd.f32 0.0, %v6285
  %v6287 = vpop.f32.mrf.mxu0
  %6288 = vmatprep.mubr.f32.mxu0 0.0
  %6289 = vmatmul.mubr.f32.gmra.mxu0 %v6121
  %v6290 = vpop.f32.mrf.mxu0
  %v6291 = vadd.f32 0.0, %v6290
  %v6292 = vpop.f32.mrf.mxu0
  %6293 = vmatprep.mubr.f32.mxu0 0.0
  %6294 = vmatmul.mubr.f32.gmra.mxu0 %v6123
  %v6295 = vpop.f32.mrf.mxu0
  %v6296 = vadd.f32 0.0, %v6295
  %v6297 = vpop.f32.mrf.mxu0
  %6298 = vmatprep.mubr.f32.mxu0 0.0
  %6299 = vmatmul.mubr.f32.gmra.mxu0 %v6125
  %v6300 = vpop.f32.mrf.mxu0
  %v6301 = vadd.f32 0.0, %v6300
  %v6302 = vpop.f32.mrf.mxu0
  %6303 = vmatprep.mubr.f32.mxu0 0.0
  %6304 = vmatmul.mubr.f32.gmra.mxu0 %v6127
  %v6305 = vpop.f32.mrf.mxu0
  %v6306 = vadd.f32 0.0, %v6305
  %v6307 = vpop.f32.mrf.mxu0
  %6308 = vmatprep.mubr.f32.mxu0 0.0
  %6309 = vmatmul.mubr.f32.gmra.mxu0 %v6129
  %v6310 = vpop.f32.mrf.mxu0
  %v6311 = vadd.f32 0.0, %v6310
  %v6312 = vpop.f32.mrf.mxu0
  %6313 = vmatprep.mubr.f32.mxu0 0.0
  %6314 = vmatmul.mubr.f32.gmra.mxu0 %v6131
  %v6315 = vpop.f32.mrf.mxu0
  %v6316 = vadd.f32 0.0, %v6315
  %v6317 = vpop.f32.mrf.mxu0
  %6318 = vmatprep.mubr.f32.mxu0 0.0
  %6319 = vmatmul.mubr.f32.gmra.mxu0 %v6133
  %v6320 = vpop.f32.mrf.mxu0
  %v6321 = vadd.f32 0.0, %v6320
  %v6322 = vpop.f32.mrf.mxu0
  %6323 = vmatprep.mubr.f32.mxu0 0.0
  %6324 = vmatmul.mubr.f32.gmra.mxu0 %v6135
  %v6325 = vpop.f32.mrf.mxu0
  %v6326 = vadd.f32 0.0, %v6325
  %v6327 = vpop.f32.mrf.mxu0
  %6328 = vdwg.mxu0
  %6345 = vrot.lane.b32.xlu0 %v6251, 16
  %v6346 = vpop.permute.xlu0 %6345
  %6347 = vrot.lane.b32.xlu0 %v6256, 16
  %v6348 = vpop.permute.xlu0 %6347
  %6349 = vrot.lane.b32.xlu0 %v6261, 16
  %v6350 = vpop.permute.xlu0 %6349
  %6351 = vrot.lane.b32.xlu0 %v6266, 16
  %v6352 = vpop.permute.xlu0 %6351
  %6353 = vrot.lane.b32.xlu0 %v6271, 16
  %v6354 = vpop.permute.xlu0 %6353
  %6355 = vrot.lane.b32.xlu0 %v6276, 16
  %v6356 = vpop.permute.xlu0 %6355
  %6357 = vrot.lane.b32.xlu0 %v6281, 16
  %v6358 = vpop.permute.xlu0 %6357
  %6359 = vrot.lane.b32.xlu0 %v6286, 16
  %v6360 = vpop.permute.xlu0 %6359
  %6361 = vrot.lane.b32.xlu0 %v6291, 16
  %v6362 = vpop.permute.xlu0 %6361
  %6363 = vrot.lane.b32.xlu0 %v6296, 16
  %v6364 = vpop.permute.xlu0 %6363
  %6365 = vrot.lane.b32.xlu0 %v6301, 16
  %v6366 = vpop.permute.xlu0 %6365
  %6367 = vrot.lane.b32.xlu0 %v6306, 16
  %v6368 = vpop.permute.xlu0 %6367
  %6369 = vrot.lane.b32.xlu0 %v6311, 16
  %v6370 = vpop.permute.xlu0 %6369
  %6371 = vrot.lane.b32.xlu0 %v6316, 16
  %v6372 = vpop.permute.xlu0 %6371
  %6373 = vrot.lane.b32.xlu0 %v6321, 16
  %v6374 = vpop.permute.xlu0 %6373
  %6375 = vrot.lane.b32.xlu0 %v6326, 16
  %v6376 = vpop.permute.xlu0 %6375
  %6393 = vst.msk [vmem:[#allocation2] sm:$0xff] %vm2292, %v6346
  %6394 = vst.msk [vmem:[#allocation2 + $0x8] sm:$0xff] %vm2292, %v6348
  %6395 = vst.msk [vmem:[#allocation2 + $0x10] sm:$0xff] %vm2292, %v6350
  %6396 = vst.msk [vmem:[#allocation2 + $0x18] sm:$0xff] %vm2292, %v6352
  %6397 = vst.msk [vmem:[#allocation2 + $0x20] sm:$0xff] %vm2292, %v6354
  %6398 = vst.msk [vmem:[#allocation2 + $0x28] sm:$0xff] %vm2292, %v6356
  %6399 = vst.msk [vmem:[#allocation2 + $0x30] sm:$0xff] %vm2292, %v6358
  %6400 = vst.msk [vmem:[#allocation2 + $0x38] sm:$0xff] %vm2292, %v6360
  %6401 = vst.msk [vmem:[#allocation2 + $0x40] sm:$0xff] %vm2292, %v6362
  %6402 = vst.msk [vmem:[#allocation2 + $0x48] sm:$0xff] %vm2292, %v6364
  %6403 = vst.msk [vmem:[#allocation2 + $0x50] sm:$0xff] %vm2292, %v6366
  %6404 = vst.msk [vmem:[#allocation2 + $0x58] sm:$0xff] %vm2292, %v6368
  %6405 = vst.msk [vmem:[#allocation2 + $0x60] sm:$0xff] %vm2292, %v6370
  %6406 = vst.msk [vmem:[#allocation2 + $0x68] sm:$0xff] %vm2292, %v6372
  %6407 = vst.msk [vmem:[#allocation2 + $0x70] sm:$0xff] %vm2292, %v6374
  %6408 = vst.msk [vmem:[#allocation2 + $0x78] sm:$0xff] %vm2292, %v6376
  %v6409 = vld [vmem:[%s1] sm:$0xff]
  %v6410 = vld [vmem:[%s1 + $0x8] sm:$0xff]
  %v6411 = vld [vmem:[%s1 + $0x10] sm:$0xff]
  %v6412 = vld [vmem:[%s1 + $0x18] sm:$0xff]
  %v6413 = vld [vmem:[%s1 + $0x20] sm:$0xff]
  %v6414 = vld [vmem:[%s1 + $0x28] sm:$0xff]
  %v6415 = vld [vmem:[%s1 + $0x30] sm:$0xff]
  %v6416 = vld [vmem:[%s1 + $0x38] sm:$0xff]
  %v6417 = vld [vmem:[%s1 + $0x40] sm:$0xff]
  %v6418 = vld [vmem:[%s1 + $0x48] sm:$0xff]
  %v6419 = vld [vmem:[%s1 + $0x50] sm:$0xff]
  %v6420 = vld [vmem:[%s1 + $0x58] sm:$0xff]
  %v6421 = vld [vmem:[%s1 + $0x60] sm:$0xff]
  %v6422 = vld [vmem:[%s1 + $0x68] sm:$0xff]
  %v6423 = vld [vmem:[%s1 + $0x70] sm:$0xff]
  %v6424 = vld [vmem:[%s1 + $0x78] sm:$0xff]
  %6425 = vrot.lane.b32.xlu0 %v4293, 104
  %v6426 = vpop.permute.xlu0 %6425
  %6427 = vrot.lane.b32.xlu0 %v4298, 104
  %v6428 = vpop.permute.xlu0 %6427
  %6429 = vrot.lane.b32.xlu0 %v4303, 104
  %v6430 = vpop.permute.xlu0 %6429
  %6431 = vrot.lane.b32.xlu0 %v4308, 104
  %v6432 = vpop.permute.xlu0 %6431
  %6433 = vrot.lane.b32.xlu0 %v4313, 104
  %v6434 = vpop.permute.xlu0 %6433
  %6435 = vrot.lane.b32.xlu0 %v4318, 104
  %v6436 = vpop.permute.xlu0 %6435
  %6437 = vrot.lane.b32.xlu0 %v4323, 104
  %v6438 = vpop.permute.xlu0 %6437
  %6439 = vrot.lane.b32.xlu0 %v4328, 104
  %v6440 = vpop.permute.xlu0 %6439
  %6441 = vrot.lane.b32.xlu0 %v4333, 104
  %v6442 = vpop.permute.xlu0 %6441
  %6443 = vrot.lane.b32.xlu0 %v4338, 104
  %v6444 = vpop.permute.xlu0 %6443
  %6445 = vrot.lane.b32.xlu0 %v4343, 104
  %v6446 = vpop.permute.xlu0 %6445
  %6447 = vrot.lane.b32.xlu0 %v4348, 104
  %v6448 = vpop.permute.xlu0 %6447
  %6449 = vrot.lane.b32.xlu0 %v4353, 104
  %v6450 = vpop.permute.xlu0 %6449
  %6451 = vrot.lane.b32.xlu0 %v4358, 104
  %v6452 = vpop.permute.xlu0 %6451
  %6453 = vrot.lane.b32.xlu0 %v4363, 104
  %v6454 = vpop.permute.xlu0 %6453
  %6455 = vrot.lane.b32.xlu0 %v4368, 104
  %v6456 = vpop.permute.xlu0 %6455
  %6457 = vrot.lane.b32.xlu0 %v4293, 72
  %v6458 = vpop.permute.xlu0 %6457
  %6459 = vrot.lane.b32.xlu0 %v4298, 72
  %v6460 = vpop.permute.xlu0 %6459
  %6461 = vrot.lane.b32.xlu0 %v4303, 72
  %v6462 = vpop.permute.xlu0 %6461
  %6463 = vrot.lane.b32.xlu0 %v4308, 72
  %v6464 = vpop.permute.xlu0 %6463
  %6465 = vrot.lane.b32.xlu0 %v4313, 72
  %v6466 = vpop.permute.xlu0 %6465
  %6467 = vrot.lane.b32.xlu0 %v4318, 72
  %v6468 = vpop.permute.xlu0 %6467
  %6469 = vrot.lane.b32.xlu0 %v4323, 72
  %v6470 = vpop.permute.xlu0 %6469
  %6471 = vrot.lane.b32.xlu0 %v4328, 72
  %v6472 = vpop.permute.xlu0 %6471
  %6473 = vrot.lane.b32.xlu0 %v4333, 72
  %v6474 = vpop.permute.xlu0 %6473
  %6475 = vrot.lane.b32.xlu0 %v4338, 72
  %v6476 = vpop.permute.xlu0 %6475
  %6477 = vrot.lane.b32.xlu0 %v4343, 72
  %v6478 = vpop.permute.xlu0 %6477
  %6479 = vrot.lane.b32.xlu0 %v4348, 72
  %v6480 = vpop.permute.xlu0 %6479
  %6481 = vrot.lane.b32.xlu0 %v4353, 72
  %v6482 = vpop.permute.xlu0 %6481
  %6483 = vrot.lane.b32.xlu0 %v4358, 72
  %v6484 = vpop.permute.xlu0 %6483
  %6485 = vrot.lane.b32.xlu0 %v4363, 72
  %v6486 = vpop.permute.xlu0 %6485
  %6487 = vrot.lane.b32.xlu0 %v4368, 72
  %v6488 = vpop.permute.xlu0 %6487
  %v6489 = vsel %vm332, %v6426, 0
  %v6491 = vsel %vm332, %v6428, 0
  %v6493 = vsel %vm332, %v6430, 0
  %v6495 = vsel %vm332, %v6432, 0
  %v6497 = vsel %vm332, %v6434, 0
  %v6499 = vsel %vm332, %v6436, 0
  %v6501 = vsel %vm332, %v6438, 0
  %v6503 = vsel %vm332, %v6440, 0
  %v6505 = vsel %vm332, %v6442, 0
  %v6507 = vsel %vm332, %v6444, 0
  %v6509 = vsel %vm332, %v6446, 0
  %v6511 = vsel %vm332, %v6448, 0
  %v6513 = vsel %vm332, %v6450, 0
  %v6515 = vsel %vm332, %v6452, 0
  %v6517 = vsel %vm332, %v6454, 0
  %v6519 = vsel %vm332, %v6456, 0
  %v6521 = vsel %vm332, %v6458, 0
  %v6523 = vsel %vm332, %v6460, 0
  %v6525 = vsel %vm332, %v6462, 0
  %v6527 = vsel %vm332, %v6464, 0
  %v6529 = vsel %vm332, %v6466, 0
  %v6531 = vsel %vm332, %v6468, 0
  %v6533 = vsel %vm332, %v6470, 0
  %v6535 = vsel %vm332, %v6472, 0
  %v6537 = vsel %vm332, %v6474, 0
  %v6539 = vsel %vm332, %v6476, 0
  %v6541 = vsel %vm332, %v6478, 0
  %v6543 = vsel %vm332, %v6480, 0
  %v6545 = vsel %vm332, %v6482, 0
  %v6547 = vsel %vm332, %v6484, 0
  %v6549 = vsel %vm332, %v6486, 0
  %v6551 = vsel %vm332, %v6488, 0
  %6553 = vmatprep.subr.mxu0 0.0
  %6554 = vmatpush1.xpose.msra.mxu0 %v6551
  %6555 = vmatprep.subr.mxu0 0.0
  %6556 = vmatpush1.xpose.msra.mxu0 %v6549
  %6557 = vmatprep.subr.mxu0 0.0
  %6558 = vmatpush1.xpose.msra.mxu0 %v6547
  %6559 = vmatprep.subr.mxu0 0.0
  %6560 = vmatpush1.xpose.msra.mxu0 %v6545
  %6561 = vmatprep.subr.mxu0 0.0
  %6562 = vmatpush1.xpose.msra.mxu0 %v6543
  %6563 = vmatprep.subr.mxu0 0.0
  %6564 = vmatpush1.xpose.msra.mxu0 %v6541
  %6565 = vmatprep.subr.mxu0 0.0
  %6566 = vmatpush1.xpose.msra.mxu0 %v6539
  %6567 = vmatprep.subr.mxu0 0.0
  %6568 = vmatpush1.xpose.msra.mxu0 %v6537
  %6569 = vmatprep.subr.mxu0 0.0
  %6570 = vmatpush1.xpose.msra.mxu0 %v6535
  %6571 = vmatprep.subr.mxu0 0.0
  %6572 = vmatpush1.xpose.msra.mxu0 %v6533
  %6573 = vmatprep.subr.mxu0 0.0
  %6574 = vmatpush1.xpose.msra.mxu0 %v6531
  %6575 = vmatprep.subr.mxu0 0.0
  %6576 = vmatpush1.xpose.msra.mxu0 %v6529
  %6577 = vmatprep.subr.mxu0 0.0
  %6578 = vmatpush1.xpose.msra.mxu0 %v6527
  %6579 = vmatprep.subr.mxu0 0.0
  %6580 = vmatpush1.xpose.msra.mxu0 %v6525
  %6581 = vmatprep.subr.mxu0 0.0
  %6582 = vmatpush1.xpose.msra.mxu0 %v6523
  %6583 = vmatprep.subr.mxu0 0.0
  %6584 = vmatpush1.xpose.msra.mxu0 %v6521
  %6585 = vmatprep.subr.mxu0 0.0
  %6586 = vmatpush2.xpose.msra.mxu0 0.0
  %6587 = vmatprep.subr.mxu0 0.0
  %6588 = vmatpush2.xpose.msra.mxu0 0.0
  %6589 = vmatprep.subr.mxu0 0.0
  %6590 = vmatpush2.xpose.msra.mxu0 0.0
  %6591 = vmatprep.subr.mxu0 0.0
  %6592 = vmatpush2.xpose.msra.mxu0 0.0
  %6593 = vmatprep.subr.mxu0 0.0
  %6594 = vmatpush2.xpose.msra.mxu0 0.0
  %6595 = vmatprep.subr.mxu0 0.0
  %6596 = vmatpush2.xpose.msra.mxu0 0.0
  %6597 = vmatprep.subr.mxu0 0.0
  %6598 = vmatpush2.xpose.msra.mxu0 0.0
  %6599 = vmatprep.subr.mxu0 0.0
  %6600 = vmatpush2.xpose.msra.mxu0 0.0
  %6601 = vmatprep.subr.mxu0 0.0
  %6602 = vmatpush2.xpose.msra.mxu0 0.0
  %6603 = vmatprep.subr.mxu0 0.0
  %6604 = vmatpush2.xpose.msra.mxu0 0.0
  %6605 = vmatprep.subr.mxu0 0.0
  %6606 = vmatpush2.xpose.msra.mxu0 0.0
  %6607 = vmatprep.subr.mxu0 0.0
  %6608 = vmatpush2.xpose.msra.mxu0 0.0
  %6609 = vmatprep.subr.mxu0 0.0
  %6610 = vmatpush2.xpose.msra.mxu0 0.0
  %6611 = vmatprep.subr.mxu0 0.0
  %6612 = vmatpush2.xpose.msra.mxu0 0.0
  %6613 = vmatprep.subr.mxu0 0.0
  %6614 = vmatpush2.xpose.msra.mxu0 0.0
  %6615 = vmatprep.subr.mxu0 0.0
  %6616 = vmatpush2.xpose.msra.mxu0 0.0
  %6617 = vmatprep.mubr.f32.mxu0 0.0
  %6618 = vmatmul.mubr.f32.gmra.mxu0 %v6489
  %v6619 = vpop.f32.mrf.mxu0
  %v6620 = vadd.f32 %v6409, %v6619
  %v6621 = vpop.f32.mrf.mxu0
  %6622 = vmatprep.mubr.f32.mxu0 0.0
  %6623 = vmatmul.mubr.f32.gmra.mxu0 %v6491
  %v6624 = vpop.f32.mrf.mxu0
  %v6625 = vadd.f32 %v6410, %v6624
  %v6626 = vpop.f32.mrf.mxu0
  %6627 = vmatprep.mubr.f32.mxu0 0.0
  %6628 = vmatmul.mubr.f32.gmra.mxu0 %v6493
  %v6629 = vpop.f32.mrf.mxu0
  %v6630 = vadd.f32 %v6411, %v6629
  %v6631 = vpop.f32.mrf.mxu0
  %6632 = vmatprep.mubr.f32.mxu0 0.0
  %6633 = vmatmul.mubr.f32.gmra.mxu0 %v6495
  %v6634 = vpop.f32.mrf.mxu0
  %v6635 = vadd.f32 %v6412, %v6634
  %v6636 = vpop.f32.mrf.mxu0
  %6637 = vmatprep.mubr.f32.mxu0 0.0
  %6638 = vmatmul.mubr.f32.gmra.mxu0 %v6497
  %v6639 = vpop.f32.mrf.mxu0
  %v6640 = vadd.f32 %v6413, %v6639
  %v6641 = vpop.f32.mrf.mxu0
  %6642 = vmatprep.mubr.f32.mxu0 0.0
  %6643 = vmatmul.mubr.f32.gmra.mxu0 %v6499
  %v6644 = vpop.f32.mrf.mxu0
  %v6645 = vadd.f32 %v6414, %v6644
  %v6646 = vpop.f32.mrf.mxu0
  %6647 = vmatprep.mubr.f32.mxu0 0.0
  %6648 = vmatmul.mubr.f32.gmra.mxu0 %v6501
  %v6649 = vpop.f32.mrf.mxu0
  %v6650 = vadd.f32 %v6415, %v6649
  %v6651 = vpop.f32.mrf.mxu0
  %6652 = vmatprep.mubr.f32.mxu0 0.0
  %6653 = vmatmul.mubr.f32.gmra.mxu0 %v6503
  %v6654 = vpop.f32.mrf.mxu0
  %v6655 = vadd.f32 %v6416, %v6654
  %v6656 = vpop.f32.mrf.mxu0
  %6657 = vmatprep.mubr.f32.mxu0 0.0
  %6658 = vmatmul.mubr.f32.gmra.mxu0 %v6505
  %v6659 = vpop.f32.mrf.mxu0
  %v6660 = vadd.f32 %v6417, %v6659
  %v6661 = vpop.f32.mrf.mxu0
  %6662 = vmatprep.mubr.f32.mxu0 0.0
  %6663 = vmatmul.mubr.f32.gmra.mxu0 %v6507
  %v6664 = vpop.f32.mrf.mxu0
  %v6665 = vadd.f32 %v6418, %v6664
  %v6666 = vpop.f32.mrf.mxu0
  %6667 = vmatprep.mubr.f32.mxu0 0.0
  %6668 = vmatmul.mubr.f32.gmra.mxu0 %v6509
  %v6669 = vpop.f32.mrf.mxu0
  %v6670 = vadd.f32 %v6419, %v6669
  %v6671 = vpop.f32.mrf.mxu0
  %6672 = vmatprep.mubr.f32.mxu0 0.0
  %6673 = vmatmul.mubr.f32.gmra.mxu0 %v6511
  %v6674 = vpop.f32.mrf.mxu0
  %v6675 = vadd.f32 %v6420, %v6674
  %v6676 = vpop.f32.mrf.mxu0
  %6677 = vmatprep.mubr.f32.mxu0 0.0
  %6678 = vmatmul.mubr.f32.gmra.mxu0 %v6513
  %v6679 = vpop.f32.mrf.mxu0
  %v6680 = vadd.f32 %v6421, %v6679
  %v6681 = vpop.f32.mrf.mxu0
  %6682 = vmatprep.mubr.f32.mxu0 0.0
  %6683 = vmatmul.mubr.f32.gmra.mxu0 %v6515
  %v6684 = vpop.f32.mrf.mxu0
  %v6685 = vadd.f32 %v6422, %v6684
  %v6686 = vpop.f32.mrf.mxu0
  %6687 = vmatprep.mubr.f32.mxu0 0.0
  %6688 = vmatmul.mubr.f32.gmra.mxu0 %v6517
  %v6689 = vpop.f32.mrf.mxu0
  %v6690 = vadd.f32 %v6423, %v6689
  %v6691 = vpop.f32.mrf.mxu0
  %6692 = vmatprep.mubr.f32.mxu0 0.0
  %6693 = vmatmul.mubr.f32.gmra.mxu0 %v6519
  %v6694 = vpop.f32.mrf.mxu0
  %v6695 = vadd.f32 %v6424, %v6694
  %v6696 = vpop.f32.mrf.mxu0
  %6697 = vdwg.mxu0
  %6698 = vmax.xlane.f32.xlu0 %v6620
  %v6699 = vpop.xlane.xlu0 %6698
  %6700 = vmax.xlane.f32.xlu0 %v6625
  %v6701 = vpop.xlane.xlu0 %6700
  %6702 = vmax.xlane.f32.xlu0 %v6630
  %v6703 = vpop.xlane.xlu0 %6702
  %6704 = vmax.xlane.f32.xlu0 %v6635
  %v6705 = vpop.xlane.xlu0 %6704
  %6706 = vmax.xlane.f32.xlu0 %v6640
  %v6707 = vpop.xlane.xlu0 %6706
  %6708 = vmax.xlane.f32.xlu0 %v6645
  %v6709 = vpop.xlane.xlu0 %6708
  %6710 = vmax.xlane.f32.xlu0 %v6650
  %v6711 = vpop.xlane.xlu0 %6710
  %6712 = vmax.xlane.f32.xlu0 %v6655
  %v6713 = vpop.xlane.xlu0 %6712
  %6714 = vmax.xlane.f32.xlu0 %v6660
  %v6715 = vpop.xlane.xlu0 %6714
  %6716 = vmax.xlane.f32.xlu0 %v6665
  %v6717 = vpop.xlane.xlu0 %6716
  %6718 = vmax.xlane.f32.xlu0 %v6670
  %v6719 = vpop.xlane.xlu0 %6718
  %6720 = vmax.xlane.f32.xlu0 %v6675
  %v6721 = vpop.xlane.xlu0 %6720
  %6722 = vmax.xlane.f32.xlu0 %v6680
  %v6723 = vpop.xlane.xlu0 %6722
  %6724 = vmax.xlane.f32.xlu0 %v6685
  %v6725 = vpop.xlane.xlu0 %6724
  %6726 = vmax.xlane.f32.xlu0 %v6690
  %v6727 = vpop.xlane.xlu0 %6726
  %6728 = vmax.xlane.f32.xlu0 %v6695
  %v6729 = vpop.xlane.xlu0 %6728
  %v6730 = vsub.f32 %v6620, %v6699
  %v6731 = vsub.f32 %v6625, %v6701
  %v6732 = vsub.f32 %v6630, %v6703
  %v6733 = vsub.f32 %v6635, %v6705
  %v6734 = vsub.f32 %v6640, %v6707
  %v6735 = vsub.f32 %v6645, %v6709
  %v6736 = vsub.f32 %v6650, %v6711
  %v6737 = vsub.f32 %v6655, %v6713
  %v6738 = vsub.f32 %v6660, %v6715
  %v6739 = vsub.f32 %v6665, %v6717
  %v6740 = vsub.f32 %v6670, %v6719
  %v6741 = vsub.f32 %v6675, %v6721
  %v6742 = vsub.f32 %v6680, %v6723
  %v6743 = vsub.f32 %v6685, %v6725
  %v6744 = vsub.f32 %v6690, %v6727
  %v6745 = vsub.f32 %v6695, %v6729
  %v6746 = vmul.f32 %v6730, 1.442695
  %v6747 = vpow.pop %v6746
  %v6748 = vmul.f32 %v6731, 1.442695
  %v6749 = vpow.pop %v6748
  %v6750 = vmul.f32 %v6732, 1.442695
  %v6751 = vpow.pop %v6750
  %v6752 = vmul.f32 %v6733, 1.442695
  %v6753 = vpow.pop %v6752
  %v6754 = vmul.f32 %v6734, 1.442695
  %v6755 = vpow.pop %v6754
  %v6756 = vmul.f32 %v6735, 1.442695
  %v6757 = vpow.pop %v6756
  %v6758 = vmul.f32 %v6736, 1.442695
  %v6759 = vpow.pop %v6758
  %v6760 = vmul.f32 %v6737, 1.442695
  %v6761 = vpow.pop %v6760
  %v6762 = vmul.f32 %v6738, 1.442695
  %v6763 = vpow.pop %v6762
  %v6764 = vmul.f32 %v6739, 1.442695
  %v6765 = vpow.pop %v6764
  %v6766 = vmul.f32 %v6740, 1.442695
  %v6767 = vpow.pop %v6766
  %v6768 = vmul.f32 %v6741, 1.442695
  %v6769 = vpow.pop %v6768
  %v6770 = vmul.f32 %v6742, 1.442695
  %v6771 = vpow.pop %v6770
  %v6772 = vmul.f32 %v6743, 1.442695
  %v6773 = vpow.pop %v6772
  %v6774 = vmul.f32 %v6744, 1.442695
  %v6775 = vpow.pop %v6774
  %v6776 = vmul.f32 %v6745, 1.442695
  %v6777 = vpow.pop %v6776
  %6778 = vadd.xlane.f32.xlu0 %v6747
  %v6779 = vpop.xlane.xlu0 %6778
  %6780 = vadd.xlane.f32.xlu0 %v6749
  %v6781 = vpop.xlane.xlu0 %6780
  %6782 = vadd.xlane.f32.xlu0 %v6751
  %v6783 = vpop.xlane.xlu0 %6782
  %6784 = vadd.xlane.f32.xlu0 %v6753
  %v6785 = vpop.xlane.xlu0 %6784
  %6786 = vadd.xlane.f32.xlu0 %v6755
  %v6787 = vpop.xlane.xlu0 %6786
  %6788 = vadd.xlane.f32.xlu0 %v6757
  %v6789 = vpop.xlane.xlu0 %6788
  %6790 = vadd.xlane.f32.xlu0 %v6759
  %v6791 = vpop.xlane.xlu0 %6790
  %6792 = vadd.xlane.f32.xlu0 %v6761
  %v6793 = vpop.xlane.xlu0 %6792
  %6794 = vadd.xlane.f32.xlu0 %v6763
  %v6795 = vpop.xlane.xlu0 %6794
  %6796 = vadd.xlane.f32.xlu0 %v6765
  %v6797 = vpop.xlane.xlu0 %6796
  %6798 = vadd.xlane.f32.xlu0 %v6767
  %v6799 = vpop.xlane.xlu0 %6798
  %6800 = vadd.xlane.f32.xlu0 %v6769
  %v6801 = vpop.xlane.xlu0 %6800
  %6802 = vadd.xlane.f32.xlu0 %v6771
  %v6803 = vpop.xlane.xlu0 %6802
  %6804 = vadd.xlane.f32.xlu0 %v6773
  %v6805 = vpop.xlane.xlu0 %6804
  %6806 = vadd.xlane.f32.xlu0 %v6775
  %v6807 = vpop.xlane.xlu0 %6806
  %6808 = vadd.xlane.f32.xlu0 %v6777
  %v6809 = vpop.xlane.xlu0 %6808
  %v6810 = vrcp.pop %v6779
  %v6811 = vmul.f32 %v6747, %v6810
  %v6812 = vrcp.pop %v6781
  %v6813 = vmul.f32 %v6749, %v6812
  %v6814 = vrcp.pop %v6783
  %v6815 = vmul.f32 %v6751, %v6814
  %v6816 = vrcp.pop %v6785
  %v6817 = vmul.f32 %v6753, %v6816
  %v6818 = vrcp.pop %v6787
  %v6819 = vmul.f32 %v6755, %v6818
  %v6820 = vrcp.pop %v6789
  %v6821 = vmul.f32 %v6757, %v6820
  %v6822 = vrcp.pop %v6791
  %v6823 = vmul.f32 %v6759, %v6822
  %v6824 = vrcp.pop %v6793
  %v6825 = vmul.f32 %v6761, %v6824
  %v6826 = vrcp.pop %v6795
  %v6827 = vmul.f32 %v6763, %v6826
  %v6828 = vrcp.pop %v6797
  %v6829 = vmul.f32 %v6765, %v6828
  %v6830 = vrcp.pop %v6799
  %v6831 = vmul.f32 %v6767, %v6830
  %v6832 = vrcp.pop %v6801
  %v6833 = vmul.f32 %v6769, %v6832
  %v6834 = vrcp.pop %v6803
  %v6835 = vmul.f32 %v6771, %v6834
  %v6836 = vrcp.pop %v6805
  %v6837 = vmul.f32 %v6773, %v6836
  %v6838 = vrcp.pop %v6807
  %v6839 = vmul.f32 %v6775, %v6838
  %v6840 = vrcp.pop %v6809
  %v6841 = vmul.f32 %v6777, %v6840
  %6842 = vrot.lane.b32.xlu0 %v4293, 40
  %v6843 = vpop.permute.xlu0 %6842
  %6844 = vrot.lane.b32.xlu0 %v4298, 40
  %v6845 = vpop.permute.xlu0 %6844
  %6846 = vrot.lane.b32.xlu0 %v4303, 40
  %v6847 = vpop.permute.xlu0 %6846
  %6848 = vrot.lane.b32.xlu0 %v4308, 40
  %v6849 = vpop.permute.xlu0 %6848
  %6850 = vrot.lane.b32.xlu0 %v4313, 40
  %v6851 = vpop.permute.xlu0 %6850
  %6852 = vrot.lane.b32.xlu0 %v4318, 40
  %v6853 = vpop.permute.xlu0 %6852
  %6854 = vrot.lane.b32.xlu0 %v4323, 40
  %v6855 = vpop.permute.xlu0 %6854
  %6856 = vrot.lane.b32.xlu0 %v4328, 40
  %v6857 = vpop.permute.xlu0 %6856
  %6858 = vrot.lane.b32.xlu0 %v4333, 40
  %v6859 = vpop.permute.xlu0 %6858
  %6860 = vrot.lane.b32.xlu0 %v4338, 40
  %v6861 = vpop.permute.xlu0 %6860
  %6862 = vrot.lane.b32.xlu0 %v4343, 40
  %v6863 = vpop.permute.xlu0 %6862
  %6864 = vrot.lane.b32.xlu0 %v4348, 40
  %v6865 = vpop.permute.xlu0 %6864
  %6866 = vrot.lane.b32.xlu0 %v4353, 40
  %v6867 = vpop.permute.xlu0 %6866
  %6868 = vrot.lane.b32.xlu0 %v4358, 40
  %v6869 = vpop.permute.xlu0 %6868
  %6870 = vrot.lane.b32.xlu0 %v4363, 40
  %v6871 = vpop.permute.xlu0 %6870
  %6872 = vrot.lane.b32.xlu0 %v4368, 40
  %v6873 = vpop.permute.xlu0 %6872
  %6890 = vmatprep.subr.mxu0 0.0
  %6891 = vmatpush1.msra.mxu0 %v6873
  %6892 = vmatprep.subr.mxu0 0.0
  %6893 = vmatpush1.msra.mxu0 %v6871
  %6894 = vmatprep.subr.mxu0 0.0
  %6895 = vmatpush1.msra.mxu0 %v6869
  %6896 = vmatprep.subr.mxu0 0.0
  %6897 = vmatpush1.msra.mxu0 %v6867
  %6898 = vmatprep.subr.mxu0 0.0
  %6899 = vmatpush1.msra.mxu0 %v6865
  %6900 = vmatprep.subr.mxu0 0.0
  %6901 = vmatpush1.msra.mxu0 %v6863
  %6902 = vmatprep.subr.mxu0 0.0
  %6903 = vmatpush1.msra.mxu0 %v6861
  %6904 = vmatprep.subr.mxu0 0.0
  %6905 = vmatpush1.msra.mxu0 %v6859
  %6906 = vmatprep.subr.mxu0 0.0
  %6907 = vmatpush1.msra.mxu0 %v6857
  %6908 = vmatprep.subr.mxu0 0.0
  %6909 = vmatpush1.msra.mxu0 %v6855
  %6910 = vmatprep.subr.mxu0 0.0
  %6911 = vmatpush1.msra.mxu0 %v6853
  %6912 = vmatprep.subr.mxu0 0.0
  %6913 = vmatpush1.msra.mxu0 %v6851
  %6914 = vmatprep.subr.mxu0 0.0
  %6915 = vmatpush1.msra.mxu0 %v6849
  %6916 = vmatprep.subr.mxu0 0.0
  %6917 = vmatpush1.msra.mxu0 %v6847
  %6918 = vmatprep.subr.mxu0 0.0
  %6919 = vmatpush1.msra.mxu0 %v6845
  %6920 = vmatprep.subr.mxu0 0.0
  %6921 = vmatpush1.msra.mxu0 %v6843
  %6922 = vmatprep.subr.mxu0 0.0
  %6923 = vmatpush2.msra.mxu0 0.0
  %6924 = vmatprep.subr.mxu0 0.0
  %6925 = vmatpush2.msra.mxu0 0.0
  %6926 = vmatprep.subr.mxu0 0.0
  %6927 = vmatpush2.msra.mxu0 0.0
  %6928 = vmatprep.subr.mxu0 0.0
  %6929 = vmatpush2.msra.mxu0 0.0
  %6930 = vmatprep.subr.mxu0 0.0
  %6931 = vmatpush2.msra.mxu0 0.0
  %6932 = vmatprep.subr.mxu0 0.0
  %6933 = vmatpush2.msra.mxu0 0.0
  %6934 = vmatprep.subr.mxu0 0.0
  %6935 = vmatpush2.msra.mxu0 0.0
  %6936 = vmatprep.subr.mxu0 0.0
  %6937 = vmatpush2.msra.mxu0 0.0
  %6938 = vmatprep.subr.mxu0 0.0
  %6939 = vmatpush2.msra.mxu0 0.0
  %6940 = vmatprep.subr.mxu0 0.0
  %6941 = vmatpush2.msra.mxu0 0.0
  %6942 = vmatprep.subr.mxu0 0.0
  %6943 = vmatpush2.msra.mxu0 0.0
  %6944 = vmatprep.subr.mxu0 0.0
  %6945 = vmatpush2.msra.mxu0 0.0
  %6946 = vmatprep.subr.mxu0 0.0
  %6947 = vmatpush2.msra.mxu0 0.0
  %6948 = vmatprep.subr.mxu0 0.0
  %6949 = vmatpush2.msra.mxu0 0.0
  %6950 = vmatprep.subr.mxu0 0.0
  %6951 = vmatpush2.msra.mxu0 0.0
  %6952 = vmatprep.subr.mxu0 0.0
  %6953 = vmatpush2.msra.mxu0 0.0
  %6954 = vmatprep.mubr.f32.mxu0 0.0
  %6955 = vmatmul.mubr.f32.gmra.mxu0 %v6811
  %v6956 = vpop.f32.mrf.mxu0
  %v6957 = vadd.f32 0.0, %v6956
  %v6958 = vpop.f32.mrf.mxu0
  %6959 = vmatprep.mubr.f32.mxu0 0.0
  %6960 = vmatmul.mubr.f32.gmra.mxu0 %v6813
  %v6961 = vpop.f32.mrf.mxu0
  %v6962 = vadd.f32 0.0, %v6961
  %v6963 = vpop.f32.mrf.mxu0
  %6964 = vmatprep.mubr.f32.mxu0 0.0
  %6965 = vmatmul.mubr.f32.gmra.mxu0 %v6815
  %v6966 = vpop.f32.mrf.mxu0
  %v6967 = vadd.f32 0.0, %v6966
  %v6968 = vpop.f32.mrf.mxu0
  %6969 = vmatprep.mubr.f32.mxu0 0.0
  %6970 = vmatmul.mubr.f32.gmra.mxu0 %v6817
  %v6971 = vpop.f32.mrf.mxu0
  %v6972 = vadd.f32 0.0, %v6971
  %v6973 = vpop.f32.mrf.mxu0
  %6974 = vmatprep.mubr.f32.mxu0 0.0
  %6975 = vmatmul.mubr.f32.gmra.mxu0 %v6819
  %v6976 = vpop.f32.mrf.mxu0
  %v6977 = vadd.f32 0.0, %v6976
  %v6978 = vpop.f32.mrf.mxu0
  %6979 = vmatprep.mubr.f32.mxu0 0.0
  %6980 = vmatmul.mubr.f32.gmra.mxu0 %v6821
  %v6981 = vpop.f32.mrf.mxu0
  %v6982 = vadd.f32 0.0, %v6981
  %v6983 = vpop.f32.mrf.mxu0
  %6984 = vmatprep.mubr.f32.mxu0 0.0
  %6985 = vmatmul.mubr.f32.gmra.mxu0 %v6823
  %v6986 = vpop.f32.mrf.mxu0
  %v6987 = vadd.f32 0.0, %v6986
  %v6988 = vpop.f32.mrf.mxu0
  %6989 = vmatprep.mubr.f32.mxu0 0.0
  %6990 = vmatmul.mubr.f32.gmra.mxu0 %v6825
  %v6991 = vpop.f32.mrf.mxu0
  %v6992 = vadd.f32 0.0, %v6991
  %v6993 = vpop.f32.mrf.mxu0
  %6994 = vmatprep.mubr.f32.mxu0 0.0
  %6995 = vmatmul.mubr.f32.gmra.mxu0 %v6827
  %v6996 = vpop.f32.mrf.mxu0
  %v6997 = vadd.f32 0.0, %v6996
  %v6998 = vpop.f32.mrf.mxu0
  %6999 = vmatprep.mubr.f32.mxu0 0.0
  %7000 = vmatmul.mubr.f32.gmra.mxu0 %v6829
  %v7001 = vpop.f32.mrf.mxu0
  %v7002 = vadd.f32 0.0, %v7001
  %v7003 = vpop.f32.mrf.mxu0
  %7004 = vmatprep.mubr.f32.mxu0 0.0
  %7005 = vmatmul.mubr.f32.gmra.mxu0 %v6831
  %v7006 = vpop.f32.mrf.mxu0
  %v7007 = vadd.f32 0.0, %v7006
  %v7008 = vpop.f32.mrf.mxu0
  %7009 = vmatprep.mubr.f32.mxu0 0.0
  %7010 = vmatmul.mubr.f32.gmra.mxu0 %v6833
  %v7011 = vpop.f32.mrf.mxu0
  %v7012 = vadd.f32 0.0, %v7011
  %v7013 = vpop.f32.mrf.mxu0
  %7014 = vmatprep.mubr.f32.mxu0 0.0
  %7015 = vmatmul.mubr.f32.gmra.mxu0 %v6835
  %v7016 = vpop.f32.mrf.mxu0
  %v7017 = vadd.f32 0.0, %v7016
  %v7018 = vpop.f32.mrf.mxu0
  %7019 = vmatprep.mubr.f32.mxu0 0.0
  %7020 = vmatmul.mubr.f32.gmra.mxu0 %v6837
  %v7021 = vpop.f32.mrf.mxu0
  %v7022 = vadd.f32 0.0, %v7021
  %v7023 = vpop.f32.mrf.mxu0
  %7024 = vmatprep.mubr.f32.mxu0 0.0
  %7025 = vmatmul.mubr.f32.gmra.mxu0 %v6839
  %v7026 = vpop.f32.mrf.mxu0
  %v7027 = vadd.f32 0.0, %v7026
  %v7028 = vpop.f32.mrf.mxu0
  %7029 = vmatprep.mubr.f32.mxu0 0.0
  %7030 = vmatmul.mubr.f32.gmra.mxu0 %v6841
  %v7031 = vpop.f32.mrf.mxu0
  %v7032 = vadd.f32 0.0, %v7031
  %v7033 = vpop.f32.mrf.mxu0
  %7034 = vdwg.mxu0
  %7051 = vrot.lane.b32.xlu0 %v6957, 24
  %v7052 = vpop.permute.xlu0 %7051
  %7053 = vrot.lane.b32.xlu0 %v6962, 24
  %v7054 = vpop.permute.xlu0 %7053
  %7055 = vrot.lane.b32.xlu0 %v6967, 24
  %v7056 = vpop.permute.xlu0 %7055
  %7057 = vrot.lane.b32.xlu0 %v6972, 24
  %v7058 = vpop.permute.xlu0 %7057
  %7059 = vrot.lane.b32.xlu0 %v6977, 24
  %v7060 = vpop.permute.xlu0 %7059
  %7061 = vrot.lane.b32.xlu0 %v6982, 24
  %v7062 = vpop.permute.xlu0 %7061
  %7063 = vrot.lane.b32.xlu0 %v6987, 24
  %v7064 = vpop.permute.xlu0 %7063
  %7065 = vrot.lane.b32.xlu0 %v6992, 24
  %v7066 = vpop.permute.xlu0 %7065
  %7067 = vrot.lane.b32.xlu0 %v6997, 24
  %v7068 = vpop.permute.xlu0 %7067
  %7069 = vrot.lane.b32.xlu0 %v7002, 24
  %v7070 = vpop.permute.xlu0 %7069
  %7071 = vrot.lane.b32.xlu0 %v7007, 24
  %v7072 = vpop.permute.xlu0 %7071
  %7073 = vrot.lane.b32.xlu0 %v7012, 24
  %v7074 = vpop.permute.xlu0 %7073
  %7075 = vrot.lane.b32.xlu0 %v7017, 24
  %v7076 = vpop.permute.xlu0 %7075
  %7077 = vrot.lane.b32.xlu0 %v7022, 24
  %v7078 = vpop.permute.xlu0 %7077
  %7079 = vrot.lane.b32.xlu0 %v7027, 24
  %v7080 = vpop.permute.xlu0 %7079
  %7081 = vrot.lane.b32.xlu0 %v7032, 24
  %v7082 = vpop.permute.xlu0 %7081
  %7099 = vst.msk [vmem:[#allocation2] sm:$0xff] %vm2999, %v7052
  %7100 = vst.msk [vmem:[#allocation2 + $0x8] sm:$0xff] %vm2999, %v7054
  %7101 = vst.msk [vmem:[#allocation2 + $0x10] sm:$0xff] %vm2999, %v7056
  %7102 = vst.msk [vmem:[#allocation2 + $0x18] sm:$0xff] %vm2999, %v7058
  %7103 = vst.msk [vmem:[#allocation2 + $0x20] sm:$0xff] %vm2999, %v7060
  %7104 = vst.msk [vmem:[#allocation2 + $0x28] sm:$0xff] %vm2999, %v7062
  %7105 = vst.msk [vmem:[#allocation2 + $0x30] sm:$0xff] %vm2999, %v7064
  %7106 = vst.msk [vmem:[#allocation2 + $0x38] sm:$0xff] %vm2999, %v7066
  %7107 = vst.msk [vmem:[#allocation2 + $0x40] sm:$0xff] %vm2999, %v7068
  %7108 = vst.msk [vmem:[#allocation2 + $0x48] sm:$0xff] %vm2999, %v7070
  %7109 = vst.msk [vmem:[#allocation2 + $0x50] sm:$0xff] %vm2999, %v7072
  %7110 = vst.msk [vmem:[#allocation2 + $0x58] sm:$0xff] %vm2999, %v7074
  %7111 = vst.msk [vmem:[#allocation2 + $0x60] sm:$0xff] %vm2999, %v7076
  %7112 = vst.msk [vmem:[#allocation2 + $0x68] sm:$0xff] %vm2999, %v7078
  %7113 = vst.msk [vmem:[#allocation2 + $0x70] sm:$0xff] %vm2999, %v7080
  %7114 = vst.msk [vmem:[#allocation2 + $0x78] sm:$0xff] %vm2999, %v7082
  %v7115 = vld [vmem:[#allocation2] sm:$0xff]
  %v7116 = vld [vmem:[#allocation2 + $0x8] sm:$0xff]
  %v7117 = vld [vmem:[#allocation2 + $0x10] sm:$0xff]
  %v7118 = vld [vmem:[#allocation2 + $0x18] sm:$0xff]
  %v7119 = vld [vmem:[#allocation2 + $0x20] sm:$0xff]
  %v7120 = vld [vmem:[#allocation2 + $0x28] sm:$0xff]
  %v7121 = vld [vmem:[#allocation2 + $0x30] sm:$0xff]
  %v7122 = vld [vmem:[#allocation2 + $0x38] sm:$0xff]
  %v7123 = vld [vmem:[#allocation2 + $0x40] sm:$0xff]
  %v7124 = vld [vmem:[#allocation2 + $0x48] sm:$0xff]
  %v7125 = vld [vmem:[#allocation2 + $0x50] sm:$0xff]
  %v7126 = vld [vmem:[#allocation2 + $0x58] sm:$0xff]
  %v7127 = vld [vmem:[#allocation2 + $0x60] sm:$0xff]
  %v7128 = vld [vmem:[#allocation2 + $0x68] sm:$0xff]
  %v7129 = vld [vmem:[#allocation2 + $0x70] sm:$0xff]
  %v7130 = vld [vmem:[#allocation2 + $0x78] sm:$0xff]
  %s7131 = scalar_lea.vmem %s4, 32
  %v7132 = vld [vmem:[%s7131] sm:$0xff]
  %v7133 = vld [vmem:[%s7131 + $0x8] sm:$0xff]
  %v7134 = vld [vmem:[%s7131 + $0x10] sm:$0xff]
  %v7135 = vld [vmem:[%s7131 + $0x18] sm:$0xff]
  %s7136 = scalar_lea.vmem %s5, 1
  %v7137 = vld [vmem:[%s7136] sm:$0x1]
  %v7139 = vlaneseq
  %v7140 = vshrl.u32 %v7139, 7
  %v7141 = vsub.s32 0, %v7140
  %v7142 = vrot.slane %v7137, %v7141
  %v7145 = vsel %vm74, %v7115, 0
  %v7148 = vsel %vm74, %v7116, 0
  %v7151 = vsel %vm74, %v7117, 0
  %v7154 = vsel %vm74, %v7118, 0
  %v7157 = vsel %vm74, %v7119, 0
  %v7160 = vsel %vm74, %v7120, 0
  %v7163 = vsel %vm74, %v7121, 0
  %v7166 = vsel %vm74, %v7122, 0
  %v7169 = vsel %vm74, %v7123, 0
  %v7172 = vsel %vm74, %v7124, 0
  %v7175 = vsel %vm74, %v7125, 0
  %v7178 = vsel %vm74, %v7126, 0
  %v7181 = vsel %vm74, %v7127, 0
  %v7184 = vsel %vm74, %v7128, 0
  %v7187 = vsel %vm74, %v7129, 0
  %v7190 = vsel %vm74, %v7130, 0
  %7192 = vmatprep.subr.mxu0 0.0
  %7193 = vmatpush1.msra.mxu0 0.0
  %7194 = vmatprep.subr.mxu0 0.0
  %7195 = vmatpush1.msra.mxu0 0.0
  %7196 = vmatprep.subr.mxu0 0.0
  %7197 = vmatpush1.msra.mxu0 0.0
  %7198 = vmatprep.subr.mxu0 0.0
  %7199 = vmatpush1.msra.mxu0 0.0
  %7200 = vmatprep.subr.mxu0 0.0
  %7201 = vmatpush1.msra.mxu0 0.0
  %7202 = vmatprep.subr.mxu0 0.0
  %7203 = vmatpush1.msra.mxu0 0.0
  %7204 = vmatprep.subr.mxu0 0.0
  %7205 = vmatpush1.msra.mxu0 0.0
  %7206 = vmatprep.subr.mxu0 0.0
  %7207 = vmatpush1.msra.mxu0 0.0
  %7208 = vmatprep.subr.mxu0 0.0
  %7209 = vmatpush1.msra.mxu0 0.0
  %7210 = vmatprep.subr.mxu0 0.0
  %7211 = vmatpush1.msra.mxu0 0.0
  %7212 = vmatprep.subr.mxu0 0.0
  %7213 = vmatpush1.msra.mxu0 0.0
  %7214 = vmatprep.subr.mxu0 0.0
  %7215 = vmatpush1.msra.mxu0 0.0
  %7216 = vmatprep.subr.mxu0 0.0
  %7217 = vmatpush1.msra.mxu0 %v7135
  %7218 = vmatprep.subr.mxu0 0.0
  %7219 = vmatpush1.msra.mxu0 %v7134
  %7220 = vmatprep.subr.mxu0 0.0
  %7221 = vmatpush1.msra.mxu0 %v7133
  %7222 = vmatprep.subr.mxu0 0.0
  %7223 = vmatpush1.msra.mxu0 %v7132
  %7224 = vmatprep.subr.mxu0 0.0
  %7225 = vmatpush2.msra.mxu0 0.0
  %7226 = vmatprep.subr.mxu0 0.0
  %7227 = vmatpush2.msra.mxu0 0.0
  %7228 = vmatprep.subr.mxu0 0.0
  %7229 = vmatpush2.msra.mxu0 0.0
  %7230 = vmatprep.subr.mxu0 0.0
  %7231 = vmatpush2.msra.mxu0 0.0
  %7232 = vmatprep.subr.mxu0 0.0
  %7233 = vmatpush2.msra.mxu0 0.0
  %7234 = vmatprep.subr.mxu0 0.0
  %7235 = vmatpush2.msra.mxu0 0.0
  %7236 = vmatprep.subr.mxu0 0.0
  %7237 = vmatpush2.msra.mxu0 0.0
  %7238 = vmatprep.subr.mxu0 0.0
  %7239 = vmatpush2.msra.mxu0 0.0
  %7240 = vmatprep.subr.mxu0 0.0
  %7241 = vmatpush2.msra.mxu0 0.0
  %7242 = vmatprep.subr.mxu0 0.0
  %7243 = vmatpush2.msra.mxu0 0.0
  %7244 = vmatprep.subr.mxu0 0.0
  %7245 = vmatpush2.msra.mxu0 0.0
  %7246 = vmatprep.subr.mxu0 0.0
  %7247 = vmatpush2.msra.mxu0 0.0
  %7248 = vmatprep.subr.mxu0 0.0
  %7249 = vmatpush2.msra.mxu0 0.0
  %7250 = vmatprep.subr.mxu0 0.0
  %7251 = vmatpush2.msra.mxu0 0.0
  %7252 = vmatprep.subr.mxu0 0.0
  %7253 = vmatpush2.msra.mxu0 0.0
  %7254 = vmatprep.subr.mxu0 0.0
  %7255 = vmatpush2.msra.mxu0 0.0
  %7256 = vmatprep.mubr.f32.mxu0 0.0
  %7257 = vmatmul.mubr.f32.gmra.mxu0 %v7145
  %v7258 = vpop.f32.mrf.mxu0
  %v7259 = vadd.f32 %v7142, %v7258
  %v7260 = vpop.f32.mrf.mxu0
  %7261 = vmatprep.mubr.f32.mxu0 0.0
  %7262 = vmatmul.mubr.f32.gmra.mxu0 %v7148
  %v7263 = vpop.f32.mrf.mxu0
  %v7264 = vadd.f32 %v7142, %v7263
  %v7265 = vpop.f32.mrf.mxu0
  %7266 = vmatprep.mubr.f32.mxu0 0.0
  %7267 = vmatmul.mubr.f32.gmra.mxu0 %v7151
  %v7268 = vpop.f32.mrf.mxu0
  %v7269 = vadd.f32 %v7142, %v7268
  %v7270 = vpop.f32.mrf.mxu0
  %7271 = vmatprep.mubr.f32.mxu0 0.0
  %7272 = vmatmul.mubr.f32.gmra.mxu0 %v7154
  %v7273 = vpop.f32.mrf.mxu0
  %v7274 = vadd.f32 %v7142, %v7273
  %v7275 = vpop.f32.mrf.mxu0
  %7276 = vmatprep.mubr.f32.mxu0 0.0
  %7277 = vmatmul.mubr.f32.gmra.mxu0 %v7157
  %v7278 = vpop.f32.mrf.mxu0
  %v7279 = vadd.f32 %v7142, %v7278
  %v7280 = vpop.f32.mrf.mxu0
  %7281 = vmatprep.mubr.f32.mxu0 0.0
  %7282 = vmatmul.mubr.f32.gmra.mxu0 %v7160
  %v7283 = vpop.f32.mrf.mxu0
  %v7284 = vadd.f32 %v7142, %v7283
  %v7285 = vpop.f32.mrf.mxu0
  %7286 = vmatprep.mubr.f32.mxu0 0.0
  %7287 = vmatmul.mubr.f32.gmra.mxu0 %v7163
  %v7288 = vpop.f32.mrf.mxu0
  %v7289 = vadd.f32 %v7142, %v7288
  %v7290 = vpop.f32.mrf.mxu0
  %7291 = vmatprep.mubr.f32.mxu0 0.0
  %7292 = vmatmul.mubr.f32.gmra.mxu0 %v7166
  %v7293 = vpop.f32.mrf.mxu0
  %v7294 = vadd.f32 %v7142, %v7293
  %v7295 = vpop.f32.mrf.mxu0
  %7296 = vmatprep.mubr.f32.mxu0 0.0
  %7297 = vmatmul.mubr.f32.gmra.mxu0 %v7169
  %v7298 = vpop.f32.mrf.mxu0
  %v7299 = vadd.f32 %v7142, %v7298
  %v7300 = vpop.f32.mrf.mxu0
  %7301 = vmatprep.mubr.f32.mxu0 0.0
  %7302 = vmatmul.mubr.f32.gmra.mxu0 %v7172
  %v7303 = vpop.f32.mrf.mxu0
  %v7304 = vadd.f32 %v7142, %v7303
  %v7305 = vpop.f32.mrf.mxu0
  %7306 = vmatprep.mubr.f32.mxu0 0.0
  %7307 = vmatmul.mubr.f32.gmra.mxu0 %v7175
  %v7308 = vpop.f32.mrf.mxu0
  %v7309 = vadd.f32 %v7142, %v7308
  %v7310 = vpop.f32.mrf.mxu0
  %7311 = vmatprep.mubr.f32.mxu0 0.0
  %7312 = vmatmul.mubr.f32.gmra.mxu0 %v7178
  %v7313 = vpop.f32.mrf.mxu0
  %v7314 = vadd.f32 %v7142, %v7313
  %v7315 = vpop.f32.mrf.mxu0
  %7316 = vmatprep.mubr.f32.mxu0 0.0
  %7317 = vmatmul.mubr.f32.gmra.mxu0 %v7181
  %v7318 = vpop.f32.mrf.mxu0
  %v7319 = vadd.f32 %v7142, %v7318
  %v7320 = vpop.f32.mrf.mxu0
  %7321 = vmatprep.mubr.f32.mxu0 0.0
  %7322 = vmatmul.mubr.f32.gmra.mxu0 %v7184
  %v7323 = vpop.f32.mrf.mxu0
  %v7324 = vadd.f32 %v7142, %v7323
  %v7325 = vpop.f32.mrf.mxu0
  %7326 = vmatprep.mubr.f32.mxu0 0.0
  %7327 = vmatmul.mubr.f32.gmra.mxu0 %v7187
  %v7328 = vpop.f32.mrf.mxu0
  %v7329 = vadd.f32 %v7142, %v7328
  %v7330 = vpop.f32.mrf.mxu0
  %7331 = vmatprep.mubr.f32.mxu0 0.0
  %7332 = vmatmul.mubr.f32.gmra.mxu0 %v7190
  %v7333 = vpop.f32.mrf.mxu0
  %v7334 = vadd.f32 %v7142, %v7333
  %v7335 = vpop.f32.mrf.mxu0
  %7336 = vdwg.mxu0
  %v7337 = vadd.f32 %v4149, %v7259
  %v7338 = vadd.f32 %v4150, %v7264
  %v7339 = vadd.f32 %v4151, %v7269
  %v7340 = vadd.f32 %v4152, %v7274
  %v7341 = vadd.f32 %v4153, %v7279
  %v7342 = vadd.f32 %v4154, %v7284
  %v7343 = vadd.f32 %v4155, %v7289
  %v7344 = vadd.f32 %v4156, %v7294
  %v7345 = vadd.f32 %v4157, %v7299
  %v7346 = vadd.f32 %v4158, %v7304
  %v7347 = vadd.f32 %v4159, %v7309
  %v7348 = vadd.f32 %v4160, %v7314
  %v7349 = vadd.f32 %v4161, %v7319
  %v7350 = vadd.f32 %v4162, %v7324
  %v7351 = vadd.f32 %v4163, %v7329
  %v7352 = vadd.f32 %v4164, %v7334
  %s7353 = scalar_lea.vmem %s6, 1
  %v7354 = vld [vmem:[%s7353] sm:$0x1]
  %s7355 = scalar_lea.vmem %s7, 1
  %v7356 = vld [vmem:[%s7355] sm:$0x1]
  %v7357 = vsel %vm74, %v7337, 0.0
  %7358 = vadd.xlane.f32.xlu0 %v7357
  %v7359 = vpop.xlane.xlu0 %7358
  %v7360 = vsel %vm74, %v7338, 0.0
  %7361 = vadd.xlane.f32.xlu0 %v7360
  %v7362 = vpop.xlane.xlu0 %7361
  %v7363 = vsel %vm74, %v7339, 0.0
  %7364 = vadd.xlane.f32.xlu0 %v7363
  %v7365 = vpop.xlane.xlu0 %7364
  %v7366 = vsel %vm74, %v7340, 0.0
  %7367 = vadd.xlane.f32.xlu0 %v7366
  %v7368 = vpop.xlane.xlu0 %7367
  %v7369 = vsel %vm74, %v7341, 0.0
  %7370 = vadd.xlane.f32.xlu0 %v7369
  %v7371 = vpop.xlane.xlu0 %7370
  %v7372 = vsel %vm74, %v7342, 0.0
  %7373 = vadd.xlane.f32.xlu0 %v7372
  %v7374 = vpop.xlane.xlu0 %7373
  %v7375 = vsel %vm74, %v7343, 0.0
  %7376 = vadd.xlane.f32.xlu0 %v7375
  %v7377 = vpop.xlane.xlu0 %7376
  %v7378 = vsel %vm74, %v7344, 0.0
  %7379 = vadd.xlane.f32.xlu0 %v7378
  %v7380 = vpop.xlane.xlu0 %7379
  %v7381 = vsel %vm74, %v7345, 0.0
  %7382 = vadd.xlane.f32.xlu0 %v7381
  %v7383 = vpop.xlane.xlu0 %7382
  %v7384 = vsel %vm74, %v7346, 0.0
  %7385 = vadd.xlane.f32.xlu0 %v7384
  %v7386 = vpop.xlane.xlu0 %7385
  %v7387 = vsel %vm74, %v7347, 0.0
  %7388 = vadd.xlane.f32.xlu0 %v7387
  %v7389 = vpop.xlane.xlu0 %7388
  %v7390 = vsel %vm74, %v7348, 0.0
  %7391 = vadd.xlane.f32.xlu0 %v7390
  %v7392 = vpop.xlane.xlu0 %7391
  %v7393 = vsel %vm74, %v7349, 0.0
  %7394 = vadd.xlane.f32.xlu0 %v7393
  %v7395 = vpop.xlane.xlu0 %7394
  %v7396 = vsel %vm74, %v7350, 0.0
  %7397 = vadd.xlane.f32.xlu0 %v7396
  %v7398 = vpop.xlane.xlu0 %7397
  %v7399 = vsel %vm74, %v7351, 0.0
  %7400 = vadd.xlane.f32.xlu0 %v7399
  %v7401 = vpop.xlane.xlu0 %7400
  %v7402 = vsel %vm74, %v7352, 0.0
  %7403 = vadd.xlane.f32.xlu0 %v7402
  %v7404 = vpop.xlane.xlu0 %7403
  %v7405 = vmul.f32 %v7359, %v3302
  %v7406 = vmul.f32 %v7362, %v3302
  %v7407 = vmul.f32 %v7365, %v3302
  %v7408 = vmul.f32 %v7368, %v3302
  %v7409 = vmul.f32 %v7371, %v3302
  %v7410 = vmul.f32 %v7374, %v3302
  %v7411 = vmul.f32 %v7377, %v3302
  %v7412 = vmul.f32 %v7380, %v3302
  %v7413 = vmul.f32 %v7383, %v3302
  %v7414 = vmul.f32 %v7386, %v3302
  %v7415 = vmul.f32 %v7389, %v3302
  %v7416 = vmul.f32 %v7392, %v3302
  %v7417 = vmul.f32 %v7395, %v3302
  %v7418 = vmul.f32 %v7398, %v3302
  %v7419 = vmul.f32 %v7401, %v3302
  %v7420 = vmul.f32 %v7404, %v3302
  %v7421 = vsub.f32 %v7337, %v7405
  %v7422 = vsub.f32 %v7338, %v7406
  %v7423 = vsub.f32 %v7339, %v7407
  %v7424 = vsub.f32 %v7340, %v7408
  %v7425 = vsub.f32 %v7341, %v7409
  %v7426 = vsub.f32 %v7342, %v7410
  %v7427 = vsub.f32 %v7343, %v7411
  %v7428 = vsub.f32 %v7344, %v7412
  %v7429 = vsub.f32 %v7345, %v7413
  %v7430 = vsub.f32 %v7346, %v7414
  %v7431 = vsub.f32 %v7347, %v7415
  %v7432 = vsub.f32 %v7348, %v7416
  %v7433 = vsub.f32 %v7349, %v7417
  %v7434 = vsub.f32 %v7350, %v7418
  %v7435 = vsub.f32 %v7351, %v7419
  %v7436 = vsub.f32 %v7352, %v7420
  %v7437 = vmul.f32 %v7421, %v7421
  %v7438 = vmul.f32 %v7422, %v7422
  %v7439 = vmul.f32 %v7423, %v7423
  %v7440 = vmul.f32 %v7424, %v7424
  %v7441 = vmul.f32 %v7425, %v7425
  %v7442 = vmul.f32 %v7426, %v7426
  %v7443 = vmul.f32 %v7427, %v7427
  %v7444 = vmul.f32 %v7428, %v7428
  %v7445 = vmul.f32 %v7429, %v7429
  %v7446 = vmul.f32 %v7430, %v7430
  %v7447 = vmul.f32 %v7431, %v7431
  %v7448 = vmul.f32 %v7432, %v7432
  %v7449 = vmul.f32 %v7433, %v7433
  %v7450 = vmul.f32 %v7434, %v7434
  %v7451 = vmul.f32 %v7435, %v7435
  %v7452 = vmul.f32 %v7436, %v7436
  %v7453 = vsel %vm74, %v7437, 0.0
  %7454 = vadd.xlane.f32.xlu0 %v7453
  %v7455 = vpop.xlane.xlu0 %7454
  %v7456 = vsel %vm74, %v7438, 0.0
  %7457 = vadd.xlane.f32.xlu0 %v7456
  %v7458 = vpop.xlane.xlu0 %7457
  %v7459 = vsel %vm74, %v7439, 0.0
  %7460 = vadd.xlane.f32.xlu0 %v7459
  %v7461 = vpop.xlane.xlu0 %7460
  %v7462 = vsel %vm74, %v7440, 0.0
  %7463 = vadd.xlane.f32.xlu0 %v7462
  %v7464 = vpop.xlane.xlu0 %7463
  %v7465 = vsel %vm74, %v7441, 0.0
  %7466 = vadd.xlane.f32.xlu0 %v7465
  %v7467 = vpop.xlane.xlu0 %7466
  %v7468 = vsel %vm74, %v7442, 0.0
  %7469 = vadd.xlane.f32.xlu0 %v7468
  %v7470 = vpop.xlane.xlu0 %7469
  %v7471 = vsel %vm74, %v7443, 0.0
  %7472 = vadd.xlane.f32.xlu0 %v7471
  %v7473 = vpop.xlane.xlu0 %7472
  %v7474 = vsel %vm74, %v7444, 0.0
  %7475 = vadd.xlane.f32.xlu0 %v7474
  %v7476 = vpop.xlane.xlu0 %7475
  %v7477 = vsel %vm74, %v7445, 0.0
  %7478 = vadd.xlane.f32.xlu0 %v7477
  %v7479 = vpop.xlane.xlu0 %7478
  %v7480 = vsel %vm74, %v7446, 0.0
  %7481 = vadd.xlane.f32.xlu0 %v7480
  %v7482 = vpop.xlane.xlu0 %7481
  %v7483 = vsel %vm74, %v7447, 0.0
  %7484 = vadd.xlane.f32.xlu0 %v7483
  %v7485 = vpop.xlane.xlu0 %7484
  %v7486 = vsel %vm74, %v7448, 0.0
  %7487 = vadd.xlane.f32.xlu0 %v7486
  %v7488 = vpop.xlane.xlu0 %7487
  %v7489 = vsel %vm74, %v7449, 0.0
  %7490 = vadd.xlane.f32.xlu0 %v7489
  %v7491 = vpop.xlane.xlu0 %7490
  %v7492 = vsel %vm74, %v7450, 0.0
  %7493 = vadd.xlane.f32.xlu0 %v7492
  %v7494 = vpop.xlane.xlu0 %7493
  %v7495 = vsel %vm74, %v7451, 0.0
  %7496 = vadd.xlane.f32.xlu0 %v7495
  %v7497 = vpop.xlane.xlu0 %7496
  %v7498 = vsel %vm74, %v7452, 0.0
  %7499 = vadd.xlane.f32.xlu0 %v7498
  %v7500 = vpop.xlane.xlu0 %7499
  %v7501 = vmul.f32 %v7455, %v3302
  %v7502 = vmul.f32 %v7458, %v3302
  %v7503 = vmul.f32 %v7461, %v3302
  %v7504 = vmul.f32 %v7464, %v3302
  %v7505 = vmul.f32 %v7467, %v3302
  %v7506 = vmul.f32 %v7470, %v3302
  %v7507 = vmul.f32 %v7473, %v3302
  %v7508 = vmul.f32 %v7476, %v3302
  %v7509 = vmul.f32 %v7479, %v3302
  %v7510 = vmul.f32 %v7482, %v3302
  %v7511 = vmul.f32 %v7485, %v3302
  %v7512 = vmul.f32 %v7488, %v3302
  %v7513 = vmul.f32 %v7491, %v3302
  %v7514 = vmul.f32 %v7494, %v3302
  %v7515 = vmul.f32 %v7497, %v3302
  %v7516 = vmul.f32 %v7500, %v3302
  %v7517 = vadd.f32 %v7501, 1e-05
  %v7518 = vadd.f32 %v7502, 1e-05
  %v7519 = vadd.f32 %v7503, 1e-05
  %v7520 = vadd.f32 %v7504, 1e-05
  %v7521 = vadd.f32 %v7505, 1e-05
  %v7522 = vadd.f32 %v7506, 1e-05
  %v7523 = vadd.f32 %v7507, 1e-05
  %v7524 = vadd.f32 %v7508, 1e-05
  %v7525 = vadd.f32 %v7509, 1e-05
  %v7526 = vadd.f32 %v7510, 1e-05
  %v7527 = vadd.f32 %v7511, 1e-05
  %v7528 = vadd.f32 %v7512, 1e-05
  %v7529 = vadd.f32 %v7513, 1e-05
  %v7530 = vadd.f32 %v7514, 1e-05
  %v7531 = vadd.f32 %v7515, 1e-05
  %v7532 = vadd.f32 %v7516, 1e-05
  %v7533 = vrsqrt.pop %v7517
  %v7534 = vrsqrt.pop %v7518
  %v7535 = vrsqrt.pop %v7519
  %v7536 = vrsqrt.pop %v7520
  %v7537 = vrsqrt.pop %v7521
  %v7538 = vrsqrt.pop %v7522
  %v7539 = vrsqrt.pop %v7523
  %v7540 = vrsqrt.pop %v7524
  %v7541 = vrsqrt.pop %v7525
  %v7542 = vrsqrt.pop %v7526
  %v7543 = vrsqrt.pop %v7527
  %v7544 = vrsqrt.pop %v7528
  %v7545 = vrsqrt.pop %v7529
  %v7546 = vrsqrt.pop %v7530
  %v7547 = vrsqrt.pop %v7531
  %v7548 = vrsqrt.pop %v7532
  %v7549 = vmul.f32 %v7421, %v7533
  %v7550 = vmul.f32 %v7422, %v7534
  %v7551 = vmul.f32 %v7423, %v7535
  %v7552 = vmul.f32 %v7424, %v7536
  %v7553 = vmul.f32 %v7425, %v7537
  %v7554 = vmul.f32 %v7426, %v7538
  %v7555 = vmul.f32 %v7427, %v7539
  %v7556 = vmul.f32 %v7428, %v7540
  %v7557 = vmul.f32 %v7429, %v7541
  %v7558 = vmul.f32 %v7430, %v7542
  %v7559 = vmul.f32 %v7431, %v7543
  %v7560 = vmul.f32 %v7432, %v7544
  %v7561 = vmul.f32 %v7433, %v7545
  %v7562 = vmul.f32 %v7434, %v7546
  %v7563 = vmul.f32 %v7435, %v7547
  %v7564 = vmul.f32 %v7436, %v7548
  %v7566 = vlaneseq
  %v7567 = vshrl.u32 %v7566, 7
  %v7568 = vsub.s32 0, %v7567
  %v7569 = vrot.slane %v7354, %v7568
  %v7571 = vmul.f32 %v7549, %v7569
  %v7572 = vmul.f32 %v7550, %v7569
  %v7573 = vmul.f32 %v7551, %v7569
  %v7574 = vmul.f32 %v7552, %v7569
  %v7575 = vmul.f32 %v7553, %v7569
  %v7576 = vmul.f32 %v7554, %v7569
  %v7577 = vmul.f32 %v7555, %v7569
  %v7578 = vmul.f32 %v7556, %v7569
  %v7579 = vmul.f32 %v7557, %v7569
  %v7580 = vmul.f32 %v7558, %v7569
  %v7581 = vmul.f32 %v7559, %v7569
  %v7582 = vmul.f32 %v7560, %v7569
  %v7583 = vmul.f32 %v7561, %v7569
  %v7584 = vmul.f32 %v7562, %v7569
  %v7585 = vmul.f32 %v7563, %v7569
  %v7586 = vmul.f32 %v7564, %v7569
  %v7588 = vlaneseq
  %v7589 = vshrl.u32 %v7588, 7
  %v7590 = vsub.s32 0, %v7589
  %v7591 = vrot.slane %v7356, %v7590
  %v7593 = vadd.f32 %v7571, %v7591
  %v7594 = vadd.f32 %v7572, %v7591
  %v7595 = vadd.f32 %v7573, %v7591
  %v7596 = vadd.f32 %v7574, %v7591
  %v7597 = vadd.f32 %v7575, %v7591
  %v7598 = vadd.f32 %v7576, %v7591
  %v7599 = vadd.f32 %v7577, %v7591
  %v7600 = vadd.f32 %v7578, %v7591
  %v7601 = vadd.f32 %v7579, %v7591
  %v7602 = vadd.f32 %v7580, %v7591
  %v7603 = vadd.f32 %v7581, %v7591
  %v7604 = vadd.f32 %v7582, %v7591
  %v7605 = vadd.f32 %v7583, %v7591
  %v7606 = vadd.f32 %v7584, %v7591
  %v7607 = vadd.f32 %v7585, %v7591
  %v7608 = vadd.f32 %v7586, %v7591
  %s7609 = scalar_lea.vmem %s8, 32
  %v7610 = vld [vmem:[%s7609] sm:$0xff]
  %v7611 = vld [vmem:[%s7609 + $0x8] sm:$0xff]
  %v7612 = vld [vmem:[%s7609 + $0x10] sm:$0xff]
  %v7613 = vld [vmem:[%s7609 + $0x18] sm:$0xff]
  %s7614 = scalar_lea.vmem %s9, 1
  %v7615 = vld [vmem:[%s7614] sm:$0x1]
  %v7617 = vlaneseq
  %v7618 = vshrl.u32 %v7617, 7
  %v7619 = vsub.s32 0, %v7618
  %v7620 = vrot.slane %v7615, %v7619
  %v7623 = vsel %vm74, %v7593, 0
  %v7626 = vsel %vm74, %v7594, 0
  %v7629 = vsel %vm74, %v7595, 0
  %v7632 = vsel %vm74, %v7596, 0
  %v7635 = vsel %vm74, %v7597, 0
  %v7638 = vsel %vm74, %v7598, 0
  %v7641 = vsel %vm74, %v7599, 0
  %v7644 = vsel %vm74, %v7600, 0
  %v7647 = vsel %vm74, %v7601, 0
  %v7650 = vsel %vm74, %v7602, 0
  %v7653 = vsel %vm74, %v7603, 0
  %v7656 = vsel %vm74, %v7604, 0
  %v7659 = vsel %vm74, %v7605, 0
  %v7662 = vsel %vm74, %v7606, 0
  %v7665 = vsel %vm74, %v7607, 0
  %v7668 = vsel %vm74, %v7608, 0
  %7670 = vmatprep.subr.mxu0 0.0
  %7671 = vmatpush1.msra.mxu0 0.0
  %7672 = vmatprep.subr.mxu0 0.0
  %7673 = vmatpush1.msra.mxu0 0.0
  %7674 = vmatprep.subr.mxu0 0.0
  %7675 = vmatpush1.msra.mxu0 0.0
  %7676 = vmatprep.subr.mxu0 0.0
  %7677 = vmatpush1.msra.mxu0 0.0
  %7678 = vmatprep.subr.mxu0 0.0
  %7679 = vmatpush1.msra.mxu0 0.0
  %7680 = vmatprep.subr.mxu0 0.0
  %7681 = vmatpush1.msra.mxu0 0.0
  %7682 = vmatprep.subr.mxu0 0.0
  %7683 = vmatpush1.msra.mxu0 0.0
  %7684 = vmatprep.subr.mxu0 0.0
  %7685 = vmatpush1.msra.mxu0 0.0
  %7686 = vmatprep.subr.mxu0 0.0
  %7687 = vmatpush1.msra.mxu0 0.0
  %7688 = vmatprep.subr.mxu0 0.0
  %7689 = vmatpush1.msra.mxu0 0.0
  %7690 = vmatprep.subr.mxu0 0.0
  %7691 = vmatpush1.msra.mxu0 0.0
  %7692 = vmatprep.subr.mxu0 0.0
  %7693 = vmatpush1.msra.mxu0 0.0
  %7694 = vmatprep.subr.mxu0 0.0
  %7695 = vmatpush1.msra.mxu0 %v7613
  %7696 = vmatprep.subr.mxu0 0.0
  %7697 = vmatpush1.msra.mxu0 %v7612
  %7698 = vmatprep.subr.mxu0 0.0
  %7699 = vmatpush1.msra.mxu0 %v7611
  %7700 = vmatprep.subr.mxu0 0.0
  %7701 = vmatpush1.msra.mxu0 %v7610
  %7702 = vmatprep.subr.mxu0 0.0
  %7703 = vmatpush2.msra.mxu0 0.0
  %7704 = vmatprep.subr.mxu0 0.0
  %7705 = vmatpush2.msra.mxu0 0.0
  %7706 = vmatprep.subr.mxu0 0.0
  %7707 = vmatpush2.msra.mxu0 0.0
  %7708 = vmatprep.subr.mxu0 0.0
  %7709 = vmatpush2.msra.mxu0 0.0
  %7710 = vmatprep.subr.mxu0 0.0
  %7711 = vmatpush2.msra.mxu0 0.0
  %7712 = vmatprep.subr.mxu0 0.0
  %7713 = vmatpush2.msra.mxu0 0.0
  %7714 = vmatprep.subr.mxu0 0.0
  %7715 = vmatpush2.msra.mxu0 0.0
  %7716 = vmatprep.subr.mxu0 0.0
  %7717 = vmatpush2.msra.mxu0 0.0
  %7718 = vmatprep.subr.mxu0 0.0
  %7719 = vmatpush2.msra.mxu0 0.0
  %7720 = vmatprep.subr.mxu0 0.0
  %7721 = vmatpush2.msra.mxu0 0.0
  %7722 = vmatprep.subr.mxu0 0.0
  %7723 = vmatpush2.msra.mxu0 0.0
  %7724 = vmatprep.subr.mxu0 0.0
  %7725 = vmatpush2.msra.mxu0 0.0
  %7726 = vmatprep.subr.mxu0 0.0
  %7727 = vmatpush2.msra.mxu0 0.0
  %7728 = vmatprep.subr.mxu0 0.0
  %7729 = vmatpush2.msra.mxu0 0.0
  %7730 = vmatprep.subr.mxu0 0.0
  %7731 = vmatpush2.msra.mxu0 0.0
  %7732 = vmatprep.subr.mxu0 0.0
  %7733 = vmatpush2.msra.mxu0 0.0
  %7734 = vmatprep.mubr.f32.mxu0 0.0
  %7735 = vmatmul.mubr.f32.gmra.mxu0 %v7623
  %v7736 = vpop.f32.mrf.mxu0
  %v7737 = vadd.f32 %v7620, %v7736
  %v7738 = vpop.f32.mrf.mxu0
  %7739 = vmatprep.mubr.f32.mxu0 0.0
  %7740 = vmatmul.mubr.f32.gmra.mxu0 %v7626
  %v7741 = vpop.f32.mrf.mxu0
  %v7742 = vadd.f32 %v7620, %v7741
  %v7743 = vpop.f32.mrf.mxu0
  %7744 = vmatprep.mubr.f32.mxu0 0.0
  %7745 = vmatmul.mubr.f32.gmra.mxu0 %v7629
  %v7746 = vpop.f32.mrf.mxu0
  %v7747 = vadd.f32 %v7620, %v7746
  %v7748 = vpop.f32.mrf.mxu0
  %7749 = vmatprep.mubr.f32.mxu0 0.0
  %7750 = vmatmul.mubr.f32.gmra.mxu0 %v7632
  %v7751 = vpop.f32.mrf.mxu0
  %v7752 = vadd.f32 %v7620, %v7751
  %v7753 = vpop.f32.mrf.mxu0
  %7754 = vmatprep.mubr.f32.mxu0 0.0
  %7755 = vmatmul.mubr.f32.gmra.mxu0 %v7635
  %v7756 = vpop.f32.mrf.mxu0
  %v7757 = vadd.f32 %v7620, %v7756
  %v7758 = vpop.f32.mrf.mxu0
  %7759 = vmatprep.mubr.f32.mxu0 0.0
  %7760 = vmatmul.mubr.f32.gmra.mxu0 %v7638
  %v7761 = vpop.f32.mrf.mxu0
  %v7762 = vadd.f32 %v7620, %v7761
  %v7763 = vpop.f32.mrf.mxu0
  %7764 = vmatprep.mubr.f32.mxu0 0.0
  %7765 = vmatmul.mubr.f32.gmra.mxu0 %v7641
  %v7766 = vpop.f32.mrf.mxu0
  %v7767 = vadd.f32 %v7620, %v7766
  %v7768 = vpop.f32.mrf.mxu0
  %7769 = vmatprep.mubr.f32.mxu0 0.0
  %7770 = vmatmul.mubr.f32.gmra.mxu0 %v7644
  %v7771 = vpop.f32.mrf.mxu0
  %v7772 = vadd.f32 %v7620, %v7771
  %v7773 = vpop.f32.mrf.mxu0
  %7774 = vmatprep.mubr.f32.mxu0 0.0
  %7775 = vmatmul.mubr.f32.gmra.mxu0 %v7647
  %v7776 = vpop.f32.mrf.mxu0
  %v7777 = vadd.f32 %v7620, %v7776
  %v7778 = vpop.f32.mrf.mxu0
  %7779 = vmatprep.mubr.f32.mxu0 0.0
  %7780 = vmatmul.mubr.f32.gmra.mxu0 %v7650
  %v7781 = vpop.f32.mrf.mxu0
  %v7782 = vadd.f32 %v7620, %v7781
  %v7783 = vpop.f32.mrf.mxu0
  %7784 = vmatprep.mubr.f32.mxu0 0.0
  %7785 = vmatmul.mubr.f32.gmra.mxu0 %v7653
  %v7786 = vpop.f32.mrf.mxu0
  %v7787 = vadd.f32 %v7620, %v7786
  %v7788 = vpop.f32.mrf.mxu0
  %7789 = vmatprep.mubr.f32.mxu0 0.0
  %7790 = vmatmul.mubr.f32.gmra.mxu0 %v7656
  %v7791 = vpop.f32.mrf.mxu0
  %v7792 = vadd.f32 %v7620, %v7791
  %v7793 = vpop.f32.mrf.mxu0
  %7794 = vmatprep.mubr.f32.mxu0 0.0
  %7795 = vmatmul.mubr.f32.gmra.mxu0 %v7659
  %v7796 = vpop.f32.mrf.mxu0
  %v7797 = vadd.f32 %v7620, %v7796
  %v7798 = vpop.f32.mrf.mxu0
  %7799 = vmatprep.mubr.f32.mxu0 0.0
  %7800 = vmatmul.mubr.f32.gmra.mxu0 %v7662
  %v7801 = vpop.f32.mrf.mxu0
  %v7802 = vadd.f32 %v7620, %v7801
  %v7803 = vpop.f32.mrf.mxu0
  %7804 = vmatprep.mubr.f32.mxu0 0.0
  %7805 = vmatmul.mubr.f32.gmra.mxu0 %v7665
  %v7806 = vpop.f32.mrf.mxu0
  %v7807 = vadd.f32 %v7620, %v7806
  %v7808 = vpop.f32.mrf.mxu0
  %7809 = vmatprep.mubr.f32.mxu0 0.0
  %7810 = vmatmul.mubr.f32.gmra.mxu0 %v7668
  %v7811 = vpop.f32.mrf.mxu0
  %v7812 = vadd.f32 %v7620, %v7811
  %v7813 = vpop.f32.mrf.mxu0
  %7814 = vdwg.mxu0
  %v7815 = vmax.f32 %v7737, 0.0
  %v7816 = vmax.f32 %v7742, 0.0
  %v7817 = vmax.f32 %v7747, 0.0
  %v7818 = vmax.f32 %v7752, 0.0
  %v7819 = vmax.f32 %v7757, 0.0
  %v7820 = vmax.f32 %v7762, 0.0
  %v7821 = vmax.f32 %v7767, 0.0
  %v7822 = vmax.f32 %v7772, 0.0
  %v7823 = vmax.f32 %v7777, 0.0
  %v7824 = vmax.f32 %v7782, 0.0
  %v7825 = vmax.f32 %v7787, 0.0
  %v7826 = vmax.f32 %v7792, 0.0
  %v7827 = vmax.f32 %v7797, 0.0
  %v7828 = vmax.f32 %v7802, 0.0
  %v7829 = vmax.f32 %v7807, 0.0
  %v7830 = vmax.f32 %v7812, 0.0
  %s7831 = scalar_lea.vmem %s10, 128
  %v7832 = vld [vmem:[%s7831] sm:$0xff]
  %v7833 = vld [vmem:[%s7831 + $0x8] sm:$0xff]
  %v7834 = vld [vmem:[%s7831 + $0x10] sm:$0xff]
  %v7835 = vld [vmem:[%s7831 + $0x18] sm:$0xff]
  %v7836 = vld [vmem:[%s7831 + $0x20] sm:$0xff]
  %v7837 = vld [vmem:[%s7831 + $0x28] sm:$0xff]
  %v7838 = vld [vmem:[%s7831 + $0x30] sm:$0xff]
  %v7839 = vld [vmem:[%s7831 + $0x38] sm:$0xff]
  %v7840 = vld [vmem:[%s7831 + $0x40] sm:$0xff]
  %v7841 = vld [vmem:[%s7831 + $0x48] sm:$0xff]
  %v7842 = vld [vmem:[%s7831 + $0x50] sm:$0xff]
  %v7843 = vld [vmem:[%s7831 + $0x58] sm:$0xff]
  %v7844 = vld [vmem:[%s7831 + $0x60] sm:$0xff]
  %v7845 = vld [vmem:[%s7831 + $0x68] sm:$0xff]
  %v7846 = vld [vmem:[%s7831 + $0x70] sm:$0xff]
  %v7847 = vld [vmem:[%s7831 + $0x78] sm:$0xff]
  %s7848 = scalar_lea.vmem %s11, 1
  %v7849 = vld [vmem:[%s7848] sm:$0x1]
  %v7851 = vlaneseq
  %v7852 = vshrl.u32 %v7851, 7
  %v7853 = vsub.s32 0, %v7852
  %v7854 = vrot.slane %v7849, %v7853
  %7856 = vmatprep.subr.mxu0 0.0
  %7857 = vmatpush1.msra.mxu0 %v7847
  %7858 = vmatprep.subr.mxu0 0.0
  %7859 = vmatpush1.msra.mxu0 %v7846
  %7860 = vmatprep.subr.mxu0 0.0
  %7861 = vmatpush1.msra.mxu0 %v7845
  %7862 = vmatprep.subr.mxu0 0.0
  %7863 = vmatpush1.msra.mxu0 %v7844
  %7864 = vmatprep.subr.mxu0 0.0
  %7865 = vmatpush1.msra.mxu0 %v7843
  %7866 = vmatprep.subr.mxu0 0.0
  %7867 = vmatpush1.msra.mxu0 %v7842
  %7868 = vmatprep.subr.mxu0 0.0
  %7869 = vmatpush1.msra.mxu0 %v7841
  %7870 = vmatprep.subr.mxu0 0.0
  %7871 = vmatpush1.msra.mxu0 %v7840
  %7872 = vmatprep.subr.mxu0 0.0
  %7873 = vmatpush1.msra.mxu0 %v7839
  %7874 = vmatprep.subr.mxu0 0.0
  %7875 = vmatpush1.msra.mxu0 %v7838
  %7876 = vmatprep.subr.mxu0 0.0
  %7877 = vmatpush1.msra.mxu0 %v7837
  %7878 = vmatprep.subr.mxu0 0.0
  %7879 = vmatpush1.msra.mxu0 %v7836
  %7880 = vmatprep.subr.mxu0 0.0
  %7881 = vmatpush1.msra.mxu0 %v7835
  %7882 = vmatprep.subr.mxu0 0.0
  %7883 = vmatpush1.msra.mxu0 %v7834
  %7884 = vmatprep.subr.mxu0 0.0
  %7885 = vmatpush1.msra.mxu0 %v7833
  %7886 = vmatprep.subr.mxu0 0.0
  %7887 = vmatpush1.msra.mxu0 %v7832
  %7888 = vmatprep.subr.mxu0 0.0
  %7889 = vmatpush2.msra.mxu0 0.0
  %7890 = vmatprep.subr.mxu0 0.0
  %7891 = vmatpush2.msra.mxu0 0.0
  %7892 = vmatprep.subr.mxu0 0.0
  %7893 = vmatpush2.msra.mxu0 0.0
  %7894 = vmatprep.subr.mxu0 0.0
  %7895 = vmatpush2.msra.mxu0 0.0
  %7896 = vmatprep.subr.mxu0 0.0
  %7897 = vmatpush2.msra.mxu0 0.0
  %7898 = vmatprep.subr.mxu0 0.0
  %7899 = vmatpush2.msra.mxu0 0.0
  %7900 = vmatprep.subr.mxu0 0.0
  %7901 = vmatpush2.msra.mxu0 0.0
  %7902 = vmatprep.subr.mxu0 0.0
  %7903 = vmatpush2.msra.mxu0 0.0
  %7904 = vmatprep.subr.mxu0 0.0
  %7905 = vmatpush2.msra.mxu0 0.0
  %7906 = vmatprep.subr.mxu0 0.0
  %7907 = vmatpush2.msra.mxu0 0.0
  %7908 = vmatprep.subr.mxu0 0.0
  %7909 = vmatpush2.msra.mxu0 0.0
  %7910 = vmatprep.subr.mxu0 0.0
  %7911 = vmatpush2.msra.mxu0 0.0
  %7912 = vmatprep.subr.mxu0 0.0
  %7913 = vmatpush2.msra.mxu0 0.0
  %7914 = vmatprep.subr.mxu0 0.0
  %7915 = vmatpush2.msra.mxu0 0.0
  %7916 = vmatprep.subr.mxu0 0.0
  %7917 = vmatpush2.msra.mxu0 0.0
  %7918 = vmatprep.subr.mxu0 0.0
  %7919 = vmatpush2.msra.mxu0 0.0
  %7920 = vmatprep.mubr.f32.mxu0 0.0
  %7921 = vmatmul.mubr.f32.gmra.mxu0 %v7815
  %v7922 = vpop.f32.mrf.mxu0
  %v7923 = vadd.f32 %v7854, %v7922
  %v7924 = vpop.f32.mrf.mxu0
  %7925 = vmatprep.mubr.f32.mxu0 0.0
  %7926 = vmatmul.mubr.f32.gmra.mxu0 %v7816
  %v7927 = vpop.f32.mrf.mxu0
  %v7928 = vadd.f32 %v7854, %v7927
  %v7929 = vpop.f32.mrf.mxu0
  %7930 = vmatprep.mubr.f32.mxu0 0.0
  %7931 = vmatmul.mubr.f32.gmra.mxu0 %v7817
  %v7932 = vpop.f32.mrf.mxu0
  %v7933 = vadd.f32 %v7854, %v7932
  %v7934 = vpop.f32.mrf.mxu0
  %7935 = vmatprep.mubr.f32.mxu0 0.0
  %7936 = vmatmul.mubr.f32.gmra.mxu0 %v7818
  %v7937 = vpop.f32.mrf.mxu0
  %v7938 = vadd.f32 %v7854, %v7937
  %v7939 = vpop.f32.mrf.mxu0
  %7940 = vmatprep.mubr.f32.mxu0 0.0
  %7941 = vmatmul.mubr.f32.gmra.mxu0 %v7819
  %v7942 = vpop.f32.mrf.mxu0
  %v7943 = vadd.f32 %v7854, %v7942
  %v7944 = vpop.f32.mrf.mxu0
  %7945 = vmatprep.mubr.f32.mxu0 0.0
  %7946 = vmatmul.mubr.f32.gmra.mxu0 %v7820
  %v7947 = vpop.f32.mrf.mxu0
  %v7948 = vadd.f32 %v7854, %v7947
  %v7949 = vpop.f32.mrf.mxu0
  %7950 = vmatprep.mubr.f32.mxu0 0.0
  %7951 = vmatmul.mubr.f32.gmra.mxu0 %v7821
  %v7952 = vpop.f32.mrf.mxu0
  %v7953 = vadd.f32 %v7854, %v7952
  %v7954 = vpop.f32.mrf.mxu0
  %7955 = vmatprep.mubr.f32.mxu0 0.0
  %7956 = vmatmul.mubr.f32.gmra.mxu0 %v7822
  %v7957 = vpop.f32.mrf.mxu0
  %v7958 = vadd.f32 %v7854, %v7957
  %v7959 = vpop.f32.mrf.mxu0
  %7960 = vmatprep.mubr.f32.mxu0 0.0
  %7961 = vmatmul.mubr.f32.gmra.mxu0 %v7823
  %v7962 = vpop.f32.mrf.mxu0
  %v7963 = vadd.f32 %v7854, %v7962
  %v7964 = vpop.f32.mrf.mxu0
  %7965 = vmatprep.mubr.f32.mxu0 0.0
  %7966 = vmatmul.mubr.f32.gmra.mxu0 %v7824
  %v7967 = vpop.f32.mrf.mxu0
  %v7968 = vadd.f32 %v7854, %v7967
  %v7969 = vpop.f32.mrf.mxu0
  %7970 = vmatprep.mubr.f32.mxu0 0.0
  %7971 = vmatmul.mubr.f32.gmra.mxu0 %v7825
  %v7972 = vpop.f32.mrf.mxu0
  %v7973 = vadd.f32 %v7854, %v7972
  %v7974 = vpop.f32.mrf.mxu0
  %7975 = vmatprep.mubr.f32.mxu0 0.0
  %7976 = vmatmul.mubr.f32.gmra.mxu0 %v7826
  %v7977 = vpop.f32.mrf.mxu0
  %v7978 = vadd.f32 %v7854, %v7977
  %v7979 = vpop.f32.mrf.mxu0
  %7980 = vmatprep.mubr.f32.mxu0 0.0
  %7981 = vmatmul.mubr.f32.gmra.mxu0 %v7827
  %v7982 = vpop.f32.mrf.mxu0
  %v7983 = vadd.f32 %v7854, %v7982
  %v7984 = vpop.f32.mrf.mxu0
  %7985 = vmatprep.mubr.f32.mxu0 0.0
  %7986 = vmatmul.mubr.f32.gmra.mxu0 %v7828
  %v7987 = vpop.f32.mrf.mxu0
  %v7988 = vadd.f32 %v7854, %v7987
  %v7989 = vpop.f32.mrf.mxu0
  %7990 = vmatprep.mubr.f32.mxu0 0.0
  %7991 = vmatmul.mubr.f32.gmra.mxu0 %v7829
  %v7992 = vpop.f32.mrf.mxu0
  %v7993 = vadd.f32 %v7854, %v7992
  %v7994 = vpop.f32.mrf.mxu0
  %7995 = vmatprep.mubr.f32.mxu0 0.0
  %7996 = vmatmul.mubr.f32.gmra.mxu0 %v7830
  %v7997 = vpop.f32.mrf.mxu0
  %v7998 = vadd.f32 %v7854, %v7997
  %v7999 = vpop.f32.mrf.mxu0
  %8000 = vdwg.mxu0
  %v8001 = vadd.f32 %v7593, %v7923
  %v8002 = vadd.f32 %v7594, %v7928
  %v8003 = vadd.f32 %v7595, %v7933
  %v8004 = vadd.f32 %v7596, %v7938
  %v8005 = vadd.f32 %v7597, %v7943
  %v8006 = vadd.f32 %v7598, %v7948
  %v8007 = vadd.f32 %v7599, %v7953
  %v8008 = vadd.f32 %v7600, %v7958
  %v8009 = vadd.f32 %v7601, %v7963
  %v8010 = vadd.f32 %v7602, %v7968
  %v8011 = vadd.f32 %v7603, %v7973
  %v8012 = vadd.f32 %v7604, %v7978
  %v8013 = vadd.f32 %v7605, %v7983
  %v8014 = vadd.f32 %v7606, %v7988
  %v8015 = vadd.f32 %v7607, %v7993
  %v8016 = vadd.f32 %v7608, %v7998
  %s8017 = scalar_lea.vmem %s12, 1
  %v8018 = vld [vmem:[%s8017] sm:$0x1]
  %s8019 = scalar_lea.vmem %s13, 1
  %v8020 = vld [vmem:[%s8019] sm:$0x1]
  %v8021 = vsel %vm74, %v8001, 0.0
  %8022 = vadd.xlane.f32.xlu0 %v8021
  %v8023 = vpop.xlane.xlu0 %8022
  %v8024 = vsel %vm74, %v8002, 0.0
  %8025 = vadd.xlane.f32.xlu0 %v8024
  %v8026 = vpop.xlane.xlu0 %8025
  %v8027 = vsel %vm74, %v8003, 0.0
  %8028 = vadd.xlane.f32.xlu0 %v8027
  %v8029 = vpop.xlane.xlu0 %8028
  %v8030 = vsel %vm74, %v8004, 0.0
  %8031 = vadd.xlane.f32.xlu0 %v8030
  %v8032 = vpop.xlane.xlu0 %8031
  %v8033 = vsel %vm74, %v8005, 0.0
  %8034 = vadd.xlane.f32.xlu0 %v8033
  %v8035 = vpop.xlane.xlu0 %8034
  %v8036 = vsel %vm74, %v8006, 0.0
  %8037 = vadd.xlane.f32.xlu0 %v8036
  %v8038 = vpop.xlane.xlu0 %8037
  %v8039 = vsel %vm74, %v8007, 0.0
  %8040 = vadd.xlane.f32.xlu0 %v8039
  %v8041 = vpop.xlane.xlu0 %8040
  %v8042 = vsel %vm74, %v8008, 0.0
  %8043 = vadd.xlane.f32.xlu0 %v8042
  %v8044 = vpop.xlane.xlu0 %8043
  %v8045 = vsel %vm74, %v8009, 0.0
  %8046 = vadd.xlane.f32.xlu0 %v8045
  %v8047 = vpop.xlane.xlu0 %8046
  %v8048 = vsel %vm74, %v8010, 0.0
  %8049 = vadd.xlane.f32.xlu0 %v8048
  %v8050 = vpop.xlane.xlu0 %8049
  %v8051 = vsel %vm74, %v8011, 0.0
  %8052 = vadd.xlane.f32.xlu0 %v8051
  %v8053 = vpop.xlane.xlu0 %8052
  %v8054 = vsel %vm74, %v8012, 0.0
  %8055 = vadd.xlane.f32.xlu0 %v8054
  %v8056 = vpop.xlane.xlu0 %8055
  %v8057 = vsel %vm74, %v8013, 0.0
  %8058 = vadd.xlane.f32.xlu0 %v8057
  %v8059 = vpop.xlane.xlu0 %8058
  %v8060 = vsel %vm74, %v8014, 0.0
  %8061 = vadd.xlane.f32.xlu0 %v8060
  %v8062 = vpop.xlane.xlu0 %8061
  %v8063 = vsel %vm74, %v8015, 0.0
  %8064 = vadd.xlane.f32.xlu0 %v8063
  %v8065 = vpop.xlane.xlu0 %8064
  %v8066 = vsel %vm74, %v8016, 0.0
  %8067 = vadd.xlane.f32.xlu0 %v8066
  %v8068 = vpop.xlane.xlu0 %8067
  %v8069 = vmul.f32 %v8023, %v3302
  %v8070 = vmul.f32 %v8026, %v3302
  %v8071 = vmul.f32 %v8029, %v3302
  %v8072 = vmul.f32 %v8032, %v3302
  %v8073 = vmul.f32 %v8035, %v3302
  %v8074 = vmul.f32 %v8038, %v3302
  %v8075 = vmul.f32 %v8041, %v3302
  %v8076 = vmul.f32 %v8044, %v3302
  %v8077 = vmul.f32 %v8047, %v3302
  %v8078 = vmul.f32 %v8050, %v3302
  %v8079 = vmul.f32 %v8053, %v3302
  %v8080 = vmul.f32 %v8056, %v3302
  %v8081 = vmul.f32 %v8059, %v3302
  %v8082 = vmul.f32 %v8062, %v3302
  %v8083 = vmul.f32 %v8065, %v3302
  %v8084 = vmul.f32 %v8068, %v3302
  %v8085 = vsub.f32 %v8001, %v8069
  %v8086 = vsub.f32 %v8002, %v8070
  %v8087 = vsub.f32 %v8003, %v8071
  %v8088 = vsub.f32 %v8004, %v8072
  %v8089 = vsub.f32 %v8005, %v8073
  %v8090 = vsub.f32 %v8006, %v8074
  %v8091 = vsub.f32 %v8007, %v8075
  %v8092 = vsub.f32 %v8008, %v8076
  %v8093 = vsub.f32 %v8009, %v8077
  %v8094 = vsub.f32 %v8010, %v8078
  %v8095 = vsub.f32 %v8011, %v8079
  %v8096 = vsub.f32 %v8012, %v8080
  %v8097 = vsub.f32 %v8013, %v8081
  %v8098 = vsub.f32 %v8014, %v8082
  %v8099 = vsub.f32 %v8015, %v8083
  %v8100 = vsub.f32 %v8016, %v8084
  %v8101 = vmul.f32 %v8085, %v8085
  %v8102 = vmul.f32 %v8086, %v8086
  %v8103 = vmul.f32 %v8087, %v8087
  %v8104 = vmul.f32 %v8088, %v8088
  %v8105 = vmul.f32 %v8089, %v8089
  %v8106 = vmul.f32 %v8090, %v8090
  %v8107 = vmul.f32 %v8091, %v8091
  %v8108 = vmul.f32 %v8092, %v8092
  %v8109 = vmul.f32 %v8093, %v8093
  %v8110 = vmul.f32 %v8094, %v8094
  %v8111 = vmul.f32 %v8095, %v8095
  %v8112 = vmul.f32 %v8096, %v8096
  %v8113 = vmul.f32 %v8097, %v8097
  %v8114 = vmul.f32 %v8098, %v8098
  %v8115 = vmul.f32 %v8099, %v8099
  %v8116 = vmul.f32 %v8100, %v8100
  %v8117 = vsel %vm74, %v8101, 0.0
  %8118 = vadd.xlane.f32.xlu0 %v8117
  %v8119 = vpop.xlane.xlu0 %8118
  %v8120 = vsel %vm74, %v8102, 0.0
  %8121 = vadd.xlane.f32.xlu0 %v8120
  %v8122 = vpop.xlane.xlu0 %8121
  %v8123 = vsel %vm74, %v8103, 0.0
  %8124 = vadd.xlane.f32.xlu0 %v8123
  %v8125 = vpop.xlane.xlu0 %8124
  %v8126 = vsel %vm74, %v8104, 0.0
  %8127 = vadd.xlane.f32.xlu0 %v8126
  %v8128 = vpop.xlane.xlu0 %8127
  %v8129 = vsel %vm74, %v8105, 0.0
  %8130 = vadd.xlane.f32.xlu0 %v8129
  %v8131 = vpop.xlane.xlu0 %8130
  %v8132 = vsel %vm74, %v8106, 0.0
  %8133 = vadd.xlane.f32.xlu0 %v8132
  %v8134 = vpop.xlane.xlu0 %8133
  %v8135 = vsel %vm74, %v8107, 0.0
  %8136 = vadd.xlane.f32.xlu0 %v8135
  %v8137 = vpop.xlane.xlu0 %8136
  %v8138 = vsel %vm74, %v8108, 0.0
  %8139 = vadd.xlane.f32.xlu0 %v8138
  %v8140 = vpop.xlane.xlu0 %8139
  %v8141 = vsel %vm74, %v8109, 0.0
  %8142 = vadd.xlane.f32.xlu0 %v8141
  %v8143 = vpop.xlane.xlu0 %8142
  %v8144 = vsel %vm74, %v8110, 0.0
  %8145 = vadd.xlane.f32.xlu0 %v8144
  %v8146 = vpop.xlane.xlu0 %8145
  %v8147 = vsel %vm74, %v8111, 0.0
  %8148 = vadd.xlane.f32.xlu0 %v8147
  %v8149 = vpop.xlane.xlu0 %8148
  %v8150 = vsel %vm74, %v8112, 0.0
  %8151 = vadd.xlane.f32.xlu0 %v8150
  %v8152 = vpop.xlane.xlu0 %8151
  %v8153 = vsel %vm74, %v8113, 0.0
  %8154 = vadd.xlane.f32.xlu0 %v8153
  %v8155 = vpop.xlane.xlu0 %8154
  %v8156 = vsel %vm74, %v8114, 0.0
  %8157 = vadd.xlane.f32.xlu0 %v8156
  %v8158 = vpop.xlane.xlu0 %8157
  %v8159 = vsel %vm74, %v8115, 0.0
  %8160 = vadd.xlane.f32.xlu0 %v8159
  %v8161 = vpop.xlane.xlu0 %8160
  %v8162 = vsel %vm74, %v8116, 0.0
  %8163 = vadd.xlane.f32.xlu0 %v8162
  %v8164 = vpop.xlane.xlu0 %8163
  %v8165 = vmul.f32 %v8119, %v3302
  %v8166 = vmul.f32 %v8122, %v3302
  %v8167 = vmul.f32 %v8125, %v3302
  %v8168 = vmul.f32 %v8128, %v3302
  %v8169 = vmul.f32 %v8131, %v3302
  %v8170 = vmul.f32 %v8134, %v3302
  %v8171 = vmul.f32 %v8137, %v3302
  %v8172 = vmul.f32 %v8140, %v3302
  %v8173 = vmul.f32 %v8143, %v3302
  %v8174 = vmul.f32 %v8146, %v3302
  %v8175 = vmul.f32 %v8149, %v3302
  %v8176 = vmul.f32 %v8152, %v3302
  %v8177 = vmul.f32 %v8155, %v3302
  %v8178 = vmul.f32 %v8158, %v3302
  %v8179 = vmul.f32 %v8161, %v3302
  %v8180 = vmul.f32 %v8164, %v3302
  %v8181 = vadd.f32 %v8165, 1e-05
  %v8182 = vadd.f32 %v8166, 1e-05
  %v8183 = vadd.f32 %v8167, 1e-05
  %v8184 = vadd.f32 %v8168, 1e-05
  %v8185 = vadd.f32 %v8169, 1e-05
  %v8186 = vadd.f32 %v8170, 1e-05
  %v8187 = vadd.f32 %v8171, 1e-05
  %v8188 = vadd.f32 %v8172, 1e-05
  %v8189 = vadd.f32 %v8173, 1e-05
  %v8190 = vadd.f32 %v8174, 1e-05
  %v8191 = vadd.f32 %v8175, 1e-05
  %v8192 = vadd.f32 %v8176, 1e-05
  %v8193 = vadd.f32 %v8177, 1e-05
  %v8194 = vadd.f32 %v8178, 1e-05
  %v8195 = vadd.f32 %v8179, 1e-05
  %v8196 = vadd.f32 %v8180, 1e-05
  %v8197 = vrsqrt.pop %v8181
  %v8198 = vrsqrt.pop %v8182
  %v8199 = vrsqrt.pop %v8183
  %v8200 = vrsqrt.pop %v8184
  %v8201 = vrsqrt.pop %v8185
  %v8202 = vrsqrt.pop %v8186
  %v8203 = vrsqrt.pop %v8187
  %v8204 = vrsqrt.pop %v8188
  %v8205 = vrsqrt.pop %v8189
  %v8206 = vrsqrt.pop %v8190
  %v8207 = vrsqrt.pop %v8191
  %v8208 = vrsqrt.pop %v8192
  %v8209 = vrsqrt.pop %v8193
  %v8210 = vrsqrt.pop %v8194
  %v8211 = vrsqrt.pop %v8195
  %v8212 = vrsqrt.pop %v8196
  %v8213 = vmul.f32 %v8085, %v8197
  %v8214 = vmul.f32 %v8086, %v8198
  %v8215 = vmul.f32 %v8087, %v8199
  %v8216 = vmul.f32 %v8088, %v8200
  %v8217 = vmul.f32 %v8089, %v8201
  %v8218 = vmul.f32 %v8090, %v8202
  %v8219 = vmul.f32 %v8091, %v8203
  %v8220 = vmul.f32 %v8092, %v8204
  %v8221 = vmul.f32 %v8093, %v8205
  %v8222 = vmul.f32 %v8094, %v8206
  %v8223 = vmul.f32 %v8095, %v8207
  %v8224 = vmul.f32 %v8096, %v8208
  %v8225 = vmul.f32 %v8097, %v8209
  %v8226 = vmul.f32 %v8098, %v8210
  %v8227 = vmul.f32 %v8099, %v8211
  %v8228 = vmul.f32 %v8100, %v8212
  %v8230 = vlaneseq
  %v8231 = vshrl.u32 %v8230, 7
  %v8232 = vsub.s32 0, %v8231
  %v8233 = vrot.slane %v8018, %v8232
  %v8235 = vmul.f32 %v8213, %v8233
  %v8236 = vmul.f32 %v8214, %v8233
  %v8237 = vmul.f32 %v8215, %v8233
  %v8238 = vmul.f32 %v8216, %v8233
  %v8239 = vmul.f32 %v8217, %v8233
  %v8240 = vmul.f32 %v8218, %v8233
  %v8241 = vmul.f32 %v8219, %v8233
  %v8242 = vmul.f32 %v8220, %v8233
  %v8243 = vmul.f32 %v8221, %v8233
  %v8244 = vmul.f32 %v8222, %v8233
  %v8245 = vmul.f32 %v8223, %v8233
  %v8246 = vmul.f32 %v8224, %v8233
  %v8247 = vmul.f32 %v8225, %v8233
  %v8248 = vmul.f32 %v8226, %v8233
  %v8249 = vmul.f32 %v8227, %v8233
  %v8250 = vmul.f32 %v8228, %v8233
  %v8252 = vlaneseq
  %v8253 = vshrl.u32 %v8252, 7
  %v8254 = vsub.s32 0, %v8253
  %v8255 = vrot.slane %v8020, %v8254
  %v8257 = vadd.f32 %v8235, %v8255
  %v8258 = vadd.f32 %v8236, %v8255
  %v8259 = vadd.f32 %v8237, %v8255
  %v8260 = vadd.f32 %v8238, %v8255
  %v8261 = vadd.f32 %v8239, %v8255
  %v8262 = vadd.f32 %v8240, %v8255
  %v8263 = vadd.f32 %v8241, %v8255
  %v8264 = vadd.f32 %v8242, %v8255
  %v8265 = vadd.f32 %v8243, %v8255
  %v8266 = vadd.f32 %v8244, %v8255
  %v8267 = vadd.f32 %v8245, %v8255
  %v8268 = vadd.f32 %v8246, %v8255
  %v8269 = vadd.f32 %v8247, %v8255
  %v8270 = vadd.f32 %v8248, %v8255
  %v8271 = vadd.f32 %v8249, %v8255
  %v8272 = vadd.f32 %v8250, %v8255
  %8273 = vst.msk [vmem:[%s14] sm:$0xff] %vm74, %v8257
  %8274 = vst.msk [vmem:[%s14 + $0x8] sm:$0xff] %vm74, %v8258
  %8275 = vst.msk [vmem:[%s14 + $0x10] sm:$0xff] %vm74, %v8259
  %8276 = vst.msk [vmem:[%s14 + $0x18] sm:$0xff] %vm74, %v8260
  %8277 = vst.msk [vmem:[%s14 + $0x20] sm:$0xff] %vm74, %v8261
  %8278 = vst.msk [vmem:[%s14 + $0x28] sm:$0xff] %vm74, %v8262
  %8279 = vst.msk [vmem:[%s14 + $0x30] sm:$0xff] %vm74, %v8263
  %8280 = vst.msk [vmem:[%s14 + $0x38] sm:$0xff] %vm74, %v8264
  %8281 = vst.msk [vmem:[%s14 + $0x40] sm:$0xff] %vm74, %v8265
  %8282 = vst.msk [vmem:[%s14 + $0x48] sm:$0xff] %vm74, %v8266
  %8283 = vst.msk [vmem:[%s14 + $0x50] sm:$0xff] %vm74, %v8267
  %8284 = vst.msk [vmem:[%s14 + $0x58] sm:$0xff] %vm74, %v8268
  %8285 = vst.msk [vmem:[%s14 + $0x60] sm:$0xff] %vm74, %v8269
  %8286 = vst.msk [vmem:[%s14 + $0x68] sm:$0xff] %vm74, %v8270
  %8287 = vst.msk [vmem:[%s14 + $0x70] sm:$0xff] %vm74, %v8271
  %8288 = vst.msk [vmem:[%s14 + $0x78] sm:$0xff] %vm74, %v8272
  // Predicated region
  $region58: #{tpu_custom_call.1} parent=0 // pred_check
    _
  $region59: #{tpu_custom_call.1} parent=0 // pred_check_branch
    %8290 = sbr.rel (0) target = $region61
  $region60: #{tpu_custom_call.1} parent=0 // pred_region
    _
  $region61: #{tpu_custom_call.1} parent=0 // pred_fallthru
    _
  // Predicated region
  $region62: #{tpu_custom_call.1} parent=0 // pred_check
    _
  $region63: #{tpu_custom_call.1} parent=0 // pred_check_branch
    %8292 = sbr.rel (0) target = $region65
  $region64: #{tpu_custom_call.1} parent=0 // pred_region
    _
  $region65: #{tpu_custom_call.1} parent=0 // pred_fallthru
    _

</llo_original>
